<compile_context>
chip_gen: v7x
topology: tpu7x:2x2x1
jax: 0.10.0
libtpu: 0.0.40
codegen_flags: <defaults>
</compile_context>

<pallas_src>
import functools

import jax
import jax.numpy as jnp
from jax.experimental import pallas as pl
from jax.experimental.pallas import tpu as pltpu

# Set to jnp.bfloat16 on v6e / v7x for ~2x MXU + HBM savings (f32 accumulate).
COMPUTE_DTYPE = jnp.float32

_MAX_TM = 512      # max rows per GEMM tile
_SUBLANE = 16      # row padding multiple (valid for f32 and bf16)


def _round_up(v, m):
    return ((v + m - 1) // m) * m


# ----------------------------------------------------------------------------
# Pallas kernel 1: fused  out = relu?(x @ w + b)   (used for the conv GEMMs)
# ----------------------------------------------------------------------------
def _matmul_bias_kernel(x_ref, w_ref, b_ref, o_ref, *, relu):
    acc = jnp.dot(x_ref[...], w_ref[...], preferred_element_type=jnp.float32)
    acc = acc + b_ref[...]                       # b is (1, N) f32, broadcasts over M
    if relu:
        acc = jnp.maximum(acc, 0.0)
    o_ref[...] = acc.astype(o_ref.dtype)


def matmul_bias(x, w, b, *, relu):
    """x: (M, K), w: (K, N), b: (N,) f32 -> (M, N) in x.dtype (f32 accumulate)."""
    M, K = x.shape
    K2, N = w.shape
    assert K == K2

    # N tiling: 128-wide lane tiles when possible, else full (N = 32 / 64 convs).
    if N % 128 == 0 and N > 128:
        tn = 128
    else:
        tn = N
    gn = N // tn

    # M tiling: pad rows to a sublane multiple, split into <= _MAX_TM tiles.
    gm = max(1, -(-M // _MAX_TM))
    tm = _round_up(-(-M // gm), _SUBLANE)
    Mp = gm * tm
    x_p = jnp.pad(x, ((0, Mp - M), (0, 0))) if Mp != M else x

    out = pl.pallas_call(
        functools.partial(_matmul_bias_kernel, relu=relu),
        out_shape=jax.ShapeDtypeStruct((Mp, N), x.dtype),
        grid=(gm, gn),
        in_specs=[
            pl.BlockSpec((tm, K), lambda i, j: (i, 0)),
            pl.BlockSpec((K, tn), lambda i, j: (0, j)),
            pl.BlockSpec((1, tn), lambda i, j: (0, j)),
        ],
        out_specs=pl.BlockSpec((tm, tn), lambda i, j: (i, j)),
        compiler_params=pltpu.CompilerParams(
            dimension_semantics=("parallel", "parallel")),
        cost_estimate=pl.CostEstimate(
            flops=2 * Mp * K * N,
            transcendentals=0,
            bytes_accessed=(x_p.size * x_p.dtype.itemsize
                            + w.size * w.dtype.itemsize
                            + b.size * 4
                            + Mp * N * x.dtype.itemsize)),
    )(x_p, w, b.reshape(1, N).astype(jnp.float32))
    return out[:M] if Mp != M else out


# ----------------------------------------------------------------------------
# Pallas kernel 2: fused fc(3136->512) + ReLU + [actor|critic] heads.
#   final = sum_j relu(x @ fcW[:, j] + fcB[j]) @ headW[j, :]   (+ headB)
# fc N axis (512) is the grid/reduction axis; head output is one lane-dense
# (B, 128) slab accumulated in VMEM.
# ----------------------------------------------------------------------------
def _fc_heads_kernel(x_ref, fcw_ref, fcb_ref, hw_ref, hb_ref, o_ref, acc_ref):
    j = pl.program_id(0)

    @pl.when(j == 0)
    def _init():
        acc_ref[...] = jnp.zeros_like(acc_ref)

    h_blk = jnp.dot(x_ref[...], fcw_ref[...], preferred_element_type=jnp.float32)
    h_blk = jnp.maximum(h_blk + fcb_ref[...], 0.0)
    acc_ref[...] += jnp.dot(h_blk.astype(hw_ref.dtype), hw_ref[...],
                            preferred_element_type=jnp.float32)

    @pl.when(j == pl.num_programs(0) - 1)
    def _finish():
        o_ref[...] = (acc_ref[...] + hb_ref[...]).astype(o_ref.dtype)


def fc_heads(flat, fc_w, fc_b, head_w, head_b):
    """flat:(B,K), fc_w:(K,512), fc_b:(1,512), head_w:(512,Np), head_b:(1,Np)."""
    B, K = flat.shape
    K2, N = fc_w.shape
    assert K == K2 and N % 128 == 0
    Np = head_w.shape[1]
    tn = 128
    gn = N // tn

    return pl.pallas_call(
        _fc_heads_kernel,
        out_shape=jax.ShapeDtypeStruct((B, Np), jnp.float32),
        grid=(gn,),
        in_specs=[
            pl.BlockSpec((B, K), lambda j: (0, 0)),
            pl.BlockSpec((K, tn), lambda j: (0, j)),
            pl.BlockSpec((1, tn), lambda j: (0, j)),
            pl.BlockSpec((tn, Np), lambda j: (j, 0)),
            pl.BlockSpec((1, Np), lambda j: (0, 0)),
        ],
        out_specs=pl.BlockSpec((B, Np), lambda j: (0, 0)),
        scratch_shapes=[pltpu.VMEM((B, Np), jnp.float32)],
        compiler_params=pltpu.CompilerParams(
            dimension_semantics=("arbitrary",)),
        cost_estimate=pl.CostEstimate(
            flops=2 * B * K * N + 2 * B * N * Np,
            transcendentals=0,
            bytes_accessed=(flat.size * flat.dtype.itemsize
                            + fc_w.size * fc_w.dtype.itemsize
                            + fc_b.size * 4
                            + head_w.size * head_w.dtype.itemsize
                            + head_b.size * 4
                            + B * Np * 4)),
    )(flat, fc_w, fc_b, head_w, head_b)


# ----------------------------------------------------------------------------
# Glue: NHWC im2col (strided slices + lane concat only — no transposes)
# ----------------------------------------------------------------------------
def im2col_nhwc(x, kh, kw, stride):
    B, H, W, C = x.shape
    oh = (H - kh) // stride + 1
    ow = (W - kw) // stride + 1
    cols = []
    for i in range(kh):
        for j in range(kw):
            cols.append(x[:, i:i + stride * oh:stride,
                          j:j + stride * ow:stride, :])
    # feature index = (i*kw + j)*C + c  -- matches prepare_params conv weights
    patches = jnp.concatenate(cols, axis=-1)          # (B, oh, ow, kh*kw*C)
    return patches.reshape(B * oh * ow, kh * kw * C), oh, ow


def conv2d_relu_nhwc(x, w_mat, b, *, kh, kw, stride):
    """x: (B,H,W,C) NHWC, w_mat: (kh*kw*C, OC), b: (OC,) -> (B,OH,OW,OC) NHWC."""
    B = x.shape[0]
    OC = w_mat.shape[1]
    patches, oh, ow = im2col_nhwc(x, kh, kw, stride)
    out = matmul_bias(patches, w_mat, b, relu=True)   # (B*oh*ow, OC)
    return out.reshape(B, oh, ow, OC)                 # stays NHWC, no transpose


# ----------------------------------------------------------------------------
# Parameter init in torch layout (deterministic, U(-1/sqrt(fan_in), ...))
# ----------------------------------------------------------------------------
def init_params(key, num_actions, input_shape):
    def uinit(key, fan_in, shape_w, shape_b):
        k1, k2 = jax.random.split(key)
        bound = 1.0 / float(jnp.sqrt(fan_in))
        w = jax.random.uniform(k1, shape_w, jnp.float32, -bound, bound)
        b = jax.random.uniform(k2, shape_b, jnp.float32, -bound, bound)
        return w, b

    C, H, W = input_shape
    ks = jax.random.split(key, 6)
    params = {
        "conv1": uinit(ks[0], C * 8 * 8, (32, C, 8, 8), (32,)),
        "conv2": uinit(ks[1], 32 * 4 * 4, (64, 32, 4, 4), (64,)),
        "conv3": uinit(ks[2], 64 * 3 * 3, (64, 64, 3, 3), (64,)),
    }

    def cout(s, k, st):
        return (s - k) // st + 1

    h = cout(cout(cout(H, 8, 4), 4, 2), 3, 1)
    w = cout(cout(cout(W, 8, 4), 4, 2), 3, 1)
    conv_out_size = 64 * h * w
    params["fc"] = uinit(ks[3], conv_out_size, (512, conv_out_size), (512,))
    params["actor"] = uinit(ks[4], 512, (num_actions, 512), (num_actions,))
    params["critic"] = uinit(ks[5], 512, (1, 512), (1,))
    return params


# ----------------------------------------------------------------------------
# One-time (outside jit) conversion: torch layout -> kernel layout.
# ----------------------------------------------------------------------------
def prepare_params(tp, input_shape, compute_dtype=COMPUTE_DTYPE):
    C, H, W = input_shape

    def cout(s, k, st):
        return (s - k) // st + 1

    h3 = cout(cout(cout(H, 8, 4), 4, 2), 3, 1)
    w3 = cout(cout(cout(W, 8, 4), 4, 2), 3, 1)

    def conv_mat(w):  # (OC, IC, KH, KW) -> (KH*KW*IC, OC), NHWC im2col ordering
        oc, ic, kh, kw = w.shape
        return (jnp.transpose(w, (2, 3, 1, 0))
                .reshape(kh * kw * ic, oc).astype(compute_dtype))

    p = {}
    for name in ("conv1", "conv2", "conv3"):
        w, b = tp[name]
        p[name] = (conv_mat(w), b.astype(jnp.float32))

    # fc: permute input rows from torch's NCHW flatten (c,h,w) to NHWC (h,w,c).
    fc_w, fc_b = tp["fc"]                                  # (512, 64*h3*w3)
    fc_w = (fc_w.reshape(512, 64, h3, w3)
            .transpose(2, 3, 1, 0).reshape(h3 * w3 * 64, 512))
    p["fc_w"] = fc_w.astype(compute_dtype)
    p["fc_b"] = fc_b.reshape(1, 512).astype(jnp.float32)

    # heads: concat actor+critic, transpose to (512, A+1), zero-pad to 128 lanes.
    a_w, a_b = tp["actor"]                                 # (A, 512), (A,)
    c_w, c_b = tp["critic"]                                # (1, 512), (1,)
    hw = jnp.concatenate([a_w, c_w], axis=0).T             # (512, A+1)
    hb = jnp.concatenate([a_b, c_b])                       # (A+1,)
    n_head = hw.shape[1]
    n_pad = _round_up(n_head, 128)
    p["head_w"] = jnp.pad(hw, ((0, 0), (0, n_pad - n_head))).astype(compute_dtype)
    p["head_b"] = jnp.pad(hb, (0, n_pad - n_head)).reshape(1, n_pad).astype(jnp.float32)
    return p


# ----------------------------------------------------------------------------
# Forward pass: matches SharedNetworkA2C.forward
# ----------------------------------------------------------------------------
def shared_network_a2c_forward(params, x, *, num_actions):
    dt = params["conv1"][0].dtype
    # Single NCHW -> NHWC transpose at the input; everything downstream is NHWC.
    x = jnp.transpose(x, (0, 2, 3, 1)).astype(dt)
    x = conv2d_relu_nhwc(x, *params["conv1"], kh=8, kw=8, stride=4)
    x = conv2d_relu_nhwc(x, *params["conv2"], kh=4, kw=4, stride=2)
    x = conv2d_relu_nhwc(x, *params["conv3"], kh=3, kw=3, stride=1)
    B = x.shape[0]
    flat = x.reshape(B, -1)     # NHWC flatten; fc weight rows were pre-permuted

    head = fc_heads(flat, params["fc_w"], params["fc_b"],
                    params["head_w"], params["head_b"])     # (B, 128) lane-dense
    policy_logits = head[:, :num_actions]
    value = head[:, num_actions:num_actions + 1]
    return policy_logits, value


# ----------------------------------------------------------------------------
# Pure-XLA reference (torch-layout params) for a correctness sanity check.
# ----------------------------------------------------------------------------
def reference_forward(tp, x, num_actions):
    hp = jax.lax.Precision.HIGHEST

    def conv(x, w, b, stride):
        y = jax.lax.conv_general_dilated(
            x, w, window_strides=(stride, stride), padding="VALID",
            dimension_numbers=("NCHW", "OIHW", "NCHW"), precision=hp)
        return jax.nn.relu(y + b.reshape(1, -1, 1, 1))

    y = conv(x, *tp["conv1"], 4)
    y = conv(y, *tp["conv2"], 2)
    y = conv(y, *tp["conv3"], 1)
    flat = y.reshape(y.shape[0], -1)
    fc_w, fc_b = tp["fc"]
    h = jax.nn.relu(jnp.dot(flat, fc_w.T, precision=hp) + fc_b)
    a_w, a_b = tp["actor"]
    c_w, c_b = tp["critic"]
    logits = jnp.dot(h, a_w.T, precision=hp) + a_b
    value = jnp.dot(h, c_w.T, precision=hp) + c_b
    return logits, value


if __name__ == "__main__":
    num_actions = 6
    input_shape = (4, 84, 84)     # module default; conv_out_size = 64*7*7 = 3136
    batch = 2

    key = jax.random.PRNGKey(0)
    pkey, xkey = jax.random.split(key)
    torch_params = init_params(pkey, num_actions, input_shape)
    params = prepare_params(torch_params, input_shape)      # one-time re-layout
    x = jax.random.normal(xkey, (batch,) + input_shape, dtype=jnp.float32)

    fwd = jax.jit(shared_network_a2c_forward, static_argnames=("num_actions",))
    policy_logits, value = fwd(params, x, num_actions=num_actions)
    jax.block_until_ready((policy_logits, value))

    assert policy_logits.shape == (batch, num_actions)
    assert value.shape == (batch, 1)

    # Correctness check against a plain XLA reference (f32 compute path only).
    if COMPUTE_DTYPE == jnp.float32:
        ref_logits, ref_value = reference_forward(torch_params, x, num_actions)
        assert jnp.allclose(policy_logits, ref_logits, atol=1e-2, rtol=1e-2)
        assert jnp.allclose(value, ref_value, atol=1e-2, rtol=1e-2)

    print("KERNEL_OK")
</pallas_src>

<mosaic_0001>
module attributes {stable_mosaic.version = 11 : i64} {
  func.func @_matmul_bias_kernel(%arg0: i32, %arg1: i32, %arg2: memref<400x256xf32, #tpu.memory_space<vmem>>, %arg3: memref<256x32xf32, #tpu.memory_space<vmem>>, %arg4: memref<1x32xf32, #tpu.memory_space<vmem>>, %arg5: memref<400x32xf32, #tpu.memory_space<vmem>>) attributes {dimension_semantics = [#tpu.dimension_semantics<parallel>, #tpu.dimension_semantics<parallel>], iteration_bounds = array<i64: 2, 1>, scalar_prefetch = 0 : i64, scratch_operands = 0 : i64, tpu.core_type = #tpu.core_type<tc>, window_params = [{transform_indices = @transform_0, window_bounds = array<i64: 400, 256>}, {transform_indices = @transform_1, window_bounds = array<i64: 256, 32>}, {transform_indices = @transform_2, window_bounds = array<i64: 1, 32>}, {transform_indices = @transform_3, window_bounds = array<i64: 400, 32>}]} {
    %c0 = arith.constant 0 : index
    %c0_0 = arith.constant 0 : index
    %0 = vector.load %arg2[%c0, %c0_0] : memref<400x256xf32, #tpu.memory_space<vmem>>, vector<400x256xf32>
    %c0_1 = arith.constant 0 : index
    %c0_2 = arith.constant 0 : index
    %1 = vector.load %arg3[%c0_1, %c0_2] : memref<256x32xf32, #tpu.memory_space<vmem>>, vector<256x32xf32>
    %cst = arith.constant dense<0.000000e+00> : vector<400x32xf32>
    %2 = tpu.matmul %0, %1, %cst {dimension_numbers = #tpu.dot_dimension_numbers<[1], [0], [0], [1], [0, 0, 1, 1], [], []>} : vector<400x256xf32>, vector<256x32xf32>, vector<400x32xf32> -> vector<400x32xf32>
    %c0_3 = arith.constant 0 : index
    %c0_4 = arith.constant 0 : index
    %3 = vector.load %arg4[%c0_3, %c0_4] : memref<1x32xf32, #tpu.memory_space<vmem>>, vector<1x32xf32>
    %4 = vector.broadcast %3 : vector<1x32xf32> to vector<400x32xf32>
    %5 = arith.addf %2, %4 : vector<400x32xf32>
    %cst_5 = arith.constant 0.000000e+00 : f32
    %6 = vector.broadcast %cst_5 : f32 to vector<400x32xf32>
    %7 = arith.maximumf %5, %6 : vector<400x32xf32>
    %c0_6 = arith.constant 0 : index
    %c0_7 = arith.constant 0 : index
    %8 = vector.load %arg5[%c0_6, %c0_7] : memref<400x32xf32, #tpu.memory_space<vmem>>, vector<400x32xf32>
    tpu.vector_store %arg5[%c0_6, %c0_7], %7 {strides = array<i32>} : memref<400x32xf32, #tpu.memory_space<vmem>>, vector<400x32xf32>,
    return
  }
  func.func @transform_0(%arg0: i32, %arg1: i32) -> (i32, i32) {
    %c0_i32 = arith.constant 0 : i32
    %c0_i32_0 = arith.constant 0 : i32
    return %arg0, %c0_i32 : i32, i32
  }
  func.func @transform_1(%arg0: i32, %arg1: i32) -> (i32, i32) {
    %c0_i32 = arith.constant 0 : i32
    %c0_i32_0 = arith.constant 0 : i32
    return %c0_i32, %arg1 : i32, i32
  }
  func.func @transform_2(%arg0: i32, %arg1: i32) -> (i32, i32) {
    %c0_i32 = arith.constant 0 : i32
    %c0_i32_0 = arith.constant 0 : i32
    return %c0_i32, %arg1 : i32, i32
  }
  func.func @transform_3(%arg0: i32, %arg1: i32) -> (i32, i32) {
    %c0_i32 = arith.constant 0 : i32
    return %arg0, %arg1 : i32, i32
  }
}

module attributes {stable_mosaic.version = 11 : i64} {
  func.func @_matmul_bias_kernel(%arg0: i32, %arg1: i32, %arg2: memref<176x512xf32, #tpu.memory_space<vmem>>, %arg3: memref<512x64xf32, #tpu.memory_space<vmem>>, %arg4: memref<1x64xf32, #tpu.memory_space<vmem>>, %arg5: memref<176x64xf32, #tpu.memory_space<vmem>>) attributes {dimension_semantics = [#tpu.dimension_semantics<parallel>, #tpu.dimension_semantics<parallel>], iteration_bounds = array<i64: 1, 1>, scalar_prefetch = 0 : i64, scratch_operands = 0 : i64, tpu.core_type = #tpu.core_type<tc>, window_params = [{transform_indices = @transform_0, window_bounds = array<i64: 176, 512>}, {transform_indices = @transform_1, window_bounds = array<i64: 512, 64>}, {transform_indices = @transform_2, window_bounds = array<i64: 1, 64>}, {transform_indices = @transform_3, window_bounds = array<i64: 176, 64>}]} {
    %c0 = arith.constant 0 : index
    %c0_0 = arith.constant 0 : index
    %0 = vector.load %arg2[%c0, %c0_0] : memref<176x512xf32, #tpu.memory_space<vmem>>, vector<176x512xf32>
    %c0_1 = arith.constant 0 : index
    %c0_2 = arith.constant 0 : index
    %1 = vector.load %arg3[%c0_1, %c0_2] : memref<512x64xf32, #tpu.memory_space<vmem>>, vector<512x64xf32>
    %cst = arith.constant dense<0.000000e+00> : vector<176x64xf32>
    %2 = tpu.matmul %0, %1, %cst {dimension_numbers = #tpu.dot_dimension_numbers<[1], [0], [0], [1], [0, 0, 1, 1], [], []>} : vector<176x512xf32>, vector<512x64xf32>, vector<176x64xf32> -> vector<176x64xf32>
    %c0_3 = arith.constant 0 : index
    %c0_4 = arith.constant 0 : index
    %3 = vector.load %arg4[%c0_3, %c0_4] : memref<1x64xf32, #tpu.memory_space<vmem>>, vector<1x64xf32>
    %4 = vector.broadcast %3 : vector<1x64xf32> to vector<176x64xf32>
    %5 = arith.addf %2, %4 : vector<176x64xf32>
    %cst_5 = arith.constant 0.000000e+00 : f32
    %6 = vector.broadcast %cst_5 : f32 to vector<176x64xf32>
    %7 = arith.maximumf %5, %6 : vector<176x64xf32>
    %c0_6 = arith.constant 0 : index
    %c0_7 = arith.constant 0 : index
    %8 = vector.load %arg5[%c0_6, %c0_7] : memref<176x64xf32, #tpu.memory_space<vmem>>, vector<176x64xf32>
    tpu.vector_store %arg5[%c0_6, %c0_7], %7 {strides = array<i32>} : memref<176x64xf32, #tpu.memory_space<vmem>>, vector<176x64xf32>,
    return
  }
  func.func @transform_0(%arg0: i32, %arg1: i32) -> (i32, i32) {
    %c0_i32 = arith.constant 0 : i32
    %c0_i32_0 = arith.constant 0 : i32
    return %arg0, %c0_i32 : i32, i32
  }
  func.func @transform_1(%arg0: i32, %arg1: i32) -> (i32, i32) {
    %c0_i32 = arith.constant 0 : i32
    %c0_i32_0 = arith.constant 0 : i32
    return %c0_i32, %arg1 : i32, i32
  }
  func.func @transform_2(%arg0: i32, %arg1: i32) -> (i32, i32) {
    %c0_i32 = arith.constant 0 : i32
    %c0_i32_0 = arith.constant 0 : i32
    return %c0_i32, %arg1 : i32, i32
  }
  func.func @transform_3(%arg0: i32, %arg1: i32) -> (i32, i32) {
    %c0_i32 = arith.constant 0 : i32
    return %arg0, %arg1 : i32, i32
  }
}

module attributes {stable_mosaic.version = 11 : i64} {
  func.func @_matmul_bias_kernel(%arg0: i32, %arg1: i32, %arg2: memref<112x576xf32, #tpu.memory_space<vmem>>, %arg3: memref<576x64xf32, #tpu.memory_space<vmem>>, %arg4: memref<1x64xf32, #tpu.memory_space<vmem>>, %arg5: memref<112x64xf32, #tpu.memory_space<vmem>>) attributes {dimension_semantics = [#tpu.dimension_semantics<parallel>, #tpu.dimension_semantics<parallel>], iteration_bounds = array<i64: 1, 1>, scalar_prefetch = 0 : i64, scratch_operands = 0 : i64, tpu.core_type = #tpu.core_type<tc>, window_params = [{transform_indices = @transform_0, window_bounds = array<i64: 112, 576>}, {transform_indices = @transform_1, window_bounds = array<i64: 576, 64>}, {transform_indices = @transform_2, window_bounds = array<i64: 1, 64>}, {transform_indices = @transform_3, window_bounds = array<i64: 112, 64>}]} {
    %c0 = arith.constant 0 : index
    %c0_0 = arith.constant 0 : index
    %0 = vector.load %arg2[%c0, %c0_0] : memref<112x576xf32, #tpu.memory_space<vmem>>, vector<112x576xf32>
    %c0_1 = arith.constant 0 : index
    %c0_2 = arith.constant 0 : index
    %1 = vector.load %arg3[%c0_1, %c0_2] : memref<576x64xf32, #tpu.memory_space<vmem>>, vector<576x64xf32>
    %cst = arith.constant dense<0.000000e+00> : vector<112x64xf32>
    %2 = tpu.matmul %0, %1, %cst {dimension_numbers = #tpu.dot_dimension_numbers<[1], [0], [0], [1], [0, 0, 1, 1], [], []>} : vector<112x576xf32>, vector<576x64xf32>, vector<112x64xf32> -> vector<112x64xf32>
    %c0_3 = arith.constant 0 : index
    %c0_4 = arith.constant 0 : index
    %3 = vector.load %arg4[%c0_3, %c0_4] : memref<1x64xf32, #tpu.memory_space<vmem>>, vector<1x64xf32>
    %4 = vector.broadcast %3 : vector<1x64xf32> to vector<112x64xf32>
    %5 = arith.addf %2, %4 : vector<112x64xf32>
    %cst_5 = arith.constant 0.000000e+00 : f32
    %6 = vector.broadcast %cst_5 : f32 to vector<112x64xf32>
    %7 = arith.maximumf %5, %6 : vector<112x64xf32>
    %c0_6 = arith.constant 0 : index
    %c0_7 = arith.constant 0 : index
    %8 = vector.load %arg5[%c0_6, %c0_7] : memref<112x64xf32, #tpu.memory_space<vmem>>, vector<112x64xf32>
    tpu.vector_store %arg5[%c0_6, %c0_7], %7 {strides = array<i32>} : memref<112x64xf32, #tpu.memory_space<vmem>>, vector<112x64xf32>,
    return
  }
  func.func @transform_0(%arg0: i32, %arg1: i32) -> (i32, i32) {
    %c0_i32 = arith.constant 0 : i32
    %c0_i32_0 = arith.constant 0 : i32
    return %arg0, %c0_i32 : i32, i32
  }
  func.func @transform_1(%arg0: i32, %arg1: i32) -> (i32, i32) {
    %c0_i32 = arith.constant 0 : i32
    %c0_i32_0 = arith.constant 0 : i32
    return %c0_i32, %arg1 : i32, i32
  }
  func.func @transform_2(%arg0: i32, %arg1: i32) -> (i32, i32) {
    %c0_i32 = arith.constant 0 : i32
    %c0_i32_0 = arith.constant 0 : i32
    return %c0_i32, %arg1 : i32, i32
  }
  func.func @transform_3(%arg0: i32, %arg1: i32) -> (i32, i32) {
    %c0_i32 = arith.constant 0 : i32
    return %arg0, %arg1 : i32, i32
  }
}

module attributes {stable_mosaic.version = 11 : i64} {
  func.func @_fc_heads_kernel(%arg0: i32, %arg1: memref<2x3136xf32, #tpu.memory_space<vmem>>, %arg2: memref<3136x128xf32, #tpu.memory_space<vmem>>, %arg3: memref<1x128xf32, #tpu.memory_space<vmem>>, %arg4: memref<128x128xf32, #tpu.memory_space<vmem>>, %arg5: memref<1x128xf32, #tpu.memory_space<vmem>>, %arg6: memref<2x128xf32, #tpu.memory_space<vmem>>, %arg7: memref<2x128xf32, #tpu.memory_space<vmem>>) attributes {dimension_semantics = [#tpu.dimension_semantics<arbitrary>], iteration_bounds = array<i64: 4>, scalar_prefetch = 0 : i64, scratch_operands = 1 : i64, tpu.core_type = #tpu.core_type<tc>, window_params = [{pipeline_mode = #tpu.pipeline_mode<synchronous>, transform_indices = @transform_0, window_bounds = array<i64: 2, 3136>}, {transform_indices = @transform_1, window_bounds = array<i64: 3136, 128>}, {transform_indices = @transform_2, window_bounds = array<i64: 1, 128>}, {transform_indices = @transform_3, window_bounds = array<i64: 128, 128>}, {pipeline_mode = #tpu.pipeline_mode<synchronous>, transform_indices = @transform_4, window_bounds = array<i64: 1, 128>}, {pipeline_mode = #tpu.pipeline_mode<synchronous>, transform_indices = @transform_5, window_bounds = array<i64: 2, 128>}]} {
    %c0_i32 = arith.constant 0 : i32
    %0 = arith.cmpi eq, %arg0, %c0_i32 : i32
    %1 = arith.extui %0 : i1 to i32
    %c0_i32_0 = arith.constant 0 : i32
    %2 = arith.cmpi ne, %1, %c0_i32_0 : i32
    scf.if %2 {
      %cst_15 = arith.constant 0.000000e+00 : f32
      %19 = vector.broadcast %cst_15 : f32 to vector<2x128xf32>
      %c0_16 = arith.constant 0 : index
      %c0_17 = arith.constant 0 : index
      %20 = vector.load %arg7[%c0_16, %c0_17] : memref<2x128xf32, #tpu.memory_space<vmem>>, vector<2x128xf32>
      tpu.vector_store %arg7[%c0_16, %c0_17], %19 {strides = array<i32>} : memref<2x128xf32, #tpu.memory_space<vmem>>, vector<2x128xf32>,
    } else {
    }
    %c0 = arith.constant 0 : index
    %c0_1 = arith.constant 0 : index
    %3 = vector.load %arg1[%c0, %c0_1] : memref<2x3136xf32, #tpu.memory_space<vmem>>, vector<2x3136xf32>
    %c0_2 = arith.constant 0 : index
    %c0_3 = arith.constant 0 : index
    %4 = vector.load %arg2[%c0_2, %c0_3] : memref<3136x128xf32, #tpu.memory_space<vmem>>, vector<3136x128xf32>
    %cst = arith.constant dense<0.000000e+00> : vector<2x128xf32>
    %5 = tpu.matmul %3, %4, %cst {dimension_numbers = #tpu.dot_dimension_numbers<[1], [0], [0], [1], [0, 0, 1, 1], [], []>} : vector<2x3136xf32>, vector<3136x128xf32>, vector<2x128xf32> -> vector<2x128xf32>
    %c0_4 = arith.constant 0 : index
    %c0_5 = arith.constant 0 : index
    %6 = vector.load %arg3[%c0_4, %c0_5] : memref<1x128xf32, #tpu.memory_space<vmem>>, vector<1x128xf32>
    %7 = vector.broadcast %6 : vector<1x128xf32> to vector<2x128xf32>
    %8 = arith.addf %5, %7 : vector<2x128xf32>
    %cst_6 = arith.constant 0.000000e+00 : f32
    %9 = vector.broadcast %cst_6 : f32 to vector<2x128xf32>
    %10 = arith.maximumf %8, %9 : vector<2x128xf32>
    %c0_7 = arith.constant 0 : index
    %c0_8 = arith.constant 0 : index
    %11 = vector.load %arg7[%c0_7, %c0_8] : memref<2x128xf32, #tpu.memory_space<vmem>>, vector<2x128xf32>
    %c0_9 = arith.constant 0 : index
    %c0_10 = arith.constant 0 : index
    %12 = vector.load %arg4[%c0_9, %c0_10] : memref<128x128xf32, #tpu.memory_space<vmem>>, vector<128x128xf32>
    %cst_11 = arith.constant dense<0.000000e+00> : vector<2x128xf32>
    %13 = tpu.matmul %10, %12, %cst_11 {dimension_numbers = #tpu.dot_dimension_numbers<[1], [0], [0], [1], [0, 0, 1, 1], [], []>} : vector<2x128xf32>, vector<128x128xf32>, vector<2x128xf32> -> vector<2x128xf32>
    %14 = arith.addf %11, %13 : vector<2x128xf32>
    %c0_12 = arith.constant 0 : index
    %c0_13 = arith.constant 0 : index
    %15 = vector.load %arg7[%c0_12, %c0_13] : memref<2x128xf32, #tpu.memory_space<vmem>>, vector<2x128xf32>
    tpu.vector_store %arg7[%c0_12, %c0_13], %14 {strides = array<i32>} : memref<2x128xf32, #tpu.memory_space<vmem>>, vector<2x128xf32>,
    %c3_i32 = arith.constant 3 : i32
    %16 = arith.cmpi eq, %arg0, %c3_i32 : i32
    %17 = arith.extui %16 : i1 to i32
    %c0_i32_14 = arith.constant 0 : i32
    %18 = arith.cmpi ne, %17, %c0_i32_14 : i32
    scf.if %18 {
      %c0_15 = arith.constant 0 : index
      %c0_16 = arith.constant 0 : index
      %19 = vector.load %arg7[%c0_15, %c0_16] : memref<2x128xf32, #tpu.memory_space<vmem>>, vector<2x128xf32>
      %c0_17 = arith.constant 0 : index
      %c0_18 = arith.constant 0 : index
      %20 = vector.load %arg5[%c0_17, %c0_18] : memref<1x128xf32, #tpu.memory_space<vmem>>, vector<1x128xf32>
      %21 = vector.broadcast %20 : vector<1x128xf32> to vector<2x128xf32>
      %22 = arith.addf %19, %21 : vector<2x128xf32>
      %c0_19 = arith.constant 0 : index
      %c0_20 = arith.constant 0 : index
      %23 = vector.load %arg6[%c0_19, %c0_20] : memref<2x128xf32, #tpu.memory_space<vmem>>, vector<2x128xf32>
      tpu.vector_store %arg6[%c0_19, %c0_20], %22 {strides = array<i32>} : memref<2x128xf32, #tpu.memory_space<vmem>>, vector<2x128xf32>,
    } else {
    }
    return
  }
  func.func @transform_0(%arg0: i32) -> (i32, i32) {
    %c0_i32 = arith.constant 0 : i32
    %c0_i32_0 = arith.constant 0 : i32
    %c0_i32_1 = arith.constant 0 : i32
    return %c0_i32, %c0_i32_0 : i32, i32
  }
  func.func @transform_1(%arg0: i32) -> (i32, i32) {
    %c0_i32 = arith.constant 0 : i32
    %c0_i32_0 = arith.constant 0 : i32
    return %c0_i32, %arg0 : i32, i32
  }
  func.func @transform_2(%arg0: i32) -> (i32, i32) {
    %c0_i32 = arith.constant 0 : i32
    %c0_i32_0 = arith.constant 0 : i32
    return %c0_i32, %arg0 : i32, i32
  }
  func.func @transform_3(%arg0: i32) -> (i32, i32) {
    %c0_i32 = arith.constant 0 : i32
    %c0_i32_0 = arith.constant 0 : i32
    return %arg0, %c0_i32 : i32, i32
  }
  func.func @transform_4(%arg0: i32) -> (i32, i32) {
    %c0_i32 = arith.constant 0 : i32
    %c0_i32_0 = arith.constant 0 : i32
    %c0_i32_1 = arith.constant 0 : i32
    return %c0_i32, %c0_i32_0 : i32, i32
  }
  func.func @transform_5(%arg0: i32) -> (i32, i32) {
    %c0_i32 = arith.constant 0 : i32
    %c0_i32_0 = arith.constant 0 : i32
    %c0_i32_1 = arith.constant 0 : i32
    return %c0_i32, %c0_i32_0 : i32, i32
  }
}

</mosaic_0001>

<llo_original>
// kernel: shared_network_a2c_forward.4
$region0: #{shared_network_a2c_forward.4}
  #allocation0 [shape = 'u32[]', space=smem, size = 0x4, offset = 0x4, fixed_abs, tag = 'smem constant byte address 0x4 - core index']
  #allocation1 [shape = 'u32[144,128]{1,0:T(1,128)}', space=vmem, size = 0x12000, scoped, tag = 'internal scratch']
  %s0 = inlined_call_operand.vmem [shape: f32[800,256], index: 0, kind: input, shape index: {}]
  %s1 = inlined_call_operand.vmem [shape: f32[256,32], index: 1, kind: input, shape index: {}]
  %s2 = inlined_call_operand.vmem [shape: f32[1,32], index: 2, kind: input, shape index: {}]
  %s3 = inlined_call_operand.vmem [shape: f32[800,32], index: 3, kind: output, shape index: {}]
  %s4 = sld [smem:[#allocation0]]
  $region45: #{shared_network_a2c_forward.4} parent=0
    _
  %s6 = ssub.s32 1, %s4
  %s7 = scalar_select 0, %s6, %s4
  loop: start=0, step=1, limit=4
  $region2: #{shared_network_a2c_forward.4} parent=0 // loop_pre_header
    _
  $region3: #{shared_network_a2c_forward.4} parent=0 // loop_header
    %s9 = sphi 0, %s13
    %p10 = scmp.ge.s32.totalorder %s9, 4
    %s16 = sphi 0, %s28
    %s17 = sphi 0, %s24
    %s18 = sphi 0, %s16
    %s19 = sphi 0, %s17
    %s20 = sphi 0, %s18
    %s21 = sphi 0, %s19
    %s31 = sphi 0, %s33
    %s34 = sphi 0, %s31
    %s35 = sphi 0, %s34
    %s51 = sphi 0, %s35
    %s57 = sphi 0, %s59
    %s60 = sphi 0, %s57
    %s61 = sphi 0, %s60
    %s77 = sphi 0, %s61
    %s83 = sphi 0, %s85
    %s86 = sphi 0, %s83
    %s87 = sphi 0, %s86
    %s103 = sphi 0, %s87
    %s111 = sphi 0, %s113
    %s114 = sphi 0, %s111
    %s115 = sphi 0, %s114
    %s131 = sphi 0, %s115
  $region4: #{shared_network_a2c_forward.4} parent=0 // loop_header_branch
    %12 = sbr.rel (%p10) target = $region8
  $region5: #{shared_network_a2c_forward.4} parent=0 // loop_body
    %s14 = ssub.s32 %s9, 1
    %s15 = ssub.s32 %s9, 2
    %s22 = sadd.s32 1, %s17
    %p23 = scmp.ge.s32.totalorder %s22, 1
    %s24 = scalar_select %p23, 0, %s22
    %s25 = sadd.s32 1, %s16
    %s26 = scalar_select %p23, %s25, %s16
    %p27 = scmp.ge.s32.totalorder %s26, 2
    %s28 = scalar_select %p27, 0, %s26
    %s29 = ssub.s32 %s16, %s28
    %p30 = scmp.eq.s32.totalorder %s29, 0
    %s32 = sadd.s32 %s31, 1
    %s33 = scalar_select %p30, %s31, %s32
    %p36 = pneg %p30
    %p37 = scmp.eq.s32.totalorder %s9, 1
    %p38 = por %p36, %p37
    %p39 = scmp.ne.s32.totalorder %s31, %s34
    %p40 = scmp.eq.s32.totalorder %s9, 0
    %p41 = por %p39, %p40
    %p42 = scmp.ne.s32.totalorder %s31, %s34
    %p43 = scmp.eq.s32.totalorder %s14, 1
    %p44 = por %p42, %p43
    %p45 = scmp.ne.s32.totalorder %s34, %s35
    %p46 = scmp.eq.s32.totalorder %s14, 0
    %p47 = por %p45, %p46
    %p48 = scmp.ne.s32.totalorder %s34, %s35
    %p49 = scmp.eq.s32.totalorder %s15, 1
    %p50 = por %p48, %p49
    %p52 = scmp.ne.s32.totalorder %s35, %s51
    %p53 = scmp.eq.s32.totalorder %s15, 0
    %p54 = por %p52, %p53
    %s55 = ssub.s32 %s17, %s24
    %p56 = scmp.eq.s32.totalorder %s55, 0
    %s58 = sadd.s32 %s57, 1
    %s59 = scalar_select %p56, %s57, %s58
    %p62 = pneg %p56
    %p63 = scmp.eq.s32.totalorder %s9, 1
    %p64 = por %p62, %p63
    %p65 = scmp.ne.s32.totalorder %s57, %s60
    %p66 = scmp.eq.s32.totalorder %s9, 0
    %p67 = por %p65, %p66
    %p68 = scmp.ne.s32.totalorder %s57, %s60
    %p69 = scmp.eq.s32.totalorder %s14, 1
    %p70 = por %p68, %p69
    %p71 = scmp.ne.s32.totalorder %s60, %s61
    %p72 = scmp.eq.s32.totalorder %s14, 0
    %p73 = por %p71, %p72
    %p74 = scmp.ne.s32.totalorder %s60, %s61
    %p75 = scmp.eq.s32.totalorder %s15, 1
    %p76 = por %p74, %p75
    %p78 = scmp.ne.s32.totalorder %s61, %s77
    %p79 = scmp.eq.s32.totalorder %s15, 0
    %p80 = por %p78, %p79
    %s81 = ssub.s32 %s17, %s24
    %p82 = scmp.eq.s32.totalorder %s81, 0
    %s84 = sadd.s32 %s83, 1
    %s85 = scalar_select %p82, %s83, %s84
    %p88 = pneg %p82
    %p89 = scmp.eq.s32.totalorder %s9, 1
    %p90 = por %p88, %p89
    %p91 = scmp.ne.s32.totalorder %s83, %s86
    %p92 = scmp.eq.s32.totalorder %s9, 0
    %p93 = por %p91, %p92
    %p94 = scmp.ne.s32.totalorder %s83, %s86
    %p95 = scmp.eq.s32.totalorder %s14, 1
    %p96 = por %p94, %p95
    %p97 = scmp.ne.s32.totalorder %s86, %s87
    %p98 = scmp.eq.s32.totalorder %s14, 0
    %p99 = por %p97, %p98
    %p100 = scmp.ne.s32.totalorder %s86, %s87
    %p101 = scmp.eq.s32.totalorder %s15, 1
    %p102 = por %p100, %p101
    %p104 = scmp.ne.s32.totalorder %s87, %s103
    %p105 = scmp.eq.s32.totalorder %s15, 0
    %p106 = por %p104, %p105
    %s107 = ssub.s32 %s16, %s28
    %s108 = ssub.s32 %s17, %s24
    %s109 = sor.u32 %s107, %s108
    %p110 = scmp.eq.s32.totalorder %s109, 0
    %s112 = sadd.s32 %s111, 1
    %s113 = scalar_select %p110, %s111, %s112
    %p116 = pneg %p110
    %p117 = scmp.eq.s32.totalorder %s9, 1
    %p118 = por %p116, %p117
    %p119 = scmp.ne.s32.totalorder %s111, %s114
    %p120 = scmp.eq.s32.totalorder %s9, 0
    %p121 = por %p119, %p120
    %p122 = scmp.ne.s32.totalorder %s111, %s114
    %p123 = scmp.eq.s32.totalorder %s14, 1
    %p124 = por %p122, %p123
    %p125 = scmp.ne.s32.totalorder %s114, %s115
    %p126 = scmp.eq.s32.totalorder %s14, 0
    %p127 = por %p125, %p126
    %p128 = scmp.ne.s32.totalorder %s114, %s115
    %p129 = scmp.eq.s32.totalorder %s15, 1
    %p130 = por %p128, %p129
    %p132 = scmp.ne.s32.totalorder %s115, %s131
    %p133 = scmp.eq.s32.totalorder %s15, 0
    %p134 = por %p132, %p133
    %p135 = scmp.le.s32.totalorder 1, %s9
    %p136 = scmp.lt.s32.totalorder %s9, 3
    %p137 = pnand %p135, %p136
    %p138 = pneg %p137
    // Predicated region
    $region9: #{shared_network_a2c_forward.4} parent=5 // pred_check
      _
    $region10: #{shared_network_a2c_forward.4} parent=5 // pred_check_branch
      %140 = sbr.rel (%p137) target = $region12
    $region11: #{shared_network_a2c_forward.4} parent=5 // pred_region
      %s141 = ssub.s32 %s9, 1
      // Predicated region
      $region13: #{shared_network_a2c_forward.4} parent=11 // pred_check
        %p142 = pneg %p73
      $region14: #{shared_network_a2c_forward.4} parent=11 // pred_check_branch
        %144 = sbr.rel (%p142) target = $region16
      $region15: #{shared_network_a2c_forward.4} parent=11 // pred_region
        %p145 = scmp.lt.s32.totalorder %s19, 0
        %s146 = scalar_select %p145, %s19, 0
        %s147 = smul.addr %s146, 8
        %s148 = scalar_lea.vmem %s1, %s147
      $region16: #{shared_network_a2c_forward.4} parent=11 // pred_fallthru
        _
      // Predicated region
      $region17: #{shared_network_a2c_forward.4} parent=11 // pred_check
        %p149 = pneg %p99
      $region18: #{shared_network_a2c_forward.4} parent=11 // pred_check_branch
        %151 = sbr.rel (%p149) target = $region20
      $region19: #{shared_network_a2c_forward.4} parent=11 // pred_region
        %p152 = scmp.lt.s32.totalorder %s19, 0
        %s153 = scalar_select %p152, %s19, 0
        %s154 = scalar_lea.vmem %s2, %s153
      $region20: #{shared_network_a2c_forward.4} parent=11 // pred_fallthru
        _
    $region12: #{shared_network_a2c_forward.4} parent=5 // pred_fallthru
      _
    %p155 = scmp.lt.s32.totalorder %s9, 2
    // Predicated region
    $region21: #{shared_network_a2c_forward.4} parent=5 // pred_check
      %p156 = pneg %p155
    $region22: #{shared_network_a2c_forward.4} parent=5 // pred_check_branch
      %158 = sbr.rel (%p156) target = $region24
    $region23: #{shared_network_a2c_forward.4} parent=5 // pred_region
      // Predicated region
      $region25: #{shared_network_a2c_forward.4} parent=23 // pred_check
        %p159 = pneg %p41
      $region26: #{shared_network_a2c_forward.4} parent=23 // pred_check_branch
        %161 = sbr.rel (%p159) target = $region28
      $region27: #{shared_network_a2c_forward.4} parent=23 // pred_region
        %s162 = smul.u32 50, %s16
        %p163 = scmp.lt.s32.totalorder %s162, 99
        %s164 = scalar_select %p163, %s162, 99
        %s165 = smul.addr %s164, 2
        %s166 = smul.addr %s165, 8
        %s167 = scalar_lea.vmem %s0, %s166
        %s168 = smul.u32 50, %s16
      $region28: #{shared_network_a2c_forward.4} parent=23 // pred_fallthru
        _
    $region24: #{shared_network_a2c_forward.4} parent=5 // pred_fallthru
      _
    %p169 = scmp.le.s32.totalorder 1, %s9
    %p170 = scmp.lt.s32.totalorder %s9, 3
    %p171 = pnand %p169, %p170
    %p172 = pneg %p171
    // Predicated region
    $region29: #{shared_network_a2c_forward.4} parent=5 // pred_check
      _
    $region30: #{shared_network_a2c_forward.4} parent=5 // pred_check_branch
      %174 = sbr.rel (%p171) target = $region32
    $region31: #{shared_network_a2c_forward.4} parent=5 // pred_region
      %s175 = ssub.s32 %s9, 1
      %s176 = smul.u32 50, %s18
      %p177 = scmp.lt.s32.totalorder %s176, 99
      %s178 = scalar_select %p177, %s176, 99
      %s179 = smul.addr %s178, 2
      %s180 = smul.addr %s179, 8
      %s181 = scalar_lea.vmem %s0, %s180
      %p182 = pneg %p47
      %p183 = pneg %p44
      %p184 = scmp.lt.s32.totalorder %s19, 0
      %s185 = scalar_select %p184, %s19, 0
      %s186 = smul.addr %s185, 8
      %s187 = scalar_lea.vmem %s1, %s186
      %p188 = pneg %p73
      %p189 = pneg %p70
      %p190 = scmp.lt.s32.totalorder %s19, 0
      %s191 = scalar_select %p190, %s19, 0
      %s192 = scalar_lea.vmem %s2, %s191
      %p193 = pneg %p99
      %p194 = pneg %p96
      %p195 = pneg %p127
      %p196 = pneg %p124
      %s197 = smul.u32 50, %s18
      %p198 = scmp.lt.s32.totalorder %s197, 99
      %s199 = scalar_select %p198, %s197, 99
      %p200 = scmp.lt.s32.totalorder %s19, 0
      %s201 = scalar_select %p200, %s19, 0
      %s202 = sadd.s32 %s201, %s199
      %s203 = smul.addr %s202, 8
      %s204 = scalar_lea.vmem %s3, %s203
      %s205 = smul.u32 50, %s18
      %p206 = scmp.lt.s32.totalorder %s205, 99
      %s207 = scalar_select %p206, %s205, 99
      %s208 = smul.addr %s207, 2
      %s209 = smul.addr %s208, 8
      %s210 = scalar_lea.vmem %s0, %s209
      %s211 = smul.u32 50, %s18
      %p212 = scmp.lt.s32.totalorder %s19, 0
      %s213 = scalar_select %p212, %s19, 0
      %s214 = smul.addr %s213, 8
      %s215 = scalar_lea.vmem %s1, %s214
      %p216 = scmp.lt.s32.totalorder %s19, 0
      %s217 = scalar_select %p216, %s19, 0
      %s218 = scalar_lea.vmem %s2, %s217
      %s219 = smul.u32 50, %s18
      %p220 = scmp.lt.s32.totalorder %s219, 99
      %s221 = scalar_select %p220, %s219, 99
      %p222 = scmp.lt.s32.totalorder %s19, 0
      %s223 = scalar_select %p222, %s19, 0
      %s224 = sadd.s32 %s223, %s221
      %s225 = smul.addr %s224, 8
      %s226 = scalar_lea.vmem %s3, %s225
      %s227 = smul.u32 50, %s18
      %v228 = vld [vmem:[%s210] sm:$0xff]
      %v229 = vld [vmem:[%s210 + $0x8] sm:$0xff]
      %v230 = vld [vmem:[%s210 + $0x10] sm:$0xff]
      %v231 = vld [vmem:[%s210 + $0x18] sm:$0xff]
      %v232 = vld [vmem:[%s210 + $0x20] sm:$0xff]
      %v233 = vld [vmem:[%s210 + $0x28] sm:$0xff]
      %v234 = vld [vmem:[%s210 + $0x30] sm:$0xff]
      %v235 = vld [vmem:[%s210 + $0x38] sm:$0xff]
      %v236 = vld [vmem:[%s210 + $0x40] sm:$0xff]
      %v237 = vld [vmem:[%s210 + $0x48] sm:$0xff]
      %v238 = vld [vmem:[%s210 + $0x50] sm:$0xff]
      %v239 = vld [vmem:[%s210 + $0x58] sm:$0xff]
      %v240 = vld [vmem:[%s210 + $0x60] sm:$0xff]
      %v241 = vld [vmem:[%s210 + $0x68] sm:$0xff]
      %v242 = vld [vmem:[%s210 + $0x70] sm:$0xff]
      %v243 = vld [vmem:[%s210 + $0x78] sm:$0xff]
      %v244 = vld [vmem:[%s210 + $0x80] sm:$0xff]
      %v245 = vld [vmem:[%s210 + $0x88] sm:$0xff]
      %v246 = vld [vmem:[%s210 + $0x90] sm:$0xff]
      %v247 = vld [vmem:[%s210 + $0x98] sm:$0xff]
      %v248 = vld [vmem:[%s210 + $0xa0] sm:$0xff]
      %v249 = vld [vmem:[%s210 + $0xa8] sm:$0xff]
      %v250 = vld [vmem:[%s210 + $0xb0] sm:$0xff]
      %v251 = vld [vmem:[%s210 + $0xb8] sm:$0xff]
      %v252 = vld [vmem:[%s210 + $0xc0] sm:$0xff]
      %v253 = vld [vmem:[%s210 + $0xc8] sm:$0xff]
      %v254 = vld [vmem:[%s210 + $0xd0] sm:$0xff]
      %v255 = vld [vmem:[%s210 + $0xd8] sm:$0xff]
      %v256 = vld [vmem:[%s210 + $0xe0] sm:$0xff]
      %v257 = vld [vmem:[%s210 + $0xe8] sm:$0xff]
      %v258 = vld [vmem:[%s210 + $0xf0] sm:$0xff]
      %v259 = vld [vmem:[%s210 + $0xf8] sm:$0xff]
      %v260 = vld [vmem:[%s210 + $0x100] sm:$0xff]
      %v261 = vld [vmem:[%s210 + $0x108] sm:$0xff]
      %v262 = vld [vmem:[%s210 + $0x110] sm:$0xff]
      %v263 = vld [vmem:[%s210 + $0x118] sm:$0xff]
      %v264 = vld [vmem:[%s210 + $0x120] sm:$0xff]
      %v265 = vld [vmem:[%s210 + $0x128] sm:$0xff]
      %v266 = vld [vmem:[%s210 + $0x130] sm:$0xff]
      %v267 = vld [vmem:[%s210 + $0x138] sm:$0xff]
      %v268 = vld [vmem:[%s210 + $0x140] sm:$0xff]
      %v269 = vld [vmem:[%s210 + $0x148] sm:$0xff]
      %v270 = vld [vmem:[%s210 + $0x150] sm:$0xff]
      %v271 = vld [vmem:[%s210 + $0x158] sm:$0xff]
      %v272 = vld [vmem:[%s210 + $0x160] sm:$0xff]
      %v273 = vld [vmem:[%s210 + $0x168] sm:$0xff]
      %v274 = vld [vmem:[%s210 + $0x170] sm:$0xff]
      %v275 = vld [vmem:[%s210 + $0x178] sm:$0xff]
      %v276 = vld [vmem:[%s210 + $0x180] sm:$0xff]
      %v277 = vld [vmem:[%s210 + $0x188] sm:$0xff]
      %v278 = vld [vmem:[%s210 + $0x190] sm:$0xff]
      %v279 = vld [vmem:[%s210 + $0x198] sm:$0xff]
      %v280 = vld [vmem:[%s210 + $0x1a0] sm:$0xff]
      %v281 = vld [vmem:[%s210 + $0x1a8] sm:$0xff]
      %v282 = vld [vmem:[%s210 + $0x1b0] sm:$0xff]
      %v283 = vld [vmem:[%s210 + $0x1b8] sm:$0xff]
      %v284 = vld [vmem:[%s210 + $0x1c0] sm:$0xff]
      %v285 = vld [vmem:[%s210 + $0x1c8] sm:$0xff]
      %v286 = vld [vmem:[%s210 + $0x1d0] sm:$0xff]
      %v287 = vld [vmem:[%s210 + $0x1d8] sm:$0xff]
      %v288 = vld [vmem:[%s210 + $0x1e0] sm:$0xff]
      %v289 = vld [vmem:[%s210 + $0x1e8] sm:$0xff]
      %v290 = vld [vmem:[%s210 + $0x1f0] sm:$0xff]
      %v291 = vld [vmem:[%s210 + $0x1f8] sm:$0xff]
      %v292 = vld [vmem:[%s210 + $0x200] sm:$0xff]
      %v293 = vld [vmem:[%s210 + $0x208] sm:$0xff]
      %v294 = vld [vmem:[%s210 + $0x210] sm:$0xff]
      %v295 = vld [vmem:[%s210 + $0x218] sm:$0xff]
      %v296 = vld [vmem:[%s210 + $0x220] sm:$0xff]
      %v297 = vld [vmem:[%s210 + $0x228] sm:$0xff]
      %v298 = vld [vmem:[%s210 + $0x230] sm:$0xff]
      %v299 = vld [vmem:[%s210 + $0x238] sm:$0xff]
      %v300 = vld [vmem:[%s210 + $0x240] sm:$0xff]
      %v301 = vld [vmem:[%s210 + $0x248] sm:$0xff]
      %v302 = vld [vmem:[%s210 + $0x250] sm:$0xff]
      %v303 = vld [vmem:[%s210 + $0x258] sm:$0xff]
      %v304 = vld [vmem:[%s210 + $0x260] sm:$0xff]
      %v305 = vld [vmem:[%s210 + $0x268] sm:$0xff]
      %v306 = vld [vmem:[%s210 + $0x270] sm:$0xff]
      %v307 = vld [vmem:[%s210 + $0x278] sm:$0xff]
      %v308 = vld [vmem:[%s210 + $0x280] sm:$0xff]
      %v309 = vld [vmem:[%s210 + $0x288] sm:$0xff]
      %v310 = vld [vmem:[%s210 + $0x290] sm:$0xff]
      %v311 = vld [vmem:[%s210 + $0x298] sm:$0xff]
      %v312 = vld [vmem:[%s210 + $0x2a0] sm:$0xff]
      %v313 = vld [vmem:[%s210 + $0x2a8] sm:$0xff]
      %v314 = vld [vmem:[%s210 + $0x2b0] sm:$0xff]
      %v315 = vld [vmem:[%s210 + $0x2b8] sm:$0xff]
      %v316 = vld [vmem:[%s210 + $0x2c0] sm:$0xff]
      %v317 = vld [vmem:[%s210 + $0x2c8] sm:$0xff]
      %v318 = vld [vmem:[%s210 + $0x2d0] sm:$0xff]
      %v319 = vld [vmem:[%s210 + $0x2d8] sm:$0xff]
      %v320 = vld [vmem:[%s210 + $0x2e0] sm:$0xff]
      %v321 = vld [vmem:[%s210 + $0x2e8] sm:$0xff]
      %v322 = vld [vmem:[%s210 + $0x2f0] sm:$0xff]
      %v323 = vld [vmem:[%s210 + $0x2f8] sm:$0xff]
      %v324 = vld [vmem:[%s210 + $0x300] sm:$0xff]
      %v325 = vld [vmem:[%s210 + $0x308] sm:$0xff]
      %v326 = vld [vmem:[%s210 + $0x310] sm:$0xff]
      %v327 = vld [vmem:[%s210 + $0x318] sm:$0xff]
      %v328 = vld [vmem:[%s215] sm:$0xff]
      %v329 = vld [vmem:[%s215 + $0x8] sm:$0xff]
      %v330 = vld [vmem:[%s215 + $0x10] sm:$0xff]
      %v331 = vld [vmem:[%s215 + $0x18] sm:$0xff]
      %v332 = vld [vmem:[%s215 + $0x20] sm:$0xff]
      %v333 = vld [vmem:[%s215 + $0x28] sm:$0xff]
      %v334 = vld [vmem:[%s215 + $0x30] sm:$0xff]
      %v335 = vld [vmem:[%s215 + $0x38] sm:$0xff]
      %v336 = vld [vmem:[%s215 + $0x40] sm:$0xff]
      %v337 = vld [vmem:[%s215 + $0x48] sm:$0xff]
      %v338 = vld [vmem:[%s215 + $0x50] sm:$0xff]
      %v339 = vld [vmem:[%s215 + $0x58] sm:$0xff]
      %v340 = vld [vmem:[%s215 + $0x60] sm:$0xff]
      %v341 = vld [vmem:[%s215 + $0x68] sm:$0xff]
      %v342 = vld [vmem:[%s215 + $0x70] sm:$0xff]
      %v343 = vld [vmem:[%s215 + $0x78] sm:$0xff]
      %v344 = vld [vmem:[%s215 + $0x80] sm:$0xff]
      %v345 = vld [vmem:[%s215 + $0x88] sm:$0xff]
      %v346 = vld [vmem:[%s215 + $0x90] sm:$0xff]
      %v347 = vld [vmem:[%s215 + $0x98] sm:$0xff]
      %v348 = vld [vmem:[%s215 + $0xa0] sm:$0xff]
      %v349 = vld [vmem:[%s215 + $0xa8] sm:$0xff]
      %v350 = vld [vmem:[%s215 + $0xb0] sm:$0xff]
      %v351 = vld [vmem:[%s215 + $0xb8] sm:$0xff]
      %v352 = vld [vmem:[%s215 + $0xc0] sm:$0xff]
      %v353 = vld [vmem:[%s215 + $0xc8] sm:$0xff]
      %v354 = vld [vmem:[%s215 + $0xd0] sm:$0xff]
      %v355 = vld [vmem:[%s215 + $0xd8] sm:$0xff]
      %v356 = vld [vmem:[%s215 + $0xe0] sm:$0xff]
      %v357 = vld [vmem:[%s215 + $0xe8] sm:$0xff]
      %v358 = vld [vmem:[%s215 + $0xf0] sm:$0xff]
      %v359 = vld [vmem:[%s215 + $0xf8] sm:$0xff]
      %v360 = vld [vmem:[%s218] sm:$0x1]
      %v362 = vlaneseq
      %v363 = vshrl.u32 %v362, 7
      %v364 = vsub.s32 0, %v363
      %v365 = vrot.slane %v360, %v364
      %367 = vmatprep.subr.mxu0 0.0
      %368 = vmatpush1.msra.mxu0 %v328
      %369 = vmatprep.subr.mxu0 0.0
      %370 = vmatpush1.msra.mxu0 %v329
      %371 = vmatprep.subr.mxu0 0.0
      %372 = vmatpush1.msra.mxu0 %v330
      %373 = vmatprep.subr.mxu0 0.0
      %374 = vmatpush1.msra.mxu0 %v331
      %375 = vmatprep.subr.mxu0 0.0
      %376 = vmatpush1.msra.mxu0 %v332
      %377 = vmatprep.subr.mxu0 0.0
      %378 = vmatpush1.msra.mxu0 %v333
      %379 = vmatprep.subr.mxu0 0.0
      %380 = vmatpush1.msra.mxu0 %v334
      %381 = vmatprep.subr.mxu0 0.0
      %382 = vmatpush1.msra.mxu0 %v335
      %383 = vmatprep.subr.mxu0 0.0
      %384 = vmatpush1.msra.mxu0 %v336
      %385 = vmatprep.subr.mxu0 0.0
      %386 = vmatpush1.msra.mxu0 %v337
      %387 = vmatprep.subr.mxu0 0.0
      %388 = vmatpush1.msra.mxu0 %v338
      %389 = vmatprep.subr.mxu0 0.0
      %390 = vmatpush1.msra.mxu0 %v339
      %391 = vmatprep.subr.mxu0 0.0
      %392 = vmatpush1.msra.mxu0 %v340
      %393 = vmatprep.subr.mxu0 0.0
      %394 = vmatpush1.msra.mxu0 %v341
      %395 = vmatprep.subr.mxu0 0.0
      %396 = vmatpush1.msra.mxu0 %v342
      %397 = vmatprep.subr.mxu0 0.0
      %398 = vmatpush1.msra.mxu0 %v343
      %399 = vmatprep.subr.mxu0 0.0
      %400 = vmatpush1.msra.mxu0 %v344
      %401 = vmatprep.subr.mxu0 0.0
      %402 = vmatpush1.msra.mxu0 %v345
      %403 = vmatprep.subr.mxu0 0.0
      %404 = vmatpush1.msra.mxu0 %v346
      %405 = vmatprep.subr.mxu0 0.0
      %406 = vmatpush1.msra.mxu0 %v347
      %407 = vmatprep.subr.mxu0 0.0
      %408 = vmatpush1.msra.mxu0 %v348
      %409 = vmatprep.subr.mxu0 0.0
      %410 = vmatpush1.msra.mxu0 %v349
      %411 = vmatprep.subr.mxu0 0.0
      %412 = vmatpush1.msra.mxu0 %v350
      %413 = vmatprep.subr.mxu0 0.0
      %414 = vmatpush1.msra.mxu0 %v351
      %415 = vmatprep.subr.mxu0 0.0
      %416 = vmatpush1.msra.mxu0 %v352
      %417 = vmatprep.subr.mxu0 0.0
      %418 = vmatpush1.msra.mxu0 %v353
      %419 = vmatprep.subr.mxu0 0.0
      %420 = vmatpush1.msra.mxu0 %v354
      %421 = vmatprep.subr.mxu0 0.0
      %422 = vmatpush1.msra.mxu0 %v355
      %423 = vmatprep.subr.mxu0 0.0
      %424 = vmatpush1.msra.mxu0 %v356
      %425 = vmatprep.subr.mxu0 0.0
      %426 = vmatpush1.msra.mxu0 %v357
      %427 = vmatprep.subr.mxu0 0.0
      %428 = vmatpush1.msra.mxu0 %v358
      %429 = vmatprep.subr.mxu0 0.0
      %430 = vmatpush1.msra.mxu0 %v359
      %431 = vmatprep.mubr.f32.mxu0 %v229
      %432 = vmatmul.mubr.f32.gmra.mrb[0].mxu0 %v228
      %v433 = vpop.f32.mrb[0].mxu0
      %v434 = vadd.f32 %v365, %v433
      %v435 = vpop.f32.mrb[0].mxu0
      %436 = vmatprep.mubr.f32.mxu0 %v231
      %437 = vmatmul.mubr.f32.gmra.mrb[0].mxu0 %v230
      %v438 = vpop.f32.mrb[0].mxu0
      %v439 = vadd.f32 %v365, %v438
      %v440 = vpop.f32.mrb[0].mxu0
      %441 = vmatprep.mubr.f32.mxu0 %v233
      %442 = vmatmul.mubr.f32.gmra.mrb[0].mxu0 %v232
      %v443 = vpop.f32.mrb[0].mxu0
      %v444 = vadd.f32 %v365, %v443
      %v445 = vpop.f32.mrb[0].mxu0
      %446 = vmatprep.mubr.f32.mxu0 %v235
      %447 = vmatmul.mubr.f32.gmra.mrb[0].mxu0 %v234
      %v448 = vpop.f32.mrb[0].mxu0
      %v449 = vadd.f32 %v365, %v448
      %v450 = vpop.f32.mrb[0].mxu0
      %451 = vmatprep.mubr.f32.mxu0 %v237
      %452 = vmatmul.mubr.f32.gmra.mrb[0].mxu0 %v236
      %v453 = vpop.f32.mrb[0].mxu0
      %v454 = vadd.f32 %v365, %v453
      %v455 = vpop.f32.mrb[0].mxu0
      %456 = vmatprep.mubr.f32.mxu0 %v239
      %457 = vmatmul.mubr.f32.gmra.mrb[0].mxu0 %v238
      %v458 = vpop.f32.mrb[0].mxu0
      %v459 = vadd.f32 %v365, %v458
      %v460 = vpop.f32.mrb[0].mxu0
      %461 = vmatprep.mubr.f32.mxu0 %v241
      %462 = vmatmul.mubr.f32.gmra.mrb[0].mxu0 %v240
      %v463 = vpop.f32.mrb[0].mxu0
      %v464 = vadd.f32 %v365, %v463
      %v465 = vpop.f32.mrb[0].mxu0
      %466 = vmatprep.mubr.f32.mxu0 %v243
      %467 = vmatmul.mubr.f32.gmra.mrb[0].mxu0 %v242
      %v468 = vpop.f32.mrb[0].mxu0
      %v469 = vadd.f32 %v365, %v468
      %v470 = vpop.f32.mrb[0].mxu0
      %471 = vmatprep.mubr.f32.mxu0 %v245
      %472 = vmatmul.mubr.f32.gmra.mrb[0].mxu0 %v244
      %v473 = vpop.f32.mrb[0].mxu0
      %v474 = vadd.f32 %v365, %v473
      %v475 = vpop.f32.mrb[0].mxu0
      %476 = vmatprep.mubr.f32.mxu0 %v247
      %477 = vmatmul.mubr.f32.gmra.mrb[0].mxu0 %v246
      %v478 = vpop.f32.mrb[0].mxu0
      %v479 = vadd.f32 %v365, %v478
      %v480 = vpop.f32.mrb[0].mxu0
      %481 = vmatprep.mubr.f32.mxu0 %v249
      %482 = vmatmul.mubr.f32.gmra.mrb[0].mxu0 %v248
      %v483 = vpop.f32.mrb[0].mxu0
      %v484 = vadd.f32 %v365, %v483
      %v485 = vpop.f32.mrb[0].mxu0
      %486 = vmatprep.mubr.f32.mxu0 %v251
      %487 = vmatmul.mubr.f32.gmra.mrb[0].mxu0 %v250
      %v488 = vpop.f32.mrb[0].mxu0
      %v489 = vadd.f32 %v365, %v488
      %v490 = vpop.f32.mrb[0].mxu0
      %491 = vmatprep.mubr.f32.mxu0 %v253
      %492 = vmatmul.mubr.f32.gmra.mrb[0].mxu0 %v252
      %v493 = vpop.f32.mrb[0].mxu0
      %v494 = vadd.f32 %v365, %v493
      %v495 = vpop.f32.mrb[0].mxu0
      %496 = vmatprep.mubr.f32.mxu0 %v255
      %497 = vmatmul.mubr.f32.gmra.mrb[0].mxu0 %v254
      %v498 = vpop.f32.mrb[0].mxu0
      %v499 = vadd.f32 %v365, %v498
      %v500 = vpop.f32.mrb[0].mxu0
      %501 = vmatprep.mubr.f32.mxu0 %v257
      %502 = vmatmul.mubr.f32.gmra.mrb[0].mxu0 %v256
      %v503 = vpop.f32.mrb[0].mxu0
      %v504 = vadd.f32 %v365, %v503
      %v505 = vpop.f32.mrb[0].mxu0
      %506 = vmatprep.mubr.f32.mxu0 %v259
      %507 = vmatmul.mubr.f32.gmra.mrb[0].mxu0 %v258
      %v508 = vpop.f32.mrb[0].mxu0
      %v509 = vadd.f32 %v365, %v508
      %v510 = vpop.f32.mrb[0].mxu0
      %511 = vmatprep.mubr.f32.mxu0 %v261
      %512 = vmatmul.mubr.f32.gmra.mrb[0].mxu0 %v260
      %v513 = vpop.f32.mrb[0].mxu0
      %v514 = vadd.f32 %v365, %v513
      %v515 = vpop.f32.mrb[0].mxu0
      %516 = vmatprep.mubr.f32.mxu0 %v263
      %517 = vmatmul.mubr.f32.gmra.mrb[0].mxu0 %v262
      %v518 = vpop.f32.mrb[0].mxu0
      %v519 = vadd.f32 %v365, %v518
      %v520 = vpop.f32.mrb[0].mxu0
      %521 = vmatprep.mubr.f32.mxu0 %v265
      %522 = vmatmul.mubr.f32.gmra.mrb[0].mxu0 %v264
      %v523 = vpop.f32.mrb[0].mxu0
      %v524 = vadd.f32 %v365, %v523
      %v525 = vpop.f32.mrb[0].mxu0
      %526 = vmatprep.mubr.f32.mxu0 %v267
      %527 = vmatmul.mubr.f32.gmra.mrb[0].mxu0 %v266
      %v528 = vpop.f32.mrb[0].mxu0
      %v529 = vadd.f32 %v365, %v528
      %v530 = vpop.f32.mrb[0].mxu0
      %531 = vmatprep.mubr.f32.mxu0 %v269
      %532 = vmatmul.mubr.f32.gmra.mrb[0].mxu0 %v268
      %v533 = vpop.f32.mrb[0].mxu0
      %v534 = vadd.f32 %v365, %v533
      %v535 = vpop.f32.mrb[0].mxu0
      %536 = vmatprep.mubr.f32.mxu0 %v271
      %537 = vmatmul.mubr.f32.gmra.mrb[0].mxu0 %v270
      %v538 = vpop.f32.mrb[0].mxu0
      %v539 = vadd.f32 %v365, %v538
      %v540 = vpop.f32.mrb[0].mxu0
      %541 = vmatprep.mubr.f32.mxu0 %v273
      %542 = vmatmul.mubr.f32.gmra.mrb[0].mxu0 %v272
      %v543 = vpop.f32.mrb[0].mxu0
      %v544 = vadd.f32 %v365, %v543
      %v545 = vpop.f32.mrb[0].mxu0
      %546 = vmatprep.mubr.f32.mxu0 %v275
      %547 = vmatmul.mubr.f32.gmra.mrb[0].mxu0 %v274
      %v548 = vpop.f32.mrb[0].mxu0
      %v549 = vadd.f32 %v365, %v548
      %v550 = vpop.f32.mrb[0].mxu0
      %551 = vmatprep.mubr.f32.mxu0 %v277
      %552 = vmatmul.mubr.f32.gmra.mrb[0].mxu0 %v276
      %v553 = vpop.f32.mrb[0].mxu0
      %v554 = vadd.f32 %v365, %v553
      %v555 = vpop.f32.mrb[0].mxu0
      %556 = vmatprep.mubr.f32.mxu0 %v279
      %557 = vmatmul.mubr.f32.gmra.mrb[0].mxu0 %v278
      %v558 = vpop.f32.mrb[0].mxu0
      %v559 = vadd.f32 %v365, %v558
      %v560 = vpop.f32.mrb[0].mxu0
      %561 = vmatprep.mubr.f32.mxu0 %v281
      %562 = vmatmul.mubr.f32.gmra.mrb[0].mxu0 %v280
      %v563 = vpop.f32.mrb[0].mxu0
      %v564 = vadd.f32 %v365, %v563
      %v565 = vpop.f32.mrb[0].mxu0
      %566 = vmatprep.mubr.f32.mxu0 %v283
      %567 = vmatmul.mubr.f32.gmra.mrb[0].mxu0 %v282
      %v568 = vpop.f32.mrb[0].mxu0
      %v569 = vadd.f32 %v365, %v568
      %v570 = vpop.f32.mrb[0].mxu0
      %571 = vmatprep.mubr.f32.mxu0 %v285
      %572 = vmatmul.mubr.f32.gmra.mrb[0].mxu0 %v284
      %v573 = vpop.f32.mrb[0].mxu0
      %v574 = vadd.f32 %v365, %v573
      %v575 = vpop.f32.mrb[0].mxu0
      %576 = vmatprep.mubr.f32.mxu0 %v287
      %577 = vmatmul.mubr.f32.gmra.mrb[0].mxu0 %v286
      %v578 = vpop.f32.mrb[0].mxu0
      %v579 = vadd.f32 %v365, %v578
      %v580 = vpop.f32.mrb[0].mxu0
      %581 = vmatprep.mubr.f32.mxu0 %v289
      %582 = vmatmul.mubr.f32.gmra.mrb[0].mxu0 %v288
      %v583 = vpop.f32.mrb[0].mxu0
      %v584 = vadd.f32 %v365, %v583
      %v585 = vpop.f32.mrb[0].mxu0
      %586 = vmatprep.mubr.f32.mxu0 %v291
      %587 = vmatmul.mubr.f32.gmra.mrb[0].mxu0 %v290
      %v588 = vpop.f32.mrb[0].mxu0
      %v589 = vadd.f32 %v365, %v588
      %v590 = vpop.f32.mrb[0].mxu0
      %591 = vmatprep.mubr.f32.mxu0 %v293
      %592 = vmatmul.mubr.f32.gmra.mrb[0].mxu0 %v292
      %v593 = vpop.f32.mrb[0].mxu0
      %v594 = vadd.f32 %v365, %v593
      %v595 = vpop.f32.mrb[0].mxu0
      %596 = vmatprep.mubr.f32.mxu0 %v295
      %597 = vmatmul.mubr.f32.gmra.mrb[0].mxu0 %v294
      %v598 = vpop.f32.mrb[0].mxu0
      %v599 = vadd.f32 %v365, %v598
      %v600 = vpop.f32.mrb[0].mxu0
      %601 = vmatprep.mubr.f32.mxu0 %v297
      %602 = vmatmul.mubr.f32.gmra.mrb[0].mxu0 %v296
      %v603 = vpop.f32.mrb[0].mxu0
      %v604 = vadd.f32 %v365, %v603
      %v605 = vpop.f32.mrb[0].mxu0
      %606 = vmatprep.mubr.f32.mxu0 %v299
      %607 = vmatmul.mubr.f32.gmra.mrb[0].mxu0 %v298
      %v608 = vpop.f32.mrb[0].mxu0
      %v609 = vadd.f32 %v365, %v608
      %v610 = vpop.f32.mrb[0].mxu0
      %611 = vmatprep.mubr.f32.mxu0 %v301
      %612 = vmatmul.mubr.f32.gmra.mrb[0].mxu0 %v300
      %v613 = vpop.f32.mrb[0].mxu0
      %v614 = vadd.f32 %v365, %v613
      %v615 = vpop.f32.mrb[0].mxu0
      %616 = vmatprep.mubr.f32.mxu0 %v303
      %617 = vmatmul.mubr.f32.gmra.mrb[0].mxu0 %v302
      %v618 = vpop.f32.mrb[0].mxu0
      %v619 = vadd.f32 %v365, %v618
      %v620 = vpop.f32.mrb[0].mxu0
      %621 = vmatprep.mubr.f32.mxu0 %v305
      %622 = vmatmul.mubr.f32.gmra.mrb[0].mxu0 %v304
      %v623 = vpop.f32.mrb[0].mxu0
      %v624 = vadd.f32 %v365, %v623
      %v625 = vpop.f32.mrb[0].mxu0
      %626 = vmatprep.mubr.f32.mxu0 %v307
      %627 = vmatmul.mubr.f32.gmra.mrb[0].mxu0 %v306
      %v628 = vpop.f32.mrb[0].mxu0
      %v629 = vadd.f32 %v365, %v628
      %v630 = vpop.f32.mrb[0].mxu0
      %631 = vmatprep.mubr.f32.mxu0 %v309
      %632 = vmatmul.mubr.f32.gmra.mrb[0].mxu0 %v308
      %v633 = vpop.f32.mrb[0].mxu0
      %v634 = vadd.f32 %v365, %v633
      %v635 = vpop.f32.mrb[0].mxu0
      %636 = vmatprep.mubr.f32.mxu0 %v311
      %637 = vmatmul.mubr.f32.gmra.mrb[0].mxu0 %v310
      %v638 = vpop.f32.mrb[0].mxu0
      %v639 = vadd.f32 %v365, %v638
      %v640 = vpop.f32.mrb[0].mxu0
      %641 = vmatprep.mubr.f32.mxu0 %v313
      %642 = vmatmul.mubr.f32.gmra.mrb[0].mxu0 %v312
      %v643 = vpop.f32.mrb[0].mxu0
      %v644 = vadd.f32 %v365, %v643
      %v645 = vpop.f32.mrb[0].mxu0
      %646 = vmatprep.mubr.f32.mxu0 %v315
      %647 = vmatmul.mubr.f32.gmra.mrb[0].mxu0 %v314
      %v648 = vpop.f32.mrb[0].mxu0
      %v649 = vadd.f32 %v365, %v648
      %v650 = vpop.f32.mrb[0].mxu0
      %651 = vmatprep.mubr.f32.mxu0 %v317
      %652 = vmatmul.mubr.f32.gmra.mrb[0].mxu0 %v316
      %v653 = vpop.f32.mrb[0].mxu0
      %v654 = vadd.f32 %v365, %v653
      %v655 = vpop.f32.mrb[0].mxu0
      %656 = vmatprep.mubr.f32.mxu0 %v319
      %657 = vmatmul.mubr.f32.gmra.mrb[0].mxu0 %v318
      %v658 = vpop.f32.mrb[0].mxu0
      %v659 = vadd.f32 %v365, %v658
      %v660 = vpop.f32.mrb[0].mxu0
      %661 = vmatprep.mubr.f32.mxu0 %v321
      %662 = vmatmul.mubr.f32.gmra.mrb[0].mxu0 %v320
      %v663 = vpop.f32.mrb[0].mxu0
      %v664 = vadd.f32 %v365, %v663
      %v665 = vpop.f32.mrb[0].mxu0
      %666 = vmatprep.mubr.f32.mxu0 %v323
      %667 = vmatmul.mubr.f32.gmra.mrb[0].mxu0 %v322
      %v668 = vpop.f32.mrb[0].mxu0
      %v669 = vadd.f32 %v365, %v668
      %v670 = vpop.f32.mrb[0].mxu0
      %671 = vmatprep.mubr.f32.mxu0 %v325
      %672 = vmatmul.mubr.f32.gmra.mrb[0].mxu0 %v324
      %v673 = vpop.f32.mrb[0].mxu0
      %v674 = vadd.f32 %v365, %v673
      %v675 = vpop.f32.mrb[0].mxu0
      %676 = vmatprep.mubr.f32.mxu0 %v327
      %677 = vmatmul.mubr.f32.gmra.mrb[0].mxu0 %v326
      %v678 = vpop.f32.mrb[0].mxu0
      %v679 = vadd.f32 %v365, %v678
      %v680 = vpop.f32.mrb[0].mxu0
      %681 = vdwg.mxu0
      %v682 = vmax.f32 %v434, 0.0
      %v683 = vmax.f32 %v439, 0.0
      %v684 = vmax.f32 %v444, 0.0
      %v685 = vmax.f32 %v449, 0.0
      %v686 = vmax.f32 %v454, 0.0
      %v687 = vmax.f32 %v459, 0.0
      %v688 = vmax.f32 %v464, 0.0
      %v689 = vmax.f32 %v469, 0.0
      %v690 = vmax.f32 %v474, 0.0
      %v691 = vmax.f32 %v479, 0.0
      %v692 = vmax.f32 %v484, 0.0
      %v693 = vmax.f32 %v489, 0.0
      %v694 = vmax.f32 %v494, 0.0
      %v695 = vmax.f32 %v499, 0.0
      %v696 = vmax.f32 %v504, 0.0
      %v697 = vmax.f32 %v509, 0.0
      %v698 = vmax.f32 %v514, 0.0
      %v699 = vmax.f32 %v519, 0.0
      %v700 = vmax.f32 %v524, 0.0
      %v701 = vmax.f32 %v529, 0.0
      %v702 = vmax.f32 %v534, 0.0
      %v703 = vmax.f32 %v539, 0.0
      %v704 = vmax.f32 %v544, 0.0
      %v705 = vmax.f32 %v549, 0.0
      %v706 = vmax.f32 %v554, 0.0
      %v707 = vmax.f32 %v559, 0.0
      %v708 = vmax.f32 %v564, 0.0
      %v709 = vmax.f32 %v569, 0.0
      %v710 = vmax.f32 %v574, 0.0
      %v711 = vmax.f32 %v579, 0.0
      %v712 = vmax.f32 %v584, 0.0
      %v713 = vmax.f32 %v589, 0.0
      %v714 = vmax.f32 %v594, 0.0
      %v715 = vmax.f32 %v599, 0.0
      %v716 = vmax.f32 %v604, 0.0
      %v717 = vmax.f32 %v609, 0.0
      %v718 = vmax.f32 %v614, 0.0
      %v719 = vmax.f32 %v619, 0.0
      %v720 = vmax.f32 %v624, 0.0
      %v721 = vmax.f32 %v629, 0.0
      %v722 = vmax.f32 %v634, 0.0
      %v723 = vmax.f32 %v639, 0.0
      %v724 = vmax.f32 %v644, 0.0
      %v725 = vmax.f32 %v649, 0.0
      %v726 = vmax.f32 %v654, 0.0
      %v727 = vmax.f32 %v659, 0.0
      %v728 = vmax.f32 %v664, 0.0
      %v729 = vmax.f32 %v669, 0.0
      %v730 = vmax.f32 %v674, 0.0
      %v731 = vmax.f32 %v679, 0.0
      %vm732 = vcmask 261120
      %733 = vst.msk [vmem:[%s226] sm:$0xff] %vm732, %v682
      %734 = vst.msk [vmem:[%s226 + $0x8] sm:$0xff] %vm732, %v683
      %735 = vst.msk [vmem:[%s226 + $0x10] sm:$0xff] %vm732, %v684
      %736 = vst.msk [vmem:[%s226 + $0x18] sm:$0xff] %vm732, %v685
      %737 = vst.msk [vmem:[%s226 + $0x20] sm:$0xff] %vm732, %v686
      %738 = vst.msk [vmem:[%s226 + $0x28] sm:$0xff] %vm732, %v687
      %739 = vst.msk [vmem:[%s226 + $0x30] sm:$0xff] %vm732, %v688
      %740 = vst.msk [vmem:[%s226 + $0x38] sm:$0xff] %vm732, %v689
      %741 = vst.msk [vmem:[%s226 + $0x40] sm:$0xff] %vm732, %v690
      %742 = vst.msk [vmem:[%s226 + $0x48] sm:$0xff] %vm732, %v691
      %743 = vst.msk [vmem:[%s226 + $0x50] sm:$0xff] %vm732, %v692
      %744 = vst.msk [vmem:[%s226 + $0x58] sm:$0xff] %vm732, %v693
      %745 = vst.msk [vmem:[%s226 + $0x60] sm:$0xff] %vm732, %v694
      %746 = vst.msk [vmem:[%s226 + $0x68] sm:$0xff] %vm732, %v695
      %747 = vst.msk [vmem:[%s226 + $0x70] sm:$0xff] %vm732, %v696
      %748 = vst.msk [vmem:[%s226 + $0x78] sm:$0xff] %vm732, %v697
      %749 = vst.msk [vmem:[%s226 + $0x80] sm:$0xff] %vm732, %v698
      %750 = vst.msk [vmem:[%s226 + $0x88] sm:$0xff] %vm732, %v699
      %751 = vst.msk [vmem:[%s226 + $0x90] sm:$0xff] %vm732, %v700
      %752 = vst.msk [vmem:[%s226 + $0x98] sm:$0xff] %vm732, %v701
      %753 = vst.msk [vmem:[%s226 + $0xa0] sm:$0xff] %vm732, %v702
      %754 = vst.msk [vmem:[%s226 + $0xa8] sm:$0xff] %vm732, %v703
      %755 = vst.msk [vmem:[%s226 + $0xb0] sm:$0xff] %vm732, %v704
      %756 = vst.msk [vmem:[%s226 + $0xb8] sm:$0xff] %vm732, %v705
      %757 = vst.msk [vmem:[%s226 + $0xc0] sm:$0xff] %vm732, %v706
      %758 = vst.msk [vmem:[%s226 + $0xc8] sm:$0xff] %vm732, %v707
      %759 = vst.msk [vmem:[%s226 + $0xd0] sm:$0xff] %vm732, %v708
      %760 = vst.msk [vmem:[%s226 + $0xd8] sm:$0xff] %vm732, %v709
      %761 = vst.msk [vmem:[%s226 + $0xe0] sm:$0xff] %vm732, %v710
      %762 = vst.msk [vmem:[%s226 + $0xe8] sm:$0xff] %vm732, %v711
      %763 = vst.msk [vmem:[%s226 + $0xf0] sm:$0xff] %vm732, %v712
      %764 = vst.msk [vmem:[%s226 + $0xf8] sm:$0xff] %vm732, %v713
      %765 = vst.msk [vmem:[%s226 + $0x100] sm:$0xff] %vm732, %v714
      %766 = vst.msk [vmem:[%s226 + $0x108] sm:$0xff] %vm732, %v715
      %767 = vst.msk [vmem:[%s226 + $0x110] sm:$0xff] %vm732, %v716
      %768 = vst.msk [vmem:[%s226 + $0x118] sm:$0xff] %vm732, %v717
      %769 = vst.msk [vmem:[%s226 + $0x120] sm:$0xff] %vm732, %v718
      %770 = vst.msk [vmem:[%s226 + $0x128] sm:$0xff] %vm732, %v719
      %771 = vst.msk [vmem:[%s226 + $0x130] sm:$0xff] %vm732, %v720
      %772 = vst.msk [vmem:[%s226 + $0x138] sm:$0xff] %vm732, %v721
      %773 = vst.msk [vmem:[%s226 + $0x140] sm:$0xff] %vm732, %v722
      %774 = vst.msk [vmem:[%s226 + $0x148] sm:$0xff] %vm732, %v723
      %775 = vst.msk [vmem:[%s226 + $0x150] sm:$0xff] %vm732, %v724
      %776 = vst.msk [vmem:[%s226 + $0x158] sm:$0xff] %vm732, %v725
      %777 = vst.msk [vmem:[%s226 + $0x160] sm:$0xff] %vm732, %v726
      %778 = vst.msk [vmem:[%s226 + $0x168] sm:$0xff] %vm732, %v727
      %779 = vst.msk [vmem:[%s226 + $0x170] sm:$0xff] %vm732, %v728
      %780 = vst.msk [vmem:[%s226 + $0x178] sm:$0xff] %vm732, %v729
      %781 = vst.msk [vmem:[%s226 + $0x180] sm:$0xff] %vm732, %v730
      %782 = vst.msk [vmem:[%s226 + $0x188] sm:$0xff] %vm732, %v731
      %s783 = smul.u32 50, %s18
      %p784 = scmp.lt.s32.totalorder %s783, 99
      %s785 = scalar_select %p784, %s783, 99
      %p786 = scmp.lt.s32.totalorder %s19, 0
      %s787 = scalar_select %p786, %s19, 0
      %s788 = sadd.s32 %s787, %s785
      %s789 = smul.addr %s788, 8
      %s790 = scalar_lea.vmem %s3, %s789
      // Predicated region
      $region33: #{shared_network_a2c_forward.4} parent=31 // pred_check
        %p791 = pneg %p124
      $region34: #{shared_network_a2c_forward.4} parent=31 // pred_check_branch
        %793 = sbr.rel (%p791) target = $region36
      $region35: #{shared_network_a2c_forward.4} parent=31 // pred_region
        %s794 = smul.u32 50, %s18
      $region36: #{shared_network_a2c_forward.4} parent=31 // pred_fallthru
        _
    $region32: #{shared_network_a2c_forward.4} parent=5 // pred_fallthru
      _
    %p795 = scmp.le.s32.totalorder 2, %s9
    // Predicated region
    $region37: #{shared_network_a2c_forward.4} parent=5 // pred_check
      %p796 = pneg %p795
    $region38: #{shared_network_a2c_forward.4} parent=5 // pred_check_branch
      %798 = sbr.rel (%p796) target = $region40
    $region39: #{shared_network_a2c_forward.4} parent=5 // pred_region
      %s799 = ssub.s32 %s9, 2
      // Predicated region
      $region41: #{shared_network_a2c_forward.4} parent=39 // pred_check
        %p800 = pneg %p130
      $region42: #{shared_network_a2c_forward.4} parent=39 // pred_check_branch
        %802 = sbr.rel (%p800) target = $region44
      $region43: #{shared_network_a2c_forward.4} parent=39 // pred_region
        %s803 = smul.u32 50, %s20
        %p804 = scmp.lt.s32.totalorder %s803, 99
        %s805 = scalar_select %p804, %s803, 99
        %p806 = scmp.lt.s32.totalorder %s21, 0
        %s807 = scalar_select %p806, %s21, 0
        %s808 = sadd.s32 %s807, %s805
        %s809 = smul.addr %s808, 8
        %s810 = scalar_lea.vmem %s3, %s809
      $region44: #{shared_network_a2c_forward.4} parent=39 // pred_fallthru
        _
    $region40: #{shared_network_a2c_forward.4} parent=5 // pred_fallthru
      _
  $region6: #{shared_network_a2c_forward.4} parent=0 // loop_footer
    %s13 = sadd.s32 1, %s9
  $region7: #{shared_network_a2c_forward.4} parent=0 // loop_footer_branch
    %8 = sbr.rel target = $region3
  $region8: #{shared_network_a2c_forward.4} parent=0 // loop_exit
    _

// kernel: shared_network_a2c_forward.5
$region0: #{shared_network_a2c_forward.5}
  #allocation0 [shape = 'u32[]', space=smem, size = 0x4, offset = 0x4, fixed_abs, tag = 'smem constant byte address 0x4 - core index']
  #allocation1 [shape = 'u32[144,128]{1,0:T(1,128)}', space=vmem, size = 0x12000, scoped, tag = 'internal scratch']
  %s0 = inlined_call_operand.vmem [shape: f32[176,512], index: 0, kind: input, shape index: {}]
  %s1 = inlined_call_operand.vmem [shape: f32[512,64], index: 1, kind: input, shape index: {}]
  %s2 = inlined_call_operand.vmem [shape: f32[1,64], index: 2, kind: input, shape index: {}]
  %s3 = inlined_call_operand.vmem [shape: f32[176,64], index: 3, kind: output, shape index: {}]
  %s4 = sld [smem:[#allocation0]]
  $region22: #{shared_network_a2c_forward.5} parent=0
    _
  %s6 = ssub.s32 1, %s4
  %s7 = scalar_select 0, %s6, %s4
  // Predicated region
  $region2: #{shared_network_a2c_forward.5} parent=0 // pred_check
    _
  $region3: #{shared_network_a2c_forward.5} parent=0 // pred_check_branch
    %9 = sbr.rel (0) target = $region5
  $region4: #{shared_network_a2c_forward.5} parent=0 // pred_region
    _
  $region5: #{shared_network_a2c_forward.5} parent=0 // pred_fallthru
    _
  // Predicated region
  $region6: #{shared_network_a2c_forward.5} parent=0 // pred_check
    _
  $region7: #{shared_network_a2c_forward.5} parent=0 // pred_check_branch
    %11 = sbr.rel (0) target = $region9
  $region8: #{shared_network_a2c_forward.5} parent=0 // pred_region
    _
  $region9: #{shared_network_a2c_forward.5} parent=0 // pred_fallthru
    _
  // Predicated region
  $region10: #{shared_network_a2c_forward.5} parent=0 // pred_check
    _
  $region11: #{shared_network_a2c_forward.5} parent=0 // pred_check_branch
    %13 = sbr.rel (0) target = $region13
  $region12: #{shared_network_a2c_forward.5} parent=0 // pred_region
    _
  $region13: #{shared_network_a2c_forward.5} parent=0 // pred_fallthru
    _
  %v14 = vld [vmem:[%s0] sm:$0xff]
  %v15 = vld [vmem:[%s0 + $0x8] sm:$0xff]
  %v16 = vld [vmem:[%s0 + $0x10] sm:$0xff]
  %v17 = vld [vmem:[%s0 + $0x18] sm:$0xff]
  %v18 = vld [vmem:[%s0 + $0x20] sm:$0xff]
  %v19 = vld [vmem:[%s0 + $0x28] sm:$0xff]
  %v20 = vld [vmem:[%s0 + $0x30] sm:$0xff]
  %v21 = vld [vmem:[%s0 + $0x38] sm:$0xff]
  %v22 = vld [vmem:[%s0 + $0x40] sm:$0xff]
  %v23 = vld [vmem:[%s0 + $0x48] sm:$0xff]
  %v24 = vld [vmem:[%s0 + $0x50] sm:$0xff]
  %v25 = vld [vmem:[%s0 + $0x58] sm:$0xff]
  %v26 = vld [vmem:[%s0 + $0x60] sm:$0xff]
  %v27 = vld [vmem:[%s0 + $0x68] sm:$0xff]
  %v28 = vld [vmem:[%s0 + $0x70] sm:$0xff]
  %v29 = vld [vmem:[%s0 + $0x78] sm:$0xff]
  %v30 = vld [vmem:[%s0 + $0x80] sm:$0xff]
  %v31 = vld [vmem:[%s0 + $0x88] sm:$0xff]
  %v32 = vld [vmem:[%s0 + $0x90] sm:$0xff]
  %v33 = vld [vmem:[%s0 + $0x98] sm:$0xff]
  %v34 = vld [vmem:[%s0 + $0xa0] sm:$0xff]
  %v35 = vld [vmem:[%s0 + $0xa8] sm:$0xff]
  %v36 = vld [vmem:[%s0 + $0xb0] sm:$0xff]
  %v37 = vld [vmem:[%s0 + $0xb8] sm:$0xff]
  %v38 = vld [vmem:[%s0 + $0xc0] sm:$0xff]
  %v39 = vld [vmem:[%s0 + $0xc8] sm:$0xff]
  %v40 = vld [vmem:[%s0 + $0xd0] sm:$0xff]
  %v41 = vld [vmem:[%s0 + $0xd8] sm:$0xff]
  %v42 = vld [vmem:[%s0 + $0xe0] sm:$0xff]
  %v43 = vld [vmem:[%s0 + $0xe8] sm:$0xff]
  %v44 = vld [vmem:[%s0 + $0xf0] sm:$0xff]
  %v45 = vld [vmem:[%s0 + $0xf8] sm:$0xff]
  %v46 = vld [vmem:[%s0 + $0x100] sm:$0xff]
  %v47 = vld [vmem:[%s0 + $0x108] sm:$0xff]
  %v48 = vld [vmem:[%s0 + $0x110] sm:$0xff]
  %v49 = vld [vmem:[%s0 + $0x118] sm:$0xff]
  %v50 = vld [vmem:[%s0 + $0x120] sm:$0xff]
  %v51 = vld [vmem:[%s0 + $0x128] sm:$0xff]
  %v52 = vld [vmem:[%s0 + $0x130] sm:$0xff]
  %v53 = vld [vmem:[%s0 + $0x138] sm:$0xff]
  %v54 = vld [vmem:[%s0 + $0x140] sm:$0xff]
  %v55 = vld [vmem:[%s0 + $0x148] sm:$0xff]
  %v56 = vld [vmem:[%s0 + $0x150] sm:$0xff]
  %v57 = vld [vmem:[%s0 + $0x158] sm:$0xff]
  %v58 = vld [vmem:[%s0 + $0x160] sm:$0xff]
  %v59 = vld [vmem:[%s0 + $0x168] sm:$0xff]
  %v60 = vld [vmem:[%s0 + $0x170] sm:$0xff]
  %v61 = vld [vmem:[%s0 + $0x178] sm:$0xff]
  %v62 = vld [vmem:[%s0 + $0x180] sm:$0xff]
  %v63 = vld [vmem:[%s0 + $0x188] sm:$0xff]
  %v64 = vld [vmem:[%s0 + $0x190] sm:$0xff]
  %v65 = vld [vmem:[%s0 + $0x198] sm:$0xff]
  %v66 = vld [vmem:[%s0 + $0x1a0] sm:$0xff]
  %v67 = vld [vmem:[%s0 + $0x1a8] sm:$0xff]
  %v68 = vld [vmem:[%s0 + $0x1b0] sm:$0xff]
  %v69 = vld [vmem:[%s0 + $0x1b8] sm:$0xff]
  %v70 = vld [vmem:[%s0 + $0x1c0] sm:$0xff]
  %v71 = vld [vmem:[%s0 + $0x1c8] sm:$0xff]
  %v72 = vld [vmem:[%s0 + $0x1d0] sm:$0xff]
  %v73 = vld [vmem:[%s0 + $0x1d8] sm:$0xff]
  %v74 = vld [vmem:[%s0 + $0x1e0] sm:$0xff]
  %v75 = vld [vmem:[%s0 + $0x1e8] sm:$0xff]
  %v76 = vld [vmem:[%s0 + $0x1f0] sm:$0xff]
  %v77 = vld [vmem:[%s0 + $0x1f8] sm:$0xff]
  %v78 = vld [vmem:[%s0 + $0x200] sm:$0xff]
  %v79 = vld [vmem:[%s0 + $0x208] sm:$0xff]
  %v80 = vld [vmem:[%s0 + $0x210] sm:$0xff]
  %v81 = vld [vmem:[%s0 + $0x218] sm:$0xff]
  %v82 = vld [vmem:[%s0 + $0x220] sm:$0xff]
  %v83 = vld [vmem:[%s0 + $0x228] sm:$0xff]
  %v84 = vld [vmem:[%s0 + $0x230] sm:$0xff]
  %v85 = vld [vmem:[%s0 + $0x238] sm:$0xff]
  %v86 = vld [vmem:[%s0 + $0x240] sm:$0xff]
  %v87 = vld [vmem:[%s0 + $0x248] sm:$0xff]
  %v88 = vld [vmem:[%s0 + $0x250] sm:$0xff]
  %v89 = vld [vmem:[%s0 + $0x258] sm:$0xff]
  %v90 = vld [vmem:[%s0 + $0x260] sm:$0xff]
  %v91 = vld [vmem:[%s0 + $0x268] sm:$0xff]
  %v92 = vld [vmem:[%s0 + $0x270] sm:$0xff]
  %v93 = vld [vmem:[%s0 + $0x278] sm:$0xff]
  %v94 = vld [vmem:[%s0 + $0x280] sm:$0xff]
  %v95 = vld [vmem:[%s0 + $0x288] sm:$0xff]
  %v96 = vld [vmem:[%s0 + $0x290] sm:$0xff]
  %v97 = vld [vmem:[%s0 + $0x298] sm:$0xff]
  %v98 = vld [vmem:[%s0 + $0x2a0] sm:$0xff]
  %v99 = vld [vmem:[%s0 + $0x2a8] sm:$0xff]
  %v100 = vld [vmem:[%s0 + $0x2b0] sm:$0xff]
  %v101 = vld [vmem:[%s0 + $0x2b8] sm:$0xff]
  %v102 = vld [vmem:[%s1] sm:$0xff]
  %v103 = vld [vmem:[%s1 + $0x8] sm:$0xff]
  %v104 = vld [vmem:[%s1 + $0x10] sm:$0xff]
  %v105 = vld [vmem:[%s1 + $0x18] sm:$0xff]
  %v106 = vld [vmem:[%s1 + $0x20] sm:$0xff]
  %v107 = vld [vmem:[%s1 + $0x28] sm:$0xff]
  %v108 = vld [vmem:[%s1 + $0x30] sm:$0xff]
  %v109 = vld [vmem:[%s1 + $0x38] sm:$0xff]
  %v110 = vld [vmem:[%s1 + $0x40] sm:$0xff]
  %v111 = vld [vmem:[%s1 + $0x48] sm:$0xff]
  %v112 = vld [vmem:[%s1 + $0x50] sm:$0xff]
  %v113 = vld [vmem:[%s1 + $0x58] sm:$0xff]
  %v114 = vld [vmem:[%s1 + $0x60] sm:$0xff]
  %v115 = vld [vmem:[%s1 + $0x68] sm:$0xff]
  %v116 = vld [vmem:[%s1 + $0x70] sm:$0xff]
  %v117 = vld [vmem:[%s1 + $0x78] sm:$0xff]
  %v118 = vld [vmem:[%s1 + $0x80] sm:$0xff]
  %v119 = vld [vmem:[%s1 + $0x88] sm:$0xff]
  %v120 = vld [vmem:[%s1 + $0x90] sm:$0xff]
  %v121 = vld [vmem:[%s1 + $0x98] sm:$0xff]
  %v122 = vld [vmem:[%s1 + $0xa0] sm:$0xff]
  %v123 = vld [vmem:[%s1 + $0xa8] sm:$0xff]
  %v124 = vld [vmem:[%s1 + $0xb0] sm:$0xff]
  %v125 = vld [vmem:[%s1 + $0xb8] sm:$0xff]
  %v126 = vld [vmem:[%s1 + $0xc0] sm:$0xff]
  %v127 = vld [vmem:[%s1 + $0xc8] sm:$0xff]
  %v128 = vld [vmem:[%s1 + $0xd0] sm:$0xff]
  %v129 = vld [vmem:[%s1 + $0xd8] sm:$0xff]
  %v130 = vld [vmem:[%s1 + $0xe0] sm:$0xff]
  %v131 = vld [vmem:[%s1 + $0xe8] sm:$0xff]
  %v132 = vld [vmem:[%s1 + $0xf0] sm:$0xff]
  %v133 = vld [vmem:[%s1 + $0xf8] sm:$0xff]
  %v134 = vld [vmem:[%s1 + $0x100] sm:$0xff]
  %v135 = vld [vmem:[%s1 + $0x108] sm:$0xff]
  %v136 = vld [vmem:[%s1 + $0x110] sm:$0xff]
  %v137 = vld [vmem:[%s1 + $0x118] sm:$0xff]
  %v138 = vld [vmem:[%s1 + $0x120] sm:$0xff]
  %v139 = vld [vmem:[%s1 + $0x128] sm:$0xff]
  %v140 = vld [vmem:[%s1 + $0x130] sm:$0xff]
  %v141 = vld [vmem:[%s1 + $0x138] sm:$0xff]
  %v142 = vld [vmem:[%s1 + $0x140] sm:$0xff]
  %v143 = vld [vmem:[%s1 + $0x148] sm:$0xff]
  %v144 = vld [vmem:[%s1 + $0x150] sm:$0xff]
  %v145 = vld [vmem:[%s1 + $0x158] sm:$0xff]
  %v146 = vld [vmem:[%s1 + $0x160] sm:$0xff]
  %v147 = vld [vmem:[%s1 + $0x168] sm:$0xff]
  %v148 = vld [vmem:[%s1 + $0x170] sm:$0xff]
  %v149 = vld [vmem:[%s1 + $0x178] sm:$0xff]
  %v150 = vld [vmem:[%s1 + $0x180] sm:$0xff]
  %v151 = vld [vmem:[%s1 + $0x188] sm:$0xff]
  %v152 = vld [vmem:[%s1 + $0x190] sm:$0xff]
  %v153 = vld [vmem:[%s1 + $0x198] sm:$0xff]
  %v154 = vld [vmem:[%s1 + $0x1a0] sm:$0xff]
  %v155 = vld [vmem:[%s1 + $0x1a8] sm:$0xff]
  %v156 = vld [vmem:[%s1 + $0x1b0] sm:$0xff]
  %v157 = vld [vmem:[%s1 + $0x1b8] sm:$0xff]
  %v158 = vld [vmem:[%s1 + $0x1c0] sm:$0xff]
  %v159 = vld [vmem:[%s1 + $0x1c8] sm:$0xff]
  %v160 = vld [vmem:[%s1 + $0x1d0] sm:$0xff]
  %v161 = vld [vmem:[%s1 + $0x1d8] sm:$0xff]
  %v162 = vld [vmem:[%s1 + $0x1e0] sm:$0xff]
  %v163 = vld [vmem:[%s1 + $0x1e8] sm:$0xff]
  %v164 = vld [vmem:[%s1 + $0x1f0] sm:$0xff]
  %v165 = vld [vmem:[%s1 + $0x1f8] sm:$0xff]
  %v166 = vld [vmem:[%s2] sm:$0x1]
  %v168 = vlaneseq
  %v169 = vshrl.u32 %v168, 7
  %v170 = vsub.s32 0, %v169
  %v171 = vrot.slane %v166, %v170
  %173 = vmatprep.subr.mxu0 0.0
  %174 = vmatpush1.msra.mxu0 %v102
  %175 = vmatprep.subr.mxu0 0.0
  %176 = vmatpush1.msra.mxu0 %v103
  %177 = vmatprep.subr.mxu0 0.0
  %178 = vmatpush1.msra.mxu0 %v104
  %179 = vmatprep.subr.mxu0 0.0
  %180 = vmatpush1.msra.mxu0 %v105
  %181 = vmatprep.subr.mxu0 0.0
  %182 = vmatpush1.msra.mxu0 %v106
  %183 = vmatprep.subr.mxu0 0.0
  %184 = vmatpush1.msra.mxu0 %v107
  %185 = vmatprep.subr.mxu0 0.0
  %186 = vmatpush1.msra.mxu0 %v108
  %187 = vmatprep.subr.mxu0 0.0
  %188 = vmatpush1.msra.mxu0 %v109
  %189 = vmatprep.subr.mxu0 0.0
  %190 = vmatpush1.msra.mxu0 %v110
  %191 = vmatprep.subr.mxu0 0.0
  %192 = vmatpush1.msra.mxu0 %v111
  %193 = vmatprep.subr.mxu0 0.0
  %194 = vmatpush1.msra.mxu0 %v112
  %195 = vmatprep.subr.mxu0 0.0
  %196 = vmatpush1.msra.mxu0 %v113
  %197 = vmatprep.subr.mxu0 0.0
  %198 = vmatpush1.msra.mxu0 %v114
  %199 = vmatprep.subr.mxu0 0.0
  %200 = vmatpush1.msra.mxu0 %v115
  %201 = vmatprep.subr.mxu0 0.0
  %202 = vmatpush1.msra.mxu0 %v116
  %203 = vmatprep.subr.mxu0 0.0
  %204 = vmatpush1.msra.mxu0 %v117
  %205 = vmatprep.subr.mxu0 0.0
  %206 = vmatpush1.msra.mxu0 %v118
  %207 = vmatprep.subr.mxu0 0.0
  %208 = vmatpush1.msra.mxu0 %v119
  %209 = vmatprep.subr.mxu0 0.0
  %210 = vmatpush1.msra.mxu0 %v120
  %211 = vmatprep.subr.mxu0 0.0
  %212 = vmatpush1.msra.mxu0 %v121
  %213 = vmatprep.subr.mxu0 0.0
  %214 = vmatpush1.msra.mxu0 %v122
  %215 = vmatprep.subr.mxu0 0.0
  %216 = vmatpush1.msra.mxu0 %v123
  %217 = vmatprep.subr.mxu0 0.0
  %218 = vmatpush1.msra.mxu0 %v124
  %219 = vmatprep.subr.mxu0 0.0
  %220 = vmatpush1.msra.mxu0 %v125
  %221 = vmatprep.subr.mxu0 0.0
  %222 = vmatpush1.msra.mxu0 %v126
  %223 = vmatprep.subr.mxu0 0.0
  %224 = vmatpush1.msra.mxu0 %v127
  %225 = vmatprep.subr.mxu0 0.0
  %226 = vmatpush1.msra.mxu0 %v128
  %227 = vmatprep.subr.mxu0 0.0
  %228 = vmatpush1.msra.mxu0 %v129
  %229 = vmatprep.subr.mxu0 0.0
  %230 = vmatpush1.msra.mxu0 %v130
  %231 = vmatprep.subr.mxu0 0.0
  %232 = vmatpush1.msra.mxu0 %v131
  %233 = vmatprep.subr.mxu0 0.0
  %234 = vmatpush1.msra.mxu0 %v132
  %235 = vmatprep.subr.mxu0 0.0
  %236 = vmatpush1.msra.mxu0 %v133
  %237 = vmatprep.mubr.f32.mxu0 %v15
  %238 = vmatmul.mubr.f32.gmra.mrb[0].mxu0 %v14
  %v239 = vpop.f32.mrb[0].mxu0
  %v240 = vadd.f32 %v171, %v239
  %v241 = vpop.f32.mrb[0].mxu0
  %242 = vmatprep.mubr.f32.mxu0 %v19
  %243 = vmatmul.mubr.f32.gmra.mrb[0].mxu0 %v18
  %v244 = vpop.f32.mrb[0].mxu0
  %v245 = vadd.f32 %v171, %v244
  %v246 = vpop.f32.mrb[0].mxu0
  %247 = vmatprep.mubr.f32.mxu0 %v23
  %248 = vmatmul.mubr.f32.gmra.mrb[0].mxu0 %v22
  %v249 = vpop.f32.mrb[0].mxu0
  %v250 = vadd.f32 %v171, %v249
  %v251 = vpop.f32.mrb[0].mxu0
  %252 = vmatprep.mubr.f32.mxu0 %v27
  %253 = vmatmul.mubr.f32.gmra.mrb[0].mxu0 %v26
  %v254 = vpop.f32.mrb[0].mxu0
  %v255 = vadd.f32 %v171, %v254
  %v256 = vpop.f32.mrb[0].mxu0
  %257 = vmatprep.mubr.f32.mxu0 %v31
  %258 = vmatmul.mubr.f32.gmra.mrb[0].mxu0 %v30
  %v259 = vpop.f32.mrb[0].mxu0
  %v260 = vadd.f32 %v171, %v259
  %v261 = vpop.f32.mrb[0].mxu0
  %262 = vmatprep.mubr.f32.mxu0 %v35
  %263 = vmatmul.mubr.f32.gmra.mrb[0].mxu0 %v34
  %v264 = vpop.f32.mrb[0].mxu0
  %v265 = vadd.f32 %v171, %v264
  %v266 = vpop.f32.mrb[0].mxu0
  %267 = vmatprep.mubr.f32.mxu0 %v39
  %268 = vmatmul.mubr.f32.gmra.mrb[0].mxu0 %v38
  %v269 = vpop.f32.mrb[0].mxu0
  %v270 = vadd.f32 %v171, %v269
  %v271 = vpop.f32.mrb[0].mxu0
  %272 = vmatprep.mubr.f32.mxu0 %v43
  %273 = vmatmul.mubr.f32.gmra.mrb[0].mxu0 %v42
  %v274 = vpop.f32.mrb[0].mxu0
  %v275 = vadd.f32 %v171, %v274
  %v276 = vpop.f32.mrb[0].mxu0
  %277 = vmatprep.mubr.f32.mxu0 %v47
  %278 = vmatmul.mubr.f32.gmra.mrb[0].mxu0 %v46
  %v279 = vpop.f32.mrb[0].mxu0
  %v280 = vadd.f32 %v171, %v279
  %v281 = vpop.f32.mrb[0].mxu0
  %282 = vmatprep.mubr.f32.mxu0 %v51
  %283 = vmatmul.mubr.f32.gmra.mrb[0].mxu0 %v50
  %v284 = vpop.f32.mrb[0].mxu0
  %v285 = vadd.f32 %v171, %v284
  %v286 = vpop.f32.mrb[0].mxu0
  %287 = vmatprep.mubr.f32.mxu0 %v55
  %288 = vmatmul.mubr.f32.gmra.mrb[0].mxu0 %v54
  %v289 = vpop.f32.mrb[0].mxu0
  %v290 = vadd.f32 %v171, %v289
  %v291 = vpop.f32.mrb[0].mxu0
  %292 = vmatprep.mubr.f32.mxu0 %v59
  %293 = vmatmul.mubr.f32.gmra.mrb[0].mxu0 %v58
  %v294 = vpop.f32.mrb[0].mxu0
  %v295 = vadd.f32 %v171, %v294
  %v296 = vpop.f32.mrb[0].mxu0
  %297 = vmatprep.mubr.f32.mxu0 %v63
  %298 = vmatmul.mubr.f32.gmra.mrb[0].mxu0 %v62
  %v299 = vpop.f32.mrb[0].mxu0
  %v300 = vadd.f32 %v171, %v299
  %v301 = vpop.f32.mrb[0].mxu0
  %302 = vmatprep.mubr.f32.mxu0 %v67
  %303 = vmatmul.mubr.f32.gmra.mrb[0].mxu0 %v66
  %v304 = vpop.f32.mrb[0].mxu0
  %v305 = vadd.f32 %v171, %v304
  %v306 = vpop.f32.mrb[0].mxu0
  %307 = vmatprep.mubr.f32.mxu0 %v71
  %308 = vmatmul.mubr.f32.gmra.mrb[0].mxu0 %v70
  %v309 = vpop.f32.mrb[0].mxu0
  %v310 = vadd.f32 %v171, %v309
  %v311 = vpop.f32.mrb[0].mxu0
  %312 = vmatprep.mubr.f32.mxu0 %v75
  %313 = vmatmul.mubr.f32.gmra.mrb[0].mxu0 %v74
  %v314 = vpop.f32.mrb[0].mxu0
  %v315 = vadd.f32 %v171, %v314
  %v316 = vpop.f32.mrb[0].mxu0
  %317 = vmatprep.mubr.f32.mxu0 %v79
  %318 = vmatmul.mubr.f32.gmra.mrb[0].mxu0 %v78
  %v319 = vpop.f32.mrb[0].mxu0
  %v320 = vadd.f32 %v171, %v319
  %v321 = vpop.f32.mrb[0].mxu0
  %322 = vmatprep.mubr.f32.mxu0 %v83
  %323 = vmatmul.mubr.f32.gmra.mrb[0].mxu0 %v82
  %v324 = vpop.f32.mrb[0].mxu0
  %v325 = vadd.f32 %v171, %v324
  %v326 = vpop.f32.mrb[0].mxu0
  %327 = vmatprep.mubr.f32.mxu0 %v87
  %328 = vmatmul.mubr.f32.gmra.mrb[0].mxu0 %v86
  %v329 = vpop.f32.mrb[0].mxu0
  %v330 = vadd.f32 %v171, %v329
  %v331 = vpop.f32.mrb[0].mxu0
  %332 = vmatprep.mubr.f32.mxu0 %v91
  %333 = vmatmul.mubr.f32.gmra.mrb[0].mxu0 %v90
  %v334 = vpop.f32.mrb[0].mxu0
  %v335 = vadd.f32 %v171, %v334
  %v336 = vpop.f32.mrb[0].mxu0
  %337 = vmatprep.mubr.f32.mxu0 %v95
  %338 = vmatmul.mubr.f32.gmra.mrb[0].mxu0 %v94
  %v339 = vpop.f32.mrb[0].mxu0
  %v340 = vadd.f32 %v171, %v339
  %v341 = vpop.f32.mrb[0].mxu0
  %342 = vmatprep.mubr.f32.mxu0 %v99
  %343 = vmatmul.mubr.f32.gmra.mrb[0].mxu0 %v98
  %v344 = vpop.f32.mrb[0].mxu0
  %v345 = vadd.f32 %v171, %v344
  %v346 = vpop.f32.mrb[0].mxu0
  %347 = vdwg.mxu0
  %348 = vmatprep.subr.mxu0 0.0
  %349 = vmatpush1.msra.mxu0 %v134
  %350 = vmatprep.subr.mxu0 0.0
  %351 = vmatpush1.msra.mxu0 %v135
  %352 = vmatprep.subr.mxu0 0.0
  %353 = vmatpush1.msra.mxu0 %v136
  %354 = vmatprep.subr.mxu0 0.0
  %355 = vmatpush1.msra.mxu0 %v137
  %356 = vmatprep.subr.mxu0 0.0
  %357 = vmatpush1.msra.mxu0 %v138
  %358 = vmatprep.subr.mxu0 0.0
  %359 = vmatpush1.msra.mxu0 %v139
  %360 = vmatprep.subr.mxu0 0.0
  %361 = vmatpush1.msra.mxu0 %v140
  %362 = vmatprep.subr.mxu0 0.0
  %363 = vmatpush1.msra.mxu0 %v141
  %364 = vmatprep.subr.mxu0 0.0
  %365 = vmatpush1.msra.mxu0 %v142
  %366 = vmatprep.subr.mxu0 0.0
  %367 = vmatpush1.msra.mxu0 %v143
  %368 = vmatprep.subr.mxu0 0.0
  %369 = vmatpush1.msra.mxu0 %v144
  %370 = vmatprep.subr.mxu0 0.0
  %371 = vmatpush1.msra.mxu0 %v145
  %372 = vmatprep.subr.mxu0 0.0
  %373 = vmatpush1.msra.mxu0 %v146
  %374 = vmatprep.subr.mxu0 0.0
  %375 = vmatpush1.msra.mxu0 %v147
  %376 = vmatprep.subr.mxu0 0.0
  %377 = vmatpush1.msra.mxu0 %v148
  %378 = vmatprep.subr.mxu0 0.0
  %379 = vmatpush1.msra.mxu0 %v149
  %380 = vmatprep.subr.mxu0 0.0
  %381 = vmatpush1.msra.mxu0 %v150
  %382 = vmatprep.subr.mxu0 0.0
  %383 = vmatpush1.msra.mxu0 %v151
  %384 = vmatprep.subr.mxu0 0.0
  %385 = vmatpush1.msra.mxu0 %v152
  %386 = vmatprep.subr.mxu0 0.0
  %387 = vmatpush1.msra.mxu0 %v153
  %388 = vmatprep.subr.mxu0 0.0
  %389 = vmatpush1.msra.mxu0 %v154
  %390 = vmatprep.subr.mxu0 0.0
  %391 = vmatpush1.msra.mxu0 %v155
  %392 = vmatprep.subr.mxu0 0.0
  %393 = vmatpush1.msra.mxu0 %v156
  %394 = vmatprep.subr.mxu0 0.0
  %395 = vmatpush1.msra.mxu0 %v157
  %396 = vmatprep.subr.mxu0 0.0
  %397 = vmatpush1.msra.mxu0 %v158
  %398 = vmatprep.subr.mxu0 0.0
  %399 = vmatpush1.msra.mxu0 %v159
  %400 = vmatprep.subr.mxu0 0.0
  %401 = vmatpush1.msra.mxu0 %v160
  %402 = vmatprep.subr.mxu0 0.0
  %403 = vmatpush1.msra.mxu0 %v161
  %404 = vmatprep.subr.mxu0 0.0
  %405 = vmatpush1.msra.mxu0 %v162
  %406 = vmatprep.subr.mxu0 0.0
  %407 = vmatpush1.msra.mxu0 %v163
  %408 = vmatprep.subr.mxu0 0.0
  %409 = vmatpush1.msra.mxu0 %v164
  %410 = vmatprep.subr.mxu0 0.0
  %411 = vmatpush1.msra.mxu0 %v165
  %412 = vmatprep.mubr.f32.mxu0 %v17
  %413 = vmatmul.mubr.f32.gmra.mrb[0].mxu0 %v16
  %v414 = vpop.f32.mrb[0].mxu0
  %v415 = vadd.f32 %v240, %v414
  %v416 = vpop.f32.mrb[0].mxu0
  %417 = vmatprep.mubr.f32.mxu0 %v21
  %418 = vmatmul.mubr.f32.gmra.mrb[0].mxu0 %v20
  %v419 = vpop.f32.mrb[0].mxu0
  %v420 = vadd.f32 %v245, %v419
  %v421 = vpop.f32.mrb[0].mxu0
  %422 = vmatprep.mubr.f32.mxu0 %v25
  %423 = vmatmul.mubr.f32.gmra.mrb[0].mxu0 %v24
  %v424 = vpop.f32.mrb[0].mxu0
  %v425 = vadd.f32 %v250, %v424
  %v426 = vpop.f32.mrb[0].mxu0
  %427 = vmatprep.mubr.f32.mxu0 %v29
  %428 = vmatmul.mubr.f32.gmra.mrb[0].mxu0 %v28
  %v429 = vpop.f32.mrb[0].mxu0
  %v430 = vadd.f32 %v255, %v429
  %v431 = vpop.f32.mrb[0].mxu0
  %432 = vmatprep.mubr.f32.mxu0 %v33
  %433 = vmatmul.mubr.f32.gmra.mrb[0].mxu0 %v32
  %v434 = vpop.f32.mrb[0].mxu0
  %v435 = vadd.f32 %v260, %v434
  %v436 = vpop.f32.mrb[0].mxu0
  %437 = vmatprep.mubr.f32.mxu0 %v37
  %438 = vmatmul.mubr.f32.gmra.mrb[0].mxu0 %v36
  %v439 = vpop.f32.mrb[0].mxu0
  %v440 = vadd.f32 %v265, %v439
  %v441 = vpop.f32.mrb[0].mxu0
  %442 = vmatprep.mubr.f32.mxu0 %v41
  %443 = vmatmul.mubr.f32.gmra.mrb[0].mxu0 %v40
  %v444 = vpop.f32.mrb[0].mxu0
  %v445 = vadd.f32 %v270, %v444
  %v446 = vpop.f32.mrb[0].mxu0
  %447 = vmatprep.mubr.f32.mxu0 %v45
  %448 = vmatmul.mubr.f32.gmra.mrb[0].mxu0 %v44
  %v449 = vpop.f32.mrb[0].mxu0
  %v450 = vadd.f32 %v275, %v449
  %v451 = vpop.f32.mrb[0].mxu0
  %452 = vmatprep.mubr.f32.mxu0 %v49
  %453 = vmatmul.mubr.f32.gmra.mrb[0].mxu0 %v48
  %v454 = vpop.f32.mrb[0].mxu0
  %v455 = vadd.f32 %v280, %v454
  %v456 = vpop.f32.mrb[0].mxu0
  %457 = vmatprep.mubr.f32.mxu0 %v53
  %458 = vmatmul.mubr.f32.gmra.mrb[0].mxu0 %v52
  %v459 = vpop.f32.mrb[0].mxu0
  %v460 = vadd.f32 %v285, %v459
  %v461 = vpop.f32.mrb[0].mxu0
  %462 = vmatprep.mubr.f32.mxu0 %v57
  %463 = vmatmul.mubr.f32.gmra.mrb[0].mxu0 %v56
  %v464 = vpop.f32.mrb[0].mxu0
  %v465 = vadd.f32 %v290, %v464
  %v466 = vpop.f32.mrb[0].mxu0
  %467 = vmatprep.mubr.f32.mxu0 %v61
  %468 = vmatmul.mubr.f32.gmra.mrb[0].mxu0 %v60
  %v469 = vpop.f32.mrb[0].mxu0
  %v470 = vadd.f32 %v295, %v469
  %v471 = vpop.f32.mrb[0].mxu0
  %472 = vmatprep.mubr.f32.mxu0 %v65
  %473 = vmatmul.mubr.f32.gmra.mrb[0].mxu0 %v64
  %v474 = vpop.f32.mrb[0].mxu0
  %v475 = vadd.f32 %v300, %v474
  %v476 = vpop.f32.mrb[0].mxu0
  %477 = vmatprep.mubr.f32.mxu0 %v69
  %478 = vmatmul.mubr.f32.gmra.mrb[0].mxu0 %v68
  %v479 = vpop.f32.mrb[0].mxu0
  %v480 = vadd.f32 %v305, %v479
  %v481 = vpop.f32.mrb[0].mxu0
  %482 = vmatprep.mubr.f32.mxu0 %v73
  %483 = vmatmul.mubr.f32.gmra.mrb[0].mxu0 %v72
  %v484 = vpop.f32.mrb[0].mxu0
  %v485 = vadd.f32 %v310, %v484
  %v486 = vpop.f32.mrb[0].mxu0
  %487 = vmatprep.mubr.f32.mxu0 %v77
  %488 = vmatmul.mubr.f32.gmra.mrb[0].mxu0 %v76
  %v489 = vpop.f32.mrb[0].mxu0
  %v490 = vadd.f32 %v315, %v489
  %v491 = vpop.f32.mrb[0].mxu0
  %492 = vmatprep.mubr.f32.mxu0 %v81
  %493 = vmatmul.mubr.f32.gmra.mrb[0].mxu0 %v80
  %v494 = vpop.f32.mrb[0].mxu0
  %v495 = vadd.f32 %v320, %v494
  %v496 = vpop.f32.mrb[0].mxu0
  %497 = vmatprep.mubr.f32.mxu0 %v85
  %498 = vmatmul.mubr.f32.gmra.mrb[0].mxu0 %v84
  %v499 = vpop.f32.mrb[0].mxu0
  %v500 = vadd.f32 %v325, %v499
  %v501 = vpop.f32.mrb[0].mxu0
  %502 = vmatprep.mubr.f32.mxu0 %v89
  %503 = vmatmul.mubr.f32.gmra.mrb[0].mxu0 %v88
  %v504 = vpop.f32.mrb[0].mxu0
  %v505 = vadd.f32 %v330, %v504
  %v506 = vpop.f32.mrb[0].mxu0
  %507 = vmatprep.mubr.f32.mxu0 %v93
  %508 = vmatmul.mubr.f32.gmra.mrb[0].mxu0 %v92
  %v509 = vpop.f32.mrb[0].mxu0
  %v510 = vadd.f32 %v335, %v509
  %v511 = vpop.f32.mrb[0].mxu0
  %512 = vmatprep.mubr.f32.mxu0 %v97
  %513 = vmatmul.mubr.f32.gmra.mrb[0].mxu0 %v96
  %v514 = vpop.f32.mrb[0].mxu0
  %v515 = vadd.f32 %v340, %v514
  %v516 = vpop.f32.mrb[0].mxu0
  %517 = vmatprep.mubr.f32.mxu0 %v101
  %518 = vmatmul.mubr.f32.gmra.mrb[0].mxu0 %v100
  %v519 = vpop.f32.mrb[0].mxu0
  %v520 = vadd.f32 %v345, %v519
  %v521 = vpop.f32.mrb[0].mxu0
  %522 = vdwg.mxu0
  %v523 = vmax.f32 %v415, 0.0
  %v524 = vmax.f32 %v420, 0.0
  %v525 = vmax.f32 %v425, 0.0
  %v526 = vmax.f32 %v430, 0.0
  %v527 = vmax.f32 %v435, 0.0
  %v528 = vmax.f32 %v440, 0.0
  %v529 = vmax.f32 %v445, 0.0
  %v530 = vmax.f32 %v450, 0.0
  %v531 = vmax.f32 %v455, 0.0
  %v532 = vmax.f32 %v460, 0.0
  %v533 = vmax.f32 %v465, 0.0
  %v534 = vmax.f32 %v470, 0.0
  %v535 = vmax.f32 %v475, 0.0
  %v536 = vmax.f32 %v480, 0.0
  %v537 = vmax.f32 %v485, 0.0
  %v538 = vmax.f32 %v490, 0.0
  %v539 = vmax.f32 %v495, 0.0
  %v540 = vmax.f32 %v500, 0.0
  %v541 = vmax.f32 %v505, 0.0
  %v542 = vmax.f32 %v510, 0.0
  %v543 = vmax.f32 %v515, 0.0
  %v544 = vmax.f32 %v520, 0.0
  %vm545 = vcmask 523264
  %546 = vst.msk [vmem:[%s3] sm:$0xff] %vm545, %v523
  %547 = vst.msk [vmem:[%s3 + $0x8] sm:$0xff] %vm545, %v524
  %548 = vst.msk [vmem:[%s3 + $0x10] sm:$0xff] %vm545, %v525
  %549 = vst.msk [vmem:[%s3 + $0x18] sm:$0xff] %vm545, %v526
  %550 = vst.msk [vmem:[%s3 + $0x20] sm:$0xff] %vm545, %v527
  %551 = vst.msk [vmem:[%s3 + $0x28] sm:$0xff] %vm545, %v528
  %552 = vst.msk [vmem:[%s3 + $0x30] sm:$0xff] %vm545, %v529
  %553 = vst.msk [vmem:[%s3 + $0x38] sm:$0xff] %vm545, %v530
  %554 = vst.msk [vmem:[%s3 + $0x40] sm:$0xff] %vm545, %v531
  %555 = vst.msk [vmem:[%s3 + $0x48] sm:$0xff] %vm545, %v532
  %556 = vst.msk [vmem:[%s3 + $0x50] sm:$0xff] %vm545, %v533
  %557 = vst.msk [vmem:[%s3 + $0x58] sm:$0xff] %vm545, %v534
  %558 = vst.msk [vmem:[%s3 + $0x60] sm:$0xff] %vm545, %v535
  %559 = vst.msk [vmem:[%s3 + $0x68] sm:$0xff] %vm545, %v536
  %560 = vst.msk [vmem:[%s3 + $0x70] sm:$0xff] %vm545, %v537
  %561 = vst.msk [vmem:[%s3 + $0x78] sm:$0xff] %vm545, %v538
  %562 = vst.msk [vmem:[%s3 + $0x80] sm:$0xff] %vm545, %v539
  %563 = vst.msk [vmem:[%s3 + $0x88] sm:$0xff] %vm545, %v540
  %564 = vst.msk [vmem:[%s3 + $0x90] sm:$0xff] %vm545, %v541
  %565 = vst.msk [vmem:[%s3 + $0x98] sm:$0xff] %vm545, %v542
  %566 = vst.msk [vmem:[%s3 + $0xa0] sm:$0xff] %vm545, %v543
  %567 = vst.msk [vmem:[%s3 + $0xa8] sm:$0xff] %vm545, %v544
  // Predicated region
  $region14: #{shared_network_a2c_forward.5} parent=0 // pred_check
    _
  $region15: #{shared_network_a2c_forward.5} parent=0 // pred_check_branch
    %569 = sbr.rel (0) target = $region17
  $region16: #{shared_network_a2c_forward.5} parent=0 // pred_region
    _
  $region17: #{shared_network_a2c_forward.5} parent=0 // pred_fallthru
    _
  // Predicated region
  $region18: #{shared_network_a2c_forward.5} parent=0 // pred_check
    _
  $region19: #{shared_network_a2c_forward.5} parent=0 // pred_check_branch
    %571 = sbr.rel (0) target = $region21
  $region20: #{shared_network_a2c_forward.5} parent=0 // pred_region
    _
  $region21: #{shared_network_a2c_forward.5} parent=0 // pred_fallthru
    _

// kernel: shared_network_a2c_forward.6
$region0: #{shared_network_a2c_forward.6}
  #allocation0 [shape = 'u32[]', space=smem, size = 0x4, offset = 0x4, fixed_abs, tag = 'smem constant byte address 0x4 - core index']
  #allocation1 [shape = 'u32[144,128]{1,0:T(1,128)}', space=vmem, size = 0x12000, scoped, tag = 'internal scratch']
  %s0 = inlined_call_operand.vmem [shape: f32[112,576], index: 0, kind: input, shape index: {}]
  %s1 = inlined_call_operand.vmem [shape: f32[576,64], index: 1, kind: input, shape index: {}]
  %s2 = inlined_call_operand.vmem [shape: f32[1,64], index: 2, kind: input, shape index: {}]
  %s3 = inlined_call_operand.vmem [shape: f32[112,64], index: 3, kind: output, shape index: {}]
  %s4 = sld [smem:[#allocation0]]
  $region22: #{shared_network_a2c_forward.6} parent=0
    _
  %s6 = ssub.s32 1, %s4
  %s7 = scalar_select 0, %s6, %s4
  // Predicated region
  $region2: #{shared_network_a2c_forward.6} parent=0 // pred_check
    _
  $region3: #{shared_network_a2c_forward.6} parent=0 // pred_check_branch
    %9 = sbr.rel (0) target = $region5
  $region4: #{shared_network_a2c_forward.6} parent=0 // pred_region
    _
  $region5: #{shared_network_a2c_forward.6} parent=0 // pred_fallthru
    _
  // Predicated region
  $region6: #{shared_network_a2c_forward.6} parent=0 // pred_check
    _
  $region7: #{shared_network_a2c_forward.6} parent=0 // pred_check_branch
    %11 = sbr.rel (0) target = $region9
  $region8: #{shared_network_a2c_forward.6} parent=0 // pred_region
    _
  $region9: #{shared_network_a2c_forward.6} parent=0 // pred_fallthru
    _
  // Predicated region
  $region10: #{shared_network_a2c_forward.6} parent=0 // pred_check
    _
  $region11: #{shared_network_a2c_forward.6} parent=0 // pred_check_branch
    %13 = sbr.rel (0) target = $region13
  $region12: #{shared_network_a2c_forward.6} parent=0 // pred_region
    _
  $region13: #{shared_network_a2c_forward.6} parent=0 // pred_fallthru
    _
  %v14 = vld [vmem:[%s0] sm:$0xff]
  %v15 = vld [vmem:[%s0 + $0x8] sm:$0xff]
  %v16 = vld [vmem:[%s0 + $0x10] sm:$0xff]
  %v17 = vld [vmem:[%s0 + $0x18] sm:$0xff]
  %v18 = vld [vmem:[%s0 + $0x20] sm:$0xff]
  %v19 = vld [vmem:[%s0 + $0x28] sm:$0xff]
  %v20 = vld [vmem:[%s0 + $0x30] sm:$0xff]
  %v21 = vld [vmem:[%s0 + $0x38] sm:$0xff]
  %v22 = vld [vmem:[%s0 + $0x40] sm:$0xff]
  %v23 = vld [vmem:[%s0 + $0x48] sm:$0xff]
  %v24 = vld [vmem:[%s0 + $0x50] sm:$0xff]
  %v25 = vld [vmem:[%s0 + $0x58] sm:$0xff]
  %v26 = vld [vmem:[%s0 + $0x60] sm:$0xff]
  %v27 = vld [vmem:[%s0 + $0x68] sm:$0xff]
  %v28 = vld [vmem:[%s0 + $0x70] sm:$0xff]
  %v29 = vld [vmem:[%s0 + $0x78] sm:$0xff]
  %v30 = vld [vmem:[%s0 + $0x80] sm:$0xff]
  %v31 = vld [vmem:[%s0 + $0x88] sm:$0xff]
  %v32 = vld [vmem:[%s0 + $0x90] sm:$0xff]
  %v33 = vld [vmem:[%s0 + $0x98] sm:$0xff]
  %v34 = vld [vmem:[%s0 + $0xa0] sm:$0xff]
  %v35 = vld [vmem:[%s0 + $0xa8] sm:$0xff]
  %v36 = vld [vmem:[%s0 + $0xb0] sm:$0xff]
  %v37 = vld [vmem:[%s0 + $0xb8] sm:$0xff]
  %v38 = vld [vmem:[%s0 + $0xc0] sm:$0xff]
  %v39 = vld [vmem:[%s0 + $0xc8] sm:$0xff]
  %v40 = vld [vmem:[%s0 + $0xd0] sm:$0xff]
  %v41 = vld [vmem:[%s0 + $0xd8] sm:$0xff]
  %v42 = vld [vmem:[%s0 + $0xe0] sm:$0xff]
  %v43 = vld [vmem:[%s0 + $0xe8] sm:$0xff]
  %v44 = vld [vmem:[%s0 + $0xf0] sm:$0xff]
  %v45 = vld [vmem:[%s0 + $0xf8] sm:$0xff]
  %v46 = vld [vmem:[%s0 + $0x100] sm:$0xff]
  %v47 = vld [vmem:[%s0 + $0x108] sm:$0xff]
  %v48 = vld [vmem:[%s0 + $0x110] sm:$0xff]
  %v49 = vld [vmem:[%s0 + $0x118] sm:$0xff]
  %v50 = vld [vmem:[%s0 + $0x120] sm:$0xff]
  %v51 = vld [vmem:[%s0 + $0x128] sm:$0xff]
  %v52 = vld [vmem:[%s0 + $0x130] sm:$0xff]
  %v53 = vld [vmem:[%s0 + $0x138] sm:$0xff]
  %v54 = vld [vmem:[%s0 + $0x140] sm:$0xff]
  %v55 = vld [vmem:[%s0 + $0x148] sm:$0xff]
  %v56 = vld [vmem:[%s0 + $0x150] sm:$0xff]
  %v57 = vld [vmem:[%s0 + $0x158] sm:$0xff]
  %v58 = vld [vmem:[%s0 + $0x160] sm:$0xff]
  %v59 = vld [vmem:[%s0 + $0x168] sm:$0xff]
  %v60 = vld [vmem:[%s0 + $0x170] sm:$0xff]
  %v61 = vld [vmem:[%s0 + $0x178] sm:$0xff]
  %v62 = vld [vmem:[%s0 + $0x180] sm:$0xff]
  %v63 = vld [vmem:[%s0 + $0x188] sm:$0xff]
  %v64 = vld [vmem:[%s0 + $0x190] sm:$0xff]
  %v65 = vld [vmem:[%s0 + $0x198] sm:$0xff]
  %v66 = vld [vmem:[%s0 + $0x1a0] sm:$0xff]
  %v67 = vld [vmem:[%s0 + $0x1a8] sm:$0xff]
  %v68 = vld [vmem:[%s0 + $0x1b0] sm:$0xff]
  %v69 = vld [vmem:[%s0 + $0x1b8] sm:$0xff]
  %v70 = vld [vmem:[%s0 + $0x1c0] sm:$0xff]
  %v71 = vld [vmem:[%s0 + $0x1c8] sm:$0xff]
  %v72 = vld [vmem:[%s0 + $0x1d0] sm:$0xff]
  %v73 = vld [vmem:[%s0 + $0x1d8] sm:$0xff]
  %v74 = vld [vmem:[%s0 + $0x1e0] sm:$0xff]
  %v75 = vld [vmem:[%s0 + $0x1e8] sm:$0xff]
  %v76 = vld [vmem:[%s0 + $0x1f0] sm:$0xff]
  %v77 = vld [vmem:[%s0 + $0x1f8] sm:$0xff]
  %v78 = vld [vmem:[%s0 + $0x200] sm:$0xff]
  %v79 = vld [vmem:[%s0 + $0x208] sm:$0xff]
  %v80 = vld [vmem:[%s0 + $0x210] sm:$0xff]
  %v81 = vld [vmem:[%s0 + $0x218] sm:$0xff]
  %v82 = vld [vmem:[%s0 + $0x220] sm:$0xff]
  %v83 = vld [vmem:[%s0 + $0x228] sm:$0xff]
  %v84 = vld [vmem:[%s1] sm:$0xff]
  %v85 = vld [vmem:[%s1 + $0x8] sm:$0xff]
  %v86 = vld [vmem:[%s1 + $0x10] sm:$0xff]
  %v87 = vld [vmem:[%s1 + $0x18] sm:$0xff]
  %v88 = vld [vmem:[%s1 + $0x20] sm:$0xff]
  %v89 = vld [vmem:[%s1 + $0x28] sm:$0xff]
  %v90 = vld [vmem:[%s1 + $0x30] sm:$0xff]
  %v91 = vld [vmem:[%s1 + $0x38] sm:$0xff]
  %v92 = vld [vmem:[%s1 + $0x40] sm:$0xff]
  %v93 = vld [vmem:[%s1 + $0x48] sm:$0xff]
  %v94 = vld [vmem:[%s1 + $0x50] sm:$0xff]
  %v95 = vld [vmem:[%s1 + $0x58] sm:$0xff]
  %v96 = vld [vmem:[%s1 + $0x60] sm:$0xff]
  %v97 = vld [vmem:[%s1 + $0x68] sm:$0xff]
  %v98 = vld [vmem:[%s1 + $0x70] sm:$0xff]
  %v99 = vld [vmem:[%s1 + $0x78] sm:$0xff]
  %v100 = vld [vmem:[%s1 + $0x80] sm:$0xff]
  %v101 = vld [vmem:[%s1 + $0x88] sm:$0xff]
  %v102 = vld [vmem:[%s1 + $0x90] sm:$0xff]
  %v103 = vld [vmem:[%s1 + $0x98] sm:$0xff]
  %v104 = vld [vmem:[%s1 + $0xa0] sm:$0xff]
  %v105 = vld [vmem:[%s1 + $0xa8] sm:$0xff]
  %v106 = vld [vmem:[%s1 + $0xb0] sm:$0xff]
  %v107 = vld [vmem:[%s1 + $0xb8] sm:$0xff]
  %v108 = vld [vmem:[%s1 + $0xc0] sm:$0xff]
  %v109 = vld [vmem:[%s1 + $0xc8] sm:$0xff]
  %v110 = vld [vmem:[%s1 + $0xd0] sm:$0xff]
  %v111 = vld [vmem:[%s1 + $0xd8] sm:$0xff]
  %v112 = vld [vmem:[%s1 + $0xe0] sm:$0xff]
  %v113 = vld [vmem:[%s1 + $0xe8] sm:$0xff]
  %v114 = vld [vmem:[%s1 + $0xf0] sm:$0xff]
  %v115 = vld [vmem:[%s1 + $0xf8] sm:$0xff]
  %v116 = vld [vmem:[%s1 + $0x100] sm:$0xff]
  %v117 = vld [vmem:[%s1 + $0x108] sm:$0xff]
  %v118 = vld [vmem:[%s1 + $0x110] sm:$0xff]
  %v119 = vld [vmem:[%s1 + $0x118] sm:$0xff]
  %v120 = vld [vmem:[%s1 + $0x120] sm:$0xff]
  %v121 = vld [vmem:[%s1 + $0x128] sm:$0xff]
  %v122 = vld [vmem:[%s1 + $0x130] sm:$0xff]
  %v123 = vld [vmem:[%s1 + $0x138] sm:$0xff]
  %v124 = vld [vmem:[%s1 + $0x140] sm:$0xff]
  %v125 = vld [vmem:[%s1 + $0x148] sm:$0xff]
  %v126 = vld [vmem:[%s1 + $0x150] sm:$0xff]
  %v127 = vld [vmem:[%s1 + $0x158] sm:$0xff]
  %v128 = vld [vmem:[%s1 + $0x160] sm:$0xff]
  %v129 = vld [vmem:[%s1 + $0x168] sm:$0xff]
  %v130 = vld [vmem:[%s1 + $0x170] sm:$0xff]
  %v131 = vld [vmem:[%s1 + $0x178] sm:$0xff]
  %v132 = vld [vmem:[%s1 + $0x180] sm:$0xff]
  %v133 = vld [vmem:[%s1 + $0x188] sm:$0xff]
  %v134 = vld [vmem:[%s1 + $0x190] sm:$0xff]
  %v135 = vld [vmem:[%s1 + $0x198] sm:$0xff]
  %v136 = vld [vmem:[%s1 + $0x1a0] sm:$0xff]
  %v137 = vld [vmem:[%s1 + $0x1a8] sm:$0xff]
  %v138 = vld [vmem:[%s1 + $0x1b0] sm:$0xff]
  %v139 = vld [vmem:[%s1 + $0x1b8] sm:$0xff]
  %v140 = vld [vmem:[%s1 + $0x1c0] sm:$0xff]
  %v141 = vld [vmem:[%s1 + $0x1c8] sm:$0xff]
  %v142 = vld [vmem:[%s1 + $0x1d0] sm:$0xff]
  %v143 = vld [vmem:[%s1 + $0x1d8] sm:$0xff]
  %v144 = vld [vmem:[%s1 + $0x1e0] sm:$0xff]
  %v145 = vld [vmem:[%s1 + $0x1e8] sm:$0xff]
  %v146 = vld [vmem:[%s1 + $0x1f0] sm:$0xff]
  %v147 = vld [vmem:[%s1 + $0x1f8] sm:$0xff]
  %v148 = vld [vmem:[%s1 + $0x200] sm:$0xff]
  %v149 = vld [vmem:[%s1 + $0x208] sm:$0xff]
  %v150 = vld [vmem:[%s1 + $0x210] sm:$0xff]
  %v151 = vld [vmem:[%s1 + $0x218] sm:$0xff]
  %v152 = vld [vmem:[%s1 + $0x220] sm:$0xff]
  %v153 = vld [vmem:[%s1 + $0x228] sm:$0xff]
  %v154 = vld [vmem:[%s1 + $0x230] sm:$0xff]
  %v155 = vld [vmem:[%s1 + $0x238] sm:$0xff]
  %v156 = vld [vmem:[%s2] sm:$0x1]
  %v158 = vlaneseq
  %v159 = vshrl.u32 %v158, 7
  %v160 = vsub.s32 0, %v159
  %v161 = vrot.slane %v156, %v160
  %vm163 = vcmask 523264
  %v165 = vsel %vm163, %v18, 0
  %v168 = vsel %vm163, %v23, 0
  %v171 = vsel %vm163, %v28, 0
  %v174 = vsel %vm163, %v33, 0
  %v177 = vsel %vm163, %v38, 0
  %v180 = vsel %vm163, %v43, 0
  %v183 = vsel %vm163, %v48, 0
  %v186 = vsel %vm163, %v53, 0
  %v189 = vsel %vm163, %v58, 0
  %v192 = vsel %vm163, %v63, 0
  %v195 = vsel %vm163, %v68, 0
  %v198 = vsel %vm163, %v73, 0
  %v201 = vsel %vm163, %v78, 0
  %v204 = vsel %vm163, %v83, 0
  %206 = vmatprep.subr.mxu0 0.0
  %207 = vmatpush1.msra.mxu0 %v84
  %208 = vmatprep.subr.mxu0 0.0
  %209 = vmatpush1.msra.mxu0 %v85
  %210 = vmatprep.subr.mxu0 0.0
  %211 = vmatpush1.msra.mxu0 %v86
  %212 = vmatprep.subr.mxu0 0.0
  %213 = vmatpush1.msra.mxu0 %v87
  %214 = vmatprep.subr.mxu0 0.0
  %215 = vmatpush1.msra.mxu0 %v88
  %216 = vmatprep.subr.mxu0 0.0
  %217 = vmatpush1.msra.mxu0 %v89
  %218 = vmatprep.subr.mxu0 0.0
  %219 = vmatpush1.msra.mxu0 %v90
  %220 = vmatprep.subr.mxu0 0.0
  %221 = vmatpush1.msra.mxu0 %v91
  %222 = vmatprep.subr.mxu0 0.0
  %223 = vmatpush1.msra.mxu0 %v92
  %224 = vmatprep.subr.mxu0 0.0
  %225 = vmatpush1.msra.mxu0 %v93
  %226 = vmatprep.subr.mxu0 0.0
  %227 = vmatpush1.msra.mxu0 %v94
  %228 = vmatprep.subr.mxu0 0.0
  %229 = vmatpush1.msra.mxu0 %v95
  %230 = vmatprep.subr.mxu0 0.0
  %231 = vmatpush1.msra.mxu0 %v96
  %232 = vmatprep.subr.mxu0 0.0
  %233 = vmatpush1.msra.mxu0 %v97
  %234 = vmatprep.subr.mxu0 0.0
  %235 = vmatpush1.msra.mxu0 %v98
  %236 = vmatprep.subr.mxu0 0.0
  %237 = vmatpush1.msra.mxu0 %v99
  %238 = vmatprep.subr.mxu0 0.0
  %239 = vmatpush1.msra.mxu0 %v100
  %240 = vmatprep.subr.mxu0 0.0
  %241 = vmatpush1.msra.mxu0 %v101
  %242 = vmatprep.subr.mxu0 0.0
  %243 = vmatpush1.msra.mxu0 %v102
  %244 = vmatprep.subr.mxu0 0.0
  %245 = vmatpush1.msra.mxu0 %v103
  %246 = vmatprep.subr.mxu0 0.0
  %247 = vmatpush1.msra.mxu0 %v104
  %248 = vmatprep.subr.mxu0 0.0
  %249 = vmatpush1.msra.mxu0 %v105
  %250 = vmatprep.subr.mxu0 0.0
  %251 = vmatpush1.msra.mxu0 %v106
  %252 = vmatprep.subr.mxu0 0.0
  %253 = vmatpush1.msra.mxu0 %v107
  %254 = vmatprep.subr.mxu0 0.0
  %255 = vmatpush1.msra.mxu0 %v108
  %256 = vmatprep.subr.mxu0 0.0
  %257 = vmatpush1.msra.mxu0 %v109
  %258 = vmatprep.subr.mxu0 0.0
  %259 = vmatpush1.msra.mxu0 %v110
  %260 = vmatprep.subr.mxu0 0.0
  %261 = vmatpush1.msra.mxu0 %v111
  %262 = vmatprep.subr.mxu0 0.0
  %263 = vmatpush1.msra.mxu0 %v112
  %264 = vmatprep.subr.mxu0 0.0
  %265 = vmatpush1.msra.mxu0 %v113
  %266 = vmatprep.subr.mxu0 0.0
  %267 = vmatpush1.msra.mxu0 %v114
  %268 = vmatprep.subr.mxu0 0.0
  %269 = vmatpush1.msra.mxu0 %v115
  %270 = vmatprep.mubr.f32.mxu0 %v15
  %271 = vmatmul.mubr.f32.gmra.mrb[0].mxu0 %v14
  %v272 = vpop.f32.mrb[0].mxu0
  %v273 = vadd.f32 %v161, %v272
  %v274 = vpop.f32.mrb[0].mxu0
  %275 = vmatprep.mubr.f32.mxu0 %v20
  %276 = vmatmul.mubr.f32.gmra.mrb[0].mxu0 %v19
  %v277 = vpop.f32.mrb[0].mxu0
  %v278 = vadd.f32 %v161, %v277
  %v279 = vpop.f32.mrb[0].mxu0
  %280 = vmatprep.mubr.f32.mxu0 %v25
  %281 = vmatmul.mubr.f32.gmra.mrb[0].mxu0 %v24
  %v282 = vpop.f32.mrb[0].mxu0
  %v283 = vadd.f32 %v161, %v282
  %v284 = vpop.f32.mrb[0].mxu0
  %285 = vmatprep.mubr.f32.mxu0 %v30
  %286 = vmatmul.mubr.f32.gmra.mrb[0].mxu0 %v29
  %v287 = vpop.f32.mrb[0].mxu0
  %v288 = vadd.f32 %v161, %v287
  %v289 = vpop.f32.mrb[0].mxu0
  %290 = vmatprep.mubr.f32.mxu0 %v35
  %291 = vmatmul.mubr.f32.gmra.mrb[0].mxu0 %v34
  %v292 = vpop.f32.mrb[0].mxu0
  %v293 = vadd.f32 %v161, %v292
  %v294 = vpop.f32.mrb[0].mxu0
  %295 = vmatprep.mubr.f32.mxu0 %v40
  %296 = vmatmul.mubr.f32.gmra.mrb[0].mxu0 %v39
  %v297 = vpop.f32.mrb[0].mxu0
  %v298 = vadd.f32 %v161, %v297
  %v299 = vpop.f32.mrb[0].mxu0
  %300 = vmatprep.mubr.f32.mxu0 %v45
  %301 = vmatmul.mubr.f32.gmra.mrb[0].mxu0 %v44
  %v302 = vpop.f32.mrb[0].mxu0
  %v303 = vadd.f32 %v161, %v302
  %v304 = vpop.f32.mrb[0].mxu0
  %305 = vmatprep.mubr.f32.mxu0 %v50
  %306 = vmatmul.mubr.f32.gmra.mrb[0].mxu0 %v49
  %v307 = vpop.f32.mrb[0].mxu0
  %v308 = vadd.f32 %v161, %v307
  %v309 = vpop.f32.mrb[0].mxu0
  %310 = vmatprep.mubr.f32.mxu0 %v55
  %311 = vmatmul.mubr.f32.gmra.mrb[0].mxu0 %v54
  %v312 = vpop.f32.mrb[0].mxu0
  %v313 = vadd.f32 %v161, %v312
  %v314 = vpop.f32.mrb[0].mxu0
  %315 = vmatprep.mubr.f32.mxu0 %v60
  %316 = vmatmul.mubr.f32.gmra.mrb[0].mxu0 %v59
  %v317 = vpop.f32.mrb[0].mxu0
  %v318 = vadd.f32 %v161, %v317
  %v319 = vpop.f32.mrb[0].mxu0
  %320 = vmatprep.mubr.f32.mxu0 %v65
  %321 = vmatmul.mubr.f32.gmra.mrb[0].mxu0 %v64
  %v322 = vpop.f32.mrb[0].mxu0
  %v323 = vadd.f32 %v161, %v322
  %v324 = vpop.f32.mrb[0].mxu0
  %325 = vmatprep.mubr.f32.mxu0 %v70
  %326 = vmatmul.mubr.f32.gmra.mrb[0].mxu0 %v69
  %v327 = vpop.f32.mrb[0].mxu0
  %v328 = vadd.f32 %v161, %v327
  %v329 = vpop.f32.mrb[0].mxu0
  %330 = vmatprep.mubr.f32.mxu0 %v75
  %331 = vmatmul.mubr.f32.gmra.mrb[0].mxu0 %v74
  %v332 = vpop.f32.mrb[0].mxu0
  %v333 = vadd.f32 %v161, %v332
  %v334 = vpop.f32.mrb[0].mxu0
  %335 = vmatprep.mubr.f32.mxu0 %v80
  %336 = vmatmul.mubr.f32.gmra.mrb[0].mxu0 %v79
  %v337 = vpop.f32.mrb[0].mxu0
  %v338 = vadd.f32 %v161, %v337
  %v339 = vpop.f32.mrb[0].mxu0
  %340 = vdwg.mxu0
  %341 = vmatprep.subr.mxu0 0.0
  %342 = vmatpush1.msra.mxu0 %v116
  %343 = vmatprep.subr.mxu0 0.0
  %344 = vmatpush1.msra.mxu0 %v117
  %345 = vmatprep.subr.mxu0 0.0
  %346 = vmatpush1.msra.mxu0 %v118
  %347 = vmatprep.subr.mxu0 0.0
  %348 = vmatpush1.msra.mxu0 %v119
  %349 = vmatprep.subr.mxu0 0.0
  %350 = vmatpush1.msra.mxu0 %v120
  %351 = vmatprep.subr.mxu0 0.0
  %352 = vmatpush1.msra.mxu0 %v121
  %353 = vmatprep.subr.mxu0 0.0
  %354 = vmatpush1.msra.mxu0 %v122
  %355 = vmatprep.subr.mxu0 0.0
  %356 = vmatpush1.msra.mxu0 %v123
  %357 = vmatprep.subr.mxu0 0.0
  %358 = vmatpush1.msra.mxu0 %v124
  %359 = vmatprep.subr.mxu0 0.0
  %360 = vmatpush1.msra.mxu0 %v125
  %361 = vmatprep.subr.mxu0 0.0
  %362 = vmatpush1.msra.mxu0 %v126
  %363 = vmatprep.subr.mxu0 0.0
  %364 = vmatpush1.msra.mxu0 %v127
  %365 = vmatprep.subr.mxu0 0.0
  %366 = vmatpush1.msra.mxu0 %v128
  %367 = vmatprep.subr.mxu0 0.0
  %368 = vmatpush1.msra.mxu0 %v129
  %369 = vmatprep.subr.mxu0 0.0
  %370 = vmatpush1.msra.mxu0 %v130
  %371 = vmatprep.subr.mxu0 0.0
  %372 = vmatpush1.msra.mxu0 %v131
  %373 = vmatprep.subr.mxu0 0.0
  %374 = vmatpush1.msra.mxu0 %v132
  %375 = vmatprep.subr.mxu0 0.0
  %376 = vmatpush1.msra.mxu0 %v133
  %377 = vmatprep.subr.mxu0 0.0
  %378 = vmatpush1.msra.mxu0 %v134
  %379 = vmatprep.subr.mxu0 0.0
  %380 = vmatpush1.msra.mxu0 %v135
  %381 = vmatprep.subr.mxu0 0.0
  %382 = vmatpush1.msra.mxu0 %v136
  %383 = vmatprep.subr.mxu0 0.0
  %384 = vmatpush1.msra.mxu0 %v137
  %385 = vmatprep.subr.mxu0 0.0
  %386 = vmatpush1.msra.mxu0 %v138
  %387 = vmatprep.subr.mxu0 0.0
  %388 = vmatpush1.msra.mxu0 %v139
  %389 = vmatprep.subr.mxu0 0.0
  %390 = vmatpush1.msra.mxu0 %v140
  %391 = vmatprep.subr.mxu0 0.0
  %392 = vmatpush1.msra.mxu0 %v141
  %393 = vmatprep.subr.mxu0 0.0
  %394 = vmatpush1.msra.mxu0 %v142
  %395 = vmatprep.subr.mxu0 0.0
  %396 = vmatpush1.msra.mxu0 %v143
  %397 = vmatprep.subr.mxu0 0.0
  %398 = vmatpush1.msra.mxu0 %v144
  %399 = vmatprep.subr.mxu0 0.0
  %400 = vmatpush1.msra.mxu0 %v145
  %401 = vmatprep.subr.mxu0 0.0
  %402 = vmatpush1.msra.mxu0 %v146
  %403 = vmatprep.subr.mxu0 0.0
  %404 = vmatpush1.msra.mxu0 %v147
  %405 = vmatprep.mubr.f32.mxu0 %v17
  %406 = vmatmul.mubr.f32.gmra.mrb[0].mxu0 %v16
  %v407 = vpop.f32.mrb[0].mxu0
  %v408 = vadd.f32 %v273, %v407
  %v409 = vpop.f32.mrb[0].mxu0
  %410 = vmatprep.mubr.f32.mxu0 %v22
  %411 = vmatmul.mubr.f32.gmra.mrb[0].mxu0 %v21
  %v412 = vpop.f32.mrb[0].mxu0
  %v413 = vadd.f32 %v278, %v412
  %v414 = vpop.f32.mrb[0].mxu0
  %415 = vmatprep.mubr.f32.mxu0 %v27
  %416 = vmatmul.mubr.f32.gmra.mrb[0].mxu0 %v26
  %v417 = vpop.f32.mrb[0].mxu0
  %v418 = vadd.f32 %v283, %v417
  %v419 = vpop.f32.mrb[0].mxu0
  %420 = vmatprep.mubr.f32.mxu0 %v32
  %421 = vmatmul.mubr.f32.gmra.mrb[0].mxu0 %v31
  %v422 = vpop.f32.mrb[0].mxu0
  %v423 = vadd.f32 %v288, %v422
  %v424 = vpop.f32.mrb[0].mxu0
  %425 = vmatprep.mubr.f32.mxu0 %v37
  %426 = vmatmul.mubr.f32.gmra.mrb[0].mxu0 %v36
  %v427 = vpop.f32.mrb[0].mxu0
  %v428 = vadd.f32 %v293, %v427
  %v429 = vpop.f32.mrb[0].mxu0
  %430 = vmatprep.mubr.f32.mxu0 %v42
  %431 = vmatmul.mubr.f32.gmra.mrb[0].mxu0 %v41
  %v432 = vpop.f32.mrb[0].mxu0
  %v433 = vadd.f32 %v298, %v432
  %v434 = vpop.f32.mrb[0].mxu0
  %435 = vmatprep.mubr.f32.mxu0 %v47
  %436 = vmatmul.mubr.f32.gmra.mrb[0].mxu0 %v46
  %v437 = vpop.f32.mrb[0].mxu0
  %v438 = vadd.f32 %v303, %v437
  %v439 = vpop.f32.mrb[0].mxu0
  %440 = vmatprep.mubr.f32.mxu0 %v52
  %441 = vmatmul.mubr.f32.gmra.mrb[0].mxu0 %v51
  %v442 = vpop.f32.mrb[0].mxu0
  %v443 = vadd.f32 %v308, %v442
  %v444 = vpop.f32.mrb[0].mxu0
  %445 = vmatprep.mubr.f32.mxu0 %v57
  %446 = vmatmul.mubr.f32.gmra.mrb[0].mxu0 %v56
  %v447 = vpop.f32.mrb[0].mxu0
  %v448 = vadd.f32 %v313, %v447
  %v449 = vpop.f32.mrb[0].mxu0
  %450 = vmatprep.mubr.f32.mxu0 %v62
  %451 = vmatmul.mubr.f32.gmra.mrb[0].mxu0 %v61
  %v452 = vpop.f32.mrb[0].mxu0
  %v453 = vadd.f32 %v318, %v452
  %v454 = vpop.f32.mrb[0].mxu0
  %455 = vmatprep.mubr.f32.mxu0 %v67
  %456 = vmatmul.mubr.f32.gmra.mrb[0].mxu0 %v66
  %v457 = vpop.f32.mrb[0].mxu0
  %v458 = vadd.f32 %v323, %v457
  %v459 = vpop.f32.mrb[0].mxu0
  %460 = vmatprep.mubr.f32.mxu0 %v72
  %461 = vmatmul.mubr.f32.gmra.mrb[0].mxu0 %v71
  %v462 = vpop.f32.mrb[0].mxu0
  %v463 = vadd.f32 %v328, %v462
  %v464 = vpop.f32.mrb[0].mxu0
  %465 = vmatprep.mubr.f32.mxu0 %v77
  %466 = vmatmul.mubr.f32.gmra.mrb[0].mxu0 %v76
  %v467 = vpop.f32.mrb[0].mxu0
  %v468 = vadd.f32 %v333, %v467
  %v469 = vpop.f32.mrb[0].mxu0
  %470 = vmatprep.mubr.f32.mxu0 %v82
  %471 = vmatmul.mubr.f32.gmra.mrb[0].mxu0 %v81
  %v472 = vpop.f32.mrb[0].mxu0
  %v473 = vadd.f32 %v338, %v472
  %v474 = vpop.f32.mrb[0].mxu0
  %475 = vdwg.mxu0
  %476 = vmatprep.subr.mxu0 0.0
  %477 = vmatpush1.msra.mxu0 %v148
  %478 = vmatprep.subr.mxu0 0.0
  %479 = vmatpush1.msra.mxu0 %v149
  %480 = vmatprep.subr.mxu0 0.0
  %481 = vmatpush1.msra.mxu0 %v150
  %482 = vmatprep.subr.mxu0 0.0
  %483 = vmatpush1.msra.mxu0 %v151
  %484 = vmatprep.subr.mxu0 0.0
  %485 = vmatpush1.msra.mxu0 %v152
  %486 = vmatprep.subr.mxu0 0.0
  %487 = vmatpush1.msra.mxu0 %v153
  %488 = vmatprep.subr.mxu0 0.0
  %489 = vmatpush1.msra.mxu0 %v154
  %490 = vmatprep.subr.mxu0 0.0
  %491 = vmatpush1.msra.mxu0 %v155
  %492 = vmatprep.subr.mxu0 0.0
  %493 = vmatpush1.msra.mxu0 0.0
  %494 = vmatprep.subr.mxu0 0.0
  %495 = vmatpush1.msra.mxu0 0.0
  %496 = vmatprep.subr.mxu0 0.0
  %497 = vmatpush1.msra.mxu0 0.0
  %498 = vmatprep.subr.mxu0 0.0
  %499 = vmatpush1.msra.mxu0 0.0
  %500 = vmatprep.subr.mxu0 0.0
  %501 = vmatpush1.msra.mxu0 0.0
  %502 = vmatprep.subr.mxu0 0.0
  %503 = vmatpush1.msra.mxu0 0.0
  %504 = vmatprep.subr.mxu0 0.0
  %505 = vmatpush1.msra.mxu0 0.0
  %506 = vmatprep.subr.mxu0 0.0
  %507 = vmatpush1.msra.mxu0 0.0
  %508 = vmatprep.subr.mxu0 0.0
  %509 = vmatpush1.msra.mxu0 0.0
  %510 = vmatprep.subr.mxu0 0.0
  %511 = vmatpush1.msra.mxu0 0.0
  %512 = vmatprep.subr.mxu0 0.0
  %513 = vmatpush1.msra.mxu0 0.0
  %514 = vmatprep.subr.mxu0 0.0
  %515 = vmatpush1.msra.mxu0 0.0
  %516 = vmatprep.subr.mxu0 0.0
  %517 = vmatpush1.msra.mxu0 0.0
  %518 = vmatprep.subr.mxu0 0.0
  %519 = vmatpush1.msra.mxu0 0.0
  %520 = vmatprep.subr.mxu0 0.0
  %521 = vmatpush1.msra.mxu0 0.0
  %522 = vmatprep.subr.mxu0 0.0
  %523 = vmatpush1.msra.mxu0 0.0
  %524 = vmatprep.subr.mxu0 0.0
  %525 = vmatpush1.msra.mxu0 0.0
  %526 = vmatprep.subr.mxu0 0.0
  %527 = vmatpush1.msra.mxu0 0.0
  %528 = vmatprep.subr.mxu0 0.0
  %529 = vmatpush1.msra.mxu0 0.0
  %530 = vmatprep.subr.mxu0 0.0
  %531 = vmatpush1.msra.mxu0 0.0
  %532 = vmatprep.subr.mxu0 0.0
  %533 = vmatpush1.msra.mxu0 0.0
  %534 = vmatprep.subr.mxu0 0.0
  %535 = vmatpush1.msra.mxu0 0.0
  %536 = vmatprep.subr.mxu0 0.0
  %537 = vmatpush1.msra.mxu0 0.0
  %538 = vmatprep.subr.mxu0 0.0
  %539 = vmatpush1.msra.mxu0 0.0
  %540 = vmatprep.mubr.f32.mxu0 0.0
  %541 = vmatmul.mubr.f32.gmra.mrb[0].mxu0 %v165
  %v542 = vpop.f32.mrb[0].mxu0
  %v543 = vadd.f32 %v408, %v542
  %v544 = vpop.f32.mrb[0].mxu0
  %545 = vmatprep.mubr.f32.mxu0 0.0
  %546 = vmatmul.mubr.f32.gmra.mrb[0].mxu0 %v168
  %v547 = vpop.f32.mrb[0].mxu0
  %v548 = vadd.f32 %v413, %v547
  %v549 = vpop.f32.mrb[0].mxu0
  %550 = vmatprep.mubr.f32.mxu0 0.0
  %551 = vmatmul.mubr.f32.gmra.mrb[0].mxu0 %v171
  %v552 = vpop.f32.mrb[0].mxu0
  %v553 = vadd.f32 %v418, %v552
  %v554 = vpop.f32.mrb[0].mxu0
  %555 = vmatprep.mubr.f32.mxu0 0.0
  %556 = vmatmul.mubr.f32.gmra.mrb[0].mxu0 %v174
  %v557 = vpop.f32.mrb[0].mxu0
  %v558 = vadd.f32 %v423, %v557
  %v559 = vpop.f32.mrb[0].mxu0
  %560 = vmatprep.mubr.f32.mxu0 0.0
  %561 = vmatmul.mubr.f32.gmra.mrb[0].mxu0 %v177
  %v562 = vpop.f32.mrb[0].mxu0
  %v563 = vadd.f32 %v428, %v562
  %v564 = vpop.f32.mrb[0].mxu0
  %565 = vmatprep.mubr.f32.mxu0 0.0
  %566 = vmatmul.mubr.f32.gmra.mrb[0].mxu0 %v180
  %v567 = vpop.f32.mrb[0].mxu0
  %v568 = vadd.f32 %v433, %v567
  %v569 = vpop.f32.mrb[0].mxu0
  %570 = vmatprep.mubr.f32.mxu0 0.0
  %571 = vmatmul.mubr.f32.gmra.mrb[0].mxu0 %v183
  %v572 = vpop.f32.mrb[0].mxu0
  %v573 = vadd.f32 %v438, %v572
  %v574 = vpop.f32.mrb[0].mxu0
  %575 = vmatprep.mubr.f32.mxu0 0.0
  %576 = vmatmul.mubr.f32.gmra.mrb[0].mxu0 %v186
  %v577 = vpop.f32.mrb[0].mxu0
  %v578 = vadd.f32 %v443, %v577
  %v579 = vpop.f32.mrb[0].mxu0
  %580 = vmatprep.mubr.f32.mxu0 0.0
  %581 = vmatmul.mubr.f32.gmra.mrb[0].mxu0 %v189
  %v582 = vpop.f32.mrb[0].mxu0
  %v583 = vadd.f32 %v448, %v582
  %v584 = vpop.f32.mrb[0].mxu0
  %585 = vmatprep.mubr.f32.mxu0 0.0
  %586 = vmatmul.mubr.f32.gmra.mrb[0].mxu0 %v192
  %v587 = vpop.f32.mrb[0].mxu0
  %v588 = vadd.f32 %v453, %v587
  %v589 = vpop.f32.mrb[0].mxu0
  %590 = vmatprep.mubr.f32.mxu0 0.0
  %591 = vmatmul.mubr.f32.gmra.mrb[0].mxu0 %v195
  %v592 = vpop.f32.mrb[0].mxu0
  %v593 = vadd.f32 %v458, %v592
  %v594 = vpop.f32.mrb[0].mxu0
  %595 = vmatprep.mubr.f32.mxu0 0.0
  %596 = vmatmul.mubr.f32.gmra.mrb[0].mxu0 %v198
  %v597 = vpop.f32.mrb[0].mxu0
  %v598 = vadd.f32 %v463, %v597
  %v599 = vpop.f32.mrb[0].mxu0
  %600 = vmatprep.mubr.f32.mxu0 0.0
  %601 = vmatmul.mubr.f32.gmra.mrb[0].mxu0 %v201
  %v602 = vpop.f32.mrb[0].mxu0
  %v603 = vadd.f32 %v468, %v602
  %v604 = vpop.f32.mrb[0].mxu0
  %605 = vmatprep.mubr.f32.mxu0 0.0
  %606 = vmatmul.mubr.f32.gmra.mrb[0].mxu0 %v204
  %v607 = vpop.f32.mrb[0].mxu0
  %v608 = vadd.f32 %v473, %v607
  %v609 = vpop.f32.mrb[0].mxu0
  %610 = vdwg.mxu0
  %v611 = vmax.f32 %v543, 0.0
  %v612 = vmax.f32 %v548, 0.0
  %v613 = vmax.f32 %v553, 0.0
  %v614 = vmax.f32 %v558, 0.0
  %v615 = vmax.f32 %v563, 0.0
  %v616 = vmax.f32 %v568, 0.0
  %v617 = vmax.f32 %v573, 0.0
  %v618 = vmax.f32 %v578, 0.0
  %v619 = vmax.f32 %v583, 0.0
  %v620 = vmax.f32 %v588, 0.0
  %v621 = vmax.f32 %v593, 0.0
  %v622 = vmax.f32 %v598, 0.0
  %v623 = vmax.f32 %v603, 0.0
  %v624 = vmax.f32 %v608, 0.0
  %625 = vst.msk [vmem:[%s3] sm:$0xff] %vm163, %v611
  %626 = vst.msk [vmem:[%s3 + $0x8] sm:$0xff] %vm163, %v612
  %627 = vst.msk [vmem:[%s3 + $0x10] sm:$0xff] %vm163, %v613
  %628 = vst.msk [vmem:[%s3 + $0x18] sm:$0xff] %vm163, %v614
  %629 = vst.msk [vmem:[%s3 + $0x20] sm:$0xff] %vm163, %v615
  %630 = vst.msk [vmem:[%s3 + $0x28] sm:$0xff] %vm163, %v616
  %631 = vst.msk [vmem:[%s3 + $0x30] sm:$0xff] %vm163, %v617
  %632 = vst.msk [vmem:[%s3 + $0x38] sm:$0xff] %vm163, %v618
  %633 = vst.msk [vmem:[%s3 + $0x40] sm:$0xff] %vm163, %v619
  %634 = vst.msk [vmem:[%s3 + $0x48] sm:$0xff] %vm163, %v620
  %635 = vst.msk [vmem:[%s3 + $0x50] sm:$0xff] %vm163, %v621
  %636 = vst.msk [vmem:[%s3 + $0x58] sm:$0xff] %vm163, %v622
  %637 = vst.msk [vmem:[%s3 + $0x60] sm:$0xff] %vm163, %v623
  %638 = vst.msk [vmem:[%s3 + $0x68] sm:$0xff] %vm163, %v624
  // Predicated region
  $region14: #{shared_network_a2c_forward.6} parent=0 // pred_check
    _
  $region15: #{shared_network_a2c_forward.6} parent=0 // pred_check_branch
    %640 = sbr.rel (0) target = $region17
  $region16: #{shared_network_a2c_forward.6} parent=0 // pred_region
    _
  $region17: #{shared_network_a2c_forward.6} parent=0 // pred_fallthru
    _
  // Predicated region
  $region18: #{shared_network_a2c_forward.6} parent=0 // pred_check
    _
  $region19: #{shared_network_a2c_forward.6} parent=0 // pred_check_branch
    %642 = sbr.rel (0) target = $region21
  $region20: #{shared_network_a2c_forward.6} parent=0 // pred_region
    _
  $region21: #{shared_network_a2c_forward.6} parent=0 // pred_fallthru
    _

// kernel: shared_network_a2c_forward.7
$region0: #{shared_network_a2c_forward.7}
  #allocation0 [shape = 'u32[]', space=smem, size = 0x4, offset = 0x4, fixed_abs, tag = 'smem constant byte address 0x4 - core index']
  #allocation1 [shape = 'u32[144,128]{1,0:T(1,128)}', space=vmem, size = 0x12000, scoped, tag = 'internal scratch']
  #allocation2 [shape = 'f32[2,128]{1,0:T(2,128)}', space=vmem, size = 0x400, scoped, tag = 'scratch operand']
  %s0 = inlined_call_operand.vmem [shape: f32[2,3136], index: 0, kind: input, shape index: {}]
  %s1 = inlined_call_operand.vmem [shape: f32[3136,512], index: 1, kind: input, shape index: {}]
  %s2 = inlined_call_operand.vmem [shape: f32[1,512], index: 2, kind: input, shape index: {}]
  %s3 = inlined_call_operand.vmem [shape: f32[512,128], index: 3, kind: input, shape index: {}]
  %s4 = inlined_call_operand.vmem [shape: f32[1,128], index: 4, kind: input, shape index: {}]
  %s5 = inlined_call_operand.vmem [shape: f32[2,128], index: 5, kind: output, shape index: {}]
  %s6 = sld [smem:[#allocation0]]
  $region99: #{shared_network_a2c_forward.7} parent=0
    _
  %s8 = ssub.s32 1, %s6
  %s9 = scalar_select 0, %s8, %s6
  $region1: #{shared_network_a2c_forward.7} parent=0
    #allocation3 [shape = 'u8[3211264]{0}', space=vmem, size = 0x310000, scoped, tag = 'input window, operand 1']
    loop: start=0, step=1, limit=6
    $region2: #{shared_network_a2c_forward.7} parent=1 // loop_pre_header
      _
    $region3: #{shared_network_a2c_forward.7} parent=1 // loop_header
      %s11 = sphi 0, %s15
      %p12 = scmp.ge.s32.totalorder %s11, 6
      %s19 = sphi 0, %s19
      %s21 = sphi 0, %s19
      %s22 = sphi 0, %s21
      %s36 = sphi 0, %s22
      %s42 = sphi 0, %s44
      %s45 = sphi 0, %s42
      %s46 = sphi 0, %s45
      %s62 = sphi 0, %s46
      %s68 = sphi 0, %s70
      %s71 = sphi 0, %s68
      %s72 = sphi 0, %s71
      %s88 = sphi 0, %s72
      %s94 = sphi 0, %s96
      %s97 = sphi 0, %s94
      %s98 = sphi 0, %s97
      %s114 = sphi 0, %s98
      %s118 = sphi 0, %s118
      %s120 = sphi 0, %s118
      %s121 = sphi 0, %s120
      %s135 = sphi 0, %s121
      %s139 = sphi 0, %s139
      %s141 = sphi 0, %s139
      %s142 = sphi 0, %s141
      %s156 = sphi 0, %s142
    $region4: #{shared_network_a2c_forward.7} parent=1 // loop_header_branch
      %14 = sbr.rel (%p12) target = $region8
    $region5: #{shared_network_a2c_forward.7} parent=1 // loop_body
      %s16 = ssub.s32 %s11, 1
      %s17 = ssub.s32 %s11, 2
      %s18 = sadd.s32 %s11, 1
      %s20 = sadd.s32 %s19, 1
      %p23 = scmp.eq.s32.totalorder %s11, 3
      %p24 = scmp.ne.s32.totalorder %s19, %s21
      %p25 = scmp.eq.s32.totalorder %s11, 0
      %p26 = por %p24, %p25
      %p27 = scmp.ne.s32.totalorder %s19, %s21
      %p28 = scmp.eq.s32.totalorder %s16, 3
      %p29 = por %p27, %p28
      %p30 = scmp.ne.s32.totalorder %s21, %s22
      %p31 = scmp.eq.s32.totalorder %s16, 0
      %p32 = por %p30, %p31
      %p33 = scmp.ne.s32.totalorder %s21, %s22
      %p34 = scmp.eq.s32.totalorder %s17, 3
      %p35 = por %p33, %p34
      %p37 = scmp.ne.s32.totalorder %s22, %s36
      %p38 = scmp.eq.s32.totalorder %s17, 0
      %p39 = por %p37, %p38
      %s40 = ssub.s32 %s11, %s18
      %p41 = scmp.eq.s32.totalorder %s40, 0
      %s43 = sadd.s32 %s42, 1
      %s44 = scalar_select %p41, %s42, %s43
      %p47 = pneg %p41
      %p48 = scmp.eq.s32.totalorder %s11, 3
      %p49 = por %p47, %p48
      %p50 = scmp.ne.s32.totalorder %s42, %s45
      %p51 = scmp.eq.s32.totalorder %s11, 0
      %p52 = por %p50, %p51
      %p53 = scmp.ne.s32.totalorder %s42, %s45
      %p54 = scmp.eq.s32.totalorder %s16, 3
      %p55 = por %p53, %p54
      %p56 = scmp.ne.s32.totalorder %s45, %s46
      %p57 = scmp.eq.s32.totalorder %s16, 0
      %p58 = por %p56, %p57
      %p59 = scmp.ne.s32.totalorder %s45, %s46
      %p60 = scmp.eq.s32.totalorder %s17, 3
      %p61 = por %p59, %p60
      %p63 = scmp.ne.s32.totalorder %s46, %s62
      %p64 = scmp.eq.s32.totalorder %s17, 0
      %p65 = por %p63, %p64
      %s66 = ssub.s32 %s11, %s18
      %p67 = scmp.eq.s32.totalorder %s66, 0
      %s69 = sadd.s32 %s68, 1
      %s70 = scalar_select %p67, %s68, %s69
      %p73 = pneg %p67
      %p74 = scmp.eq.s32.totalorder %s11, 3
      %p75 = por %p73, %p74
      %p76 = scmp.ne.s32.totalorder %s68, %s71
      %p77 = scmp.eq.s32.totalorder %s11, 0
      %p78 = por %p76, %p77
      %p79 = scmp.ne.s32.totalorder %s68, %s71
      %p80 = scmp.eq.s32.totalorder %s16, 3
      %p81 = por %p79, %p80
      %p82 = scmp.ne.s32.totalorder %s71, %s72
      %p83 = scmp.eq.s32.totalorder %s16, 0
      %p84 = por %p82, %p83
      %p85 = scmp.ne.s32.totalorder %s71, %s72
      %p86 = scmp.eq.s32.totalorder %s17, 3
      %p87 = por %p85, %p86
      %p89 = scmp.ne.s32.totalorder %s72, %s88
      %p90 = scmp.eq.s32.totalorder %s17, 0
      %p91 = por %p89, %p90
      %s92 = ssub.s32 %s11, %s18
      %p93 = scmp.eq.s32.totalorder %s92, 0
      %s95 = sadd.s32 %s94, 1
      %s96 = scalar_select %p93, %s94, %s95
      %p99 = pneg %p93
      %p100 = scmp.eq.s32.totalorder %s11, 3
      %p101 = por %p99, %p100
      %p102 = scmp.ne.s32.totalorder %s94, %s97
      %p103 = scmp.eq.s32.totalorder %s11, 0
      %p104 = por %p102, %p103
      %p105 = scmp.ne.s32.totalorder %s94, %s97
      %p106 = scmp.eq.s32.totalorder %s16, 3
      %p107 = por %p105, %p106
      %p108 = scmp.ne.s32.totalorder %s97, %s98
      %p109 = scmp.eq.s32.totalorder %s16, 0
      %p110 = por %p108, %p109
      %p111 = scmp.ne.s32.totalorder %s97, %s98
      %p112 = scmp.eq.s32.totalorder %s17, 3
      %p113 = por %p111, %p112
      %p115 = scmp.ne.s32.totalorder %s98, %s114
      %p116 = scmp.eq.s32.totalorder %s17, 0
      %p117 = por %p115, %p116
      %s119 = sadd.s32 %s118, 1
      %p122 = scmp.eq.s32.totalorder %s11, 3
      %p123 = scmp.ne.s32.totalorder %s118, %s120
      %p124 = scmp.eq.s32.totalorder %s11, 0
      %p125 = por %p123, %p124
      %p126 = scmp.ne.s32.totalorder %s118, %s120
      %p127 = scmp.eq.s32.totalorder %s16, 3
      %p128 = por %p126, %p127
      %p129 = scmp.ne.s32.totalorder %s120, %s121
      %p130 = scmp.eq.s32.totalorder %s16, 0
      %p131 = por %p129, %p130
      %p132 = scmp.ne.s32.totalorder %s120, %s121
      %p133 = scmp.eq.s32.totalorder %s17, 3
      %p134 = por %p132, %p133
      %p136 = scmp.ne.s32.totalorder %s121, %s135
      %p137 = scmp.eq.s32.totalorder %s17, 0
      %p138 = por %p136, %p137
      %s140 = sadd.s32 %s139, 1
      %p143 = scmp.eq.s32.totalorder %s11, 3
      %p144 = scmp.ne.s32.totalorder %s139, %s141
      %p145 = scmp.eq.s32.totalorder %s11, 0
      %p146 = por %p144, %p145
      %p147 = scmp.ne.s32.totalorder %s139, %s141
      %p148 = scmp.eq.s32.totalorder %s16, 3
      %p149 = por %p147, %p148
      %p150 = scmp.ne.s32.totalorder %s141, %s142
      %p151 = scmp.eq.s32.totalorder %s16, 0
      %p152 = por %p150, %p151
      %p153 = scmp.ne.s32.totalorder %s141, %s142
      %p154 = scmp.eq.s32.totalorder %s17, 3
      %p155 = por %p153, %p154
      %p157 = scmp.ne.s32.totalorder %s142, %s156
      %p158 = scmp.eq.s32.totalorder %s17, 0
      %p159 = por %p157, %p158
      %p160 = scmp.le.s32.totalorder 1, %s11
      %p161 = scmp.lt.s32.totalorder %s11, 5
      %p162 = pnand %p160, %p161
      %p163 = pneg %p162
      // Predicated region
      $region9: #{shared_network_a2c_forward.7} parent=5 // pred_check
        _
      $region10: #{shared_network_a2c_forward.7} parent=5 // pred_check_branch
        %165 = sbr.rel (%p162) target = $region12
      $region11: #{shared_network_a2c_forward.7} parent=5 // pred_region
        %s166 = ssub.s32 %s11, 1
        // Predicated region
        $region13: #{shared_network_a2c_forward.7} parent=11 // pred_check
          %p167 = pneg %p32
        $region14: #{shared_network_a2c_forward.7} parent=11 // pred_check_branch
          %169 = sbr.rel (%p167) target = $region16
        $region15: #{shared_network_a2c_forward.7} parent=11 // pred_region
          _
        $region16: #{shared_network_a2c_forward.7} parent=11 // pred_fallthru
          _
        // Predicated region
        $region17: #{shared_network_a2c_forward.7} parent=11 // pred_check
          %p170 = pneg %p131
        $region18: #{shared_network_a2c_forward.7} parent=11 // pred_check_branch
          %172 = sbr.rel (%p170) target = $region20
        $region19: #{shared_network_a2c_forward.7} parent=11 // pred_region
          _
        $region20: #{shared_network_a2c_forward.7} parent=11 // pred_fallthru
          _
      $region12: #{shared_network_a2c_forward.7} parent=5 // pred_fallthru
        _
      %p173 = scmp.lt.s32.totalorder %s11, 4
      // Predicated region
      $region21: #{shared_network_a2c_forward.7} parent=5 // pred_check
        %p174 = pneg %p173
      $region22: #{shared_network_a2c_forward.7} parent=5 // pred_check_branch
        %176 = sbr.rel (%p174) target = $region24
      $region23: #{shared_network_a2c_forward.7} parent=5 // pred_region
        // Predicated region
        $region25: #{shared_network_a2c_forward.7} parent=23 // pred_check
          %p177 = pneg %p52
        $region26: #{shared_network_a2c_forward.7} parent=23 // pred_check_branch
          %179 = sbr.rel (%p177) target = $region28
        $region27: #{shared_network_a2c_forward.7} parent=23 // pred_region
          %s180 = sand.u32 %s42, 1
          %s181 = sand.u32 %s42, 1
          %s182 = smul.addr %s181, 3136
          %s183 = scalar_lea.vmem [#allocation3], %s182
          %s184 = smul.addr %s11, 8
          %s185 = scalar_lea.vmem %s1, %s184
          // Predicated region
          $region29: #{shared_network_a2c_forward.7} parent=27 // pred_check
            _
          $region30: #{shared_network_a2c_forward.7} parent=27 // pred_check_branch
            %187 = sbr.rel (0) target = $region32
          $region31: #{shared_network_a2c_forward.7} parent=27 // pred_region
            // Predicated region
            $region33: #{shared_network_a2c_forward.7} parent=31 // pred_check
              _
            $region34: #{shared_network_a2c_forward.7} parent=31 // pred_check_branch
              %189 = sbr.rel (0) target = $region36
            $region35: #{shared_network_a2c_forward.7} parent=31 // pred_region
              // Predicated region
              $region48: #{shared_network_a2c_forward.7} parent=35 // pred_check
                _
              $region49: #{shared_network_a2c_forward.7} parent=35 // pred_check_branch
                %986 = sbr.rel (0) target = $region51
              $region50: #{shared_network_a2c_forward.7} parent=35 // pred_region
                loop: start=0, step=1, limit=1
                $region52: #{shared_network_a2c_forward.7} parent=50 // loop_pre_header
                  _
                $region53: #{shared_network_a2c_forward.7} parent=50 // loop_header
                  %s988 = sphi 0, %s992
                  %p989 = scmp.ge.s32.totalorder %s988, 1
                  %s993 = sphi %s185, %s185
                  %s994 = sphi %s183, %s183
                $region54: #{shared_network_a2c_forward.7} parent=50 // loop_header_branch
                  %991 = sbr.rel (%p989) target = $region58
                $region55: #{shared_network_a2c_forward.7} parent=50 // loop_body
                  %v995 = vld [vmem:[%s993] sm:$0xff]
                  %996 = vst [vmem:[%s994] sm:$0xff] %v995
                  %v997 = vld [vmem:[%s993 + $0x20] sm:$0xff]
                  %998 = vst [vmem:[%s994 + $0x8] sm:$0xff] %v997
                  %v999 = vld [vmem:[%s993 + $0x40] sm:$0xff]
                  %1000 = vst [vmem:[%s994 + $0x10] sm:$0xff] %v999
                  %v1001 = vld [vmem:[%s993 + $0x60] sm:$0xff]
                  %1002 = vst [vmem:[%s994 + $0x18] sm:$0xff] %v1001
                  %v1003 = vld [vmem:[%s993 + $0x80] sm:$0xff]
                  %1004 = vst [vmem:[%s994 + $0x20] sm:$0xff] %v1003
                  %v1005 = vld [vmem:[%s993 + $0xa0] sm:$0xff]
                  %1006 = vst [vmem:[%s994 + $0x28] sm:$0xff] %v1005
                  %v1007 = vld [vmem:[%s993 + $0xc0] sm:$0xff]
                  %1008 = vst [vmem:[%s994 + $0x30] sm:$0xff] %v1007
                  %v1009 = vld [vmem:[%s993 + $0xe0] sm:$0xff]
                  %1010 = vst [vmem:[%s994 + $0x38] sm:$0xff] %v1009
                  %v1011 = vld [vmem:[%s993 + $0x100] sm:$0xff]
                  %1012 = vst [vmem:[%s994 + $0x40] sm:$0xff] %v1011
                  %v1013 = vld [vmem:[%s993 + $0x120] sm:$0xff]
                  %1014 = vst [vmem:[%s994 + $0x48] sm:$0xff] %v1013
                  %v1015 = vld [vmem:[%s993 + $0x140] sm:$0xff]
                  %1016 = vst [vmem:[%s994 + $0x50] sm:$0xff] %v1015
                  %v1017 = vld [vmem:[%s993 + $0x160] sm:$0xff]
                  %1018 = vst [vmem:[%s994 + $0x58] sm:$0xff] %v1017
                  %v1019 = vld [vmem:[%s993 + $0x180] sm:$0xff]
                  %1020 = vst [vmem:[%s994 + $0x60] sm:$0xff] %v1019
                  %v1021 = vld [vmem:[%s993 + $0x1a0] sm:$0xff]
                  %1022 = vst [vmem:[%s994 + $0x68] sm:$0xff] %v1021
                  %v1023 = vld [vmem:[%s993 + $0x1c0] sm:$0xff]
                  %1024 = vst [vmem:[%s994 + $0x70] sm:$0xff] %v1023
                  %v1025 = vld [vmem:[%s993 + $0x1e0] sm:$0xff]
                  %1026 = vst [vmem:[%s994 + $0x78] sm:$0xff] %v1025
                  %v1027 = vld [vmem:[%s993 + $0x200] sm:$0xff]
                  %1028 = vst [vmem:[%s994 + $0x80] sm:$0xff] %v1027
                  %v1029 = vld [vmem:[%s993 + $0x220] sm:$0xff]
                  %1030 = vst [vmem:[%s994 + $0x88] sm:$0xff] %v1029
                  %v1031 = vld [vmem:[%s993 + $0x240] sm:$0xff]
                  %1032 = vst [vmem:[%s994 + $0x90] sm:$0xff] %v1031
                  %v1033 = vld [vmem:[%s993 + $0x260] sm:$0xff]
                  %1034 = vst [vmem:[%s994 + $0x98] sm:$0xff] %v1033
                  %v1035 = vld [vmem:[%s993 + $0x280] sm:$0xff]
                  %1036 = vst [vmem:[%s994 + $0xa0] sm:$0xff] %v1035
                  %v1037 = vld [vmem:[%s993 + $0x2a0] sm:$0xff]
                  %1038 = vst [vmem:[%s994 + $0xa8] sm:$0xff] %v1037
                  %v1039 = vld [vmem:[%s993 + $0x2c0] sm:$0xff]
                  %1040 = vst [vmem:[%s994 + $0xb0] sm:$0xff] %v1039
                  %v1041 = vld [vmem:[%s993 + $0x2e0] sm:$0xff]
                  %1042 = vst [vmem:[%s994 + $0xb8] sm:$0xff] %v1041
                  %v1043 = vld [vmem:[%s993 + $0x300] sm:$0xff]
                  %1044 = vst [vmem:[%s994 + $0xc0] sm:$0xff] %v1043
                  %v1045 = vld [vmem:[%s993 + $0x320] sm:$0xff]
                  %1046 = vst [vmem:[%s994 + $0xc8] sm:$0xff] %v1045
                  %v1047 = vld [vmem:[%s993 + $0x340] sm:$0xff]
                  %1048 = vst [vmem:[%s994 + $0xd0] sm:$0xff] %v1047
                  %v1049 = vld [vmem:[%s993 + $0x360] sm:$0xff]
                  %1050 = vst [vmem:[%s994 + $0xd8] sm:$0xff] %v1049
                  %v1051 = vld [vmem:[%s993 + $0x380] sm:$0xff]
                  %1052 = vst [vmem:[%s994 + $0xe0] sm:$0xff] %v1051
                  %v1053 = vld [vmem:[%s993 + $0x3a0] sm:$0xff]
                  %1054 = vst [vmem:[%s994 + $0xe8] sm:$0xff] %v1053
                  %v1055 = vld [vmem:[%s993 + $0x3c0] sm:$0xff]
                  %1056 = vst [vmem:[%s994 + $0xf0] sm:$0xff] %v1055
                  %v1057 = vld [vmem:[%s993 + $0x3e0] sm:$0xff]
                  %1058 = vst [vmem:[%s994 + $0xf8] sm:$0xff] %v1057
                  %v1059 = vld [vmem:[%s993 + $0x400] sm:$0xff]
                  %1060 = vst [vmem:[%s994 + $0x100] sm:$0xff] %v1059
                  %v1061 = vld [vmem:[%s993 + $0x420] sm:$0xff]
                  %1062 = vst [vmem:[%s994 + $0x108] sm:$0xff] %v1061
                  %v1063 = vld [vmem:[%s993 + $0x440] sm:$0xff]
                  %1064 = vst [vmem:[%s994 + $0x110] sm:$0xff] %v1063
                  %v1065 = vld [vmem:[%s993 + $0x460] sm:$0xff]
                  %1066 = vst [vmem:[%s994 + $0x118] sm:$0xff] %v1065
                  %v1067 = vld [vmem:[%s993 + $0x480] sm:$0xff]
                  %1068 = vst [vmem:[%s994 + $0x120] sm:$0xff] %v1067
                  %v1069 = vld [vmem:[%s993 + $0x4a0] sm:$0xff]
                  %1070 = vst [vmem:[%s994 + $0x128] sm:$0xff] %v1069
                  %v1071 = vld [vmem:[%s993 + $0x4c0] sm:$0xff]
                  %1072 = vst [vmem:[%s994 + $0x130] sm:$0xff] %v1071
                  %v1073 = vld [vmem:[%s993 + $0x4e0] sm:$0xff]
                  %1074 = vst [vmem:[%s994 + $0x138] sm:$0xff] %v1073
                  %v1075 = vld [vmem:[%s993 + $0x500] sm:$0xff]
                  %1076 = vst [vmem:[%s994 + $0x140] sm:$0xff] %v1075
                  %v1077 = vld [vmem:[%s993 + $0x520] sm:$0xff]
                  %1078 = vst [vmem:[%s994 + $0x148] sm:$0xff] %v1077
                  %v1079 = vld [vmem:[%s993 + $0x540] sm:$0xff]
                  %1080 = vst [vmem:[%s994 + $0x150] sm:$0xff] %v1079
                  %v1081 = vld [vmem:[%s993 + $0x560] sm:$0xff]
                  %1082 = vst [vmem:[%s994 + $0x158] sm:$0xff] %v1081
                  %v1083 = vld [vmem:[%s993 + $0x580] sm:$0xff]
                  %1084 = vst [vmem:[%s994 + $0x160] sm:$0xff] %v1083
                  %v1085 = vld [vmem:[%s993 + $0x5a0] sm:$0xff]
                  %1086 = vst [vmem:[%s994 + $0x168] sm:$0xff] %v1085
                  %v1087 = vld [vmem:[%s993 + $0x5c0] sm:$0xff]
                  %1088 = vst [vmem:[%s994 + $0x170] sm:$0xff] %v1087
                  %v1089 = vld [vmem:[%s993 + $0x5e0] sm:$0xff]
                  %1090 = vst [vmem:[%s994 + $0x178] sm:$0xff] %v1089
                  %v1091 = vld [vmem:[%s993 + $0x600] sm:$0xff]
                  %1092 = vst [vmem:[%s994 + $0x180] sm:$0xff] %v1091
                  %v1093 = vld [vmem:[%s993 + $0x620] sm:$0xff]
                  %1094 = vst [vmem:[%s994 + $0x188] sm:$0xff] %v1093
                  %v1095 = vld [vmem:[%s993 + $0x640] sm:$0xff]
                  %1096 = vst [vmem:[%s994 + $0x190] sm:$0xff] %v1095
                  %v1097 = vld [vmem:[%s993 + $0x660] sm:$0xff]
                  %1098 = vst [vmem:[%s994 + $0x198] sm:$0xff] %v1097
                  %v1099 = vld [vmem:[%s993 + $0x680] sm:$0xff]
                  %1100 = vst [vmem:[%s994 + $0x1a0] sm:$0xff] %v1099
                  %v1101 = vld [vmem:[%s993 + $0x6a0] sm:$0xff]
                  %1102 = vst [vmem:[%s994 + $0x1a8] sm:$0xff] %v1101
                  %v1103 = vld [vmem:[%s993 + $0x6c0] sm:$0xff]
                  %1104 = vst [vmem:[%s994 + $0x1b0] sm:$0xff] %v1103
                  %v1105 = vld [vmem:[%s993 + $0x6e0] sm:$0xff]
                  %1106 = vst [vmem:[%s994 + $0x1b8] sm:$0xff] %v1105
                  %v1107 = vld [vmem:[%s993 + $0x700] sm:$0xff]
                  %1108 = vst [vmem:[%s994 + $0x1c0] sm:$0xff] %v1107
                  %v1109 = vld [vmem:[%s993 + $0x720] sm:$0xff]
                  %1110 = vst [vmem:[%s994 + $0x1c8] sm:$0xff] %v1109
                  %v1111 = vld [vmem:[%s993 + $0x740] sm:$0xff]
                  %1112 = vst [vmem:[%s994 + $0x1d0] sm:$0xff] %v1111
                  %v1113 = vld [vmem:[%s993 + $0x760] sm:$0xff]
                  %1114 = vst [vmem:[%s994 + $0x1d8] sm:$0xff] %v1113
                  %v1115 = vld [vmem:[%s993 + $0x780] sm:$0xff]
                  %1116 = vst [vmem:[%s994 + $0x1e0] sm:$0xff] %v1115
                  %v1117 = vld [vmem:[%s993 + $0x7a0] sm:$0xff]
                  %1118 = vst [vmem:[%s994 + $0x1e8] sm:$0xff] %v1117
                  %v1119 = vld [vmem:[%s993 + $0x7c0] sm:$0xff]
                  %1120 = vst [vmem:[%s994 + $0x1f0] sm:$0xff] %v1119
                  %v1121 = vld [vmem:[%s993 + $0x7e0] sm:$0xff]
                  %1122 = vst [vmem:[%s994 + $0x1f8] sm:$0xff] %v1121
                  %v1123 = vld [vmem:[%s993 + $0x800] sm:$0xff]
                  %1124 = vst [vmem:[%s994 + $0x200] sm:$0xff] %v1123
                  %v1125 = vld [vmem:[%s993 + $0x820] sm:$0xff]
                  %1126 = vst [vmem:[%s994 + $0x208] sm:$0xff] %v1125
                  %v1127 = vld [vmem:[%s993 + $0x840] sm:$0xff]
                  %1128 = vst [vmem:[%s994 + $0x210] sm:$0xff] %v1127
                  %v1129 = vld [vmem:[%s993 + $0x860] sm:$0xff]
                  %1130 = vst [vmem:[%s994 + $0x218] sm:$0xff] %v1129
                  %v1131 = vld [vmem:[%s993 + $0x880] sm:$0xff]
                  %1132 = vst [vmem:[%s994 + $0x220] sm:$0xff] %v1131
                  %v1133 = vld [vmem:[%s993 + $0x8a0] sm:$0xff]
                  %1134 = vst [vmem:[%s994 + $0x228] sm:$0xff] %v1133
                  %v1135 = vld [vmem:[%s993 + $0x8c0] sm:$0xff]
                  %1136 = vst [vmem:[%s994 + $0x230] sm:$0xff] %v1135
                  %v1137 = vld [vmem:[%s993 + $0x8e0] sm:$0xff]
                  %1138 = vst [vmem:[%s994 + $0x238] sm:$0xff] %v1137
                  %v1139 = vld [vmem:[%s993 + $0x900] sm:$0xff]
                  %1140 = vst [vmem:[%s994 + $0x240] sm:$0xff] %v1139
                  %v1141 = vld [vmem:[%s993 + $0x920] sm:$0xff]
                  %1142 = vst [vmem:[%s994 + $0x248] sm:$0xff] %v1141
                  %v1143 = vld [vmem:[%s993 + $0x940] sm:$0xff]
                  %1144 = vst [vmem:[%s994 + $0x250] sm:$0xff] %v1143
                  %v1145 = vld [vmem:[%s993 + $0x960] sm:$0xff]
                  %1146 = vst [vmem:[%s994 + $0x258] sm:$0xff] %v1145
                  %v1147 = vld [vmem:[%s993 + $0x980] sm:$0xff]
                  %1148 = vst [vmem:[%s994 + $0x260] sm:$0xff] %v1147
                  %v1149 = vld [vmem:[%s993 + $0x9a0] sm:$0xff]
                  %1150 = vst [vmem:[%s994 + $0x268] sm:$0xff] %v1149
                  %v1151 = vld [vmem:[%s993 + $0x9c0] sm:$0xff]
                  %1152 = vst [vmem:[%s994 + $0x270] sm:$0xff] %v1151
                  %v1153 = vld [vmem:[%s993 + $0x9e0] sm:$0xff]
                  %1154 = vst [vmem:[%s994 + $0x278] sm:$0xff] %v1153
                  %v1155 = vld [vmem:[%s993 + $0xa00] sm:$0xff]
                  %1156 = vst [vmem:[%s994 + $0x280] sm:$0xff] %v1155
                  %v1157 = vld [vmem:[%s993 + $0xa20] sm:$0xff]
                  %1158 = vst [vmem:[%s994 + $0x288] sm:$0xff] %v1157
                  %v1159 = vld [vmem:[%s993 + $0xa40] sm:$0xff]
                  %1160 = vst [vmem:[%s994 + $0x290] sm:$0xff] %v1159
                  %v1161 = vld [vmem:[%s993 + $0xa60] sm:$0xff]
                  %1162 = vst [vmem:[%s994 + $0x298] sm:$0xff] %v1161
                  %v1163 = vld [vmem:[%s993 + $0xa80] sm:$0xff]
                  %1164 = vst [vmem:[%s994 + $0x2a0] sm:$0xff] %v1163
                  %v1165 = vld [vmem:[%s993 + $0xaa0] sm:$0xff]
                  %1166 = vst [vmem:[%s994 + $0x2a8] sm:$0xff] %v1165
                  %v1167 = vld [vmem:[%s993 + $0xac0] sm:$0xff]
                  %1168 = vst [vmem:[%s994 + $0x2b0] sm:$0xff] %v1167
                  %v1169 = vld [vmem:[%s993 + $0xae0] sm:$0xff]
                  %1170 = vst [vmem:[%s994 + $0x2b8] sm:$0xff] %v1169
                  %v1171 = vld [vmem:[%s993 + $0xb00] sm:$0xff]
                  %1172 = vst [vmem:[%s994 + $0x2c0] sm:$0xff] %v1171
                  %v1173 = vld [vmem:[%s993 + $0xb20] sm:$0xff]
                  %1174 = vst [vmem:[%s994 + $0x2c8] sm:$0xff] %v1173
                  %v1175 = vld [vmem:[%s993 + $0xb40] sm:$0xff]
                  %1176 = vst [vmem:[%s994 + $0x2d0] sm:$0xff] %v1175
                  %v1177 = vld [vmem:[%s993 + $0xb60] sm:$0xff]
                  %1178 = vst [vmem:[%s994 + $0x2d8] sm:$0xff] %v1177
                  %v1179 = vld [vmem:[%s993 + $0xb80] sm:$0xff]
                  %1180 = vst [vmem:[%s994 + $0x2e0] sm:$0xff] %v1179
                  %v1181 = vld [vmem:[%s993 + $0xba0] sm:$0xff]
                  %1182 = vst [vmem:[%s994 + $0x2e8] sm:$0xff] %v1181
                  %v1183 = vld [vmem:[%s993 + $0xbc0] sm:$0xff]
                  %1184 = vst [vmem:[%s994 + $0x2f0] sm:$0xff] %v1183
                  %v1185 = vld [vmem:[%s993 + $0xbe0] sm:$0xff]
                  %1186 = vst [vmem:[%s994 + $0x2f8] sm:$0xff] %v1185
                  %v1187 = vld [vmem:[%s993 + $0xc00] sm:$0xff]
                  %1188 = vst [vmem:[%s994 + $0x300] sm:$0xff] %v1187
                  %v1189 = vld [vmem:[%s993 + $0xc20] sm:$0xff]
                  %1190 = vst [vmem:[%s994 + $0x308] sm:$0xff] %v1189
                  %v1191 = vld [vmem:[%s993 + $0xc40] sm:$0xff]
                  %1192 = vst [vmem:[%s994 + $0x310] sm:$0xff] %v1191
                  %v1193 = vld [vmem:[%s993 + $0xc60] sm:$0xff]
                  %1194 = vst [vmem:[%s994 + $0x318] sm:$0xff] %v1193
                  %v1195 = vld [vmem:[%s993 + $0xc80] sm:$0xff]
                  %1196 = vst [vmem:[%s994 + $0x320] sm:$0xff] %v1195
                  %v1197 = vld [vmem:[%s993 + $0xca0] sm:$0xff]
                  %1198 = vst [vmem:[%s994 + $0x328] sm:$0xff] %v1197
                  %v1199 = vld [vmem:[%s993 + $0xcc0] sm:$0xff]
                  %1200 = vst [vmem:[%s994 + $0x330] sm:$0xff] %v1199
                  %v1201 = vld [vmem:[%s993 + $0xce0] sm:$0xff]
                  %1202 = vst [vmem:[%s994 + $0x338] sm:$0xff] %v1201
                  %v1203 = vld [vmem:[%s993 + $0xd00] sm:$0xff]
                  %1204 = vst [vmem:[%s994 + $0x340] sm:$0xff] %v1203
                  %v1205 = vld [vmem:[%s993 + $0xd20] sm:$0xff]
                  %1206 = vst [vmem:[%s994 + $0x348] sm:$0xff] %v1205
                  %v1207 = vld [vmem:[%s993 + $0xd40] sm:$0xff]
                  %1208 = vst [vmem:[%s994 + $0x350] sm:$0xff] %v1207
                  %v1209 = vld [vmem:[%s993 + $0xd60] sm:$0xff]
                  %1210 = vst [vmem:[%s994 + $0x358] sm:$0xff] %v1209
                  %v1211 = vld [vmem:[%s993 + $0xd80] sm:$0xff]
                  %1212 = vst [vmem:[%s994 + $0x360] sm:$0xff] %v1211
                  %v1213 = vld [vmem:[%s993 + $0xda0] sm:$0xff]
                  %1214 = vst [vmem:[%s994 + $0x368] sm:$0xff] %v1213
                  %v1215 = vld [vmem:[%s993 + $0xdc0] sm:$0xff]
                  %1216 = vst [vmem:[%s994 + $0x370] sm:$0xff] %v1215
                  %v1217 = vld [vmem:[%s993 + $0xde0] sm:$0xff]
                  %1218 = vst [vmem:[%s994 + $0x378] sm:$0xff] %v1217
                  %v1219 = vld [vmem:[%s993 + $0xe00] sm:$0xff]
                  %1220 = vst [vmem:[%s994 + $0x380] sm:$0xff] %v1219
                  %v1221 = vld [vmem:[%s993 + $0xe20] sm:$0xff]
                  %1222 = vst [vmem:[%s994 + $0x388] sm:$0xff] %v1221
                  %v1223 = vld [vmem:[%s993 + $0xe40] sm:$0xff]
                  %1224 = vst [vmem:[%s994 + $0x390] sm:$0xff] %v1223
                  %v1225 = vld [vmem:[%s993 + $0xe60] sm:$0xff]
                  %1226 = vst [vmem:[%s994 + $0x398] sm:$0xff] %v1225
                  %v1227 = vld [vmem:[%s993 + $0xe80] sm:$0xff]
                  %1228 = vst [vmem:[%s994 + $0x3a0] sm:$0xff] %v1227
                  %v1229 = vld [vmem:[%s993 + $0xea0] sm:$0xff]
                  %1230 = vst [vmem:[%s994 + $0x3a8] sm:$0xff] %v1229
                  %v1231 = vld [vmem:[%s993 + $0xec0] sm:$0xff]
                  %1232 = vst [vmem:[%s994 + $0x3b0] sm:$0xff] %v1231
                  %v1233 = vld [vmem:[%s993 + $0xee0] sm:$0xff]
                  %1234 = vst [vmem:[%s994 + $0x3b8] sm:$0xff] %v1233
                  %v1235 = vld [vmem:[%s993 + $0xf00] sm:$0xff]
                  %1236 = vst [vmem:[%s994 + $0x3c0] sm:$0xff] %v1235
                  %v1237 = vld [vmem:[%s993 + $0xf20] sm:$0xff]
                  %1238 = vst [vmem:[%s994 + $0x3c8] sm:$0xff] %v1237
                  %v1239 = vld [vmem:[%s993 + $0xf40] sm:$0xff]
                  %1240 = vst [vmem:[%s994 + $0x3d0] sm:$0xff] %v1239
                  %v1241 = vld [vmem:[%s993 + $0xf60] sm:$0xff]
                  %1242 = vst [vmem:[%s994 + $0x3d8] sm:$0xff] %v1241
                  %v1243 = vld [vmem:[%s993 + $0xf80] sm:$0xff]
                  %1244 = vst [vmem:[%s994 + $0x3e0] sm:$0xff] %v1243
                  %v1245 = vld [vmem:[%s993 + $0xfa0] sm:$0xff]
                  %1246 = vst [vmem:[%s994 + $0x3e8] sm:$0xff] %v1245
                  %v1247 = vld [vmem:[%s993 + $0xfc0] sm:$0xff]
                  %1248 = vst [vmem:[%s994 + $0x3f0] sm:$0xff] %v1247
                  %v1249 = vld [vmem:[%s993 + $0xfe0] sm:$0xff]
                  %1250 = vst [vmem:[%s994 + $0x3f8] sm:$0xff] %v1249
                  %v1251 = vld [vmem:[%s993 + $0x1000] sm:$0xff]
                  %1252 = vst [vmem:[%s994 + $0x400] sm:$0xff] %v1251
                  %v1253 = vld [vmem:[%s993 + $0x1020] sm:$0xff]
                  %1254 = vst [vmem:[%s994 + $0x408] sm:$0xff] %v1253
                  %v1255 = vld [vmem:[%s993 + $0x1040] sm:$0xff]
                  %1256 = vst [vmem:[%s994 + $0x410] sm:$0xff] %v1255
                  %v1257 = vld [vmem:[%s993 + $0x1060] sm:$0xff]
                  %1258 = vst [vmem:[%s994 + $0x418] sm:$0xff] %v1257
                  %v1259 = vld [vmem:[%s993 + $0x1080] sm:$0xff]
                  %1260 = vst [vmem:[%s994 + $0x420] sm:$0xff] %v1259
                  %v1261 = vld [vmem:[%s993 + $0x10a0] sm:$0xff]
                  %1262 = vst [vmem:[%s994 + $0x428] sm:$0xff] %v1261
                  %v1263 = vld [vmem:[%s993 + $0x10c0] sm:$0xff]
                  %1264 = vst [vmem:[%s994 + $0x430] sm:$0xff] %v1263
                  %v1265 = vld [vmem:[%s993 + $0x10e0] sm:$0xff]
                  %1266 = vst [vmem:[%s994 + $0x438] sm:$0xff] %v1265
                  %v1267 = vld [vmem:[%s993 + $0x1100] sm:$0xff]
                  %1268 = vst [vmem:[%s994 + $0x440] sm:$0xff] %v1267
                  %v1269 = vld [vmem:[%s993 + $0x1120] sm:$0xff]
                  %1270 = vst [vmem:[%s994 + $0x448] sm:$0xff] %v1269
                  %v1271 = vld [vmem:[%s993 + $0x1140] sm:$0xff]
                  %1272 = vst [vmem:[%s994 + $0x450] sm:$0xff] %v1271
                  %v1273 = vld [vmem:[%s993 + $0x1160] sm:$0xff]
                  %1274 = vst [vmem:[%s994 + $0x458] sm:$0xff] %v1273
                  %v1275 = vld [vmem:[%s993 + $0x1180] sm:$0xff]
                  %1276 = vst [vmem:[%s994 + $0x460] sm:$0xff] %v1275
                  %v1277 = vld [vmem:[%s993 + $0x11a0] sm:$0xff]
                  %1278 = vst [vmem:[%s994 + $0x468] sm:$0xff] %v1277
                  %v1279 = vld [vmem:[%s993 + $0x11c0] sm:$0xff]
                  %1280 = vst [vmem:[%s994 + $0x470] sm:$0xff] %v1279
                  %v1281 = vld [vmem:[%s993 + $0x11e0] sm:$0xff]
                  %1282 = vst [vmem:[%s994 + $0x478] sm:$0xff] %v1281
                  %v1283 = vld [vmem:[%s993 + $0x1200] sm:$0xff]
                  %1284 = vst [vmem:[%s994 + $0x480] sm:$0xff] %v1283
                  %v1285 = vld [vmem:[%s993 + $0x1220] sm:$0xff]
                  %1286 = vst [vmem:[%s994 + $0x488] sm:$0xff] %v1285
                  %v1287 = vld [vmem:[%s993 + $0x1240] sm:$0xff]
                  %1288 = vst [vmem:[%s994 + $0x490] sm:$0xff] %v1287
                  %v1289 = vld [vmem:[%s993 + $0x1260] sm:$0xff]
                  %1290 = vst [vmem:[%s994 + $0x498] sm:$0xff] %v1289
                  %v1291 = vld [vmem:[%s993 + $0x1280] sm:$0xff]
                  %1292 = vst [vmem:[%s994 + $0x4a0] sm:$0xff] %v1291
                  %v1293 = vld [vmem:[%s993 + $0x12a0] sm:$0xff]
                  %1294 = vst [vmem:[%s994 + $0x4a8] sm:$0xff] %v1293
                  %v1295 = vld [vmem:[%s993 + $0x12c0] sm:$0xff]
                  %1296 = vst [vmem:[%s994 + $0x4b0] sm:$0xff] %v1295
                  %v1297 = vld [vmem:[%s993 + $0x12e0] sm:$0xff]
                  %1298 = vst [vmem:[%s994 + $0x4b8] sm:$0xff] %v1297
                  %v1299 = vld [vmem:[%s993 + $0x1300] sm:$0xff]
                  %1300 = vst [vmem:[%s994 + $0x4c0] sm:$0xff] %v1299
                  %v1301 = vld [vmem:[%s993 + $0x1320] sm:$0xff]
                  %1302 = vst [vmem:[%s994 + $0x4c8] sm:$0xff] %v1301
                  %v1303 = vld [vmem:[%s993 + $0x1340] sm:$0xff]
                  %1304 = vst [vmem:[%s994 + $0x4d0] sm:$0xff] %v1303
                  %v1305 = vld [vmem:[%s993 + $0x1360] sm:$0xff]
                  %1306 = vst [vmem:[%s994 + $0x4d8] sm:$0xff] %v1305
                  %v1307 = vld [vmem:[%s993 + $0x1380] sm:$0xff]
                  %1308 = vst [vmem:[%s994 + $0x4e0] sm:$0xff] %v1307
                  %v1309 = vld [vmem:[%s993 + $0x13a0] sm:$0xff]
                  %1310 = vst [vmem:[%s994 + $0x4e8] sm:$0xff] %v1309
                  %v1311 = vld [vmem:[%s993 + $0x13c0] sm:$0xff]
                  %1312 = vst [vmem:[%s994 + $0x4f0] sm:$0xff] %v1311
                  %v1313 = vld [vmem:[%s993 + $0x13e0] sm:$0xff]
                  %1314 = vst [vmem:[%s994 + $0x4f8] sm:$0xff] %v1313
                  %v1315 = vld [vmem:[%s993 + $0x1400] sm:$0xff]
                  %1316 = vst [vmem:[%s994 + $0x500] sm:$0xff] %v1315
                  %v1317 = vld [vmem:[%s993 + $0x1420] sm:$0xff]
                  %1318 = vst [vmem:[%s994 + $0x508] sm:$0xff] %v1317
                  %v1319 = vld [vmem:[%s993 + $0x1440] sm:$0xff]
                  %1320 = vst [vmem:[%s994 + $0x510] sm:$0xff] %v1319
                  %v1321 = vld [vmem:[%s993 + $0x1460] sm:$0xff]
                  %1322 = vst [vmem:[%s994 + $0x518] sm:$0xff] %v1321
                  %v1323 = vld [vmem:[%s993 + $0x1480] sm:$0xff]
                  %1324 = vst [vmem:[%s994 + $0x520] sm:$0xff] %v1323
                  %v1325 = vld [vmem:[%s993 + $0x14a0] sm:$0xff]
                  %1326 = vst [vmem:[%s994 + $0x528] sm:$0xff] %v1325
                  %v1327 = vld [vmem:[%s993 + $0x14c0] sm:$0xff]
                  %1328 = vst [vmem:[%s994 + $0x530] sm:$0xff] %v1327
                  %v1329 = vld [vmem:[%s993 + $0x14e0] sm:$0xff]
                  %1330 = vst [vmem:[%s994 + $0x538] sm:$0xff] %v1329
                  %v1331 = vld [vmem:[%s993 + $0x1500] sm:$0xff]
                  %1332 = vst [vmem:[%s994 + $0x540] sm:$0xff] %v1331
                  %v1333 = vld [vmem:[%s993 + $0x1520] sm:$0xff]
                  %1334 = vst [vmem:[%s994 + $0x548] sm:$0xff] %v1333
                  %v1335 = vld [vmem:[%s993 + $0x1540] sm:$0xff]
                  %1336 = vst [vmem:[%s994 + $0x550] sm:$0xff] %v1335
                  %v1337 = vld [vmem:[%s993 + $0x1560] sm:$0xff]
                  %1338 = vst [vmem:[%s994 + $0x558] sm:$0xff] %v1337
                  %v1339 = vld [vmem:[%s993 + $0x1580] sm:$0xff]
                  %1340 = vst [vmem:[%s994 + $0x560] sm:$0xff] %v1339
                  %v1341 = vld [vmem:[%s993 + $0x15a0] sm:$0xff]
                  %1342 = vst [vmem:[%s994 + $0x568] sm:$0xff] %v1341
                  %v1343 = vld [vmem:[%s993 + $0x15c0] sm:$0xff]
                  %1344 = vst [vmem:[%s994 + $0x570] sm:$0xff] %v1343
                  %v1345 = vld [vmem:[%s993 + $0x15e0] sm:$0xff]
                  %1346 = vst [vmem:[%s994 + $0x578] sm:$0xff] %v1345
                  %v1347 = vld [vmem:[%s993 + $0x1600] sm:$0xff]
                  %1348 = vst [vmem:[%s994 + $0x580] sm:$0xff] %v1347
                  %v1349 = vld [vmem:[%s993 + $0x1620] sm:$0xff]
                  %1350 = vst [vmem:[%s994 + $0x588] sm:$0xff] %v1349
                  %v1351 = vld [vmem:[%s993 + $0x1640] sm:$0xff]
                  %1352 = vst [vmem:[%s994 + $0x590] sm:$0xff] %v1351
                  %v1353 = vld [vmem:[%s993 + $0x1660] sm:$0xff]
                  %1354 = vst [vmem:[%s994 + $0x598] sm:$0xff] %v1353
                  %v1355 = vld [vmem:[%s993 + $0x1680] sm:$0xff]
                  %1356 = vst [vmem:[%s994 + $0x5a0] sm:$0xff] %v1355
                  %v1357 = vld [vmem:[%s993 + $0x16a0] sm:$0xff]
                  %1358 = vst [vmem:[%s994 + $0x5a8] sm:$0xff] %v1357
                  %v1359 = vld [vmem:[%s993 + $0x16c0] sm:$0xff]
                  %1360 = vst [vmem:[%s994 + $0x5b0] sm:$0xff] %v1359
                  %v1361 = vld [vmem:[%s993 + $0x16e0] sm:$0xff]
                  %1362 = vst [vmem:[%s994 + $0x5b8] sm:$0xff] %v1361
                  %v1363 = vld [vmem:[%s993 + $0x1700] sm:$0xff]
                  %1364 = vst [vmem:[%s994 + $0x5c0] sm:$0xff] %v1363
                  %v1365 = vld [vmem:[%s993 + $0x1720] sm:$0xff]
                  %1366 = vst [vmem:[%s994 + $0x5c8] sm:$0xff] %v1365
                  %v1367 = vld [vmem:[%s993 + $0x1740] sm:$0xff]
                  %1368 = vst [vmem:[%s994 + $0x5d0] sm:$0xff] %v1367
                  %v1369 = vld [vmem:[%s993 + $0x1760] sm:$0xff]
                  %1370 = vst [vmem:[%s994 + $0x5d8] sm:$0xff] %v1369
                  %v1371 = vld [vmem:[%s993 + $0x1780] sm:$0xff]
                  %1372 = vst [vmem:[%s994 + $0x5e0] sm:$0xff] %v1371
                  %v1373 = vld [vmem:[%s993 + $0x17a0] sm:$0xff]
                  %1374 = vst [vmem:[%s994 + $0x5e8] sm:$0xff] %v1373
                  %v1375 = vld [vmem:[%s993 + $0x17c0] sm:$0xff]
                  %1376 = vst [vmem:[%s994 + $0x5f0] sm:$0xff] %v1375
                  %v1377 = vld [vmem:[%s993 + $0x17e0] sm:$0xff]
                  %1378 = vst [vmem:[%s994 + $0x5f8] sm:$0xff] %v1377
                  %v1379 = vld [vmem:[%s993 + $0x1800] sm:$0xff]
                  %1380 = vst [vmem:[%s994 + $0x600] sm:$0xff] %v1379
                  %v1381 = vld [vmem:[%s993 + $0x1820] sm:$0xff]
                  %1382 = vst [vmem:[%s994 + $0x608] sm:$0xff] %v1381
                  %v1383 = vld [vmem:[%s993 + $0x1840] sm:$0xff]
                  %1384 = vst [vmem:[%s994 + $0x610] sm:$0xff] %v1383
                  %v1385 = vld [vmem:[%s993 + $0x1860] sm:$0xff]
                  %1386 = vst [vmem:[%s994 + $0x618] sm:$0xff] %v1385
                  %v1387 = vld [vmem:[%s993 + $0x1880] sm:$0xff]
                  %1388 = vst [vmem:[%s994 + $0x620] sm:$0xff] %v1387
                  %v1389 = vld [vmem:[%s993 + $0x18a0] sm:$0xff]
                  %1390 = vst [vmem:[%s994 + $0x628] sm:$0xff] %v1389
                  %v1391 = vld [vmem:[%s993 + $0x18c0] sm:$0xff]
                  %1392 = vst [vmem:[%s994 + $0x630] sm:$0xff] %v1391
                  %v1393 = vld [vmem:[%s993 + $0x18e0] sm:$0xff]
                  %1394 = vst [vmem:[%s994 + $0x638] sm:$0xff] %v1393
                  %v1395 = vld [vmem:[%s993 + $0x1900] sm:$0xff]
                  %1396 = vst [vmem:[%s994 + $0x640] sm:$0xff] %v1395
                  %v1397 = vld [vmem:[%s993 + $0x1920] sm:$0xff]
                  %1398 = vst [vmem:[%s994 + $0x648] sm:$0xff] %v1397
                  %v1399 = vld [vmem:[%s993 + $0x1940] sm:$0xff]
                  %1400 = vst [vmem:[%s994 + $0x650] sm:$0xff] %v1399
                  %v1401 = vld [vmem:[%s993 + $0x1960] sm:$0xff]
                  %1402 = vst [vmem:[%s994 + $0x658] sm:$0xff] %v1401
                  %v1403 = vld [vmem:[%s993 + $0x1980] sm:$0xff]
                  %1404 = vst [vmem:[%s994 + $0x660] sm:$0xff] %v1403
                  %v1405 = vld [vmem:[%s993 + $0x19a0] sm:$0xff]
                  %1406 = vst [vmem:[%s994 + $0x668] sm:$0xff] %v1405
                  %v1407 = vld [vmem:[%s993 + $0x19c0] sm:$0xff]
                  %1408 = vst [vmem:[%s994 + $0x670] sm:$0xff] %v1407
                  %v1409 = vld [vmem:[%s993 + $0x19e0] sm:$0xff]
                  %1410 = vst [vmem:[%s994 + $0x678] sm:$0xff] %v1409
                  %v1411 = vld [vmem:[%s993 + $0x1a00] sm:$0xff]
                  %1412 = vst [vmem:[%s994 + $0x680] sm:$0xff] %v1411
                  %v1413 = vld [vmem:[%s993 + $0x1a20] sm:$0xff]
                  %1414 = vst [vmem:[%s994 + $0x688] sm:$0xff] %v1413
                  %v1415 = vld [vmem:[%s993 + $0x1a40] sm:$0xff]
                  %1416 = vst [vmem:[%s994 + $0x690] sm:$0xff] %v1415
                  %v1417 = vld [vmem:[%s993 + $0x1a60] sm:$0xff]
                  %1418 = vst [vmem:[%s994 + $0x698] sm:$0xff] %v1417
                  %v1419 = vld [vmem:[%s993 + $0x1a80] sm:$0xff]
                  %1420 = vst [vmem:[%s994 + $0x6a0] sm:$0xff] %v1419
                  %v1421 = vld [vmem:[%s993 + $0x1aa0] sm:$0xff]
                  %1422 = vst [vmem:[%s994 + $0x6a8] sm:$0xff] %v1421
                  %v1423 = vld [vmem:[%s993 + $0x1ac0] sm:$0xff]
                  %1424 = vst [vmem:[%s994 + $0x6b0] sm:$0xff] %v1423
                  %v1425 = vld [vmem:[%s993 + $0x1ae0] sm:$0xff]
                  %1426 = vst [vmem:[%s994 + $0x6b8] sm:$0xff] %v1425
                  %v1427 = vld [vmem:[%s993 + $0x1b00] sm:$0xff]
                  %1428 = vst [vmem:[%s994 + $0x6c0] sm:$0xff] %v1427
                  %v1429 = vld [vmem:[%s993 + $0x1b20] sm:$0xff]
                  %1430 = vst [vmem:[%s994 + $0x6c8] sm:$0xff] %v1429
                  %v1431 = vld [vmem:[%s993 + $0x1b40] sm:$0xff]
                  %1432 = vst [vmem:[%s994 + $0x6d0] sm:$0xff] %v1431
                  %v1433 = vld [vmem:[%s993 + $0x1b60] sm:$0xff]
                  %1434 = vst [vmem:[%s994 + $0x6d8] sm:$0xff] %v1433
                  %v1435 = vld [vmem:[%s993 + $0x1b80] sm:$0xff]
                  %1436 = vst [vmem:[%s994 + $0x6e0] sm:$0xff] %v1435
                  %v1437 = vld [vmem:[%s993 + $0x1ba0] sm:$0xff]
                  %1438 = vst [vmem:[%s994 + $0x6e8] sm:$0xff] %v1437
                  %v1439 = vld [vmem:[%s993 + $0x1bc0] sm:$0xff]
                  %1440 = vst [vmem:[%s994 + $0x6f0] sm:$0xff] %v1439
                  %v1441 = vld [vmem:[%s993 + $0x1be0] sm:$0xff]
                  %1442 = vst [vmem:[%s994 + $0x6f8] sm:$0xff] %v1441
                  %v1443 = vld [vmem:[%s993 + $0x1c00] sm:$0xff]
                  %1444 = vst [vmem:[%s994 + $0x700] sm:$0xff] %v1443
                  %v1445 = vld [vmem:[%s993 + $0x1c20] sm:$0xff]
                  %1446 = vst [vmem:[%s994 + $0x708] sm:$0xff] %v1445
                  %v1447 = vld [vmem:[%s993 + $0x1c40] sm:$0xff]
                  %1448 = vst [vmem:[%s994 + $0x710] sm:$0xff] %v1447
                  %v1449 = vld [vmem:[%s993 + $0x1c60] sm:$0xff]
                  %1450 = vst [vmem:[%s994 + $0x718] sm:$0xff] %v1449
                  %v1451 = vld [vmem:[%s993 + $0x1c80] sm:$0xff]
                  %1452 = vst [vmem:[%s994 + $0x720] sm:$0xff] %v1451
                  %v1453 = vld [vmem:[%s993 + $0x1ca0] sm:$0xff]
                  %1454 = vst [vmem:[%s994 + $0x728] sm:$0xff] %v1453
                  %v1455 = vld [vmem:[%s993 + $0x1cc0] sm:$0xff]
                  %1456 = vst [vmem:[%s994 + $0x730] sm:$0xff] %v1455
                  %v1457 = vld [vmem:[%s993 + $0x1ce0] sm:$0xff]
                  %1458 = vst [vmem:[%s994 + $0x738] sm:$0xff] %v1457
                  %v1459 = vld [vmem:[%s993 + $0x1d00] sm:$0xff]
                  %1460 = vst [vmem:[%s994 + $0x740] sm:$0xff] %v1459
                  %v1461 = vld [vmem:[%s993 + $0x1d20] sm:$0xff]
                  %1462 = vst [vmem:[%s994 + $0x748] sm:$0xff] %v1461
                  %v1463 = vld [vmem:[%s993 + $0x1d40] sm:$0xff]
                  %1464 = vst [vmem:[%s994 + $0x750] sm:$0xff] %v1463
                  %v1465 = vld [vmem:[%s993 + $0x1d60] sm:$0xff]
                  %1466 = vst [vmem:[%s994 + $0x758] sm:$0xff] %v1465
                  %v1467 = vld [vmem:[%s993 + $0x1d80] sm:$0xff]
                  %1468 = vst [vmem:[%s994 + $0x760] sm:$0xff] %v1467
                  %v1469 = vld [vmem:[%s993 + $0x1da0] sm:$0xff]
                  %1470 = vst [vmem:[%s994 + $0x768] sm:$0xff] %v1469
                  %v1471 = vld [vmem:[%s993 + $0x1dc0] sm:$0xff]
                  %1472 = vst [vmem:[%s994 + $0x770] sm:$0xff] %v1471
                  %v1473 = vld [vmem:[%s993 + $0x1de0] sm:$0xff]
                  %1474 = vst [vmem:[%s994 + $0x778] sm:$0xff] %v1473
                  %v1475 = vld [vmem:[%s993 + $0x1e00] sm:$0xff]
                  %1476 = vst [vmem:[%s994 + $0x780] sm:$0xff] %v1475
                  %v1477 = vld [vmem:[%s993 + $0x1e20] sm:$0xff]
                  %1478 = vst [vmem:[%s994 + $0x788] sm:$0xff] %v1477
                  %v1479 = vld [vmem:[%s993 + $0x1e40] sm:$0xff]
                  %1480 = vst [vmem:[%s994 + $0x790] sm:$0xff] %v1479
                  %v1481 = vld [vmem:[%s993 + $0x1e60] sm:$0xff]
                  %1482 = vst [vmem:[%s994 + $0x798] sm:$0xff] %v1481
                  %v1483 = vld [vmem:[%s993 + $0x1e80] sm:$0xff]
                  %1484 = vst [vmem:[%s994 + $0x7a0] sm:$0xff] %v1483
                  %v1485 = vld [vmem:[%s993 + $0x1ea0] sm:$0xff]
                  %1486 = vst [vmem:[%s994 + $0x7a8] sm:$0xff] %v1485
                  %v1487 = vld [vmem:[%s993 + $0x1ec0] sm:$0xff]
                  %1488 = vst [vmem:[%s994 + $0x7b0] sm:$0xff] %v1487
                  %v1489 = vld [vmem:[%s993 + $0x1ee0] sm:$0xff]
                  %1490 = vst [vmem:[%s994 + $0x7b8] sm:$0xff] %v1489
                  %v1491 = vld [vmem:[%s993 + $0x1f00] sm:$0xff]
                  %1492 = vst [vmem:[%s994 + $0x7c0] sm:$0xff] %v1491
                  %v1493 = vld [vmem:[%s993 + $0x1f20] sm:$0xff]
                  %1494 = vst [vmem:[%s994 + $0x7c8] sm:$0xff] %v1493
                  %v1495 = vld [vmem:[%s993 + $0x1f40] sm:$0xff]
                  %1496 = vst [vmem:[%s994 + $0x7d0] sm:$0xff] %v1495
                  %v1497 = vld [vmem:[%s993 + $0x1f60] sm:$0xff]
                  %1498 = vst [vmem:[%s994 + $0x7d8] sm:$0xff] %v1497
                  %v1499 = vld [vmem:[%s993 + $0x1f80] sm:$0xff]
                  %1500 = vst [vmem:[%s994 + $0x7e0] sm:$0xff] %v1499
                  %v1501 = vld [vmem:[%s993 + $0x1fa0] sm:$0xff]
                  %1502 = vst [vmem:[%s994 + $0x7e8] sm:$0xff] %v1501
                  %v1503 = vld [vmem:[%s993 + $0x1fc0] sm:$0xff]
                  %1504 = vst [vmem:[%s994 + $0x7f0] sm:$0xff] %v1503
                  %v1505 = vld [vmem:[%s993 + $0x1fe0] sm:$0xff]
                  %1506 = vst [vmem:[%s994 + $0x7f8] sm:$0xff] %v1505
                  %v1507 = vld [vmem:[%s993 + $0x2000] sm:$0xff]
                  %1508 = vst [vmem:[%s994 + $0x800] sm:$0xff] %v1507
                  %v1509 = vld [vmem:[%s993 + $0x2020] sm:$0xff]
                  %1510 = vst [vmem:[%s994 + $0x808] sm:$0xff] %v1509
                  %v1511 = vld [vmem:[%s993 + $0x2040] sm:$0xff]
                  %1512 = vst [vmem:[%s994 + $0x810] sm:$0xff] %v1511
                  %v1513 = vld [vmem:[%s993 + $0x2060] sm:$0xff]
                  %1514 = vst [vmem:[%s994 + $0x818] sm:$0xff] %v1513
                  %v1515 = vld [vmem:[%s993 + $0x2080] sm:$0xff]
                  %1516 = vst [vmem:[%s994 + $0x820] sm:$0xff] %v1515
                  %v1517 = vld [vmem:[%s993 + $0x20a0] sm:$0xff]
                  %1518 = vst [vmem:[%s994 + $0x828] sm:$0xff] %v1517
                  %v1519 = vld [vmem:[%s993 + $0x20c0] sm:$0xff]
                  %1520 = vst [vmem:[%s994 + $0x830] sm:$0xff] %v1519
                  %v1521 = vld [vmem:[%s993 + $0x20e0] sm:$0xff]
                  %1522 = vst [vmem:[%s994 + $0x838] sm:$0xff] %v1521
                  %v1523 = vld [vmem:[%s993 + $0x2100] sm:$0xff]
                  %1524 = vst [vmem:[%s994 + $0x840] sm:$0xff] %v1523
                  %v1525 = vld [vmem:[%s993 + $0x2120] sm:$0xff]
                  %1526 = vst [vmem:[%s994 + $0x848] sm:$0xff] %v1525
                  %v1527 = vld [vmem:[%s993 + $0x2140] sm:$0xff]
                  %1528 = vst [vmem:[%s994 + $0x850] sm:$0xff] %v1527
                  %v1529 = vld [vmem:[%s993 + $0x2160] sm:$0xff]
                  %1530 = vst [vmem:[%s994 + $0x858] sm:$0xff] %v1529
                  %v1531 = vld [vmem:[%s993 + $0x2180] sm:$0xff]
                  %1532 = vst [vmem:[%s994 + $0x860] sm:$0xff] %v1531
                  %v1533 = vld [vmem:[%s993 + $0x21a0] sm:$0xff]
                  %1534 = vst [vmem:[%s994 + $0x868] sm:$0xff] %v1533
                  %v1535 = vld [vmem:[%s993 + $0x21c0] sm:$0xff]
                  %1536 = vst [vmem:[%s994 + $0x870] sm:$0xff] %v1535
                  %v1537 = vld [vmem:[%s993 + $0x21e0] sm:$0xff]
                  %1538 = vst [vmem:[%s994 + $0x878] sm:$0xff] %v1537
                  %v1539 = vld [vmem:[%s993 + $0x2200] sm:$0xff]
                  %1540 = vst [vmem:[%s994 + $0x880] sm:$0xff] %v1539
                  %v1541 = vld [vmem:[%s993 + $0x2220] sm:$0xff]
                  %1542 = vst [vmem:[%s994 + $0x888] sm:$0xff] %v1541
                  %v1543 = vld [vmem:[%s993 + $0x2240] sm:$0xff]
                  %1544 = vst [vmem:[%s994 + $0x890] sm:$0xff] %v1543
                  %v1545 = vld [vmem:[%s993 + $0x2260] sm:$0xff]
                  %1546 = vst [vmem:[%s994 + $0x898] sm:$0xff] %v1545
                  %v1547 = vld [vmem:[%s993 + $0x2280] sm:$0xff]
                  %1548 = vst [vmem:[%s994 + $0x8a0] sm:$0xff] %v1547
                  %v1549 = vld [vmem:[%s993 + $0x22a0] sm:$0xff]
                  %1550 = vst [vmem:[%s994 + $0x8a8] sm:$0xff] %v1549
                  %v1551 = vld [vmem:[%s993 + $0x22c0] sm:$0xff]
                  %1552 = vst [vmem:[%s994 + $0x8b0] sm:$0xff] %v1551
                  %v1553 = vld [vmem:[%s993 + $0x22e0] sm:$0xff]
                  %1554 = vst [vmem:[%s994 + $0x8b8] sm:$0xff] %v1553
                  %v1555 = vld [vmem:[%s993 + $0x2300] sm:$0xff]
                  %1556 = vst [vmem:[%s994 + $0x8c0] sm:$0xff] %v1555
                  %v1557 = vld [vmem:[%s993 + $0x2320] sm:$0xff]
                  %1558 = vst [vmem:[%s994 + $0x8c8] sm:$0xff] %v1557
                  %v1559 = vld [vmem:[%s993 + $0x2340] sm:$0xff]
                  %1560 = vst [vmem:[%s994 + $0x8d0] sm:$0xff] %v1559
                  %v1561 = vld [vmem:[%s993 + $0x2360] sm:$0xff]
                  %1562 = vst [vmem:[%s994 + $0x8d8] sm:$0xff] %v1561
                  %v1563 = vld [vmem:[%s993 + $0x2380] sm:$0xff]
                  %1564 = vst [vmem:[%s994 + $0x8e0] sm:$0xff] %v1563
                  %v1565 = vld [vmem:[%s993 + $0x23a0] sm:$0xff]
                  %1566 = vst [vmem:[%s994 + $0x8e8] sm:$0xff] %v1565
                  %v1567 = vld [vmem:[%s993 + $0x23c0] sm:$0xff]
                  %1568 = vst [vmem:[%s994 + $0x8f0] sm:$0xff] %v1567
                  %v1569 = vld [vmem:[%s993 + $0x23e0] sm:$0xff]
                  %1570 = vst [vmem:[%s994 + $0x8f8] sm:$0xff] %v1569
                  %v1571 = vld [vmem:[%s993 + $0x2400] sm:$0xff]
                  %1572 = vst [vmem:[%s994 + $0x900] sm:$0xff] %v1571
                  %v1573 = vld [vmem:[%s993 + $0x2420] sm:$0xff]
                  %1574 = vst [vmem:[%s994 + $0x908] sm:$0xff] %v1573
                  %v1575 = vld [vmem:[%s993 + $0x2440] sm:$0xff]
                  %1576 = vst [vmem:[%s994 + $0x910] sm:$0xff] %v1575
                  %v1577 = vld [vmem:[%s993 + $0x2460] sm:$0xff]
                  %1578 = vst [vmem:[%s994 + $0x918] sm:$0xff] %v1577
                  %v1579 = vld [vmem:[%s993 + $0x2480] sm:$0xff]
                  %1580 = vst [vmem:[%s994 + $0x920] sm:$0xff] %v1579
                  %v1581 = vld [vmem:[%s993 + $0x24a0] sm:$0xff]
                  %1582 = vst [vmem:[%s994 + $0x928] sm:$0xff] %v1581
                  %v1583 = vld [vmem:[%s993 + $0x24c0] sm:$0xff]
                  %1584 = vst [vmem:[%s994 + $0x930] sm:$0xff] %v1583
                  %v1585 = vld [vmem:[%s993 + $0x24e0] sm:$0xff]
                  %1586 = vst [vmem:[%s994 + $0x938] sm:$0xff] %v1585
                  %v1587 = vld [vmem:[%s993 + $0x2500] sm:$0xff]
                  %1588 = vst [vmem:[%s994 + $0x940] sm:$0xff] %v1587
                  %v1589 = vld [vmem:[%s993 + $0x2520] sm:$0xff]
                  %1590 = vst [vmem:[%s994 + $0x948] sm:$0xff] %v1589
                  %v1591 = vld [vmem:[%s993 + $0x2540] sm:$0xff]
                  %1592 = vst [vmem:[%s994 + $0x950] sm:$0xff] %v1591
                  %v1593 = vld [vmem:[%s993 + $0x2560] sm:$0xff]
                  %1594 = vst [vmem:[%s994 + $0x958] sm:$0xff] %v1593
                  %v1595 = vld [vmem:[%s993 + $0x2580] sm:$0xff]
                  %1596 = vst [vmem:[%s994 + $0x960] sm:$0xff] %v1595
                  %v1597 = vld [vmem:[%s993 + $0x25a0] sm:$0xff]
                  %1598 = vst [vmem:[%s994 + $0x968] sm:$0xff] %v1597
                  %v1599 = vld [vmem:[%s993 + $0x25c0] sm:$0xff]
                  %1600 = vst [vmem:[%s994 + $0x970] sm:$0xff] %v1599
                  %v1601 = vld [vmem:[%s993 + $0x25e0] sm:$0xff]
                  %1602 = vst [vmem:[%s994 + $0x978] sm:$0xff] %v1601
                  %v1603 = vld [vmem:[%s993 + $0x2600] sm:$0xff]
                  %1604 = vst [vmem:[%s994 + $0x980] sm:$0xff] %v1603
                  %v1605 = vld [vmem:[%s993 + $0x2620] sm:$0xff]
                  %1606 = vst [vmem:[%s994 + $0x988] sm:$0xff] %v1605
                  %v1607 = vld [vmem:[%s993 + $0x2640] sm:$0xff]
                  %1608 = vst [vmem:[%s994 + $0x990] sm:$0xff] %v1607
                  %v1609 = vld [vmem:[%s993 + $0x2660] sm:$0xff]
                  %1610 = vst [vmem:[%s994 + $0x998] sm:$0xff] %v1609
                  %v1611 = vld [vmem:[%s993 + $0x2680] sm:$0xff]
                  %1612 = vst [vmem:[%s994 + $0x9a0] sm:$0xff] %v1611
                  %v1613 = vld [vmem:[%s993 + $0x26a0] sm:$0xff]
                  %1614 = vst [vmem:[%s994 + $0x9a8] sm:$0xff] %v1613
                  %v1615 = vld [vmem:[%s993 + $0x26c0] sm:$0xff]
                  %1616 = vst [vmem:[%s994 + $0x9b0] sm:$0xff] %v1615
                  %v1617 = vld [vmem:[%s993 + $0x26e0] sm:$0xff]
                  %1618 = vst [vmem:[%s994 + $0x9b8] sm:$0xff] %v1617
                  %v1619 = vld [vmem:[%s993 + $0x2700] sm:$0xff]
                  %1620 = vst [vmem:[%s994 + $0x9c0] sm:$0xff] %v1619
                  %v1621 = vld [vmem:[%s993 + $0x2720] sm:$0xff]
                  %1622 = vst [vmem:[%s994 + $0x9c8] sm:$0xff] %v1621
                  %v1623 = vld [vmem:[%s993 + $0x2740] sm:$0xff]
                  %1624 = vst [vmem:[%s994 + $0x9d0] sm:$0xff] %v1623
                  %v1625 = vld [vmem:[%s993 + $0x2760] sm:$0xff]
                  %1626 = vst [vmem:[%s994 + $0x9d8] sm:$0xff] %v1625
                  %v1627 = vld [vmem:[%s993 + $0x2780] sm:$0xff]
                  %1628 = vst [vmem:[%s994 + $0x9e0] sm:$0xff] %v1627
                  %v1629 = vld [vmem:[%s993 + $0x27a0] sm:$0xff]
                  %1630 = vst [vmem:[%s994 + $0x9e8] sm:$0xff] %v1629
                  %v1631 = vld [vmem:[%s993 + $0x27c0] sm:$0xff]
                  %1632 = vst [vmem:[%s994 + $0x9f0] sm:$0xff] %v1631
                  %v1633 = vld [vmem:[%s993 + $0x27e0] sm:$0xff]
                  %1634 = vst [vmem:[%s994 + $0x9f8] sm:$0xff] %v1633
                  %v1635 = vld [vmem:[%s993 + $0x2800] sm:$0xff]
                  %1636 = vst [vmem:[%s994 + $0xa00] sm:$0xff] %v1635
                  %v1637 = vld [vmem:[%s993 + $0x2820] sm:$0xff]
                  %1638 = vst [vmem:[%s994 + $0xa08] sm:$0xff] %v1637
                  %v1639 = vld [vmem:[%s993 + $0x2840] sm:$0xff]
                  %1640 = vst [vmem:[%s994 + $0xa10] sm:$0xff] %v1639
                  %v1641 = vld [vmem:[%s993 + $0x2860] sm:$0xff]
                  %1642 = vst [vmem:[%s994 + $0xa18] sm:$0xff] %v1641
                  %v1643 = vld [vmem:[%s993 + $0x2880] sm:$0xff]
                  %1644 = vst [vmem:[%s994 + $0xa20] sm:$0xff] %v1643
                  %v1645 = vld [vmem:[%s993 + $0x28a0] sm:$0xff]
                  %1646 = vst [vmem:[%s994 + $0xa28] sm:$0xff] %v1645
                  %v1647 = vld [vmem:[%s993 + $0x28c0] sm:$0xff]
                  %1648 = vst [vmem:[%s994 + $0xa30] sm:$0xff] %v1647
                  %v1649 = vld [vmem:[%s993 + $0x28e0] sm:$0xff]
                  %1650 = vst [vmem:[%s994 + $0xa38] sm:$0xff] %v1649
                  %v1651 = vld [vmem:[%s993 + $0x2900] sm:$0xff]
                  %1652 = vst [vmem:[%s994 + $0xa40] sm:$0xff] %v1651
                  %v1653 = vld [vmem:[%s993 + $0x2920] sm:$0xff]
                  %1654 = vst [vmem:[%s994 + $0xa48] sm:$0xff] %v1653
                  %v1655 = vld [vmem:[%s993 + $0x2940] sm:$0xff]
                  %1656 = vst [vmem:[%s994 + $0xa50] sm:$0xff] %v1655
                  %v1657 = vld [vmem:[%s993 + $0x2960] sm:$0xff]
                  %1658 = vst [vmem:[%s994 + $0xa58] sm:$0xff] %v1657
                  %v1659 = vld [vmem:[%s993 + $0x2980] sm:$0xff]
                  %1660 = vst [vmem:[%s994 + $0xa60] sm:$0xff] %v1659
                  %v1661 = vld [vmem:[%s993 + $0x29a0] sm:$0xff]
                  %1662 = vst [vmem:[%s994 + $0xa68] sm:$0xff] %v1661
                  %v1663 = vld [vmem:[%s993 + $0x29c0] sm:$0xff]
                  %1664 = vst [vmem:[%s994 + $0xa70] sm:$0xff] %v1663
                  %v1665 = vld [vmem:[%s993 + $0x29e0] sm:$0xff]
                  %1666 = vst [vmem:[%s994 + $0xa78] sm:$0xff] %v1665
                  %v1667 = vld [vmem:[%s993 + $0x2a00] sm:$0xff]
                  %1668 = vst [vmem:[%s994 + $0xa80] sm:$0xff] %v1667
                  %v1669 = vld [vmem:[%s993 + $0x2a20] sm:$0xff]
                  %1670 = vst [vmem:[%s994 + $0xa88] sm:$0xff] %v1669
                  %v1671 = vld [vmem:[%s993 + $0x2a40] sm:$0xff]
                  %1672 = vst [vmem:[%s994 + $0xa90] sm:$0xff] %v1671
                  %v1673 = vld [vmem:[%s993 + $0x2a60] sm:$0xff]
                  %1674 = vst [vmem:[%s994 + $0xa98] sm:$0xff] %v1673
                  %v1675 = vld [vmem:[%s993 + $0x2a80] sm:$0xff]
                  %1676 = vst [vmem:[%s994 + $0xaa0] sm:$0xff] %v1675
                  %v1677 = vld [vmem:[%s993 + $0x2aa0] sm:$0xff]
                  %1678 = vst [vmem:[%s994 + $0xaa8] sm:$0xff] %v1677
                  %v1679 = vld [vmem:[%s993 + $0x2ac0] sm:$0xff]
                  %1680 = vst [vmem:[%s994 + $0xab0] sm:$0xff] %v1679
                  %v1681 = vld [vmem:[%s993 + $0x2ae0] sm:$0xff]
                  %1682 = vst [vmem:[%s994 + $0xab8] sm:$0xff] %v1681
                  %v1683 = vld [vmem:[%s993 + $0x2b00] sm:$0xff]
                  %1684 = vst [vmem:[%s994 + $0xac0] sm:$0xff] %v1683
                  %v1685 = vld [vmem:[%s993 + $0x2b20] sm:$0xff]
                  %1686 = vst [vmem:[%s994 + $0xac8] sm:$0xff] %v1685
                  %v1687 = vld [vmem:[%s993 + $0x2b40] sm:$0xff]
                  %1688 = vst [vmem:[%s994 + $0xad0] sm:$0xff] %v1687
                  %v1689 = vld [vmem:[%s993 + $0x2b60] sm:$0xff]
                  %1690 = vst [vmem:[%s994 + $0xad8] sm:$0xff] %v1689
                  %v1691 = vld [vmem:[%s993 + $0x2b80] sm:$0xff]
                  %1692 = vst [vmem:[%s994 + $0xae0] sm:$0xff] %v1691
                  %v1693 = vld [vmem:[%s993 + $0x2ba0] sm:$0xff]
                  %1694 = vst [vmem:[%s994 + $0xae8] sm:$0xff] %v1693
                  %v1695 = vld [vmem:[%s993 + $0x2bc0] sm:$0xff]
                  %1696 = vst [vmem:[%s994 + $0xaf0] sm:$0xff] %v1695
                  %v1697 = vld [vmem:[%s993 + $0x2be0] sm:$0xff]
                  %1698 = vst [vmem:[%s994 + $0xaf8] sm:$0xff] %v1697
                  %v1699 = vld [vmem:[%s993 + $0x2c00] sm:$0xff]
                  %1700 = vst [vmem:[%s994 + $0xb00] sm:$0xff] %v1699
                  %v1701 = vld [vmem:[%s993 + $0x2c20] sm:$0xff]
                  %1702 = vst [vmem:[%s994 + $0xb08] sm:$0xff] %v1701
                  %v1703 = vld [vmem:[%s993 + $0x2c40] sm:$0xff]
                  %1704 = vst [vmem:[%s994 + $0xb10] sm:$0xff] %v1703
                  %v1705 = vld [vmem:[%s993 + $0x2c60] sm:$0xff]
                  %1706 = vst [vmem:[%s994 + $0xb18] sm:$0xff] %v1705
                  %v1707 = vld [vmem:[%s993 + $0x2c80] sm:$0xff]
                  %1708 = vst [vmem:[%s994 + $0xb20] sm:$0xff] %v1707
                  %v1709 = vld [vmem:[%s993 + $0x2ca0] sm:$0xff]
                  %1710 = vst [vmem:[%s994 + $0xb28] sm:$0xff] %v1709
                  %v1711 = vld [vmem:[%s993 + $0x2cc0] sm:$0xff]
                  %1712 = vst [vmem:[%s994 + $0xb30] sm:$0xff] %v1711
                  %v1713 = vld [vmem:[%s993 + $0x2ce0] sm:$0xff]
                  %1714 = vst [vmem:[%s994 + $0xb38] sm:$0xff] %v1713
                  %v1715 = vld [vmem:[%s993 + $0x2d00] sm:$0xff]
                  %1716 = vst [vmem:[%s994 + $0xb40] sm:$0xff] %v1715
                  %v1717 = vld [vmem:[%s993 + $0x2d20] sm:$0xff]
                  %1718 = vst [vmem:[%s994 + $0xb48] sm:$0xff] %v1717
                  %v1719 = vld [vmem:[%s993 + $0x2d40] sm:$0xff]
                  %1720 = vst [vmem:[%s994 + $0xb50] sm:$0xff] %v1719
                  %v1721 = vld [vmem:[%s993 + $0x2d60] sm:$0xff]
                  %1722 = vst [vmem:[%s994 + $0xb58] sm:$0xff] %v1721
                  %v1723 = vld [vmem:[%s993 + $0x2d80] sm:$0xff]
                  %1724 = vst [vmem:[%s994 + $0xb60] sm:$0xff] %v1723
                  %v1725 = vld [vmem:[%s993 + $0x2da0] sm:$0xff]
                  %1726 = vst [vmem:[%s994 + $0xb68] sm:$0xff] %v1725
                  %v1727 = vld [vmem:[%s993 + $0x2dc0] sm:$0xff]
                  %1728 = vst [vmem:[%s994 + $0xb70] sm:$0xff] %v1727
                  %v1729 = vld [vmem:[%s993 + $0x2de0] sm:$0xff]
                  %1730 = vst [vmem:[%s994 + $0xb78] sm:$0xff] %v1729
                  %v1731 = vld [vmem:[%s993 + $0x2e00] sm:$0xff]
                  %1732 = vst [vmem:[%s994 + $0xb80] sm:$0xff] %v1731
                  %v1733 = vld [vmem:[%s993 + $0x2e20] sm:$0xff]
                  %1734 = vst [vmem:[%s994 + $0xb88] sm:$0xff] %v1733
                  %v1735 = vld [vmem:[%s993 + $0x2e40] sm:$0xff]
                  %1736 = vst [vmem:[%s994 + $0xb90] sm:$0xff] %v1735
                  %v1737 = vld [vmem:[%s993 + $0x2e60] sm:$0xff]
                  %1738 = vst [vmem:[%s994 + $0xb98] sm:$0xff] %v1737
                  %v1739 = vld [vmem:[%s993 + $0x2e80] sm:$0xff]
                  %1740 = vst [vmem:[%s994 + $0xba0] sm:$0xff] %v1739
                  %v1741 = vld [vmem:[%s993 + $0x2ea0] sm:$0xff]
                  %1742 = vst [vmem:[%s994 + $0xba8] sm:$0xff] %v1741
                  %v1743 = vld [vmem:[%s993 + $0x2ec0] sm:$0xff]
                  %1744 = vst [vmem:[%s994 + $0xbb0] sm:$0xff] %v1743
                  %v1745 = vld [vmem:[%s993 + $0x2ee0] sm:$0xff]
                  %1746 = vst [vmem:[%s994 + $0xbb8] sm:$0xff] %v1745
                  %v1747 = vld [vmem:[%s993 + $0x2f00] sm:$0xff]
                  %1748 = vst [vmem:[%s994 + $0xbc0] sm:$0xff] %v1747
                  %v1749 = vld [vmem:[%s993 + $0x2f20] sm:$0xff]
                  %1750 = vst [vmem:[%s994 + $0xbc8] sm:$0xff] %v1749
                  %v1751 = vld [vmem:[%s993 + $0x2f40] sm:$0xff]
                  %1752 = vst [vmem:[%s994 + $0xbd0] sm:$0xff] %v1751
                  %v1753 = vld [vmem:[%s993 + $0x2f60] sm:$0xff]
                  %1754 = vst [vmem:[%s994 + $0xbd8] sm:$0xff] %v1753
                  %v1755 = vld [vmem:[%s993 + $0x2f80] sm:$0xff]
                  %1756 = vst [vmem:[%s994 + $0xbe0] sm:$0xff] %v1755
                  %v1757 = vld [vmem:[%s993 + $0x2fa0] sm:$0xff]
                  %1758 = vst [vmem:[%s994 + $0xbe8] sm:$0xff] %v1757
                  %v1759 = vld [vmem:[%s993 + $0x2fc0] sm:$0xff]
                  %1760 = vst [vmem:[%s994 + $0xbf0] sm:$0xff] %v1759
                  %v1761 = vld [vmem:[%s993 + $0x2fe0] sm:$0xff]
                  %1762 = vst [vmem:[%s994 + $0xbf8] sm:$0xff] %v1761
                  %v1763 = vld [vmem:[%s993 + $0x3000] sm:$0xff]
                  %1764 = vst [vmem:[%s994 + $0xc00] sm:$0xff] %v1763
                  %v1765 = vld [vmem:[%s993 + $0x3020] sm:$0xff]
                  %1766 = vst [vmem:[%s994 + $0xc08] sm:$0xff] %v1765
                  %v1767 = vld [vmem:[%s993 + $0x3040] sm:$0xff]
                  %1768 = vst [vmem:[%s994 + $0xc10] sm:$0xff] %v1767
                  %v1769 = vld [vmem:[%s993 + $0x3060] sm:$0xff]
                  %1770 = vst [vmem:[%s994 + $0xc18] sm:$0xff] %v1769
                  %v1771 = vld [vmem:[%s993 + $0x3080] sm:$0xff]
                  %1772 = vst [vmem:[%s994 + $0xc20] sm:$0xff] %v1771
                  %v1773 = vld [vmem:[%s993 + $0x30a0] sm:$0xff]
                  %1774 = vst [vmem:[%s994 + $0xc28] sm:$0xff] %v1773
                  %v1775 = vld [vmem:[%s993 + $0x30c0] sm:$0xff]
                  %1776 = vst [vmem:[%s994 + $0xc30] sm:$0xff] %v1775
                  %v1777 = vld [vmem:[%s993 + $0x30e0] sm:$0xff]
                  %1778 = vst [vmem:[%s994 + $0xc38] sm:$0xff] %v1777
                $region56: #{shared_network_a2c_forward.7} parent=50 // loop_footer
                  %s992 = sadd.s32 1, %s988
                $region57: #{shared_network_a2c_forward.7} parent=50 // loop_footer_branch
                  %987 = sbr.rel target = $region53
                $region58: #{shared_network_a2c_forward.7} parent=50 // loop_exit
                  _
              $region51: #{shared_network_a2c_forward.7} parent=35 // pred_fallthru
                _
              // Predicated region
              $region59: #{shared_network_a2c_forward.7} parent=35 // pred_check
                _
              $region60: #{shared_network_a2c_forward.7} parent=35 // pred_check_branch
                %1780 = sbr.rel target = $region62
              $region61: #{shared_network_a2c_forward.7} parent=35 // pred_region
                _
              $region62: #{shared_network_a2c_forward.7} parent=35 // pred_fallthru
                _
            $region36: #{shared_network_a2c_forward.7} parent=31 // pred_fallthru
              _
            // Predicated region
            $region37: #{shared_network_a2c_forward.7} parent=31 // pred_check
              _
            $region38: #{shared_network_a2c_forward.7} parent=31 // pred_check_branch
              %191 = sbr.rel target = $region40
            $region39: #{shared_network_a2c_forward.7} parent=31 // pred_region
              loop: start=0, step=1, limit=1
              $region41: #{shared_network_a2c_forward.7} parent=39 // loop_pre_header
                _
              $region42: #{shared_network_a2c_forward.7} parent=39 // loop_header
                %s194 = sphi 0, %s198
                %p195 = scmp.ge.s32.totalorder %s194, 1
                %s199 = sphi %s185, %s185
                %s200 = sphi %s183, %s183
              $region43: #{shared_network_a2c_forward.7} parent=39 // loop_header_branch
                %197 = sbr.rel (%p195) target = $region47
              $region44: #{shared_network_a2c_forward.7} parent=39 // loop_body
                %v201 = vld [vmem:[%s199] sm:$0xff]
                %202 = vst [vmem:[%s200] sm:$0xff] %v201
                %v203 = vld [vmem:[%s199 + $0x20] sm:$0xff]
                %204 = vst [vmem:[%s200 + $0x8] sm:$0xff] %v203
                %v205 = vld [vmem:[%s199 + $0x40] sm:$0xff]
                %206 = vst [vmem:[%s200 + $0x10] sm:$0xff] %v205
                %v207 = vld [vmem:[%s199 + $0x60] sm:$0xff]
                %208 = vst [vmem:[%s200 + $0x18] sm:$0xff] %v207
                %v209 = vld [vmem:[%s199 + $0x80] sm:$0xff]
                %210 = vst [vmem:[%s200 + $0x20] sm:$0xff] %v209
                %v211 = vld [vmem:[%s199 + $0xa0] sm:$0xff]
                %212 = vst [vmem:[%s200 + $0x28] sm:$0xff] %v211
                %v213 = vld [vmem:[%s199 + $0xc0] sm:$0xff]
                %214 = vst [vmem:[%s200 + $0x30] sm:$0xff] %v213
                %v215 = vld [vmem:[%s199 + $0xe0] sm:$0xff]
                %216 = vst [vmem:[%s200 + $0x38] sm:$0xff] %v215
                %v217 = vld [vmem:[%s199 + $0x100] sm:$0xff]
                %218 = vst [vmem:[%s200 + $0x40] sm:$0xff] %v217
                %v219 = vld [vmem:[%s199 + $0x120] sm:$0xff]
                %220 = vst [vmem:[%s200 + $0x48] sm:$0xff] %v219
                %v221 = vld [vmem:[%s199 + $0x140] sm:$0xff]
                %222 = vst [vmem:[%s200 + $0x50] sm:$0xff] %v221
                %v223 = vld [vmem:[%s199 + $0x160] sm:$0xff]
                %224 = vst [vmem:[%s200 + $0x58] sm:$0xff] %v223
                %v225 = vld [vmem:[%s199 + $0x180] sm:$0xff]
                %226 = vst [vmem:[%s200 + $0x60] sm:$0xff] %v225
                %v227 = vld [vmem:[%s199 + $0x1a0] sm:$0xff]
                %228 = vst [vmem:[%s200 + $0x68] sm:$0xff] %v227
                %v229 = vld [vmem:[%s199 + $0x1c0] sm:$0xff]
                %230 = vst [vmem:[%s200 + $0x70] sm:$0xff] %v229
                %v231 = vld [vmem:[%s199 + $0x1e0] sm:$0xff]
                %232 = vst [vmem:[%s200 + $0x78] sm:$0xff] %v231
                %v233 = vld [vmem:[%s199 + $0x200] sm:$0xff]
                %234 = vst [vmem:[%s200 + $0x80] sm:$0xff] %v233
                %v235 = vld [vmem:[%s199 + $0x220] sm:$0xff]
                %236 = vst [vmem:[%s200 + $0x88] sm:$0xff] %v235
                %v237 = vld [vmem:[%s199 + $0x240] sm:$0xff]
                %238 = vst [vmem:[%s200 + $0x90] sm:$0xff] %v237
                %v239 = vld [vmem:[%s199 + $0x260] sm:$0xff]
                %240 = vst [vmem:[%s200 + $0x98] sm:$0xff] %v239
                %v241 = vld [vmem:[%s199 + $0x280] sm:$0xff]
                %242 = vst [vmem:[%s200 + $0xa0] sm:$0xff] %v241
                %v243 = vld [vmem:[%s199 + $0x2a0] sm:$0xff]
                %244 = vst [vmem:[%s200 + $0xa8] sm:$0xff] %v243
                %v245 = vld [vmem:[%s199 + $0x2c0] sm:$0xff]
                %246 = vst [vmem:[%s200 + $0xb0] sm:$0xff] %v245
                %v247 = vld [vmem:[%s199 + $0x2e0] sm:$0xff]
                %248 = vst [vmem:[%s200 + $0xb8] sm:$0xff] %v247
                %v249 = vld [vmem:[%s199 + $0x300] sm:$0xff]
                %250 = vst [vmem:[%s200 + $0xc0] sm:$0xff] %v249
                %v251 = vld [vmem:[%s199 + $0x320] sm:$0xff]
                %252 = vst [vmem:[%s200 + $0xc8] sm:$0xff] %v251
                %v253 = vld [vmem:[%s199 + $0x340] sm:$0xff]
                %254 = vst [vmem:[%s200 + $0xd0] sm:$0xff] %v253
                %v255 = vld [vmem:[%s199 + $0x360] sm:$0xff]
                %256 = vst [vmem:[%s200 + $0xd8] sm:$0xff] %v255
                %v257 = vld [vmem:[%s199 + $0x380] sm:$0xff]
                %258 = vst [vmem:[%s200 + $0xe0] sm:$0xff] %v257
                %v259 = vld [vmem:[%s199 + $0x3a0] sm:$0xff]
                %260 = vst [vmem:[%s200 + $0xe8] sm:$0xff] %v259
                %v261 = vld [vmem:[%s199 + $0x3c0] sm:$0xff]
                %262 = vst [vmem:[%s200 + $0xf0] sm:$0xff] %v261
                %v263 = vld [vmem:[%s199 + $0x3e0] sm:$0xff]
                %264 = vst [vmem:[%s200 + $0xf8] sm:$0xff] %v263
                %v265 = vld [vmem:[%s199 + $0x400] sm:$0xff]
                %266 = vst [vmem:[%s200 + $0x100] sm:$0xff] %v265
                %v267 = vld [vmem:[%s199 + $0x420] sm:$0xff]
                %268 = vst [vmem:[%s200 + $0x108] sm:$0xff] %v267
                %v269 = vld [vmem:[%s199 + $0x440] sm:$0xff]
                %270 = vst [vmem:[%s200 + $0x110] sm:$0xff] %v269
                %v271 = vld [vmem:[%s199 + $0x460] sm:$0xff]
                %272 = vst [vmem:[%s200 + $0x118] sm:$0xff] %v271
                %v273 = vld [vmem:[%s199 + $0x480] sm:$0xff]
                %274 = vst [vmem:[%s200 + $0x120] sm:$0xff] %v273
                %v275 = vld [vmem:[%s199 + $0x4a0] sm:$0xff]
                %276 = vst [vmem:[%s200 + $0x128] sm:$0xff] %v275
                %v277 = vld [vmem:[%s199 + $0x4c0] sm:$0xff]
                %278 = vst [vmem:[%s200 + $0x130] sm:$0xff] %v277
                %v279 = vld [vmem:[%s199 + $0x4e0] sm:$0xff]
                %280 = vst [vmem:[%s200 + $0x138] sm:$0xff] %v279
                %v281 = vld [vmem:[%s199 + $0x500] sm:$0xff]
                %282 = vst [vmem:[%s200 + $0x140] sm:$0xff] %v281
                %v283 = vld [vmem:[%s199 + $0x520] sm:$0xff]
                %284 = vst [vmem:[%s200 + $0x148] sm:$0xff] %v283
                %v285 = vld [vmem:[%s199 + $0x540] sm:$0xff]
                %286 = vst [vmem:[%s200 + $0x150] sm:$0xff] %v285
                %v287 = vld [vmem:[%s199 + $0x560] sm:$0xff]
                %288 = vst [vmem:[%s200 + $0x158] sm:$0xff] %v287
                %v289 = vld [vmem:[%s199 + $0x580] sm:$0xff]
                %290 = vst [vmem:[%s200 + $0x160] sm:$0xff] %v289
                %v291 = vld [vmem:[%s199 + $0x5a0] sm:$0xff]
                %292 = vst [vmem:[%s200 + $0x168] sm:$0xff] %v291
                %v293 = vld [vmem:[%s199 + $0x5c0] sm:$0xff]
                %294 = vst [vmem:[%s200 + $0x170] sm:$0xff] %v293
                %v295 = vld [vmem:[%s199 + $0x5e0] sm:$0xff]
                %296 = vst [vmem:[%s200 + $0x178] sm:$0xff] %v295
                %v297 = vld [vmem:[%s199 + $0x600] sm:$0xff]
                %298 = vst [vmem:[%s200 + $0x180] sm:$0xff] %v297
                %v299 = vld [vmem:[%s199 + $0x620] sm:$0xff]
                %300 = vst [vmem:[%s200 + $0x188] sm:$0xff] %v299
                %v301 = vld [vmem:[%s199 + $0x640] sm:$0xff]
                %302 = vst [vmem:[%s200 + $0x190] sm:$0xff] %v301
                %v303 = vld [vmem:[%s199 + $0x660] sm:$0xff]
                %304 = vst [vmem:[%s200 + $0x198] sm:$0xff] %v303
                %v305 = vld [vmem:[%s199 + $0x680] sm:$0xff]
                %306 = vst [vmem:[%s200 + $0x1a0] sm:$0xff] %v305
                %v307 = vld [vmem:[%s199 + $0x6a0] sm:$0xff]
                %308 = vst [vmem:[%s200 + $0x1a8] sm:$0xff] %v307
                %v309 = vld [vmem:[%s199 + $0x6c0] sm:$0xff]
                %310 = vst [vmem:[%s200 + $0x1b0] sm:$0xff] %v309
                %v311 = vld [vmem:[%s199 + $0x6e0] sm:$0xff]
                %312 = vst [vmem:[%s200 + $0x1b8] sm:$0xff] %v311
                %v313 = vld [vmem:[%s199 + $0x700] sm:$0xff]
                %314 = vst [vmem:[%s200 + $0x1c0] sm:$0xff] %v313
                %v315 = vld [vmem:[%s199 + $0x720] sm:$0xff]
                %316 = vst [vmem:[%s200 + $0x1c8] sm:$0xff] %v315
                %v317 = vld [vmem:[%s199 + $0x740] sm:$0xff]
                %318 = vst [vmem:[%s200 + $0x1d0] sm:$0xff] %v317
                %v319 = vld [vmem:[%s199 + $0x760] sm:$0xff]
                %320 = vst [vmem:[%s200 + $0x1d8] sm:$0xff] %v319
                %v321 = vld [vmem:[%s199 + $0x780] sm:$0xff]
                %322 = vst [vmem:[%s200 + $0x1e0] sm:$0xff] %v321
                %v323 = vld [vmem:[%s199 + $0x7a0] sm:$0xff]
                %324 = vst [vmem:[%s200 + $0x1e8] sm:$0xff] %v323
                %v325 = vld [vmem:[%s199 + $0x7c0] sm:$0xff]
                %326 = vst [vmem:[%s200 + $0x1f0] sm:$0xff] %v325
                %v327 = vld [vmem:[%s199 + $0x7e0] sm:$0xff]
                %328 = vst [vmem:[%s200 + $0x1f8] sm:$0xff] %v327
                %v329 = vld [vmem:[%s199 + $0x800] sm:$0xff]
                %330 = vst [vmem:[%s200 + $0x200] sm:$0xff] %v329
                %v331 = vld [vmem:[%s199 + $0x820] sm:$0xff]
                %332 = vst [vmem:[%s200 + $0x208] sm:$0xff] %v331
                %v333 = vld [vmem:[%s199 + $0x840] sm:$0xff]
                %334 = vst [vmem:[%s200 + $0x210] sm:$0xff] %v333
                %v335 = vld [vmem:[%s199 + $0x860] sm:$0xff]
                %336 = vst [vmem:[%s200 + $0x218] sm:$0xff] %v335
                %v337 = vld [vmem:[%s199 + $0x880] sm:$0xff]
                %338 = vst [vmem:[%s200 + $0x220] sm:$0xff] %v337
                %v339 = vld [vmem:[%s199 + $0x8a0] sm:$0xff]
                %340 = vst [vmem:[%s200 + $0x228] sm:$0xff] %v339
                %v341 = vld [vmem:[%s199 + $0x8c0] sm:$0xff]
                %342 = vst [vmem:[%s200 + $0x230] sm:$0xff] %v341
                %v343 = vld [vmem:[%s199 + $0x8e0] sm:$0xff]
                %344 = vst [vmem:[%s200 + $0x238] sm:$0xff] %v343
                %v345 = vld [vmem:[%s199 + $0x900] sm:$0xff]
                %346 = vst [vmem:[%s200 + $0x240] sm:$0xff] %v345
                %v347 = vld [vmem:[%s199 + $0x920] sm:$0xff]
                %348 = vst [vmem:[%s200 + $0x248] sm:$0xff] %v347
                %v349 = vld [vmem:[%s199 + $0x940] sm:$0xff]
                %350 = vst [vmem:[%s200 + $0x250] sm:$0xff] %v349
                %v351 = vld [vmem:[%s199 + $0x960] sm:$0xff]
                %352 = vst [vmem:[%s200 + $0x258] sm:$0xff] %v351
                %v353 = vld [vmem:[%s199 + $0x980] sm:$0xff]
                %354 = vst [vmem:[%s200 + $0x260] sm:$0xff] %v353
                %v355 = vld [vmem:[%s199 + $0x9a0] sm:$0xff]
                %356 = vst [vmem:[%s200 + $0x268] sm:$0xff] %v355
                %v357 = vld [vmem:[%s199 + $0x9c0] sm:$0xff]
                %358 = vst [vmem:[%s200 + $0x270] sm:$0xff] %v357
                %v359 = vld [vmem:[%s199 + $0x9e0] sm:$0xff]
                %360 = vst [vmem:[%s200 + $0x278] sm:$0xff] %v359
                %v361 = vld [vmem:[%s199 + $0xa00] sm:$0xff]
                %362 = vst [vmem:[%s200 + $0x280] sm:$0xff] %v361
                %v363 = vld [vmem:[%s199 + $0xa20] sm:$0xff]
                %364 = vst [vmem:[%s200 + $0x288] sm:$0xff] %v363
                %v365 = vld [vmem:[%s199 + $0xa40] sm:$0xff]
                %366 = vst [vmem:[%s200 + $0x290] sm:$0xff] %v365
                %v367 = vld [vmem:[%s199 + $0xa60] sm:$0xff]
                %368 = vst [vmem:[%s200 + $0x298] sm:$0xff] %v367
                %v369 = vld [vmem:[%s199 + $0xa80] sm:$0xff]
                %370 = vst [vmem:[%s200 + $0x2a0] sm:$0xff] %v369
                %v371 = vld [vmem:[%s199 + $0xaa0] sm:$0xff]
                %372 = vst [vmem:[%s200 + $0x2a8] sm:$0xff] %v371
                %v373 = vld [vmem:[%s199 + $0xac0] sm:$0xff]
                %374 = vst [vmem:[%s200 + $0x2b0] sm:$0xff] %v373
                %v375 = vld [vmem:[%s199 + $0xae0] sm:$0xff]
                %376 = vst [vmem:[%s200 + $0x2b8] sm:$0xff] %v375
                %v377 = vld [vmem:[%s199 + $0xb00] sm:$0xff]
                %378 = vst [vmem:[%s200 + $0x2c0] sm:$0xff] %v377
                %v379 = vld [vmem:[%s199 + $0xb20] sm:$0xff]
                %380 = vst [vmem:[%s200 + $0x2c8] sm:$0xff] %v379
                %v381 = vld [vmem:[%s199 + $0xb40] sm:$0xff]
                %382 = vst [vmem:[%s200 + $0x2d0] sm:$0xff] %v381
                %v383 = vld [vmem:[%s199 + $0xb60] sm:$0xff]
                %384 = vst [vmem:[%s200 + $0x2d8] sm:$0xff] %v383
                %v385 = vld [vmem:[%s199 + $0xb80] sm:$0xff]
                %386 = vst [vmem:[%s200 + $0x2e0] sm:$0xff] %v385
                %v387 = vld [vmem:[%s199 + $0xba0] sm:$0xff]
                %388 = vst [vmem:[%s200 + $0x2e8] sm:$0xff] %v387
                %v389 = vld [vmem:[%s199 + $0xbc0] sm:$0xff]
                %390 = vst [vmem:[%s200 + $0x2f0] sm:$0xff] %v389
                %v391 = vld [vmem:[%s199 + $0xbe0] sm:$0xff]
                %392 = vst [vmem:[%s200 + $0x2f8] sm:$0xff] %v391
                %v393 = vld [vmem:[%s199 + $0xc00] sm:$0xff]
                %394 = vst [vmem:[%s200 + $0x300] sm:$0xff] %v393
                %v395 = vld [vmem:[%s199 + $0xc20] sm:$0xff]
                %396 = vst [vmem:[%s200 + $0x308] sm:$0xff] %v395
                %v397 = vld [vmem:[%s199 + $0xc40] sm:$0xff]
                %398 = vst [vmem:[%s200 + $0x310] sm:$0xff] %v397
                %v399 = vld [vmem:[%s199 + $0xc60] sm:$0xff]
                %400 = vst [vmem:[%s200 + $0x318] sm:$0xff] %v399
                %v401 = vld [vmem:[%s199 + $0xc80] sm:$0xff]
                %402 = vst [vmem:[%s200 + $0x320] sm:$0xff] %v401
                %v403 = vld [vmem:[%s199 + $0xca0] sm:$0xff]
                %404 = vst [vmem:[%s200 + $0x328] sm:$0xff] %v403
                %v405 = vld [vmem:[%s199 + $0xcc0] sm:$0xff]
                %406 = vst [vmem:[%s200 + $0x330] sm:$0xff] %v405
                %v407 = vld [vmem:[%s199 + $0xce0] sm:$0xff]
                %408 = vst [vmem:[%s200 + $0x338] sm:$0xff] %v407
                %v409 = vld [vmem:[%s199 + $0xd00] sm:$0xff]
                %410 = vst [vmem:[%s200 + $0x340] sm:$0xff] %v409
                %v411 = vld [vmem:[%s199 + $0xd20] sm:$0xff]
                %412 = vst [vmem:[%s200 + $0x348] sm:$0xff] %v411
                %v413 = vld [vmem:[%s199 + $0xd40] sm:$0xff]
                %414 = vst [vmem:[%s200 + $0x350] sm:$0xff] %v413
                %v415 = vld [vmem:[%s199 + $0xd60] sm:$0xff]
                %416 = vst [vmem:[%s200 + $0x358] sm:$0xff] %v415
                %v417 = vld [vmem:[%s199 + $0xd80] sm:$0xff]
                %418 = vst [vmem:[%s200 + $0x360] sm:$0xff] %v417
                %v419 = vld [vmem:[%s199 + $0xda0] sm:$0xff]
                %420 = vst [vmem:[%s200 + $0x368] sm:$0xff] %v419
                %v421 = vld [vmem:[%s199 + $0xdc0] sm:$0xff]
                %422 = vst [vmem:[%s200 + $0x370] sm:$0xff] %v421
                %v423 = vld [vmem:[%s199 + $0xde0] sm:$0xff]
                %424 = vst [vmem:[%s200 + $0x378] sm:$0xff] %v423
                %v425 = vld [vmem:[%s199 + $0xe00] sm:$0xff]
                %426 = vst [vmem:[%s200 + $0x380] sm:$0xff] %v425
                %v427 = vld [vmem:[%s199 + $0xe20] sm:$0xff]
                %428 = vst [vmem:[%s200 + $0x388] sm:$0xff] %v427
                %v429 = vld [vmem:[%s199 + $0xe40] sm:$0xff]
                %430 = vst [vmem:[%s200 + $0x390] sm:$0xff] %v429
                %v431 = vld [vmem:[%s199 + $0xe60] sm:$0xff]
                %432 = vst [vmem:[%s200 + $0x398] sm:$0xff] %v431
                %v433 = vld [vmem:[%s199 + $0xe80] sm:$0xff]
                %434 = vst [vmem:[%s200 + $0x3a0] sm:$0xff] %v433
                %v435 = vld [vmem:[%s199 + $0xea0] sm:$0xff]
                %436 = vst [vmem:[%s200 + $0x3a8] sm:$0xff] %v435
                %v437 = vld [vmem:[%s199 + $0xec0] sm:$0xff]
                %438 = vst [vmem:[%s200 + $0x3b0] sm:$0xff] %v437
                %v439 = vld [vmem:[%s199 + $0xee0] sm:$0xff]
                %440 = vst [vmem:[%s200 + $0x3b8] sm:$0xff] %v439
                %v441 = vld [vmem:[%s199 + $0xf00] sm:$0xff]
                %442 = vst [vmem:[%s200 + $0x3c0] sm:$0xff] %v441
                %v443 = vld [vmem:[%s199 + $0xf20] sm:$0xff]
                %444 = vst [vmem:[%s200 + $0x3c8] sm:$0xff] %v443
                %v445 = vld [vmem:[%s199 + $0xf40] sm:$0xff]
                %446 = vst [vmem:[%s200 + $0x3d0] sm:$0xff] %v445
                %v447 = vld [vmem:[%s199 + $0xf60] sm:$0xff]
                %448 = vst [vmem:[%s200 + $0x3d8] sm:$0xff] %v447
                %v449 = vld [vmem:[%s199 + $0xf80] sm:$0xff]
                %450 = vst [vmem:[%s200 + $0x3e0] sm:$0xff] %v449
                %v451 = vld [vmem:[%s199 + $0xfa0] sm:$0xff]
                %452 = vst [vmem:[%s200 + $0x3e8] sm:$0xff] %v451
                %v453 = vld [vmem:[%s199 + $0xfc0] sm:$0xff]
                %454 = vst [vmem:[%s200 + $0x3f0] sm:$0xff] %v453
                %v455 = vld [vmem:[%s199 + $0xfe0] sm:$0xff]
                %456 = vst [vmem:[%s200 + $0x3f8] sm:$0xff] %v455
                %v457 = vld [vmem:[%s199 + $0x1000] sm:$0xff]
                %458 = vst [vmem:[%s200 + $0x400] sm:$0xff] %v457
                %v459 = vld [vmem:[%s199 + $0x1020] sm:$0xff]
                %460 = vst [vmem:[%s200 + $0x408] sm:$0xff] %v459
                %v461 = vld [vmem:[%s199 + $0x1040] sm:$0xff]
                %462 = vst [vmem:[%s200 + $0x410] sm:$0xff] %v461
                %v463 = vld [vmem:[%s199 + $0x1060] sm:$0xff]
                %464 = vst [vmem:[%s200 + $0x418] sm:$0xff] %v463
                %v465 = vld [vmem:[%s199 + $0x1080] sm:$0xff]
                %466 = vst [vmem:[%s200 + $0x420] sm:$0xff] %v465
                %v467 = vld [vmem:[%s199 + $0x10a0] sm:$0xff]
                %468 = vst [vmem:[%s200 + $0x428] sm:$0xff] %v467
                %v469 = vld [vmem:[%s199 + $0x10c0] sm:$0xff]
                %470 = vst [vmem:[%s200 + $0x430] sm:$0xff] %v469
                %v471 = vld [vmem:[%s199 + $0x10e0] sm:$0xff]
                %472 = vst [vmem:[%s200 + $0x438] sm:$0xff] %v471
                %v473 = vld [vmem:[%s199 + $0x1100] sm:$0xff]
                %474 = vst [vmem:[%s200 + $0x440] sm:$0xff] %v473
                %v475 = vld [vmem:[%s199 + $0x1120] sm:$0xff]
                %476 = vst [vmem:[%s200 + $0x448] sm:$0xff] %v475
                %v477 = vld [vmem:[%s199 + $0x1140] sm:$0xff]
                %478 = vst [vmem:[%s200 + $0x450] sm:$0xff] %v477
                %v479 = vld [vmem:[%s199 + $0x1160] sm:$0xff]
                %480 = vst [vmem:[%s200 + $0x458] sm:$0xff] %v479
                %v481 = vld [vmem:[%s199 + $0x1180] sm:$0xff]
                %482 = vst [vmem:[%s200 + $0x460] sm:$0xff] %v481
                %v483 = vld [vmem:[%s199 + $0x11a0] sm:$0xff]
                %484 = vst [vmem:[%s200 + $0x468] sm:$0xff] %v483
                %v485 = vld [vmem:[%s199 + $0x11c0] sm:$0xff]
                %486 = vst [vmem:[%s200 + $0x470] sm:$0xff] %v485
                %v487 = vld [vmem:[%s199 + $0x11e0] sm:$0xff]
                %488 = vst [vmem:[%s200 + $0x478] sm:$0xff] %v487
                %v489 = vld [vmem:[%s199 + $0x1200] sm:$0xff]
                %490 = vst [vmem:[%s200 + $0x480] sm:$0xff] %v489
                %v491 = vld [vmem:[%s199 + $0x1220] sm:$0xff]
                %492 = vst [vmem:[%s200 + $0x488] sm:$0xff] %v491
                %v493 = vld [vmem:[%s199 + $0x1240] sm:$0xff]
                %494 = vst [vmem:[%s200 + $0x490] sm:$0xff] %v493
                %v495 = vld [vmem:[%s199 + $0x1260] sm:$0xff]
                %496 = vst [vmem:[%s200 + $0x498] sm:$0xff] %v495
                %v497 = vld [vmem:[%s199 + $0x1280] sm:$0xff]
                %498 = vst [vmem:[%s200 + $0x4a0] sm:$0xff] %v497
                %v499 = vld [vmem:[%s199 + $0x12a0] sm:$0xff]
                %500 = vst [vmem:[%s200 + $0x4a8] sm:$0xff] %v499
                %v501 = vld [vmem:[%s199 + $0x12c0] sm:$0xff]
                %502 = vst [vmem:[%s200 + $0x4b0] sm:$0xff] %v501
                %v503 = vld [vmem:[%s199 + $0x12e0] sm:$0xff]
                %504 = vst [vmem:[%s200 + $0x4b8] sm:$0xff] %v503
                %v505 = vld [vmem:[%s199 + $0x1300] sm:$0xff]
                %506 = vst [vmem:[%s200 + $0x4c0] sm:$0xff] %v505
                %v507 = vld [vmem:[%s199 + $0x1320] sm:$0xff]
                %508 = vst [vmem:[%s200 + $0x4c8] sm:$0xff] %v507
                %v509 = vld [vmem:[%s199 + $0x1340] sm:$0xff]
                %510 = vst [vmem:[%s200 + $0x4d0] sm:$0xff] %v509
                %v511 = vld [vmem:[%s199 + $0x1360] sm:$0xff]
                %512 = vst [vmem:[%s200 + $0x4d8] sm:$0xff] %v511
                %v513 = vld [vmem:[%s199 + $0x1380] sm:$0xff]
                %514 = vst [vmem:[%s200 + $0x4e0] sm:$0xff] %v513
                %v515 = vld [vmem:[%s199 + $0x13a0] sm:$0xff]
                %516 = vst [vmem:[%s200 + $0x4e8] sm:$0xff] %v515
                %v517 = vld [vmem:[%s199 + $0x13c0] sm:$0xff]
                %518 = vst [vmem:[%s200 + $0x4f0] sm:$0xff] %v517
                %v519 = vld [vmem:[%s199 + $0x13e0] sm:$0xff]
                %520 = vst [vmem:[%s200 + $0x4f8] sm:$0xff] %v519
                %v521 = vld [vmem:[%s199 + $0x1400] sm:$0xff]
                %522 = vst [vmem:[%s200 + $0x500] sm:$0xff] %v521
                %v523 = vld [vmem:[%s199 + $0x1420] sm:$0xff]
                %524 = vst [vmem:[%s200 + $0x508] sm:$0xff] %v523
                %v525 = vld [vmem:[%s199 + $0x1440] sm:$0xff]
                %526 = vst [vmem:[%s200 + $0x510] sm:$0xff] %v525
                %v527 = vld [vmem:[%s199 + $0x1460] sm:$0xff]
                %528 = vst [vmem:[%s200 + $0x518] sm:$0xff] %v527
                %v529 = vld [vmem:[%s199 + $0x1480] sm:$0xff]
                %530 = vst [vmem:[%s200 + $0x520] sm:$0xff] %v529
                %v531 = vld [vmem:[%s199 + $0x14a0] sm:$0xff]
                %532 = vst [vmem:[%s200 + $0x528] sm:$0xff] %v531
                %v533 = vld [vmem:[%s199 + $0x14c0] sm:$0xff]
                %534 = vst [vmem:[%s200 + $0x530] sm:$0xff] %v533
                %v535 = vld [vmem:[%s199 + $0x14e0] sm:$0xff]
                %536 = vst [vmem:[%s200 + $0x538] sm:$0xff] %v535
                %v537 = vld [vmem:[%s199 + $0x1500] sm:$0xff]
                %538 = vst [vmem:[%s200 + $0x540] sm:$0xff] %v537
                %v539 = vld [vmem:[%s199 + $0x1520] sm:$0xff]
                %540 = vst [vmem:[%s200 + $0x548] sm:$0xff] %v539
                %v541 = vld [vmem:[%s199 + $0x1540] sm:$0xff]
                %542 = vst [vmem:[%s200 + $0x550] sm:$0xff] %v541
                %v543 = vld [vmem:[%s199 + $0x1560] sm:$0xff]
                %544 = vst [vmem:[%s200 + $0x558] sm:$0xff] %v543
                %v545 = vld [vmem:[%s199 + $0x1580] sm:$0xff]
                %546 = vst [vmem:[%s200 + $0x560] sm:$0xff] %v545
                %v547 = vld [vmem:[%s199 + $0x15a0] sm:$0xff]
                %548 = vst [vmem:[%s200 + $0x568] sm:$0xff] %v547
                %v549 = vld [vmem:[%s199 + $0x15c0] sm:$0xff]
                %550 = vst [vmem:[%s200 + $0x570] sm:$0xff] %v549
                %v551 = vld [vmem:[%s199 + $0x15e0] sm:$0xff]
                %552 = vst [vmem:[%s200 + $0x578] sm:$0xff] %v551
                %v553 = vld [vmem:[%s199 + $0x1600] sm:$0xff]
                %554 = vst [vmem:[%s200 + $0x580] sm:$0xff] %v553
                %v555 = vld [vmem:[%s199 + $0x1620] sm:$0xff]
                %556 = vst [vmem:[%s200 + $0x588] sm:$0xff] %v555
                %v557 = vld [vmem:[%s199 + $0x1640] sm:$0xff]
                %558 = vst [vmem:[%s200 + $0x590] sm:$0xff] %v557
                %v559 = vld [vmem:[%s199 + $0x1660] sm:$0xff]
                %560 = vst [vmem:[%s200 + $0x598] sm:$0xff] %v559
                %v561 = vld [vmem:[%s199 + $0x1680] sm:$0xff]
                %562 = vst [vmem:[%s200 + $0x5a0] sm:$0xff] %v561
                %v563 = vld [vmem:[%s199 + $0x16a0] sm:$0xff]
                %564 = vst [vmem:[%s200 + $0x5a8] sm:$0xff] %v563
                %v565 = vld [vmem:[%s199 + $0x16c0] sm:$0xff]
                %566 = vst [vmem:[%s200 + $0x5b0] sm:$0xff] %v565
                %v567 = vld [vmem:[%s199 + $0x16e0] sm:$0xff]
                %568 = vst [vmem:[%s200 + $0x5b8] sm:$0xff] %v567
                %v569 = vld [vmem:[%s199 + $0x1700] sm:$0xff]
                %570 = vst [vmem:[%s200 + $0x5c0] sm:$0xff] %v569
                %v571 = vld [vmem:[%s199 + $0x1720] sm:$0xff]
                %572 = vst [vmem:[%s200 + $0x5c8] sm:$0xff] %v571
                %v573 = vld [vmem:[%s199 + $0x1740] sm:$0xff]
                %574 = vst [vmem:[%s200 + $0x5d0] sm:$0xff] %v573
                %v575 = vld [vmem:[%s199 + $0x1760] sm:$0xff]
                %576 = vst [vmem:[%s200 + $0x5d8] sm:$0xff] %v575
                %v577 = vld [vmem:[%s199 + $0x1780] sm:$0xff]
                %578 = vst [vmem:[%s200 + $0x5e0] sm:$0xff] %v577
                %v579 = vld [vmem:[%s199 + $0x17a0] sm:$0xff]
                %580 = vst [vmem:[%s200 + $0x5e8] sm:$0xff] %v579
                %v581 = vld [vmem:[%s199 + $0x17c0] sm:$0xff]
                %582 = vst [vmem:[%s200 + $0x5f0] sm:$0xff] %v581
                %v583 = vld [vmem:[%s199 + $0x17e0] sm:$0xff]
                %584 = vst [vmem:[%s200 + $0x5f8] sm:$0xff] %v583
                %v585 = vld [vmem:[%s199 + $0x1800] sm:$0xff]
                %586 = vst [vmem:[%s200 + $0x600] sm:$0xff] %v585
                %v587 = vld [vmem:[%s199 + $0x1820] sm:$0xff]
                %588 = vst [vmem:[%s200 + $0x608] sm:$0xff] %v587
                %v589 = vld [vmem:[%s199 + $0x1840] sm:$0xff]
                %590 = vst [vmem:[%s200 + $0x610] sm:$0xff] %v589
                %v591 = vld [vmem:[%s199 + $0x1860] sm:$0xff]
                %592 = vst [vmem:[%s200 + $0x618] sm:$0xff] %v591
                %v593 = vld [vmem:[%s199 + $0x1880] sm:$0xff]
                %594 = vst [vmem:[%s200 + $0x620] sm:$0xff] %v593
                %v595 = vld [vmem:[%s199 + $0x18a0] sm:$0xff]
                %596 = vst [vmem:[%s200 + $0x628] sm:$0xff] %v595
                %v597 = vld [vmem:[%s199 + $0x18c0] sm:$0xff]
                %598 = vst [vmem:[%s200 + $0x630] sm:$0xff] %v597
                %v599 = vld [vmem:[%s199 + $0x18e0] sm:$0xff]
                %600 = vst [vmem:[%s200 + $0x638] sm:$0xff] %v599
                %v601 = vld [vmem:[%s199 + $0x1900] sm:$0xff]
                %602 = vst [vmem:[%s200 + $0x640] sm:$0xff] %v601
                %v603 = vld [vmem:[%s199 + $0x1920] sm:$0xff]
                %604 = vst [vmem:[%s200 + $0x648] sm:$0xff] %v603
                %v605 = vld [vmem:[%s199 + $0x1940] sm:$0xff]
                %606 = vst [vmem:[%s200 + $0x650] sm:$0xff] %v605
                %v607 = vld [vmem:[%s199 + $0x1960] sm:$0xff]
                %608 = vst [vmem:[%s200 + $0x658] sm:$0xff] %v607
                %v609 = vld [vmem:[%s199 + $0x1980] sm:$0xff]
                %610 = vst [vmem:[%s200 + $0x660] sm:$0xff] %v609
                %v611 = vld [vmem:[%s199 + $0x19a0] sm:$0xff]
                %612 = vst [vmem:[%s200 + $0x668] sm:$0xff] %v611
                %v613 = vld [vmem:[%s199 + $0x19c0] sm:$0xff]
                %614 = vst [vmem:[%s200 + $0x670] sm:$0xff] %v613
                %v615 = vld [vmem:[%s199 + $0x19e0] sm:$0xff]
                %616 = vst [vmem:[%s200 + $0x678] sm:$0xff] %v615
                %v617 = vld [vmem:[%s199 + $0x1a00] sm:$0xff]
                %618 = vst [vmem:[%s200 + $0x680] sm:$0xff] %v617
                %v619 = vld [vmem:[%s199 + $0x1a20] sm:$0xff]
                %620 = vst [vmem:[%s200 + $0x688] sm:$0xff] %v619
                %v621 = vld [vmem:[%s199 + $0x1a40] sm:$0xff]
                %622 = vst [vmem:[%s200 + $0x690] sm:$0xff] %v621
                %v623 = vld [vmem:[%s199 + $0x1a60] sm:$0xff]
                %624 = vst [vmem:[%s200 + $0x698] sm:$0xff] %v623
                %v625 = vld [vmem:[%s199 + $0x1a80] sm:$0xff]
                %626 = vst [vmem:[%s200 + $0x6a0] sm:$0xff] %v625
                %v627 = vld [vmem:[%s199 + $0x1aa0] sm:$0xff]
                %628 = vst [vmem:[%s200 + $0x6a8] sm:$0xff] %v627
                %v629 = vld [vmem:[%s199 + $0x1ac0] sm:$0xff]
                %630 = vst [vmem:[%s200 + $0x6b0] sm:$0xff] %v629
                %v631 = vld [vmem:[%s199 + $0x1ae0] sm:$0xff]
                %632 = vst [vmem:[%s200 + $0x6b8] sm:$0xff] %v631
                %v633 = vld [vmem:[%s199 + $0x1b00] sm:$0xff]
                %634 = vst [vmem:[%s200 + $0x6c0] sm:$0xff] %v633
                %v635 = vld [vmem:[%s199 + $0x1b20] sm:$0xff]
                %636 = vst [vmem:[%s200 + $0x6c8] sm:$0xff] %v635
                %v637 = vld [vmem:[%s199 + $0x1b40] sm:$0xff]
                %638 = vst [vmem:[%s200 + $0x6d0] sm:$0xff] %v637
                %v639 = vld [vmem:[%s199 + $0x1b60] sm:$0xff]
                %640 = vst [vmem:[%s200 + $0x6d8] sm:$0xff] %v639
                %v641 = vld [vmem:[%s199 + $0x1b80] sm:$0xff]
                %642 = vst [vmem:[%s200 + $0x6e0] sm:$0xff] %v641
                %v643 = vld [vmem:[%s199 + $0x1ba0] sm:$0xff]
                %644 = vst [vmem:[%s200 + $0x6e8] sm:$0xff] %v643
                %v645 = vld [vmem:[%s199 + $0x1bc0] sm:$0xff]
                %646 = vst [vmem:[%s200 + $0x6f0] sm:$0xff] %v645
                %v647 = vld [vmem:[%s199 + $0x1be0] sm:$0xff]
                %648 = vst [vmem:[%s200 + $0x6f8] sm:$0xff] %v647
                %v649 = vld [vmem:[%s199 + $0x1c00] sm:$0xff]
                %650 = vst [vmem:[%s200 + $0x700] sm:$0xff] %v649
                %v651 = vld [vmem:[%s199 + $0x1c20] sm:$0xff]
                %652 = vst [vmem:[%s200 + $0x708] sm:$0xff] %v651
                %v653 = vld [vmem:[%s199 + $0x1c40] sm:$0xff]
                %654 = vst [vmem:[%s200 + $0x710] sm:$0xff] %v653
                %v655 = vld [vmem:[%s199 + $0x1c60] sm:$0xff]
                %656 = vst [vmem:[%s200 + $0x718] sm:$0xff] %v655
                %v657 = vld [vmem:[%s199 + $0x1c80] sm:$0xff]
                %658 = vst [vmem:[%s200 + $0x720] sm:$0xff] %v657
                %v659 = vld [vmem:[%s199 + $0x1ca0] sm:$0xff]
                %660 = vst [vmem:[%s200 + $0x728] sm:$0xff] %v659
                %v661 = vld [vmem:[%s199 + $0x1cc0] sm:$0xff]
                %662 = vst [vmem:[%s200 + $0x730] sm:$0xff] %v661
                %v663 = vld [vmem:[%s199 + $0x1ce0] sm:$0xff]
                %664 = vst [vmem:[%s200 + $0x738] sm:$0xff] %v663
                %v665 = vld [vmem:[%s199 + $0x1d00] sm:$0xff]
                %666 = vst [vmem:[%s200 + $0x740] sm:$0xff] %v665
                %v667 = vld [vmem:[%s199 + $0x1d20] sm:$0xff]
                %668 = vst [vmem:[%s200 + $0x748] sm:$0xff] %v667
                %v669 = vld [vmem:[%s199 + $0x1d40] sm:$0xff]
                %670 = vst [vmem:[%s200 + $0x750] sm:$0xff] %v669
                %v671 = vld [vmem:[%s199 + $0x1d60] sm:$0xff]
                %672 = vst [vmem:[%s200 + $0x758] sm:$0xff] %v671
                %v673 = vld [vmem:[%s199 + $0x1d80] sm:$0xff]
                %674 = vst [vmem:[%s200 + $0x760] sm:$0xff] %v673
                %v675 = vld [vmem:[%s199 + $0x1da0] sm:$0xff]
                %676 = vst [vmem:[%s200 + $0x768] sm:$0xff] %v675
                %v677 = vld [vmem:[%s199 + $0x1dc0] sm:$0xff]
                %678 = vst [vmem:[%s200 + $0x770] sm:$0xff] %v677
                %v679 = vld [vmem:[%s199 + $0x1de0] sm:$0xff]
                %680 = vst [vmem:[%s200 + $0x778] sm:$0xff] %v679
                %v681 = vld [vmem:[%s199 + $0x1e00] sm:$0xff]
                %682 = vst [vmem:[%s200 + $0x780] sm:$0xff] %v681
                %v683 = vld [vmem:[%s199 + $0x1e20] sm:$0xff]
                %684 = vst [vmem:[%s200 + $0x788] sm:$0xff] %v683
                %v685 = vld [vmem:[%s199 + $0x1e40] sm:$0xff]
                %686 = vst [vmem:[%s200 + $0x790] sm:$0xff] %v685
                %v687 = vld [vmem:[%s199 + $0x1e60] sm:$0xff]
                %688 = vst [vmem:[%s200 + $0x798] sm:$0xff] %v687
                %v689 = vld [vmem:[%s199 + $0x1e80] sm:$0xff]
                %690 = vst [vmem:[%s200 + $0x7a0] sm:$0xff] %v689
                %v691 = vld [vmem:[%s199 + $0x1ea0] sm:$0xff]
                %692 = vst [vmem:[%s200 + $0x7a8] sm:$0xff] %v691
                %v693 = vld [vmem:[%s199 + $0x1ec0] sm:$0xff]
                %694 = vst [vmem:[%s200 + $0x7b0] sm:$0xff] %v693
                %v695 = vld [vmem:[%s199 + $0x1ee0] sm:$0xff]
                %696 = vst [vmem:[%s200 + $0x7b8] sm:$0xff] %v695
                %v697 = vld [vmem:[%s199 + $0x1f00] sm:$0xff]
                %698 = vst [vmem:[%s200 + $0x7c0] sm:$0xff] %v697
                %v699 = vld [vmem:[%s199 + $0x1f20] sm:$0xff]
                %700 = vst [vmem:[%s200 + $0x7c8] sm:$0xff] %v699
                %v701 = vld [vmem:[%s199 + $0x1f40] sm:$0xff]
                %702 = vst [vmem:[%s200 + $0x7d0] sm:$0xff] %v701
                %v703 = vld [vmem:[%s199 + $0x1f60] sm:$0xff]
                %704 = vst [vmem:[%s200 + $0x7d8] sm:$0xff] %v703
                %v705 = vld [vmem:[%s199 + $0x1f80] sm:$0xff]
                %706 = vst [vmem:[%s200 + $0x7e0] sm:$0xff] %v705
                %v707 = vld [vmem:[%s199 + $0x1fa0] sm:$0xff]
                %708 = vst [vmem:[%s200 + $0x7e8] sm:$0xff] %v707
                %v709 = vld [vmem:[%s199 + $0x1fc0] sm:$0xff]
                %710 = vst [vmem:[%s200 + $0x7f0] sm:$0xff] %v709
                %v711 = vld [vmem:[%s199 + $0x1fe0] sm:$0xff]
                %712 = vst [vmem:[%s200 + $0x7f8] sm:$0xff] %v711
                %v713 = vld [vmem:[%s199 + $0x2000] sm:$0xff]
                %714 = vst [vmem:[%s200 + $0x800] sm:$0xff] %v713
                %v715 = vld [vmem:[%s199 + $0x2020] sm:$0xff]
                %716 = vst [vmem:[%s200 + $0x808] sm:$0xff] %v715
                %v717 = vld [vmem:[%s199 + $0x2040] sm:$0xff]
                %718 = vst [vmem:[%s200 + $0x810] sm:$0xff] %v717
                %v719 = vld [vmem:[%s199 + $0x2060] sm:$0xff]
                %720 = vst [vmem:[%s200 + $0x818] sm:$0xff] %v719
                %v721 = vld [vmem:[%s199 + $0x2080] sm:$0xff]
                %722 = vst [vmem:[%s200 + $0x820] sm:$0xff] %v721
                %v723 = vld [vmem:[%s199 + $0x20a0] sm:$0xff]
                %724 = vst [vmem:[%s200 + $0x828] sm:$0xff] %v723
                %v725 = vld [vmem:[%s199 + $0x20c0] sm:$0xff]
                %726 = vst [vmem:[%s200 + $0x830] sm:$0xff] %v725
                %v727 = vld [vmem:[%s199 + $0x20e0] sm:$0xff]
                %728 = vst [vmem:[%s200 + $0x838] sm:$0xff] %v727
                %v729 = vld [vmem:[%s199 + $0x2100] sm:$0xff]
                %730 = vst [vmem:[%s200 + $0x840] sm:$0xff] %v729
                %v731 = vld [vmem:[%s199 + $0x2120] sm:$0xff]
                %732 = vst [vmem:[%s200 + $0x848] sm:$0xff] %v731
                %v733 = vld [vmem:[%s199 + $0x2140] sm:$0xff]
                %734 = vst [vmem:[%s200 + $0x850] sm:$0xff] %v733
                %v735 = vld [vmem:[%s199 + $0x2160] sm:$0xff]
                %736 = vst [vmem:[%s200 + $0x858] sm:$0xff] %v735
                %v737 = vld [vmem:[%s199 + $0x2180] sm:$0xff]
                %738 = vst [vmem:[%s200 + $0x860] sm:$0xff] %v737
                %v739 = vld [vmem:[%s199 + $0x21a0] sm:$0xff]
                %740 = vst [vmem:[%s200 + $0x868] sm:$0xff] %v739
                %v741 = vld [vmem:[%s199 + $0x21c0] sm:$0xff]
                %742 = vst [vmem:[%s200 + $0x870] sm:$0xff] %v741
                %v743 = vld [vmem:[%s199 + $0x21e0] sm:$0xff]
                %744 = vst [vmem:[%s200 + $0x878] sm:$0xff] %v743
                %v745 = vld [vmem:[%s199 + $0x2200] sm:$0xff]
                %746 = vst [vmem:[%s200 + $0x880] sm:$0xff] %v745
                %v747 = vld [vmem:[%s199 + $0x2220] sm:$0xff]
                %748 = vst [vmem:[%s200 + $0x888] sm:$0xff] %v747
                %v749 = vld [vmem:[%s199 + $0x2240] sm:$0xff]
                %750 = vst [vmem:[%s200 + $0x890] sm:$0xff] %v749
                %v751 = vld [vmem:[%s199 + $0x2260] sm:$0xff]
                %752 = vst [vmem:[%s200 + $0x898] sm:$0xff] %v751
                %v753 = vld [vmem:[%s199 + $0x2280] sm:$0xff]
                %754 = vst [vmem:[%s200 + $0x8a0] sm:$0xff] %v753
                %v755 = vld [vmem:[%s199 + $0x22a0] sm:$0xff]
                %756 = vst [vmem:[%s200 + $0x8a8] sm:$0xff] %v755
                %v757 = vld [vmem:[%s199 + $0x22c0] sm:$0xff]
                %758 = vst [vmem:[%s200 + $0x8b0] sm:$0xff] %v757
                %v759 = vld [vmem:[%s199 + $0x22e0] sm:$0xff]
                %760 = vst [vmem:[%s200 + $0x8b8] sm:$0xff] %v759
                %v761 = vld [vmem:[%s199 + $0x2300] sm:$0xff]
                %762 = vst [vmem:[%s200 + $0x8c0] sm:$0xff] %v761
                %v763 = vld [vmem:[%s199 + $0x2320] sm:$0xff]
                %764 = vst [vmem:[%s200 + $0x8c8] sm:$0xff] %v763
                %v765 = vld [vmem:[%s199 + $0x2340] sm:$0xff]
                %766 = vst [vmem:[%s200 + $0x8d0] sm:$0xff] %v765
                %v767 = vld [vmem:[%s199 + $0x2360] sm:$0xff]
                %768 = vst [vmem:[%s200 + $0x8d8] sm:$0xff] %v767
                %v769 = vld [vmem:[%s199 + $0x2380] sm:$0xff]
                %770 = vst [vmem:[%s200 + $0x8e0] sm:$0xff] %v769
                %v771 = vld [vmem:[%s199 + $0x23a0] sm:$0xff]
                %772 = vst [vmem:[%s200 + $0x8e8] sm:$0xff] %v771
                %v773 = vld [vmem:[%s199 + $0x23c0] sm:$0xff]
                %774 = vst [vmem:[%s200 + $0x8f0] sm:$0xff] %v773
                %v775 = vld [vmem:[%s199 + $0x23e0] sm:$0xff]
                %776 = vst [vmem:[%s200 + $0x8f8] sm:$0xff] %v775
                %v777 = vld [vmem:[%s199 + $0x2400] sm:$0xff]
                %778 = vst [vmem:[%s200 + $0x900] sm:$0xff] %v777
                %v779 = vld [vmem:[%s199 + $0x2420] sm:$0xff]
                %780 = vst [vmem:[%s200 + $0x908] sm:$0xff] %v779
                %v781 = vld [vmem:[%s199 + $0x2440] sm:$0xff]
                %782 = vst [vmem:[%s200 + $0x910] sm:$0xff] %v781
                %v783 = vld [vmem:[%s199 + $0x2460] sm:$0xff]
                %784 = vst [vmem:[%s200 + $0x918] sm:$0xff] %v783
                %v785 = vld [vmem:[%s199 + $0x2480] sm:$0xff]
                %786 = vst [vmem:[%s200 + $0x920] sm:$0xff] %v785
                %v787 = vld [vmem:[%s199 + $0x24a0] sm:$0xff]
                %788 = vst [vmem:[%s200 + $0x928] sm:$0xff] %v787
                %v789 = vld [vmem:[%s199 + $0x24c0] sm:$0xff]
                %790 = vst [vmem:[%s200 + $0x930] sm:$0xff] %v789
                %v791 = vld [vmem:[%s199 + $0x24e0] sm:$0xff]
                %792 = vst [vmem:[%s200 + $0x938] sm:$0xff] %v791
                %v793 = vld [vmem:[%s199 + $0x2500] sm:$0xff]
                %794 = vst [vmem:[%s200 + $0x940] sm:$0xff] %v793
                %v795 = vld [vmem:[%s199 + $0x2520] sm:$0xff]
                %796 = vst [vmem:[%s200 + $0x948] sm:$0xff] %v795
                %v797 = vld [vmem:[%s199 + $0x2540] sm:$0xff]
                %798 = vst [vmem:[%s200 + $0x950] sm:$0xff] %v797
                %v799 = vld [vmem:[%s199 + $0x2560] sm:$0xff]
                %800 = vst [vmem:[%s200 + $0x958] sm:$0xff] %v799
                %v801 = vld [vmem:[%s199 + $0x2580] sm:$0xff]
                %802 = vst [vmem:[%s200 + $0x960] sm:$0xff] %v801
                %v803 = vld [vmem:[%s199 + $0x25a0] sm:$0xff]
                %804 = vst [vmem:[%s200 + $0x968] sm:$0xff] %v803
                %v805 = vld [vmem:[%s199 + $0x25c0] sm:$0xff]
                %806 = vst [vmem:[%s200 + $0x970] sm:$0xff] %v805
                %v807 = vld [vmem:[%s199 + $0x25e0] sm:$0xff]
                %808 = vst [vmem:[%s200 + $0x978] sm:$0xff] %v807
                %v809 = vld [vmem:[%s199 + $0x2600] sm:$0xff]
                %810 = vst [vmem:[%s200 + $0x980] sm:$0xff] %v809
                %v811 = vld [vmem:[%s199 + $0x2620] sm:$0xff]
                %812 = vst [vmem:[%s200 + $0x988] sm:$0xff] %v811
                %v813 = vld [vmem:[%s199 + $0x2640] sm:$0xff]
                %814 = vst [vmem:[%s200 + $0x990] sm:$0xff] %v813
                %v815 = vld [vmem:[%s199 + $0x2660] sm:$0xff]
                %816 = vst [vmem:[%s200 + $0x998] sm:$0xff] %v815
                %v817 = vld [vmem:[%s199 + $0x2680] sm:$0xff]
                %818 = vst [vmem:[%s200 + $0x9a0] sm:$0xff] %v817
                %v819 = vld [vmem:[%s199 + $0x26a0] sm:$0xff]
                %820 = vst [vmem:[%s200 + $0x9a8] sm:$0xff] %v819
                %v821 = vld [vmem:[%s199 + $0x26c0] sm:$0xff]
                %822 = vst [vmem:[%s200 + $0x9b0] sm:$0xff] %v821
                %v823 = vld [vmem:[%s199 + $0x26e0] sm:$0xff]
                %824 = vst [vmem:[%s200 + $0x9b8] sm:$0xff] %v823
                %v825 = vld [vmem:[%s199 + $0x2700] sm:$0xff]
                %826 = vst [vmem:[%s200 + $0x9c0] sm:$0xff] %v825
                %v827 = vld [vmem:[%s199 + $0x2720] sm:$0xff]
                %828 = vst [vmem:[%s200 + $0x9c8] sm:$0xff] %v827
                %v829 = vld [vmem:[%s199 + $0x2740] sm:$0xff]
                %830 = vst [vmem:[%s200 + $0x9d0] sm:$0xff] %v829
                %v831 = vld [vmem:[%s199 + $0x2760] sm:$0xff]
                %832 = vst [vmem:[%s200 + $0x9d8] sm:$0xff] %v831
                %v833 = vld [vmem:[%s199 + $0x2780] sm:$0xff]
                %834 = vst [vmem:[%s200 + $0x9e0] sm:$0xff] %v833
                %v835 = vld [vmem:[%s199 + $0x27a0] sm:$0xff]
                %836 = vst [vmem:[%s200 + $0x9e8] sm:$0xff] %v835
                %v837 = vld [vmem:[%s199 + $0x27c0] sm:$0xff]
                %838 = vst [vmem:[%s200 + $0x9f0] sm:$0xff] %v837
                %v839 = vld [vmem:[%s199 + $0x27e0] sm:$0xff]
                %840 = vst [vmem:[%s200 + $0x9f8] sm:$0xff] %v839
                %v841 = vld [vmem:[%s199 + $0x2800] sm:$0xff]
                %842 = vst [vmem:[%s200 + $0xa00] sm:$0xff] %v841
                %v843 = vld [vmem:[%s199 + $0x2820] sm:$0xff]
                %844 = vst [vmem:[%s200 + $0xa08] sm:$0xff] %v843
                %v845 = vld [vmem:[%s199 + $0x2840] sm:$0xff]
                %846 = vst [vmem:[%s200 + $0xa10] sm:$0xff] %v845
                %v847 = vld [vmem:[%s199 + $0x2860] sm:$0xff]
                %848 = vst [vmem:[%s200 + $0xa18] sm:$0xff] %v847
                %v849 = vld [vmem:[%s199 + $0x2880] sm:$0xff]
                %850 = vst [vmem:[%s200 + $0xa20] sm:$0xff] %v849
                %v851 = vld [vmem:[%s199 + $0x28a0] sm:$0xff]
                %852 = vst [vmem:[%s200 + $0xa28] sm:$0xff] %v851
                %v853 = vld [vmem:[%s199 + $0x28c0] sm:$0xff]
                %854 = vst [vmem:[%s200 + $0xa30] sm:$0xff] %v853
                %v855 = vld [vmem:[%s199 + $0x28e0] sm:$0xff]
                %856 = vst [vmem:[%s200 + $0xa38] sm:$0xff] %v855
                %v857 = vld [vmem:[%s199 + $0x2900] sm:$0xff]
                %858 = vst [vmem:[%s200 + $0xa40] sm:$0xff] %v857
                %v859 = vld [vmem:[%s199 + $0x2920] sm:$0xff]
                %860 = vst [vmem:[%s200 + $0xa48] sm:$0xff] %v859
                %v861 = vld [vmem:[%s199 + $0x2940] sm:$0xff]
                %862 = vst [vmem:[%s200 + $0xa50] sm:$0xff] %v861
                %v863 = vld [vmem:[%s199 + $0x2960] sm:$0xff]
                %864 = vst [vmem:[%s200 + $0xa58] sm:$0xff] %v863
                %v865 = vld [vmem:[%s199 + $0x2980] sm:$0xff]
                %866 = vst [vmem:[%s200 + $0xa60] sm:$0xff] %v865
                %v867 = vld [vmem:[%s199 + $0x29a0] sm:$0xff]
                %868 = vst [vmem:[%s200 + $0xa68] sm:$0xff] %v867
                %v869 = vld [vmem:[%s199 + $0x29c0] sm:$0xff]
                %870 = vst [vmem:[%s200 + $0xa70] sm:$0xff] %v869
                %v871 = vld [vmem:[%s199 + $0x29e0] sm:$0xff]
                %872 = vst [vmem:[%s200 + $0xa78] sm:$0xff] %v871
                %v873 = vld [vmem:[%s199 + $0x2a00] sm:$0xff]
                %874 = vst [vmem:[%s200 + $0xa80] sm:$0xff] %v873
                %v875 = vld [vmem:[%s199 + $0x2a20] sm:$0xff]
                %876 = vst [vmem:[%s200 + $0xa88] sm:$0xff] %v875
                %v877 = vld [vmem:[%s199 + $0x2a40] sm:$0xff]
                %878 = vst [vmem:[%s200 + $0xa90] sm:$0xff] %v877
                %v879 = vld [vmem:[%s199 + $0x2a60] sm:$0xff]
                %880 = vst [vmem:[%s200 + $0xa98] sm:$0xff] %v879
                %v881 = vld [vmem:[%s199 + $0x2a80] sm:$0xff]
                %882 = vst [vmem:[%s200 + $0xaa0] sm:$0xff] %v881
                %v883 = vld [vmem:[%s199 + $0x2aa0] sm:$0xff]
                %884 = vst [vmem:[%s200 + $0xaa8] sm:$0xff] %v883
                %v885 = vld [vmem:[%s199 + $0x2ac0] sm:$0xff]
                %886 = vst [vmem:[%s200 + $0xab0] sm:$0xff] %v885
                %v887 = vld [vmem:[%s199 + $0x2ae0] sm:$0xff]
                %888 = vst [vmem:[%s200 + $0xab8] sm:$0xff] %v887
                %v889 = vld [vmem:[%s199 + $0x2b00] sm:$0xff]
                %890 = vst [vmem:[%s200 + $0xac0] sm:$0xff] %v889
                %v891 = vld [vmem:[%s199 + $0x2b20] sm:$0xff]
                %892 = vst [vmem:[%s200 + $0xac8] sm:$0xff] %v891
                %v893 = vld [vmem:[%s199 + $0x2b40] sm:$0xff]
                %894 = vst [vmem:[%s200 + $0xad0] sm:$0xff] %v893
                %v895 = vld [vmem:[%s199 + $0x2b60] sm:$0xff]
                %896 = vst [vmem:[%s200 + $0xad8] sm:$0xff] %v895
                %v897 = vld [vmem:[%s199 + $0x2b80] sm:$0xff]
                %898 = vst [vmem:[%s200 + $0xae0] sm:$0xff] %v897
                %v899 = vld [vmem:[%s199 + $0x2ba0] sm:$0xff]
                %900 = vst [vmem:[%s200 + $0xae8] sm:$0xff] %v899
                %v901 = vld [vmem:[%s199 + $0x2bc0] sm:$0xff]
                %902 = vst [vmem:[%s200 + $0xaf0] sm:$0xff] %v901
                %v903 = vld [vmem:[%s199 + $0x2be0] sm:$0xff]
                %904 = vst [vmem:[%s200 + $0xaf8] sm:$0xff] %v903
                %v905 = vld [vmem:[%s199 + $0x2c00] sm:$0xff]
                %906 = vst [vmem:[%s200 + $0xb00] sm:$0xff] %v905
                %v907 = vld [vmem:[%s199 + $0x2c20] sm:$0xff]
                %908 = vst [vmem:[%s200 + $0xb08] sm:$0xff] %v907
                %v909 = vld [vmem:[%s199 + $0x2c40] sm:$0xff]
                %910 = vst [vmem:[%s200 + $0xb10] sm:$0xff] %v909
                %v911 = vld [vmem:[%s199 + $0x2c60] sm:$0xff]
                %912 = vst [vmem:[%s200 + $0xb18] sm:$0xff] %v911
                %v913 = vld [vmem:[%s199 + $0x2c80] sm:$0xff]
                %914 = vst [vmem:[%s200 + $0xb20] sm:$0xff] %v913
                %v915 = vld [vmem:[%s199 + $0x2ca0] sm:$0xff]
                %916 = vst [vmem:[%s200 + $0xb28] sm:$0xff] %v915
                %v917 = vld [vmem:[%s199 + $0x2cc0] sm:$0xff]
                %918 = vst [vmem:[%s200 + $0xb30] sm:$0xff] %v917
                %v919 = vld [vmem:[%s199 + $0x2ce0] sm:$0xff]
                %920 = vst [vmem:[%s200 + $0xb38] sm:$0xff] %v919
                %v921 = vld [vmem:[%s199 + $0x2d00] sm:$0xff]
                %922 = vst [vmem:[%s200 + $0xb40] sm:$0xff] %v921
                %v923 = vld [vmem:[%s199 + $0x2d20] sm:$0xff]
                %924 = vst [vmem:[%s200 + $0xb48] sm:$0xff] %v923
                %v925 = vld [vmem:[%s199 + $0x2d40] sm:$0xff]
                %926 = vst [vmem:[%s200 + $0xb50] sm:$0xff] %v925
                %v927 = vld [vmem:[%s199 + $0x2d60] sm:$0xff]
                %928 = vst [vmem:[%s200 + $0xb58] sm:$0xff] %v927
                %v929 = vld [vmem:[%s199 + $0x2d80] sm:$0xff]
                %930 = vst [vmem:[%s200 + $0xb60] sm:$0xff] %v929
                %v931 = vld [vmem:[%s199 + $0x2da0] sm:$0xff]
                %932 = vst [vmem:[%s200 + $0xb68] sm:$0xff] %v931
                %v933 = vld [vmem:[%s199 + $0x2dc0] sm:$0xff]
                %934 = vst [vmem:[%s200 + $0xb70] sm:$0xff] %v933
                %v935 = vld [vmem:[%s199 + $0x2de0] sm:$0xff]
                %936 = vst [vmem:[%s200 + $0xb78] sm:$0xff] %v935
                %v937 = vld [vmem:[%s199 + $0x2e00] sm:$0xff]
                %938 = vst [vmem:[%s200 + $0xb80] sm:$0xff] %v937
                %v939 = vld [vmem:[%s199 + $0x2e20] sm:$0xff]
                %940 = vst [vmem:[%s200 + $0xb88] sm:$0xff] %v939
                %v941 = vld [vmem:[%s199 + $0x2e40] sm:$0xff]
                %942 = vst [vmem:[%s200 + $0xb90] sm:$0xff] %v941
                %v943 = vld [vmem:[%s199 + $0x2e60] sm:$0xff]
                %944 = vst [vmem:[%s200 + $0xb98] sm:$0xff] %v943
                %v945 = vld [vmem:[%s199 + $0x2e80] sm:$0xff]
                %946 = vst [vmem:[%s200 + $0xba0] sm:$0xff] %v945
                %v947 = vld [vmem:[%s199 + $0x2ea0] sm:$0xff]
                %948 = vst [vmem:[%s200 + $0xba8] sm:$0xff] %v947
                %v949 = vld [vmem:[%s199 + $0x2ec0] sm:$0xff]
                %950 = vst [vmem:[%s200 + $0xbb0] sm:$0xff] %v949
                %v951 = vld [vmem:[%s199 + $0x2ee0] sm:$0xff]
                %952 = vst [vmem:[%s200 + $0xbb8] sm:$0xff] %v951
                %v953 = vld [vmem:[%s199 + $0x2f00] sm:$0xff]
                %954 = vst [vmem:[%s200 + $0xbc0] sm:$0xff] %v953
                %v955 = vld [vmem:[%s199 + $0x2f20] sm:$0xff]
                %956 = vst [vmem:[%s200 + $0xbc8] sm:$0xff] %v955
                %v957 = vld [vmem:[%s199 + $0x2f40] sm:$0xff]
                %958 = vst [vmem:[%s200 + $0xbd0] sm:$0xff] %v957
                %v959 = vld [vmem:[%s199 + $0x2f60] sm:$0xff]
                %960 = vst [vmem:[%s200 + $0xbd8] sm:$0xff] %v959
                %v961 = vld [vmem:[%s199 + $0x2f80] sm:$0xff]
                %962 = vst [vmem:[%s200 + $0xbe0] sm:$0xff] %v961
                %v963 = vld [vmem:[%s199 + $0x2fa0] sm:$0xff]
                %964 = vst [vmem:[%s200 + $0xbe8] sm:$0xff] %v963
                %v965 = vld [vmem:[%s199 + $0x2fc0] sm:$0xff]
                %966 = vst [vmem:[%s200 + $0xbf0] sm:$0xff] %v965
                %v967 = vld [vmem:[%s199 + $0x2fe0] sm:$0xff]
                %968 = vst [vmem:[%s200 + $0xbf8] sm:$0xff] %v967
                %v969 = vld [vmem:[%s199 + $0x3000] sm:$0xff]
                %970 = vst [vmem:[%s200 + $0xc00] sm:$0xff] %v969
                %v971 = vld [vmem:[%s199 + $0x3020] sm:$0xff]
                %972 = vst [vmem:[%s200 + $0xc08] sm:$0xff] %v971
                %v973 = vld [vmem:[%s199 + $0x3040] sm:$0xff]
                %974 = vst [vmem:[%s200 + $0xc10] sm:$0xff] %v973
                %v975 = vld [vmem:[%s199 + $0x3060] sm:$0xff]
                %976 = vst [vmem:[%s200 + $0xc18] sm:$0xff] %v975
                %v977 = vld [vmem:[%s199 + $0x3080] sm:$0xff]
                %978 = vst [vmem:[%s200 + $0xc20] sm:$0xff] %v977
                %v979 = vld [vmem:[%s199 + $0x30a0] sm:$0xff]
                %980 = vst [vmem:[%s200 + $0xc28] sm:$0xff] %v979
                %v981 = vld [vmem:[%s199 + $0x30c0] sm:$0xff]
                %982 = vst [vmem:[%s200 + $0xc30] sm:$0xff] %v981
                %v983 = vld [vmem:[%s199 + $0x30e0] sm:$0xff]
                %984 = vst [vmem:[%s200 + $0xc38] sm:$0xff] %v983
              $region45: #{shared_network_a2c_forward.7} parent=39 // loop_footer
                %s198 = sadd.s32 1, %s194
              $region46: #{shared_network_a2c_forward.7} parent=39 // loop_footer_branch
                %193 = sbr.rel target = $region42
              $region47: #{shared_network_a2c_forward.7} parent=39 // loop_exit
                _
            $region40: #{shared_network_a2c_forward.7} parent=31 // pred_fallthru
              _
          $region32: #{shared_network_a2c_forward.7} parent=27 // pred_fallthru
            _
          %1781 = vnop
        $region28: #{shared_network_a2c_forward.7} parent=23 // pred_fallthru
          _
        // Predicated region
        $region63: #{shared_network_a2c_forward.7} parent=23 // pred_check
          %p1782 = pneg %p78
        $region64: #{shared_network_a2c_forward.7} parent=23 // pred_check_branch
          %1784 = sbr.rel (%p1782) target = $region66
        $region65: #{shared_network_a2c_forward.7} parent=23 // pred_region
          %p1785 = scmp.lt.s32.totalorder %s11, 3
          %s1786 = scalar_select %p1785, %s11, 3
          %s1787 = scalar_lea.vmem %s2, %s1786
        $region66: #{shared_network_a2c_forward.7} parent=23 // pred_fallthru
          _
        // Predicated region
        $region67: #{shared_network_a2c_forward.7} parent=23 // pred_check
          %p1788 = pneg %p104
        $region68: #{shared_network_a2c_forward.7} parent=23 // pred_check_branch
          %1790 = sbr.rel (%p1788) target = $region70
        $region69: #{shared_network_a2c_forward.7} parent=23 // pred_region
          %s1791 = smul.u32 16, %s11
          %p1792 = scmp.lt.s32.totalorder %s1791, 63
          %s1793 = scalar_select %p1792, %s1791, 63
          %s1794 = smul.addr %s1793, 8
          %s1795 = scalar_lea.vmem %s3, %s1794
          %s1796 = smul.u32 16, %s11
        $region70: #{shared_network_a2c_forward.7} parent=23 // pred_fallthru
          _
      $region24: #{shared_network_a2c_forward.7} parent=5 // pred_fallthru
        _
      %p1797 = scmp.le.s32.totalorder 1, %s11
      %p1798 = scmp.lt.s32.totalorder %s11, 5
      %p1799 = pnand %p1797, %p1798
      %p1800 = pneg %p1799
      // Predicated region
      $region71: #{shared_network_a2c_forward.7} parent=5 // pred_check
        _
      $region72: #{shared_network_a2c_forward.7} parent=5 // pred_check_branch
        %1802 = sbr.rel (%p1799) target = $region74
      $region73: #{shared_network_a2c_forward.7} parent=5 // pred_region
        %s1803 = ssub.s32 %s11, 1
        %s1804 = sand.u32 %s45, 1
        %s1805 = sand.u32 %s45, 1
        %s1806 = smul.addr %s1805, 3136
        %s1807 = scalar_lea.vmem [#allocation3], %s1806
        // Predicated region
        $region75: #{shared_network_a2c_forward.7} parent=73 // pred_check
          %p1808 = pneg %p58
        $region76: #{shared_network_a2c_forward.7} parent=73 // pred_check_branch
          %1810 = sbr.rel (%p1808) target = $region78
        $region77: #{shared_network_a2c_forward.7} parent=73 // pred_region
          _
        $region78: #{shared_network_a2c_forward.7} parent=73 // pred_fallthru
          _
        %p1811 = pneg %p32
        %p1812 = pneg %p29
        %s1813 = sand.u32 %s45, 1
        %s1814 = sand.u32 %s45, 1
        %s1815 = smul.addr %s1814, 3136
        %s1816 = scalar_lea.vmem [#allocation3], %s1815
        %p1817 = pneg %p58
        %p1818 = pneg %p55
        %p1819 = scmp.lt.s32.totalorder %s16, 3
        %s1820 = scalar_select %p1819, %s16, 3
        %s1821 = scalar_lea.vmem %s2, %s1820
        %p1822 = pneg %p84
        %p1823 = pneg %p81
        %s1824 = smul.u32 16, %s16
        %p1825 = scmp.lt.s32.totalorder %s1824, 63
        %s1826 = scalar_select %p1825, %s1824, 63
        %s1827 = smul.addr %s1826, 8
        %s1828 = scalar_lea.vmem %s3, %s1827
        %p1829 = pneg %p110
        %p1830 = pneg %p107
        %p1831 = pneg %p131
        %p1832 = pneg %p128
        %p1833 = pneg %p152
        %p1834 = pneg %p149
        %p1835 = scmp.lt.s32.totalorder %s16, 3
        %s1836 = scalar_select %p1835, %s16, 3
        %s1837 = scalar_lea.vmem %s2, %s1836
        %s1838 = smul.u32 16, %s16
        %p1839 = scmp.lt.s32.totalorder %s1838, 63
        %s1840 = scalar_select %p1839, %s1838, 63
        %s1841 = smul.addr %s1840, 8
        %s1842 = scalar_lea.vmem %s3, %s1841
        %s1843 = smul.u32 16, %s16
        %p1844 = scmp.eq.s32.totalorder %s16, 0
        // Predicated region
        $region79: #{shared_network_a2c_forward.7} parent=73 // pred_check
          %p1845 = pneg %p1844
        $region80: #{shared_network_a2c_forward.7} parent=73 // pred_check_branch
          %1847 = sbr.rel (%p1845) target = $region82
        $region81: #{shared_network_a2c_forward.7} parent=73 // pred_region
          %1848 = vst [vmem:[#allocation2] sm:$0x3] 0.0
        $region82: #{shared_network_a2c_forward.7} parent=73 // pred_fallthru
          _
        %v1849 = vld [vmem:[%s0] sm:$0xff]
        %v1850 = vld [vmem:[%s0 + $0x8] sm:$0xff]
        %v1851 = vld [vmem:[%s0 + $0x10] sm:$0xff]
        %v1852 = vld [vmem:[%s0 + $0x18] sm:$0xff]
        %v1853 = vld [vmem:[%s0 + $0x20] sm:$0xff]
        %v1854 = vld [vmem:[%s0 + $0x28] sm:$0xff]
        %v1855 = vld [vmem:[%s0 + $0x30] sm:$0x3]
        %v1856 = vld [vmem:[%s1807] sm:$0xff]
        %v1857 = vld [vmem:[%s1807 + $0x8] sm:$0xff]
        %v1858 = vld [vmem:[%s1807 + $0x10] sm:$0xff]
        %v1859 = vld [vmem:[%s1807 + $0x18] sm:$0xff]
        %v1860 = vld [vmem:[%s1807 + $0x20] sm:$0xff]
        %v1861 = vld [vmem:[%s1807 + $0x28] sm:$0xff]
        %v1862 = vld [vmem:[%s1807 + $0x30] sm:$0xff]
        %v1863 = vld [vmem:[%s1807 + $0x38] sm:$0xff]
        %v1864 = vld [vmem:[%s1807 + $0x40] sm:$0xff]
        %v1865 = vld [vmem:[%s1807 + $0x48] sm:$0xff]
        %v1866 = vld [vmem:[%s1807 + $0x50] sm:$0xff]
        %v1867 = vld [vmem:[%s1807 + $0x58] sm:$0xff]
        %v1868 = vld [vmem:[%s1807 + $0x60] sm:$0xff]
        %v1869 = vld [vmem:[%s1807 + $0x68] sm:$0xff]
        %v1870 = vld [vmem:[%s1807 + $0x70] sm:$0xff]
        %v1871 = vld [vmem:[%s1807 + $0x78] sm:$0xff]
        %v1872 = vld [vmem:[%s1807 + $0x80] sm:$0xff]
        %v1873 = vld [vmem:[%s1807 + $0x88] sm:$0xff]
        %v1874 = vld [vmem:[%s1807 + $0x90] sm:$0xff]
        %v1875 = vld [vmem:[%s1807 + $0x98] sm:$0xff]
        %v1876 = vld [vmem:[%s1807 + $0xa0] sm:$0xff]
        %v1877 = vld [vmem:[%s1807 + $0xa8] sm:$0xff]
        %v1878 = vld [vmem:[%s1807 + $0xb0] sm:$0xff]
        %v1879 = vld [vmem:[%s1807 + $0xb8] sm:$0xff]
        %v1880 = vld [vmem:[%s1807 + $0xc0] sm:$0xff]
        %v1881 = vld [vmem:[%s1807 + $0xc8] sm:$0xff]
        %v1882 = vld [vmem:[%s1807 + $0xd0] sm:$0xff]
        %v1883 = vld [vmem:[%s1807 + $0xd8] sm:$0xff]
        %v1884 = vld [vmem:[%s1807 + $0xe0] sm:$0xff]
        %v1885 = vld [vmem:[%s1807 + $0xe8] sm:$0xff]
        %v1886 = vld [vmem:[%s1807 + $0xf0] sm:$0xff]
        %v1887 = vld [vmem:[%s1807 + $0xf8] sm:$0xff]
        %v1888 = vld [vmem:[%s1807 + $0x100] sm:$0xff]
        %v1889 = vld [vmem:[%s1807 + $0x108] sm:$0xff]
        %v1890 = vld [vmem:[%s1807 + $0x110] sm:$0xff]
        %v1891 = vld [vmem:[%s1807 + $0x118] sm:$0xff]
        %v1892 = vld [vmem:[%s1807 + $0x120] sm:$0xff]
        %v1893 = vld [vmem:[%s1807 + $0x128] sm:$0xff]
        %v1894 = vld [vmem:[%s1807 + $0x130] sm:$0xff]
        %v1895 = vld [vmem:[%s1807 + $0x138] sm:$0xff]
        %v1896 = vld [vmem:[%s1807 + $0x140] sm:$0xff]
        %v1897 = vld [vmem:[%s1807 + $0x148] sm:$0xff]
        %v1898 = vld [vmem:[%s1807 + $0x150] sm:$0xff]
        %v1899 = vld [vmem:[%s1807 + $0x158] sm:$0xff]
        %v1900 = vld [vmem:[%s1807 + $0x160] sm:$0xff]
        %v1901 = vld [vmem:[%s1807 + $0x168] sm:$0xff]
        %v1902 = vld [vmem:[%s1807 + $0x170] sm:$0xff]
        %v1903 = vld [vmem:[%s1807 + $0x178] sm:$0xff]
        %v1904 = vld [vmem:[%s1807 + $0x180] sm:$0xff]
        %v1905 = vld [vmem:[%s1807 + $0x188] sm:$0xff]
        %v1906 = vld [vmem:[%s1807 + $0x190] sm:$0xff]
        %v1907 = vld [vmem:[%s1807 + $0x198] sm:$0xff]
        %v1908 = vld [vmem:[%s1807 + $0x1a0] sm:$0xff]
        %v1909 = vld [vmem:[%s1807 + $0x1a8] sm:$0xff]
        %v1910 = vld [vmem:[%s1807 + $0x1b0] sm:$0xff]
        %v1911 = vld [vmem:[%s1807 + $0x1b8] sm:$0xff]
        %v1912 = vld [vmem:[%s1807 + $0x1c0] sm:$0xff]
        %v1913 = vld [vmem:[%s1807 + $0x1c8] sm:$0xff]
        %v1914 = vld [vmem:[%s1807 + $0x1d0] sm:$0xff]
        %v1915 = vld [vmem:[%s1807 + $0x1d8] sm:$0xff]
        %v1916 = vld [vmem:[%s1807 + $0x1e0] sm:$0xff]
        %v1917 = vld [vmem:[%s1807 + $0x1e8] sm:$0xff]
        %v1918 = vld [vmem:[%s1807 + $0x1f0] sm:$0xff]
        %v1919 = vld [vmem:[%s1807 + $0x1f8] sm:$0xff]
        %v1920 = vld [vmem:[%s1807 + $0x200] sm:$0xff]
        %v1921 = vld [vmem:[%s1807 + $0x208] sm:$0xff]
        %v1922 = vld [vmem:[%s1807 + $0x210] sm:$0xff]
        %v1923 = vld [vmem:[%s1807 + $0x218] sm:$0xff]
        %v1924 = vld [vmem:[%s1807 + $0x220] sm:$0xff]
        %v1925 = vld [vmem:[%s1807 + $0x228] sm:$0xff]
        %v1926 = vld [vmem:[%s1807 + $0x230] sm:$0xff]
        %v1927 = vld [vmem:[%s1807 + $0x238] sm:$0xff]
        %v1928 = vld [vmem:[%s1807 + $0x240] sm:$0xff]
        %v1929 = vld [vmem:[%s1807 + $0x248] sm:$0xff]
        %v1930 = vld [vmem:[%s1807 + $0x250] sm:$0xff]
        %v1931 = vld [vmem:[%s1807 + $0x258] sm:$0xff]
        %v1932 = vld [vmem:[%s1807 + $0x260] sm:$0xff]
        %v1933 = vld [vmem:[%s1807 + $0x268] sm:$0xff]
        %v1934 = vld [vmem:[%s1807 + $0x270] sm:$0xff]
        %v1935 = vld [vmem:[%s1807 + $0x278] sm:$0xff]
        %v1936 = vld [vmem:[%s1807 + $0x280] sm:$0xff]
        %v1937 = vld [vmem:[%s1807 + $0x288] sm:$0xff]
        %v1938 = vld [vmem:[%s1807 + $0x290] sm:$0xff]
        %v1939 = vld [vmem:[%s1807 + $0x298] sm:$0xff]
        %v1940 = vld [vmem:[%s1807 + $0x2a0] sm:$0xff]
        %v1941 = vld [vmem:[%s1807 + $0x2a8] sm:$0xff]
        %v1942 = vld [vmem:[%s1807 + $0x2b0] sm:$0xff]
        %v1943 = vld [vmem:[%s1807 + $0x2b8] sm:$0xff]
        %v1944 = vld [vmem:[%s1807 + $0x2c0] sm:$0xff]
        %v1945 = vld [vmem:[%s1807 + $0x2c8] sm:$0xff]
        %v1946 = vld [vmem:[%s1807 + $0x2d0] sm:$0xff]
        %v1947 = vld [vmem:[%s1807 + $0x2d8] sm:$0xff]
        %v1948 = vld [vmem:[%s1807 + $0x2e0] sm:$0xff]
        %v1949 = vld [vmem:[%s1807 + $0x2e8] sm:$0xff]
        %v1950 = vld [vmem:[%s1807 + $0x2f0] sm:$0xff]
        %v1951 = vld [vmem:[%s1807 + $0x2f8] sm:$0xff]
        %v1952 = vld [vmem:[%s1807 + $0x300] sm:$0xff]
        %v1953 = vld [vmem:[%s1807 + $0x308] sm:$0xff]
        %v1954 = vld [vmem:[%s1807 + $0x310] sm:$0xff]
        %v1955 = vld [vmem:[%s1807 + $0x318] sm:$0xff]
        %v1956 = vld [vmem:[%s1807 + $0x320] sm:$0xff]
        %v1957 = vld [vmem:[%s1807 + $0x328] sm:$0xff]
        %v1958 = vld [vmem:[%s1807 + $0x330] sm:$0xff]
        %v1959 = vld [vmem:[%s1807 + $0x338] sm:$0xff]
        %v1960 = vld [vmem:[%s1807 + $0x340] sm:$0xff]
        %v1961 = vld [vmem:[%s1807 + $0x348] sm:$0xff]
        %v1962 = vld [vmem:[%s1807 + $0x350] sm:$0xff]
        %v1963 = vld [vmem:[%s1807 + $0x358] sm:$0xff]
        %v1964 = vld [vmem:[%s1807 + $0x360] sm:$0xff]
        %v1965 = vld [vmem:[%s1807 + $0x368] sm:$0xff]
        %v1966 = vld [vmem:[%s1807 + $0x370] sm:$0xff]
        %v1967 = vld [vmem:[%s1807 + $0x378] sm:$0xff]
        %v1968 = vld [vmem:[%s1807 + $0x380] sm:$0xff]
        %v1969 = vld [vmem:[%s1807 + $0x388] sm:$0xff]
        %v1970 = vld [vmem:[%s1807 + $0x390] sm:$0xff]
        %v1971 = vld [vmem:[%s1807 + $0x398] sm:$0xff]
        %v1972 = vld [vmem:[%s1807 + $0x3a0] sm:$0xff]
        %v1973 = vld [vmem:[%s1807 + $0x3a8] sm:$0xff]
        %v1974 = vld [vmem:[%s1807 + $0x3b0] sm:$0xff]
        %v1975 = vld [vmem:[%s1807 + $0x3b8] sm:$0xff]
        %v1976 = vld [vmem:[%s1807 + $0x3c0] sm:$0xff]
        %v1977 = vld [vmem:[%s1807 + $0x3c8] sm:$0xff]
        %v1978 = vld [vmem:[%s1807 + $0x3d0] sm:$0xff]
        %v1979 = vld [vmem:[%s1807 + $0x3d8] sm:$0xff]
        %v1980 = vld [vmem:[%s1807 + $0x3e0] sm:$0xff]
        %v1981 = vld [vmem:[%s1807 + $0x3e8] sm:$0xff]
        %v1982 = vld [vmem:[%s1807 + $0x3f0] sm:$0xff]
        %v1983 = vld [vmem:[%s1807 + $0x3f8] sm:$0xff]
        %v1984 = vld [vmem:[%s1807 + $0x400] sm:$0xff]
        %v1985 = vld [vmem:[%s1807 + $0x408] sm:$0xff]
        %v1986 = vld [vmem:[%s1807 + $0x410] sm:$0xff]
        %v1987 = vld [vmem:[%s1807 + $0x418] sm:$0xff]
        %v1988 = vld [vmem:[%s1807 + $0x420] sm:$0xff]
        %v1989 = vld [vmem:[%s1807 + $0x428] sm:$0xff]
        %v1990 = vld [vmem:[%s1807 + $0x430] sm:$0xff]
        %v1991 = vld [vmem:[%s1807 + $0x438] sm:$0xff]
        %v1992 = vld [vmem:[%s1807 + $0x440] sm:$0xff]
        %v1993 = vld [vmem:[%s1807 + $0x448] sm:$0xff]
        %v1994 = vld [vmem:[%s1807 + $0x450] sm:$0xff]
        %v1995 = vld [vmem:[%s1807 + $0x458] sm:$0xff]
        %v1996 = vld [vmem:[%s1807 + $0x460] sm:$0xff]
        %v1997 = vld [vmem:[%s1807 + $0x468] sm:$0xff]
        %v1998 = vld [vmem:[%s1807 + $0x470] sm:$0xff]
        %v1999 = vld [vmem:[%s1807 + $0x478] sm:$0xff]
        %v2000 = vld [vmem:[%s1807 + $0x480] sm:$0xff]
        %v2001 = vld [vmem:[%s1807 + $0x488] sm:$0xff]
        %v2002 = vld [vmem:[%s1807 + $0x490] sm:$0xff]
        %v2003 = vld [vmem:[%s1807 + $0x498] sm:$0xff]
        %v2004 = vld [vmem:[%s1807 + $0x4a0] sm:$0xff]
        %v2005 = vld [vmem:[%s1807 + $0x4a8] sm:$0xff]
        %v2006 = vld [vmem:[%s1807 + $0x4b0] sm:$0xff]
        %v2007 = vld [vmem:[%s1807 + $0x4b8] sm:$0xff]
        %v2008 = vld [vmem:[%s1807 + $0x4c0] sm:$0xff]
        %v2009 = vld [vmem:[%s1807 + $0x4c8] sm:$0xff]
        %v2010 = vld [vmem:[%s1807 + $0x4d0] sm:$0xff]
        %v2011 = vld [vmem:[%s1807 + $0x4d8] sm:$0xff]
        %v2012 = vld [vmem:[%s1807 + $0x4e0] sm:$0xff]
        %v2013 = vld [vmem:[%s1807 + $0x4e8] sm:$0xff]
        %v2014 = vld [vmem:[%s1807 + $0x4f0] sm:$0xff]
        %v2015 = vld [vmem:[%s1807 + $0x4f8] sm:$0xff]
        %v2016 = vld [vmem:[%s1807 + $0x500] sm:$0xff]
        %v2017 = vld [vmem:[%s1807 + $0x508] sm:$0xff]
        %v2018 = vld [vmem:[%s1807 + $0x510] sm:$0xff]
        %v2019 = vld [vmem:[%s1807 + $0x518] sm:$0xff]
        %v2020 = vld [vmem:[%s1807 + $0x520] sm:$0xff]
        %v2021 = vld [vmem:[%s1807 + $0x528] sm:$0xff]
        %v2022 = vld [vmem:[%s1807 + $0x530] sm:$0xff]
        %v2023 = vld [vmem:[%s1807 + $0x538] sm:$0xff]
        %v2024 = vld [vmem:[%s1807 + $0x540] sm:$0xff]
        %v2025 = vld [vmem:[%s1807 + $0x548] sm:$0xff]
        %v2026 = vld [vmem:[%s1807 + $0x550] sm:$0xff]
        %v2027 = vld [vmem:[%s1807 + $0x558] sm:$0xff]
        %v2028 = vld [vmem:[%s1807 + $0x560] sm:$0xff]
        %v2029 = vld [vmem:[%s1807 + $0x568] sm:$0xff]
        %v2030 = vld [vmem:[%s1807 + $0x570] sm:$0xff]
        %v2031 = vld [vmem:[%s1807 + $0x578] sm:$0xff]
        %v2032 = vld [vmem:[%s1807 + $0x580] sm:$0xff]
        %v2033 = vld [vmem:[%s1807 + $0x588] sm:$0xff]
        %v2034 = vld [vmem:[%s1807 + $0x590] sm:$0xff]
        %v2035 = vld [vmem:[%s1807 + $0x598] sm:$0xff]
        %v2036 = vld [vmem:[%s1807 + $0x5a0] sm:$0xff]
        %v2037 = vld [vmem:[%s1807 + $0x5a8] sm:$0xff]
        %v2038 = vld [vmem:[%s1807 + $0x5b0] sm:$0xff]
        %v2039 = vld [vmem:[%s1807 + $0x5b8] sm:$0xff]
        %v2040 = vld [vmem:[%s1807 + $0x5c0] sm:$0xff]
        %v2041 = vld [vmem:[%s1807 + $0x5c8] sm:$0xff]
        %v2042 = vld [vmem:[%s1807 + $0x5d0] sm:$0xff]
        %v2043 = vld [vmem:[%s1807 + $0x5d8] sm:$0xff]
        %v2044 = vld [vmem:[%s1807 + $0x5e0] sm:$0xff]
        %v2045 = vld [vmem:[%s1807 + $0x5e8] sm:$0xff]
        %v2046 = vld [vmem:[%s1807 + $0x5f0] sm:$0xff]
        %v2047 = vld [vmem:[%s1807 + $0x5f8] sm:$0xff]
        %v2048 = vld [vmem:[%s1807 + $0x600] sm:$0xff]
        %v2049 = vld [vmem:[%s1807 + $0x608] sm:$0xff]
        %v2050 = vld [vmem:[%s1807 + $0x610] sm:$0xff]
        %v2051 = vld [vmem:[%s1807 + $0x618] sm:$0xff]
        %v2052 = vld [vmem:[%s1807 + $0x620] sm:$0xff]
        %v2053 = vld [vmem:[%s1807 + $0x628] sm:$0xff]
        %v2054 = vld [vmem:[%s1807 + $0x630] sm:$0xff]
        %v2055 = vld [vmem:[%s1807 + $0x638] sm:$0xff]
        %v2056 = vld [vmem:[%s1807 + $0x640] sm:$0xff]
        %v2057 = vld [vmem:[%s1807 + $0x648] sm:$0xff]
        %v2058 = vld [vmem:[%s1807 + $0x650] sm:$0xff]
        %v2059 = vld [vmem:[%s1807 + $0x658] sm:$0xff]
        %v2060 = vld [vmem:[%s1807 + $0x660] sm:$0xff]
        %v2061 = vld [vmem:[%s1807 + $0x668] sm:$0xff]
        %v2062 = vld [vmem:[%s1807 + $0x670] sm:$0xff]
        %v2063 = vld [vmem:[%s1807 + $0x678] sm:$0xff]
        %v2064 = vld [vmem:[%s1807 + $0x680] sm:$0xff]
        %v2065 = vld [vmem:[%s1807 + $0x688] sm:$0xff]
        %v2066 = vld [vmem:[%s1807 + $0x690] sm:$0xff]
        %v2067 = vld [vmem:[%s1807 + $0x698] sm:$0xff]
        %v2068 = vld [vmem:[%s1807 + $0x6a0] sm:$0xff]
        %v2069 = vld [vmem:[%s1807 + $0x6a8] sm:$0xff]
        %v2070 = vld [vmem:[%s1807 + $0x6b0] sm:$0xff]
        %v2071 = vld [vmem:[%s1807 + $0x6b8] sm:$0xff]
        %v2072 = vld [vmem:[%s1807 + $0x6c0] sm:$0xff]
        %v2073 = vld [vmem:[%s1807 + $0x6c8] sm:$0xff]
        %v2074 = vld [vmem:[%s1807 + $0x6d0] sm:$0xff]
        %v2075 = vld [vmem:[%s1807 + $0x6d8] sm:$0xff]
        %v2076 = vld [vmem:[%s1807 + $0x6e0] sm:$0xff]
        %v2077 = vld [vmem:[%s1807 + $0x6e8] sm:$0xff]
        %v2078 = vld [vmem:[%s1807 + $0x6f0] sm:$0xff]
        %v2079 = vld [vmem:[%s1807 + $0x6f8] sm:$0xff]
        %v2080 = vld [vmem:[%s1807 + $0x700] sm:$0xff]
        %v2081 = vld [vmem:[%s1807 + $0x708] sm:$0xff]
        %v2082 = vld [vmem:[%s1807 + $0x710] sm:$0xff]
        %v2083 = vld [vmem:[%s1807 + $0x718] sm:$0xff]
        %v2084 = vld [vmem:[%s1807 + $0x720] sm:$0xff]
        %v2085 = vld [vmem:[%s1807 + $0x728] sm:$0xff]
        %v2086 = vld [vmem:[%s1807 + $0x730] sm:$0xff]
        %v2087 = vld [vmem:[%s1807 + $0x738] sm:$0xff]
        %v2088 = vld [vmem:[%s1807 + $0x740] sm:$0xff]
        %v2089 = vld [vmem:[%s1807 + $0x748] sm:$0xff]
        %v2090 = vld [vmem:[%s1807 + $0x750] sm:$0xff]
        %v2091 = vld [vmem:[%s1807 + $0x758] sm:$0xff]
        %v2092 = vld [vmem:[%s1807 + $0x760] sm:$0xff]
        %v2093 = vld [vmem:[%s1807 + $0x768] sm:$0xff]
        %v2094 = vld [vmem:[%s1807 + $0x770] sm:$0xff]
        %v2095 = vld [vmem:[%s1807 + $0x778] sm:$0xff]
        %v2096 = vld [vmem:[%s1807 + $0x780] sm:$0xff]
        %v2097 = vld [vmem:[%s1807 + $0x788] sm:$0xff]
        %v2098 = vld [vmem:[%s1807 + $0x790] sm:$0xff]
        %v2099 = vld [vmem:[%s1807 + $0x798] sm:$0xff]
        %v2100 = vld [vmem:[%s1807 + $0x7a0] sm:$0xff]
        %v2101 = vld [vmem:[%s1807 + $0x7a8] sm:$0xff]
        %v2102 = vld [vmem:[%s1807 + $0x7b0] sm:$0xff]
        %v2103 = vld [vmem:[%s1807 + $0x7b8] sm:$0xff]
        %v2104 = vld [vmem:[%s1807 + $0x7c0] sm:$0xff]
        %v2105 = vld [vmem:[%s1807 + $0x7c8] sm:$0xff]
        %v2106 = vld [vmem:[%s1807 + $0x7d0] sm:$0xff]
        %v2107 = vld [vmem:[%s1807 + $0x7d8] sm:$0xff]
        %v2108 = vld [vmem:[%s1807 + $0x7e0] sm:$0xff]
        %v2109 = vld [vmem:[%s1807 + $0x7e8] sm:$0xff]
        %v2110 = vld [vmem:[%s1807 + $0x7f0] sm:$0xff]
        %v2111 = vld [vmem:[%s1807 + $0x7f8] sm:$0xff]
        %v2112 = vld [vmem:[%s1807 + $0x800] sm:$0xff]
        %v2113 = vld [vmem:[%s1807 + $0x808] sm:$0xff]
        %v2114 = vld [vmem:[%s1807 + $0x810] sm:$0xff]
        %v2115 = vld [vmem:[%s1807 + $0x818] sm:$0xff]
        %v2116 = vld [vmem:[%s1807 + $0x820] sm:$0xff]
        %v2117 = vld [vmem:[%s1807 + $0x828] sm:$0xff]
        %v2118 = vld [vmem:[%s1807 + $0x830] sm:$0xff]
        %v2119 = vld [vmem:[%s1807 + $0x838] sm:$0xff]
        %v2120 = vld [vmem:[%s1807 + $0x840] sm:$0xff]
        %v2121 = vld [vmem:[%s1807 + $0x848] sm:$0xff]
        %v2122 = vld [vmem:[%s1807 + $0x850] sm:$0xff]
        %v2123 = vld [vmem:[%s1807 + $0x858] sm:$0xff]
        %v2124 = vld [vmem:[%s1807 + $0x860] sm:$0xff]
        %v2125 = vld [vmem:[%s1807 + $0x868] sm:$0xff]
        %v2126 = vld [vmem:[%s1807 + $0x870] sm:$0xff]
        %v2127 = vld [vmem:[%s1807 + $0x878] sm:$0xff]
        %v2128 = vld [vmem:[%s1807 + $0x880] sm:$0xff]
        %v2129 = vld [vmem:[%s1807 + $0x888] sm:$0xff]
        %v2130 = vld [vmem:[%s1807 + $0x890] sm:$0xff]
        %v2131 = vld [vmem:[%s1807 + $0x898] sm:$0xff]
        %v2132 = vld [vmem:[%s1807 + $0x8a0] sm:$0xff]
        %v2133 = vld [vmem:[%s1807 + $0x8a8] sm:$0xff]
        %v2134 = vld [vmem:[%s1807 + $0x8b0] sm:$0xff]
        %v2135 = vld [vmem:[%s1807 + $0x8b8] sm:$0xff]
        %v2136 = vld [vmem:[%s1807 + $0x8c0] sm:$0xff]
        %v2137 = vld [vmem:[%s1807 + $0x8c8] sm:$0xff]
        %v2138 = vld [vmem:[%s1807 + $0x8d0] sm:$0xff]
        %v2139 = vld [vmem:[%s1807 + $0x8d8] sm:$0xff]
        %v2140 = vld [vmem:[%s1807 + $0x8e0] sm:$0xff]
        %v2141 = vld [vmem:[%s1807 + $0x8e8] sm:$0xff]
        %v2142 = vld [vmem:[%s1807 + $0x8f0] sm:$0xff]
        %v2143 = vld [vmem:[%s1807 + $0x8f8] sm:$0xff]
        %v2144 = vld [vmem:[%s1807 + $0x900] sm:$0xff]
        %v2145 = vld [vmem:[%s1807 + $0x908] sm:$0xff]
        %v2146 = vld [vmem:[%s1807 + $0x910] sm:$0xff]
        %v2147 = vld [vmem:[%s1807 + $0x918] sm:$0xff]
        %v2148 = vld [vmem:[%s1807 + $0x920] sm:$0xff]
        %v2149 = vld [vmem:[%s1807 + $0x928] sm:$0xff]
        %v2150 = vld [vmem:[%s1807 + $0x930] sm:$0xff]
        %v2151 = vld [vmem:[%s1807 + $0x938] sm:$0xff]
        %v2152 = vld [vmem:[%s1807 + $0x940] sm:$0xff]
        %v2153 = vld [vmem:[%s1807 + $0x948] sm:$0xff]
        %v2154 = vld [vmem:[%s1807 + $0x950] sm:$0xff]
        %v2155 = vld [vmem:[%s1807 + $0x958] sm:$0xff]
        %v2156 = vld [vmem:[%s1807 + $0x960] sm:$0xff]
        %v2157 = vld [vmem:[%s1807 + $0x968] sm:$0xff]
        %v2158 = vld [vmem:[%s1807 + $0x970] sm:$0xff]
        %v2159 = vld [vmem:[%s1807 + $0x978] sm:$0xff]
        %v2160 = vld [vmem:[%s1807 + $0x980] sm:$0xff]
        %v2161 = vld [vmem:[%s1807 + $0x988] sm:$0xff]
        %v2162 = vld [vmem:[%s1807 + $0x990] sm:$0xff]
        %v2163 = vld [vmem:[%s1807 + $0x998] sm:$0xff]
        %v2164 = vld [vmem:[%s1807 + $0x9a0] sm:$0xff]
        %v2165 = vld [vmem:[%s1807 + $0x9a8] sm:$0xff]
        %v2166 = vld [vmem:[%s1807 + $0x9b0] sm:$0xff]
        %v2167 = vld [vmem:[%s1807 + $0x9b8] sm:$0xff]
        %v2168 = vld [vmem:[%s1807 + $0x9c0] sm:$0xff]
        %v2169 = vld [vmem:[%s1807 + $0x9c8] sm:$0xff]
        %v2170 = vld [vmem:[%s1807 + $0x9d0] sm:$0xff]
        %v2171 = vld [vmem:[%s1807 + $0x9d8] sm:$0xff]
        %v2172 = vld [vmem:[%s1807 + $0x9e0] sm:$0xff]
        %v2173 = vld [vmem:[%s1807 + $0x9e8] sm:$0xff]
        %v2174 = vld [vmem:[%s1807 + $0x9f0] sm:$0xff]
        %v2175 = vld [vmem:[%s1807 + $0x9f8] sm:$0xff]
        %v2176 = vld [vmem:[%s1807 + $0xa00] sm:$0xff]
        %v2177 = vld [vmem:[%s1807 + $0xa08] sm:$0xff]
        %v2178 = vld [vmem:[%s1807 + $0xa10] sm:$0xff]
        %v2179 = vld [vmem:[%s1807 + $0xa18] sm:$0xff]
        %v2180 = vld [vmem:[%s1807 + $0xa20] sm:$0xff]
        %v2181 = vld [vmem:[%s1807 + $0xa28] sm:$0xff]
        %v2182 = vld [vmem:[%s1807 + $0xa30] sm:$0xff]
        %v2183 = vld [vmem:[%s1807 + $0xa38] sm:$0xff]
        %v2184 = vld [vmem:[%s1807 + $0xa40] sm:$0xff]
        %v2185 = vld [vmem:[%s1807 + $0xa48] sm:$0xff]
        %v2186 = vld [vmem:[%s1807 + $0xa50] sm:$0xff]
        %v2187 = vld [vmem:[%s1807 + $0xa58] sm:$0xff]
        %v2188 = vld [vmem:[%s1807 + $0xa60] sm:$0xff]
        %v2189 = vld [vmem:[%s1807 + $0xa68] sm:$0xff]
        %v2190 = vld [vmem:[%s1807 + $0xa70] sm:$0xff]
        %v2191 = vld [vmem:[%s1807 + $0xa78] sm:$0xff]
        %v2192 = vld [vmem:[%s1807 + $0xa80] sm:$0xff]
        %v2193 = vld [vmem:[%s1807 + $0xa88] sm:$0xff]
        %v2194 = vld [vmem:[%s1807 + $0xa90] sm:$0xff]
        %v2195 = vld [vmem:[%s1807 + $0xa98] sm:$0xff]
        %v2196 = vld [vmem:[%s1807 + $0xaa0] sm:$0xff]
        %v2197 = vld [vmem:[%s1807 + $0xaa8] sm:$0xff]
        %v2198 = vld [vmem:[%s1807 + $0xab0] sm:$0xff]
        %v2199 = vld [vmem:[%s1807 + $0xab8] sm:$0xff]
        %v2200 = vld [vmem:[%s1807 + $0xac0] sm:$0xff]
        %v2201 = vld [vmem:[%s1807 + $0xac8] sm:$0xff]
        %v2202 = vld [vmem:[%s1807 + $0xad0] sm:$0xff]
        %v2203 = vld [vmem:[%s1807 + $0xad8] sm:$0xff]
        %v2204 = vld [vmem:[%s1807 + $0xae0] sm:$0xff]
        %v2205 = vld [vmem:[%s1807 + $0xae8] sm:$0xff]
        %v2206 = vld [vmem:[%s1807 + $0xaf0] sm:$0xff]
        %v2207 = vld [vmem:[%s1807 + $0xaf8] sm:$0xff]
        %v2208 = vld [vmem:[%s1807 + $0xb00] sm:$0xff]
        %v2209 = vld [vmem:[%s1807 + $0xb08] sm:$0xff]
        %v2210 = vld [vmem:[%s1807 + $0xb10] sm:$0xff]
        %v2211 = vld [vmem:[%s1807 + $0xb18] sm:$0xff]
        %v2212 = vld [vmem:[%s1807 + $0xb20] sm:$0xff]
        %v2213 = vld [vmem:[%s1807 + $0xb28] sm:$0xff]
        %v2214 = vld [vmem:[%s1807 + $0xb30] sm:$0xff]
        %v2215 = vld [vmem:[%s1807 + $0xb38] sm:$0xff]
        %v2216 = vld [vmem:[%s1807 + $0xb40] sm:$0xff]
        %v2217 = vld [vmem:[%s1807 + $0xb48] sm:$0xff]
        %v2218 = vld [vmem:[%s1807 + $0xb50] sm:$0xff]
        %v2219 = vld [vmem:[%s1807 + $0xb58] sm:$0xff]
        %v2220 = vld [vmem:[%s1807 + $0xb60] sm:$0xff]
        %v2221 = vld [vmem:[%s1807 + $0xb68] sm:$0xff]
        %v2222 = vld [vmem:[%s1807 + $0xb70] sm:$0xff]
        %v2223 = vld [vmem:[%s1807 + $0xb78] sm:$0xff]
        %v2224 = vld [vmem:[%s1807 + $0xb80] sm:$0xff]
        %v2225 = vld [vmem:[%s1807 + $0xb88] sm:$0xff]
        %v2226 = vld [vmem:[%s1807 + $0xb90] sm:$0xff]
        %v2227 = vld [vmem:[%s1807 + $0xb98] sm:$0xff]
        %v2228 = vld [vmem:[%s1807 + $0xba0] sm:$0xff]
        %v2229 = vld [vmem:[%s1807 + $0xba8] sm:$0xff]
        %v2230 = vld [vmem:[%s1807 + $0xbb0] sm:$0xff]
        %v2231 = vld [vmem:[%s1807 + $0xbb8] sm:$0xff]
        %v2232 = vld [vmem:[%s1807 + $0xbc0] sm:$0xff]
        %v2233 = vld [vmem:[%s1807 + $0xbc8] sm:$0xff]
        %v2234 = vld [vmem:[%s1807 + $0xbd0] sm:$0xff]
        %v2235 = vld [vmem:[%s1807 + $0xbd8] sm:$0xff]
        %v2236 = vld [vmem:[%s1807 + $0xbe0] sm:$0xff]
        %v2237 = vld [vmem:[%s1807 + $0xbe8] sm:$0xff]
        %v2238 = vld [vmem:[%s1807 + $0xbf0] sm:$0xff]
        %v2239 = vld [vmem:[%s1807 + $0xbf8] sm:$0xff]
        %v2240 = vld [vmem:[%s1807 + $0xc00] sm:$0xff]
        %v2241 = vld [vmem:[%s1807 + $0xc08] sm:$0xff]
        %v2242 = vld [vmem:[%s1807 + $0xc10] sm:$0xff]
        %v2243 = vld [vmem:[%s1807 + $0xc18] sm:$0xff]
        %v2244 = vld [vmem:[%s1807 + $0xc20] sm:$0xff]
        %v2245 = vld [vmem:[%s1807 + $0xc28] sm:$0xff]
        %v2246 = vld [vmem:[%s1807 + $0xc30] sm:$0xff]
        %v2247 = vld [vmem:[%s1807 + $0xc38] sm:$0xff]
        %v2248 = vld [vmem:[%s1837] sm:$0x1]
        %v2250 = vlaneseq
        %v2251 = vshrl.u32 %v2250, 7
        %v2252 = vsub.s32 0, %v2251
        %v2253 = vrot.slane %v2248, %v2252
        %v2262 = vcombine.high %v1849, %v1849
        %v2264 = vunpack.c.l.s4 1983009808
        %v2265 = vunpack.c.0.s8 %v2264
        %v2266 = vlaneseq
        %v2267 = vshrl.u32 %v2266, 7
        %v2268 = vsub.s32 %v2265, %v2267
        %v2269 = vrot.slane %v1849, %v2268
        %v2271 = vunpack.c.l.s4 1983009808
        %v2272 = vunpack.c.0.s8 %v2271
        %v2273 = vlaneseq
        %v2274 = vshrl.u32 %v2273, 7
        %v2275 = vsub.s32 %v2272, %v2274
        %v2276 = vrot.slane %v2262, %v2275
        %v2277 = vcombine.high %v2269, %v2269
        %v2278 = vcombine.high %v2276, %v2276
        %v2279 = vcombine.high %v1850, %v1850
        %v2281 = vunpack.c.l.s4 1983009808
        %v2282 = vunpack.c.0.s8 %v2281
        %v2283 = vlaneseq
        %v2284 = vshrl.u32 %v2283, 7
        %v2285 = vsub.s32 %v2282, %v2284
        %v2286 = vrot.slane %v1850, %v2285
        %v2288 = vunpack.c.l.s4 1983009808
        %v2289 = vunpack.c.0.s8 %v2288
        %v2290 = vlaneseq
        %v2291 = vshrl.u32 %v2290, 7
        %v2292 = vsub.s32 %v2289, %v2291
        %v2293 = vrot.slane %v2279, %v2292
        %v2294 = vcombine.high %v2286, %v2286
        %v2295 = vcombine.high %v2293, %v2293
        %v2296 = vcombine.high %v1851, %v1851
        %v2298 = vunpack.c.l.s4 1983009808
        %v2299 = vunpack.c.0.s8 %v2298
        %v2300 = vlaneseq
        %v2301 = vshrl.u32 %v2300, 7
        %v2302 = vsub.s32 %v2299, %v2301
        %v2303 = vrot.slane %v1851, %v2302
        %v2305 = vunpack.c.l.s4 1983009808
        %v2306 = vunpack.c.0.s8 %v2305
        %v2307 = vlaneseq
        %v2308 = vshrl.u32 %v2307, 7
        %v2309 = vsub.s32 %v2306, %v2308
        %v2310 = vrot.slane %v2296, %v2309
        %v2311 = vcombine.high %v2303, %v2303
        %v2312 = vcombine.high %v2310, %v2310
        %v2313 = vcombine.high %v1852, %v1852
        %v2315 = vunpack.c.l.s4 1983009808
        %v2316 = vunpack.c.0.s8 %v2315
        %v2317 = vlaneseq
        %v2318 = vshrl.u32 %v2317, 7
        %v2319 = vsub.s32 %v2316, %v2318
        %v2320 = vrot.slane %v1852, %v2319
        %v2322 = vunpack.c.l.s4 1983009808
        %v2323 = vunpack.c.0.s8 %v2322
        %v2324 = vlaneseq
        %v2325 = vshrl.u32 %v2324, 7
        %v2326 = vsub.s32 %v2323, %v2325
        %v2327 = vrot.slane %v2313, %v2326
        %v2328 = vcombine.high %v2320, %v2320
        %v2329 = vcombine.high %v2327, %v2327
        %v2330 = vcombine.high %v1853, %v1853
        %v2332 = vunpack.c.l.s4 1983009808
        %v2333 = vunpack.c.0.s8 %v2332
        %v2334 = vlaneseq
        %v2335 = vshrl.u32 %v2334, 7
        %v2336 = vsub.s32 %v2333, %v2335
        %v2337 = vrot.slane %v1853, %v2336
        %v2339 = vunpack.c.l.s4 1983009808
        %v2340 = vunpack.c.0.s8 %v2339
        %v2341 = vlaneseq
        %v2342 = vshrl.u32 %v2341, 7
        %v2343 = vsub.s32 %v2340, %v2342
        %v2344 = vrot.slane %v2330, %v2343
        %v2345 = vcombine.high %v2337, %v2337
        %v2346 = vcombine.high %v2344, %v2344
        %v2347 = vcombine.high %v1854, %v1854
        %v2349 = vunpack.c.l.s4 1983009808
        %v2350 = vunpack.c.0.s8 %v2349
        %v2351 = vlaneseq
        %v2352 = vshrl.u32 %v2351, 7
        %v2353 = vsub.s32 %v2350, %v2352
        %v2354 = vrot.slane %v1854, %v2353
        %v2356 = vunpack.c.l.s4 1983009808
        %v2357 = vunpack.c.0.s8 %v2356
        %v2358 = vlaneseq
        %v2359 = vshrl.u32 %v2358, 7
        %v2360 = vsub.s32 %v2357, %v2359
        %v2361 = vrot.slane %v2347, %v2360
        %v2362 = vcombine.high %v2354, %v2354
        %v2363 = vcombine.high %v2361, %v2361
        %v2365 = vunpack.c.l.s4 1983009808
        %v2366 = vunpack.c.0.s8 %v2365
        %v2367 = vlaneseq
        %v2368 = vshrl.u32 %v2367, 7
        %v2369 = vsub.s32 %v2366, %v2368
        %v2370 = vrot.slane %v1855, %v2369
        %vm2395 = vcmask 523264
        %v2396 = vsel %vm2395, %v2370, 0
        %2398 = vmatprep.subr.mxu0 0.0
        %2399 = vmatpush1.msra.mxu0 %v1856
        %2400 = vmatprep.subr.mxu0 0.0
        %2401 = vmatpush1.msra.mxu0 %v1857
        %2402 = vmatprep.subr.mxu0 0.0
        %2403 = vmatpush1.msra.mxu0 %v1858
        %2404 = vmatprep.subr.mxu0 0.0
        %2405 = vmatpush1.msra.mxu0 %v1859
        %2406 = vmatprep.subr.mxu0 0.0
        %2407 = vmatpush1.msra.mxu0 %v1860
        %2408 = vmatprep.subr.mxu0 0.0
        %2409 = vmatpush1.msra.mxu0 %v1861
        %2410 = vmatprep.subr.mxu0 0.0
        %2411 = vmatpush1.msra.mxu0 %v1862
        %2412 = vmatprep.subr.mxu0 0.0
        %2413 = vmatpush1.msra.mxu0 %v1863
        %2414 = vmatprep.subr.mxu0 0.0
        %2415 = vmatpush1.msra.mxu0 %v1864
        %2416 = vmatprep.subr.mxu0 0.0
        %2417 = vmatpush1.msra.mxu0 %v1865
        %2418 = vmatprep.subr.mxu0 0.0
        %2419 = vmatpush1.msra.mxu0 %v1866
        %2420 = vmatprep.subr.mxu0 0.0
        %2421 = vmatpush1.msra.mxu0 %v1867
        %2422 = vmatprep.subr.mxu0 0.0
        %2423 = vmatpush1.msra.mxu0 %v1868
        %2424 = vmatprep.subr.mxu0 0.0
        %2425 = vmatpush1.msra.mxu0 %v1869
        %2426 = vmatprep.subr.mxu0 0.0
        %2427 = vmatpush1.msra.mxu0 %v1870
        %2428 = vmatprep.subr.mxu0 0.0
        %2429 = vmatpush1.msra.mxu0 %v1871
        %2430 = vmatprep.subr.mxu0 0.0
        %2431 = vmatpush1.msra.mxu0 %v1872
        %2432 = vmatprep.subr.mxu0 0.0
        %2433 = vmatpush1.msra.mxu0 %v1873
        %2434 = vmatprep.subr.mxu0 0.0
        %2435 = vmatpush1.msra.mxu0 %v1874
        %2436 = vmatprep.subr.mxu0 0.0
        %2437 = vmatpush1.msra.mxu0 %v1875
        %2438 = vmatprep.subr.mxu0 0.0
        %2439 = vmatpush1.msra.mxu0 %v1876
        %2440 = vmatprep.subr.mxu0 0.0
        %2441 = vmatpush1.msra.mxu0 %v1877
        %2442 = vmatprep.subr.mxu0 0.0
        %2443 = vmatpush1.msra.mxu0 %v1878
        %2444 = vmatprep.subr.mxu0 0.0
        %2445 = vmatpush1.msra.mxu0 %v1879
        %2446 = vmatprep.subr.mxu0 0.0
        %2447 = vmatpush1.msra.mxu0 %v1880
        %2448 = vmatprep.subr.mxu0 0.0
        %2449 = vmatpush1.msra.mxu0 %v1881
        %2450 = vmatprep.subr.mxu0 0.0
        %2451 = vmatpush1.msra.mxu0 %v1882
        %2452 = vmatprep.subr.mxu0 0.0
        %2453 = vmatpush1.msra.mxu0 %v1883
        %2454 = vmatprep.subr.mxu0 0.0
        %2455 = vmatpush1.msra.mxu0 %v1884
        %2456 = vmatprep.subr.mxu0 0.0
        %2457 = vmatpush1.msra.mxu0 %v1885
        %2458 = vmatprep.subr.mxu0 0.0
        %2459 = vmatpush1.msra.mxu0 %v1886
        %2460 = vmatprep.subr.mxu0 0.0
        %2461 = vmatpush1.msra.mxu0 %v1887
        %2462 = vmatprep.mubr.f32.mxu0 %v2277
        %2463 = vmatmul.mubr.f32.gmra.mrb[0].mxu0 %v2269
        %v2464 = vpop.f32.mrb[0].mxu0
        %v2465 = vadd.f32 %v2253, %v2464
        %v2466 = vpop.f32.mrb[0].mxu0
        %2467 = vdwg.mxu0
        %2468 = vmatprep.subr.mxu0 0.0
        %2469 = vmatpush1.msra.mxu0 %v1888
        %2470 = vmatprep.subr.mxu0 0.0
        %2471 = vmatpush1.msra.mxu0 %v1889
        %2472 = vmatprep.subr.mxu0 0.0
        %2473 = vmatpush1.msra.mxu0 %v1890
        %2474 = vmatprep.subr.mxu0 0.0
        %2475 = vmatpush1.msra.mxu0 %v1891
        %2476 = vmatprep.subr.mxu0 0.0
        %2477 = vmatpush1.msra.mxu0 %v1892
        %2478 = vmatprep.subr.mxu0 0.0
        %2479 = vmatpush1.msra.mxu0 %v1893
        %2480 = vmatprep.subr.mxu0 0.0
        %2481 = vmatpush1.msra.mxu0 %v1894
        %2482 = vmatprep.subr.mxu0 0.0
        %2483 = vmatpush1.msra.mxu0 %v1895
        %2484 = vmatprep.subr.mxu0 0.0
        %2485 = vmatpush1.msra.mxu0 %v1896
        %2486 = vmatprep.subr.mxu0 0.0
        %2487 = vmatpush1.msra.mxu0 %v1897
        %2488 = vmatprep.subr.mxu0 0.0
        %2489 = vmatpush1.msra.mxu0 %v1898
        %2490 = vmatprep.subr.mxu0 0.0
        %2491 = vmatpush1.msra.mxu0 %v1899
        %2492 = vmatprep.subr.mxu0 0.0
        %2493 = vmatpush1.msra.mxu0 %v1900
        %2494 = vmatprep.subr.mxu0 0.0
        %2495 = vmatpush1.msra.mxu0 %v1901
        %2496 = vmatprep.subr.mxu0 0.0
        %2497 = vmatpush1.msra.mxu0 %v1902
        %2498 = vmatprep.subr.mxu0 0.0
        %2499 = vmatpush1.msra.mxu0 %v1903
        %2500 = vmatprep.subr.mxu0 0.0
        %2501 = vmatpush1.msra.mxu0 %v1904
        %2502 = vmatprep.subr.mxu0 0.0
        %2503 = vmatpush1.msra.mxu0 %v1905
        %2504 = vmatprep.subr.mxu0 0.0
        %2505 = vmatpush1.msra.mxu0 %v1906
        %2506 = vmatprep.subr.mxu0 0.0
        %2507 = vmatpush1.msra.mxu0 %v1907
        %2508 = vmatprep.subr.mxu0 0.0
        %2509 = vmatpush1.msra.mxu0 %v1908
        %2510 = vmatprep.subr.mxu0 0.0
        %2511 = vmatpush1.msra.mxu0 %v1909
        %2512 = vmatprep.subr.mxu0 0.0
        %2513 = vmatpush1.msra.mxu0 %v1910
        %2514 = vmatprep.subr.mxu0 0.0
        %2515 = vmatpush1.msra.mxu0 %v1911
        %2516 = vmatprep.subr.mxu0 0.0
        %2517 = vmatpush1.msra.mxu0 %v1912
        %2518 = vmatprep.subr.mxu0 0.0
        %2519 = vmatpush1.msra.mxu0 %v1913
        %2520 = vmatprep.subr.mxu0 0.0
        %2521 = vmatpush1.msra.mxu0 %v1914
        %2522 = vmatprep.subr.mxu0 0.0
        %2523 = vmatpush1.msra.mxu0 %v1915
        %2524 = vmatprep.subr.mxu0 0.0
        %2525 = vmatpush1.msra.mxu0 %v1916
        %2526 = vmatprep.subr.mxu0 0.0
        %2527 = vmatpush1.msra.mxu0 %v1917
        %2528 = vmatprep.subr.mxu0 0.0
        %2529 = vmatpush1.msra.mxu0 %v1918
        %2530 = vmatprep.subr.mxu0 0.0
        %2531 = vmatpush1.msra.mxu0 %v1919
        %2532 = vmatprep.mubr.f32.mxu0 %v2278
        %2533 = vmatmul.mubr.f32.gmra.mrb[0].mxu0 %v2276
        %v2534 = vpop.f32.mrb[0].mxu0
        %v2535 = vadd.f32 %v2465, %v2534
        %v2536 = vpop.f32.mrb[0].mxu0
        %2537 = vdwg.mxu0
        %2538 = vmatprep.subr.mxu0 0.0
        %2539 = vmatpush1.msra.mxu0 %v1920
        %2540 = vmatprep.subr.mxu0 0.0
        %2541 = vmatpush1.msra.mxu0 %v1921
        %2542 = vmatprep.subr.mxu0 0.0
        %2543 = vmatpush1.msra.mxu0 %v1922
        %2544 = vmatprep.subr.mxu0 0.0
        %2545 = vmatpush1.msra.mxu0 %v1923
        %2546 = vmatprep.subr.mxu0 0.0
        %2547 = vmatpush1.msra.mxu0 %v1924
        %2548 = vmatprep.subr.mxu0 0.0
        %2549 = vmatpush1.msra.mxu0 %v1925
        %2550 = vmatprep.subr.mxu0 0.0
        %2551 = vmatpush1.msra.mxu0 %v1926
        %2552 = vmatprep.subr.mxu0 0.0
        %2553 = vmatpush1.msra.mxu0 %v1927
        %2554 = vmatprep.subr.mxu0 0.0
        %2555 = vmatpush1.msra.mxu0 %v1928
        %2556 = vmatprep.subr.mxu0 0.0
        %2557 = vmatpush1.msra.mxu0 %v1929
        %2558 = vmatprep.subr.mxu0 0.0
        %2559 = vmatpush1.msra.mxu0 %v1930
        %2560 = vmatprep.subr.mxu0 0.0
        %2561 = vmatpush1.msra.mxu0 %v1931
        %2562 = vmatprep.subr.mxu0 0.0
        %2563 = vmatpush1.msra.mxu0 %v1932
        %2564 = vmatprep.subr.mxu0 0.0
        %2565 = vmatpush1.msra.mxu0 %v1933
        %2566 = vmatprep.subr.mxu0 0.0
        %2567 = vmatpush1.msra.mxu0 %v1934
        %2568 = vmatprep.subr.mxu0 0.0
        %2569 = vmatpush1.msra.mxu0 %v1935
        %2570 = vmatprep.subr.mxu0 0.0
        %2571 = vmatpush1.msra.mxu0 %v1936
        %2572 = vmatprep.subr.mxu0 0.0
        %2573 = vmatpush1.msra.mxu0 %v1937
        %2574 = vmatprep.subr.mxu0 0.0
        %2575 = vmatpush1.msra.mxu0 %v1938
        %2576 = vmatprep.subr.mxu0 0.0
        %2577 = vmatpush1.msra.mxu0 %v1939
        %2578 = vmatprep.subr.mxu0 0.0
        %2579 = vmatpush1.msra.mxu0 %v1940
        %2580 = vmatprep.subr.mxu0 0.0
        %2581 = vmatpush1.msra.mxu0 %v1941
        %2582 = vmatprep.subr.mxu0 0.0
        %2583 = vmatpush1.msra.mxu0 %v1942
        %2584 = vmatprep.subr.mxu0 0.0
        %2585 = vmatpush1.msra.mxu0 %v1943
        %2586 = vmatprep.subr.mxu0 0.0
        %2587 = vmatpush1.msra.mxu0 %v1944
        %2588 = vmatprep.subr.mxu0 0.0
        %2589 = vmatpush1.msra.mxu0 %v1945
        %2590 = vmatprep.subr.mxu0 0.0
        %2591 = vmatpush1.msra.mxu0 %v1946
        %2592 = vmatprep.subr.mxu0 0.0
        %2593 = vmatpush1.msra.mxu0 %v1947
        %2594 = vmatprep.subr.mxu0 0.0
        %2595 = vmatpush1.msra.mxu0 %v1948
        %2596 = vmatprep.subr.mxu0 0.0
        %2597 = vmatpush1.msra.mxu0 %v1949
        %2598 = vmatprep.subr.mxu0 0.0
        %2599 = vmatpush1.msra.mxu0 %v1950
        %2600 = vmatprep.subr.mxu0 0.0
        %2601 = vmatpush1.msra.mxu0 %v1951
        %2602 = vmatprep.mubr.f32.mxu0 %v2294
        %2603 = vmatmul.mubr.f32.gmra.mrb[0].mxu0 %v2286
        %v2604 = vpop.f32.mrb[0].mxu0
        %v2605 = vadd.f32 %v2535, %v2604
        %v2606 = vpop.f32.mrb[0].mxu0
        %2607 = vdwg.mxu0
        %2608 = vmatprep.subr.mxu0 0.0
        %2609 = vmatpush1.msra.mxu0 %v1952
        %2610 = vmatprep.subr.mxu0 0.0
        %2611 = vmatpush1.msra.mxu0 %v1953
        %2612 = vmatprep.subr.mxu0 0.0
        %2613 = vmatpush1.msra.mxu0 %v1954
        %2614 = vmatprep.subr.mxu0 0.0
        %2615 = vmatpush1.msra.mxu0 %v1955
        %2616 = vmatprep.subr.mxu0 0.0
        %2617 = vmatpush1.msra.mxu0 %v1956
        %2618 = vmatprep.subr.mxu0 0.0
        %2619 = vmatpush1.msra.mxu0 %v1957
        %2620 = vmatprep.subr.mxu0 0.0
        %2621 = vmatpush1.msra.mxu0 %v1958
        %2622 = vmatprep.subr.mxu0 0.0
        %2623 = vmatpush1.msra.mxu0 %v1959
        %2624 = vmatprep.subr.mxu0 0.0
        %2625 = vmatpush1.msra.mxu0 %v1960
        %2626 = vmatprep.subr.mxu0 0.0
        %2627 = vmatpush1.msra.mxu0 %v1961
        %2628 = vmatprep.subr.mxu0 0.0
        %2629 = vmatpush1.msra.mxu0 %v1962
        %2630 = vmatprep.subr.mxu0 0.0
        %2631 = vmatpush1.msra.mxu0 %v1963
        %2632 = vmatprep.subr.mxu0 0.0
        %2633 = vmatpush1.msra.mxu0 %v1964
        %2634 = vmatprep.subr.mxu0 0.0
        %2635 = vmatpush1.msra.mxu0 %v1965
        %2636 = vmatprep.subr.mxu0 0.0
        %2637 = vmatpush1.msra.mxu0 %v1966
        %2638 = vmatprep.subr.mxu0 0.0
        %2639 = vmatpush1.msra.mxu0 %v1967
        %2640 = vmatprep.subr.mxu0 0.0
        %2641 = vmatpush1.msra.mxu0 %v1968
        %2642 = vmatprep.subr.mxu0 0.0
        %2643 = vmatpush1.msra.mxu0 %v1969
        %2644 = vmatprep.subr.mxu0 0.0
        %2645 = vmatpush1.msra.mxu0 %v1970
        %2646 = vmatprep.subr.mxu0 0.0
        %2647 = vmatpush1.msra.mxu0 %v1971
        %2648 = vmatprep.subr.mxu0 0.0
        %2649 = vmatpush1.msra.mxu0 %v1972
        %2650 = vmatprep.subr.mxu0 0.0
        %2651 = vmatpush1.msra.mxu0 %v1973
        %2652 = vmatprep.subr.mxu0 0.0
        %2653 = vmatpush1.msra.mxu0 %v1974
        %2654 = vmatprep.subr.mxu0 0.0
        %2655 = vmatpush1.msra.mxu0 %v1975
        %2656 = vmatprep.subr.mxu0 0.0
        %2657 = vmatpush1.msra.mxu0 %v1976
        %2658 = vmatprep.subr.mxu0 0.0
        %2659 = vmatpush1.msra.mxu0 %v1977
        %2660 = vmatprep.subr.mxu0 0.0
        %2661 = vmatpush1.msra.mxu0 %v1978
        %2662 = vmatprep.subr.mxu0 0.0
        %2663 = vmatpush1.msra.mxu0 %v1979
        %2664 = vmatprep.subr.mxu0 0.0
        %2665 = vmatpush1.msra.mxu0 %v1980
        %2666 = vmatprep.subr.mxu0 0.0
        %2667 = vmatpush1.msra.mxu0 %v1981
        %2668 = vmatprep.subr.mxu0 0.0
        %2669 = vmatpush1.msra.mxu0 %v1982
        %2670 = vmatprep.subr.mxu0 0.0
        %2671 = vmatpush1.msra.mxu0 %v1983
        %2672 = vmatprep.mubr.f32.mxu0 %v2295
        %2673 = vmatmul.mubr.f32.gmra.mrb[0].mxu0 %v2293
        %v2674 = vpop.f32.mrb[0].mxu0
        %v2675 = vadd.f32 %v2605, %v2674
        %v2676 = vpop.f32.mrb[0].mxu0
        %2677 = vdwg.mxu0
        %2678 = vmatprep.subr.mxu0 0.0
        %2679 = vmatpush1.msra.mxu0 %v1984
        %2680 = vmatprep.subr.mxu0 0.0
        %2681 = vmatpush1.msra.mxu0 %v1985
        %2682 = vmatprep.subr.mxu0 0.0
        %2683 = vmatpush1.msra.mxu0 %v1986
        %2684 = vmatprep.subr.mxu0 0.0
        %2685 = vmatpush1.msra.mxu0 %v1987
        %2686 = vmatprep.subr.mxu0 0.0
        %2687 = vmatpush1.msra.mxu0 %v1988
        %2688 = vmatprep.subr.mxu0 0.0
        %2689 = vmatpush1.msra.mxu0 %v1989
        %2690 = vmatprep.subr.mxu0 0.0
        %2691 = vmatpush1.msra.mxu0 %v1990
        %2692 = vmatprep.subr.mxu0 0.0
        %2693 = vmatpush1.msra.mxu0 %v1991
        %2694 = vmatprep.subr.mxu0 0.0
        %2695 = vmatpush1.msra.mxu0 %v1992
        %2696 = vmatprep.subr.mxu0 0.0
        %2697 = vmatpush1.msra.mxu0 %v1993
        %2698 = vmatprep.subr.mxu0 0.0
        %2699 = vmatpush1.msra.mxu0 %v1994
        %2700 = vmatprep.subr.mxu0 0.0
        %2701 = vmatpush1.msra.mxu0 %v1995
        %2702 = vmatprep.subr.mxu0 0.0
        %2703 = vmatpush1.msra.mxu0 %v1996
        %2704 = vmatprep.subr.mxu0 0.0
        %2705 = vmatpush1.msra.mxu0 %v1997
        %2706 = vmatprep.subr.mxu0 0.0
        %2707 = vmatpush1.msra.mxu0 %v1998
        %2708 = vmatprep.subr.mxu0 0.0
        %2709 = vmatpush1.msra.mxu0 %v1999
        %2710 = vmatprep.subr.mxu0 0.0
        %2711 = vmatpush1.msra.mxu0 %v2000
        %2712 = vmatprep.subr.mxu0 0.0
        %2713 = vmatpush1.msra.mxu0 %v2001
        %2714 = vmatprep.subr.mxu0 0.0
        %2715 = vmatpush1.msra.mxu0 %v2002
        %2716 = vmatprep.subr.mxu0 0.0
        %2717 = vmatpush1.msra.mxu0 %v2003
        %2718 = vmatprep.subr.mxu0 0.0
        %2719 = vmatpush1.msra.mxu0 %v2004
        %2720 = vmatprep.subr.mxu0 0.0
        %2721 = vmatpush1.msra.mxu0 %v2005
        %2722 = vmatprep.subr.mxu0 0.0
        %2723 = vmatpush1.msra.mxu0 %v2006
        %2724 = vmatprep.subr.mxu0 0.0
        %2725 = vmatpush1.msra.mxu0 %v2007
        %2726 = vmatprep.subr.mxu0 0.0
        %2727 = vmatpush1.msra.mxu0 %v2008
        %2728 = vmatprep.subr.mxu0 0.0
        %2729 = vmatpush1.msra.mxu0 %v2009
        %2730 = vmatprep.subr.mxu0 0.0
        %2731 = vmatpush1.msra.mxu0 %v2010
        %2732 = vmatprep.subr.mxu0 0.0
        %2733 = vmatpush1.msra.mxu0 %v2011
        %2734 = vmatprep.subr.mxu0 0.0
        %2735 = vmatpush1.msra.mxu0 %v2012
        %2736 = vmatprep.subr.mxu0 0.0
        %2737 = vmatpush1.msra.mxu0 %v2013
        %2738 = vmatprep.subr.mxu0 0.0
        %2739 = vmatpush1.msra.mxu0 %v2014
        %2740 = vmatprep.subr.mxu0 0.0
        %2741 = vmatpush1.msra.mxu0 %v2015
        %2742 = vmatprep.mubr.f32.mxu0 %v2311
        %2743 = vmatmul.mubr.f32.gmra.mrb[0].mxu0 %v2303
        %v2744 = vpop.f32.mrb[0].mxu0
        %v2745 = vadd.f32 %v2675, %v2744
        %v2746 = vpop.f32.mrb[0].mxu0
        %2747 = vdwg.mxu0
        %2748 = vmatprep.subr.mxu0 0.0
        %2749 = vmatpush1.msra.mxu0 %v2016
        %2750 = vmatprep.subr.mxu0 0.0
        %2751 = vmatpush1.msra.mxu0 %v2017
        %2752 = vmatprep.subr.mxu0 0.0
        %2753 = vmatpush1.msra.mxu0 %v2018
        %2754 = vmatprep.subr.mxu0 0.0
        %2755 = vmatpush1.msra.mxu0 %v2019
        %2756 = vmatprep.subr.mxu0 0.0
        %2757 = vmatpush1.msra.mxu0 %v2020
        %2758 = vmatprep.subr.mxu0 0.0
        %2759 = vmatpush1.msra.mxu0 %v2021
        %2760 = vmatprep.subr.mxu0 0.0
        %2761 = vmatpush1.msra.mxu0 %v2022
        %2762 = vmatprep.subr.mxu0 0.0
        %2763 = vmatpush1.msra.mxu0 %v2023
        %2764 = vmatprep.subr.mxu0 0.0
        %2765 = vmatpush1.msra.mxu0 %v2024
        %2766 = vmatprep.subr.mxu0 0.0
        %2767 = vmatpush1.msra.mxu0 %v2025
        %2768 = vmatprep.subr.mxu0 0.0
        %2769 = vmatpush1.msra.mxu0 %v2026
        %2770 = vmatprep.subr.mxu0 0.0
        %2771 = vmatpush1.msra.mxu0 %v2027
        %2772 = vmatprep.subr.mxu0 0.0
        %2773 = vmatpush1.msra.mxu0 %v2028
        %2774 = vmatprep.subr.mxu0 0.0
        %2775 = vmatpush1.msra.mxu0 %v2029
        %2776 = vmatprep.subr.mxu0 0.0
        %2777 = vmatpush1.msra.mxu0 %v2030
        %2778 = vmatprep.subr.mxu0 0.0
        %2779 = vmatpush1.msra.mxu0 %v2031
        %2780 = vmatprep.subr.mxu0 0.0
        %2781 = vmatpush1.msra.mxu0 %v2032
        %2782 = vmatprep.subr.mxu0 0.0
        %2783 = vmatpush1.msra.mxu0 %v2033
        %2784 = vmatprep.subr.mxu0 0.0
        %2785 = vmatpush1.msra.mxu0 %v2034
        %2786 = vmatprep.subr.mxu0 0.0
        %2787 = vmatpush1.msra.mxu0 %v2035
        %2788 = vmatprep.subr.mxu0 0.0
        %2789 = vmatpush1.msra.mxu0 %v2036
        %2790 = vmatprep.subr.mxu0 0.0
        %2791 = vmatpush1.msra.mxu0 %v2037
        %2792 = vmatprep.subr.mxu0 0.0
        %2793 = vmatpush1.msra.mxu0 %v2038
        %2794 = vmatprep.subr.mxu0 0.0
        %2795 = vmatpush1.msra.mxu0 %v2039
        %2796 = vmatprep.subr.mxu0 0.0
        %2797 = vmatpush1.msra.mxu0 %v2040
        %2798 = vmatprep.subr.mxu0 0.0
        %2799 = vmatpush1.msra.mxu0 %v2041
        %2800 = vmatprep.subr.mxu0 0.0
        %2801 = vmatpush1.msra.mxu0 %v2042
        %2802 = vmatprep.subr.mxu0 0.0
        %2803 = vmatpush1.msra.mxu0 %v2043
        %2804 = vmatprep.subr.mxu0 0.0
        %2805 = vmatpush1.msra.mxu0 %v2044
        %2806 = vmatprep.subr.mxu0 0.0
        %2807 = vmatpush1.msra.mxu0 %v2045
        %2808 = vmatprep.subr.mxu0 0.0
        %2809 = vmatpush1.msra.mxu0 %v2046
        %2810 = vmatprep.subr.mxu0 0.0
        %2811 = vmatpush1.msra.mxu0 %v2047
        %2812 = vmatprep.mubr.f32.mxu0 %v2312
        %2813 = vmatmul.mubr.f32.gmra.mrb[0].mxu0 %v2310
        %v2814 = vpop.f32.mrb[0].mxu0
        %v2815 = vadd.f32 %v2745, %v2814
        %v2816 = vpop.f32.mrb[0].mxu0
        %2817 = vdwg.mxu0
        %2818 = vmatprep.subr.mxu0 0.0
        %2819 = vmatpush1.msra.mxu0 %v2048
        %2820 = vmatprep.subr.mxu0 0.0
        %2821 = vmatpush1.msra.mxu0 %v2049
        %2822 = vmatprep.subr.mxu0 0.0
        %2823 = vmatpush1.msra.mxu0 %v2050
        %2824 = vmatprep.subr.mxu0 0.0
        %2825 = vmatpush1.msra.mxu0 %v2051
        %2826 = vmatprep.subr.mxu0 0.0
        %2827 = vmatpush1.msra.mxu0 %v2052
        %2828 = vmatprep.subr.mxu0 0.0
        %2829 = vmatpush1.msra.mxu0 %v2053
        %2830 = vmatprep.subr.mxu0 0.0
        %2831 = vmatpush1.msra.mxu0 %v2054
        %2832 = vmatprep.subr.mxu0 0.0
        %2833 = vmatpush1.msra.mxu0 %v2055
        %2834 = vmatprep.subr.mxu0 0.0
        %2835 = vmatpush1.msra.mxu0 %v2056
        %2836 = vmatprep.subr.mxu0 0.0
        %2837 = vmatpush1.msra.mxu0 %v2057
        %2838 = vmatprep.subr.mxu0 0.0
        %2839 = vmatpush1.msra.mxu0 %v2058
        %2840 = vmatprep.subr.mxu0 0.0
        %2841 = vmatpush1.msra.mxu0 %v2059
        %2842 = vmatprep.subr.mxu0 0.0
        %2843 = vmatpush1.msra.mxu0 %v2060
        %2844 = vmatprep.subr.mxu0 0.0
        %2845 = vmatpush1.msra.mxu0 %v2061
        %2846 = vmatprep.subr.mxu0 0.0
        %2847 = vmatpush1.msra.mxu0 %v2062
        %2848 = vmatprep.subr.mxu0 0.0
        %2849 = vmatpush1.msra.mxu0 %v2063
        %2850 = vmatprep.subr.mxu0 0.0
        %2851 = vmatpush1.msra.mxu0 %v2064
        %2852 = vmatprep.subr.mxu0 0.0
        %2853 = vmatpush1.msra.mxu0 %v2065
        %2854 = vmatprep.subr.mxu0 0.0
        %2855 = vmatpush1.msra.mxu0 %v2066
        %2856 = vmatprep.subr.mxu0 0.0
        %2857 = vmatpush1.msra.mxu0 %v2067
        %2858 = vmatprep.subr.mxu0 0.0
        %2859 = vmatpush1.msra.mxu0 %v2068
        %2860 = vmatprep.subr.mxu0 0.0
        %2861 = vmatpush1.msra.mxu0 %v2069
        %2862 = vmatprep.subr.mxu0 0.0
        %2863 = vmatpush1.msra.mxu0 %v2070
        %2864 = vmatprep.subr.mxu0 0.0
        %2865 = vmatpush1.msra.mxu0 %v2071
        %2866 = vmatprep.subr.mxu0 0.0
        %2867 = vmatpush1.msra.mxu0 %v2072
        %2868 = vmatprep.subr.mxu0 0.0
        %2869 = vmatpush1.msra.mxu0 %v2073
        %2870 = vmatprep.subr.mxu0 0.0
        %2871 = vmatpush1.msra.mxu0 %v2074
        %2872 = vmatprep.subr.mxu0 0.0
        %2873 = vmatpush1.msra.mxu0 %v2075
        %2874 = vmatprep.subr.mxu0 0.0
        %2875 = vmatpush1.msra.mxu0 %v2076
        %2876 = vmatprep.subr.mxu0 0.0
        %2877 = vmatpush1.msra.mxu0 %v2077
        %2878 = vmatprep.subr.mxu0 0.0
        %2879 = vmatpush1.msra.mxu0 %v2078
        %2880 = vmatprep.subr.mxu0 0.0
        %2881 = vmatpush1.msra.mxu0 %v2079
        %2882 = vmatprep.mubr.f32.mxu0 %v2328
        %2883 = vmatmul.mubr.f32.gmra.mrb[0].mxu0 %v2320
        %v2884 = vpop.f32.mrb[0].mxu0
        %v2885 = vadd.f32 %v2815, %v2884
        %v2886 = vpop.f32.mrb[0].mxu0
        %2887 = vdwg.mxu0
        %2888 = vmatprep.subr.mxu0 0.0
        %2889 = vmatpush1.msra.mxu0 %v2080
        %2890 = vmatprep.subr.mxu0 0.0
        %2891 = vmatpush1.msra.mxu0 %v2081
        %2892 = vmatprep.subr.mxu0 0.0
        %2893 = vmatpush1.msra.mxu0 %v2082
        %2894 = vmatprep.subr.mxu0 0.0
        %2895 = vmatpush1.msra.mxu0 %v2083
        %2896 = vmatprep.subr.mxu0 0.0
        %2897 = vmatpush1.msra.mxu0 %v2084
        %2898 = vmatprep.subr.mxu0 0.0
        %2899 = vmatpush1.msra.mxu0 %v2085
        %2900 = vmatprep.subr.mxu0 0.0
        %2901 = vmatpush1.msra.mxu0 %v2086
        %2902 = vmatprep.subr.mxu0 0.0
        %2903 = vmatpush1.msra.mxu0 %v2087
        %2904 = vmatprep.subr.mxu0 0.0
        %2905 = vmatpush1.msra.mxu0 %v2088
        %2906 = vmatprep.subr.mxu0 0.0
        %2907 = vmatpush1.msra.mxu0 %v2089
        %2908 = vmatprep.subr.mxu0 0.0
        %2909 = vmatpush1.msra.mxu0 %v2090
        %2910 = vmatprep.subr.mxu0 0.0
        %2911 = vmatpush1.msra.mxu0 %v2091
        %2912 = vmatprep.subr.mxu0 0.0
        %2913 = vmatpush1.msra.mxu0 %v2092
        %2914 = vmatprep.subr.mxu0 0.0
        %2915 = vmatpush1.msra.mxu0 %v2093
        %2916 = vmatprep.subr.mxu0 0.0
        %2917 = vmatpush1.msra.mxu0 %v2094
        %2918 = vmatprep.subr.mxu0 0.0
        %2919 = vmatpush1.msra.mxu0 %v2095
        %2920 = vmatprep.subr.mxu0 0.0
        %2921 = vmatpush1.msra.mxu0 %v2096
        %2922 = vmatprep.subr.mxu0 0.0
        %2923 = vmatpush1.msra.mxu0 %v2097
        %2924 = vmatprep.subr.mxu0 0.0
        %2925 = vmatpush1.msra.mxu0 %v2098
        %2926 = vmatprep.subr.mxu0 0.0
        %2927 = vmatpush1.msra.mxu0 %v2099
        %2928 = vmatprep.subr.mxu0 0.0
        %2929 = vmatpush1.msra.mxu0 %v2100
        %2930 = vmatprep.subr.mxu0 0.0
        %2931 = vmatpush1.msra.mxu0 %v2101
        %2932 = vmatprep.subr.mxu0 0.0
        %2933 = vmatpush1.msra.mxu0 %v2102
        %2934 = vmatprep.subr.mxu0 0.0
        %2935 = vmatpush1.msra.mxu0 %v2103
        %2936 = vmatprep.subr.mxu0 0.0
        %2937 = vmatpush1.msra.mxu0 %v2104
        %2938 = vmatprep.subr.mxu0 0.0
        %2939 = vmatpush1.msra.mxu0 %v2105
        %2940 = vmatprep.subr.mxu0 0.0
        %2941 = vmatpush1.msra.mxu0 %v2106
        %2942 = vmatprep.subr.mxu0 0.0
        %2943 = vmatpush1.msra.mxu0 %v2107
        %2944 = vmatprep.subr.mxu0 0.0
        %2945 = vmatpush1.msra.mxu0 %v2108
        %2946 = vmatprep.subr.mxu0 0.0
        %2947 = vmatpush1.msra.mxu0 %v2109
        %2948 = vmatprep.subr.mxu0 0.0
        %2949 = vmatpush1.msra.mxu0 %v2110
        %2950 = vmatprep.subr.mxu0 0.0
        %2951 = vmatpush1.msra.mxu0 %v2111
        %2952 = vmatprep.mubr.f32.mxu0 %v2329
        %2953 = vmatmul.mubr.f32.gmra.mrb[0].mxu0 %v2327
        %v2954 = vpop.f32.mrb[0].mxu0
        %v2955 = vadd.f32 %v2885, %v2954
        %v2956 = vpop.f32.mrb[0].mxu0
        %2957 = vdwg.mxu0
        %2958 = vmatprep.subr.mxu0 0.0
        %2959 = vmatpush1.msra.mxu0 %v2112
        %2960 = vmatprep.subr.mxu0 0.0
        %2961 = vmatpush1.msra.mxu0 %v2113
        %2962 = vmatprep.subr.mxu0 0.0
        %2963 = vmatpush1.msra.mxu0 %v2114
        %2964 = vmatprep.subr.mxu0 0.0
        %2965 = vmatpush1.msra.mxu0 %v2115
        %2966 = vmatprep.subr.mxu0 0.0
        %2967 = vmatpush1.msra.mxu0 %v2116
        %2968 = vmatprep.subr.mxu0 0.0
        %2969 = vmatpush1.msra.mxu0 %v2117
        %2970 = vmatprep.subr.mxu0 0.0
        %2971 = vmatpush1.msra.mxu0 %v2118
        %2972 = vmatprep.subr.mxu0 0.0
        %2973 = vmatpush1.msra.mxu0 %v2119
        %2974 = vmatprep.subr.mxu0 0.0
        %2975 = vmatpush1.msra.mxu0 %v2120
        %2976 = vmatprep.subr.mxu0 0.0
        %2977 = vmatpush1.msra.mxu0 %v2121
        %2978 = vmatprep.subr.mxu0 0.0
        %2979 = vmatpush1.msra.mxu0 %v2122
        %2980 = vmatprep.subr.mxu0 0.0
        %2981 = vmatpush1.msra.mxu0 %v2123
        %2982 = vmatprep.subr.mxu0 0.0
        %2983 = vmatpush1.msra.mxu0 %v2124
        %2984 = vmatprep.subr.mxu0 0.0
        %2985 = vmatpush1.msra.mxu0 %v2125
        %2986 = vmatprep.subr.mxu0 0.0
        %2987 = vmatpush1.msra.mxu0 %v2126
        %2988 = vmatprep.subr.mxu0 0.0
        %2989 = vmatpush1.msra.mxu0 %v2127
        %2990 = vmatprep.subr.mxu0 0.0
        %2991 = vmatpush1.msra.mxu0 %v2128
        %2992 = vmatprep.subr.mxu0 0.0
        %2993 = vmatpush1.msra.mxu0 %v2129
        %2994 = vmatprep.subr.mxu0 0.0
        %2995 = vmatpush1.msra.mxu0 %v2130
        %2996 = vmatprep.subr.mxu0 0.0
        %2997 = vmatpush1.msra.mxu0 %v2131
        %2998 = vmatprep.subr.mxu0 0.0
        %2999 = vmatpush1.msra.mxu0 %v2132
        %3000 = vmatprep.subr.mxu0 0.0
        %3001 = vmatpush1.msra.mxu0 %v2133
        %3002 = vmatprep.subr.mxu0 0.0
        %3003 = vmatpush1.msra.mxu0 %v2134
        %3004 = vmatprep.subr.mxu0 0.0
        %3005 = vmatpush1.msra.mxu0 %v2135
        %3006 = vmatprep.subr.mxu0 0.0
        %3007 = vmatpush1.msra.mxu0 %v2136
        %3008 = vmatprep.subr.mxu0 0.0
        %3009 = vmatpush1.msra.mxu0 %v2137
        %3010 = vmatprep.subr.mxu0 0.0
        %3011 = vmatpush1.msra.mxu0 %v2138
        %3012 = vmatprep.subr.mxu0 0.0
        %3013 = vmatpush1.msra.mxu0 %v2139
        %3014 = vmatprep.subr.mxu0 0.0
        %3015 = vmatpush1.msra.mxu0 %v2140
        %3016 = vmatprep.subr.mxu0 0.0
        %3017 = vmatpush1.msra.mxu0 %v2141
        %3018 = vmatprep.subr.mxu0 0.0
        %3019 = vmatpush1.msra.mxu0 %v2142
        %3020 = vmatprep.subr.mxu0 0.0
        %3021 = vmatpush1.msra.mxu0 %v2143
        %3022 = vmatprep.mubr.f32.mxu0 %v2345
        %3023 = vmatmul.mubr.f32.gmra.mrb[0].mxu0 %v2337
        %v3024 = vpop.f32.mrb[0].mxu0
        %v3025 = vadd.f32 %v2955, %v3024
        %v3026 = vpop.f32.mrb[0].mxu0
        %3027 = vdwg.mxu0
        %3028 = vmatprep.subr.mxu0 0.0
        %3029 = vmatpush1.msra.mxu0 %v2144
        %3030 = vmatprep.subr.mxu0 0.0
        %3031 = vmatpush1.msra.mxu0 %v2145
        %3032 = vmatprep.subr.mxu0 0.0
        %3033 = vmatpush1.msra.mxu0 %v2146
        %3034 = vmatprep.subr.mxu0 0.0
        %3035 = vmatpush1.msra.mxu0 %v2147
        %3036 = vmatprep.subr.mxu0 0.0
        %3037 = vmatpush1.msra.mxu0 %v2148
        %3038 = vmatprep.subr.mxu0 0.0
        %3039 = vmatpush1.msra.mxu0 %v2149
        %3040 = vmatprep.subr.mxu0 0.0
        %3041 = vmatpush1.msra.mxu0 %v2150
        %3042 = vmatprep.subr.mxu0 0.0
        %3043 = vmatpush1.msra.mxu0 %v2151
        %3044 = vmatprep.subr.mxu0 0.0
        %3045 = vmatpush1.msra.mxu0 %v2152
        %3046 = vmatprep.subr.mxu0 0.0
        %3047 = vmatpush1.msra.mxu0 %v2153
        %3048 = vmatprep.subr.mxu0 0.0
        %3049 = vmatpush1.msra.mxu0 %v2154
        %3050 = vmatprep.subr.mxu0 0.0
        %3051 = vmatpush1.msra.mxu0 %v2155
        %3052 = vmatprep.subr.mxu0 0.0
        %3053 = vmatpush1.msra.mxu0 %v2156
        %3054 = vmatprep.subr.mxu0 0.0
        %3055 = vmatpush1.msra.mxu0 %v2157
        %3056 = vmatprep.subr.mxu0 0.0
        %3057 = vmatpush1.msra.mxu0 %v2158
        %3058 = vmatprep.subr.mxu0 0.0
        %3059 = vmatpush1.msra.mxu0 %v2159
        %3060 = vmatprep.subr.mxu0 0.0
        %3061 = vmatpush1.msra.mxu0 %v2160
        %3062 = vmatprep.subr.mxu0 0.0
        %3063 = vmatpush1.msra.mxu0 %v2161
        %3064 = vmatprep.subr.mxu0 0.0
        %3065 = vmatpush1.msra.mxu0 %v2162
        %3066 = vmatprep.subr.mxu0 0.0
        %3067 = vmatpush1.msra.mxu0 %v2163
        %3068 = vmatprep.subr.mxu0 0.0
        %3069 = vmatpush1.msra.mxu0 %v2164
        %3070 = vmatprep.subr.mxu0 0.0
        %3071 = vmatpush1.msra.mxu0 %v2165
        %3072 = vmatprep.subr.mxu0 0.0
        %3073 = vmatpush1.msra.mxu0 %v2166
        %3074 = vmatprep.subr.mxu0 0.0
        %3075 = vmatpush1.msra.mxu0 %v2167
        %3076 = vmatprep.subr.mxu0 0.0
        %3077 = vmatpush1.msra.mxu0 %v2168
        %3078 = vmatprep.subr.mxu0 0.0
        %3079 = vmatpush1.msra.mxu0 %v2169
        %3080 = vmatprep.subr.mxu0 0.0
        %3081 = vmatpush1.msra.mxu0 %v2170
        %3082 = vmatprep.subr.mxu0 0.0
        %3083 = vmatpush1.msra.mxu0 %v2171
        %3084 = vmatprep.subr.mxu0 0.0
        %3085 = vmatpush1.msra.mxu0 %v2172
        %3086 = vmatprep.subr.mxu0 0.0
        %3087 = vmatpush1.msra.mxu0 %v2173
        %3088 = vmatprep.subr.mxu0 0.0
        %3089 = vmatpush1.msra.mxu0 %v2174
        %3090 = vmatprep.subr.mxu0 0.0
        %3091 = vmatpush1.msra.mxu0 %v2175
        %3092 = vmatprep.mubr.f32.mxu0 %v2346
        %3093 = vmatmul.mubr.f32.gmra.mrb[0].mxu0 %v2344
        %v3094 = vpop.f32.mrb[0].mxu0
        %v3095 = vadd.f32 %v3025, %v3094
        %v3096 = vpop.f32.mrb[0].mxu0
        %3097 = vdwg.mxu0
        %3098 = vmatprep.subr.mxu0 0.0
        %3099 = vmatpush1.msra.mxu0 %v2176
        %3100 = vmatprep.subr.mxu0 0.0
        %3101 = vmatpush1.msra.mxu0 %v2177
        %3102 = vmatprep.subr.mxu0 0.0
        %3103 = vmatpush1.msra.mxu0 %v2178
        %3104 = vmatprep.subr.mxu0 0.0
        %3105 = vmatpush1.msra.mxu0 %v2179
        %3106 = vmatprep.subr.mxu0 0.0
        %3107 = vmatpush1.msra.mxu0 %v2180
        %3108 = vmatprep.subr.mxu0 0.0
        %3109 = vmatpush1.msra.mxu0 %v2181
        %3110 = vmatprep.subr.mxu0 0.0
        %3111 = vmatpush1.msra.mxu0 %v2182
        %3112 = vmatprep.subr.mxu0 0.0
        %3113 = vmatpush1.msra.mxu0 %v2183
        %3114 = vmatprep.subr.mxu0 0.0
        %3115 = vmatpush1.msra.mxu0 %v2184
        %3116 = vmatprep.subr.mxu0 0.0
        %3117 = vmatpush1.msra.mxu0 %v2185
        %3118 = vmatprep.subr.mxu0 0.0
        %3119 = vmatpush1.msra.mxu0 %v2186
        %3120 = vmatprep.subr.mxu0 0.0
        %3121 = vmatpush1.msra.mxu0 %v2187
        %3122 = vmatprep.subr.mxu0 0.0
        %3123 = vmatpush1.msra.mxu0 %v2188
        %3124 = vmatprep.subr.mxu0 0.0
        %3125 = vmatpush1.msra.mxu0 %v2189
        %3126 = vmatprep.subr.mxu0 0.0
        %3127 = vmatpush1.msra.mxu0 %v2190
        %3128 = vmatprep.subr.mxu0 0.0
        %3129 = vmatpush1.msra.mxu0 %v2191
        %3130 = vmatprep.subr.mxu0 0.0
        %3131 = vmatpush1.msra.mxu0 %v2192
        %3132 = vmatprep.subr.mxu0 0.0
        %3133 = vmatpush1.msra.mxu0 %v2193
        %3134 = vmatprep.subr.mxu0 0.0
        %3135 = vmatpush1.msra.mxu0 %v2194
        %3136 = vmatprep.subr.mxu0 0.0
        %3137 = vmatpush1.msra.mxu0 %v2195
        %3138 = vmatprep.subr.mxu0 0.0
        %3139 = vmatpush1.msra.mxu0 %v2196
        %3140 = vmatprep.subr.mxu0 0.0
        %3141 = vmatpush1.msra.mxu0 %v2197
        %3142 = vmatprep.subr.mxu0 0.0
        %3143 = vmatpush1.msra.mxu0 %v2198
        %3144 = vmatprep.subr.mxu0 0.0
        %3145 = vmatpush1.msra.mxu0 %v2199
        %3146 = vmatprep.subr.mxu0 0.0
        %3147 = vmatpush1.msra.mxu0 %v2200
        %3148 = vmatprep.subr.mxu0 0.0
        %3149 = vmatpush1.msra.mxu0 %v2201
        %3150 = vmatprep.subr.mxu0 0.0
        %3151 = vmatpush1.msra.mxu0 %v2202
        %3152 = vmatprep.subr.mxu0 0.0
        %3153 = vmatpush1.msra.mxu0 %v2203
        %3154 = vmatprep.subr.mxu0 0.0
        %3155 = vmatpush1.msra.mxu0 %v2204
        %3156 = vmatprep.subr.mxu0 0.0
        %3157 = vmatpush1.msra.mxu0 %v2205
        %3158 = vmatprep.subr.mxu0 0.0
        %3159 = vmatpush1.msra.mxu0 %v2206
        %3160 = vmatprep.subr.mxu0 0.0
        %3161 = vmatpush1.msra.mxu0 %v2207
        %3162 = vmatprep.mubr.f32.mxu0 %v2362
        %3163 = vmatmul.mubr.f32.gmra.mrb[0].mxu0 %v2354
        %v3164 = vpop.f32.mrb[0].mxu0
        %v3165 = vadd.f32 %v3095, %v3164
        %v3166 = vpop.f32.mrb[0].mxu0
        %3167 = vdwg.mxu0
        %3168 = vmatprep.subr.mxu0 0.0
        %3169 = vmatpush1.msra.mxu0 %v2208
        %3170 = vmatprep.subr.mxu0 0.0
        %3171 = vmatpush1.msra.mxu0 %v2209
        %3172 = vmatprep.subr.mxu0 0.0
        %3173 = vmatpush1.msra.mxu0 %v2210
        %3174 = vmatprep.subr.mxu0 0.0
        %3175 = vmatpush1.msra.mxu0 %v2211
        %3176 = vmatprep.subr.mxu0 0.0
        %3177 = vmatpush1.msra.mxu0 %v2212
        %3178 = vmatprep.subr.mxu0 0.0
        %3179 = vmatpush1.msra.mxu0 %v2213
        %3180 = vmatprep.subr.mxu0 0.0
        %3181 = vmatpush1.msra.mxu0 %v2214
        %3182 = vmatprep.subr.mxu0 0.0
        %3183 = vmatpush1.msra.mxu0 %v2215
        %3184 = vmatprep.subr.mxu0 0.0
        %3185 = vmatpush1.msra.mxu0 %v2216
        %3186 = vmatprep.subr.mxu0 0.0
        %3187 = vmatpush1.msra.mxu0 %v2217
        %3188 = vmatprep.subr.mxu0 0.0
        %3189 = vmatpush1.msra.mxu0 %v2218
        %3190 = vmatprep.subr.mxu0 0.0
        %3191 = vmatpush1.msra.mxu0 %v2219
        %3192 = vmatprep.subr.mxu0 0.0
        %3193 = vmatpush1.msra.mxu0 %v2220
        %3194 = vmatprep.subr.mxu0 0.0
        %3195 = vmatpush1.msra.mxu0 %v2221
        %3196 = vmatprep.subr.mxu0 0.0
        %3197 = vmatpush1.msra.mxu0 %v2222
        %3198 = vmatprep.subr.mxu0 0.0
        %3199 = vmatpush1.msra.mxu0 %v2223
        %3200 = vmatprep.subr.mxu0 0.0
        %3201 = vmatpush1.msra.mxu0 %v2224
        %3202 = vmatprep.subr.mxu0 0.0
        %3203 = vmatpush1.msra.mxu0 %v2225
        %3204 = vmatprep.subr.mxu0 0.0
        %3205 = vmatpush1.msra.mxu0 %v2226
        %3206 = vmatprep.subr.mxu0 0.0
        %3207 = vmatpush1.msra.mxu0 %v2227
        %3208 = vmatprep.subr.mxu0 0.0
        %3209 = vmatpush1.msra.mxu0 %v2228
        %3210 = vmatprep.subr.mxu0 0.0
        %3211 = vmatpush1.msra.mxu0 %v2229
        %3212 = vmatprep.subr.mxu0 0.0
        %3213 = vmatpush1.msra.mxu0 %v2230
        %3214 = vmatprep.subr.mxu0 0.0
        %3215 = vmatpush1.msra.mxu0 %v2231
        %3216 = vmatprep.subr.mxu0 0.0
        %3217 = vmatpush1.msra.mxu0 %v2232
        %3218 = vmatprep.subr.mxu0 0.0
        %3219 = vmatpush1.msra.mxu0 %v2233
        %3220 = vmatprep.subr.mxu0 0.0
        %3221 = vmatpush1.msra.mxu0 %v2234
        %3222 = vmatprep.subr.mxu0 0.0
        %3223 = vmatpush1.msra.mxu0 %v2235
        %3224 = vmatprep.subr.mxu0 0.0
        %3225 = vmatpush1.msra.mxu0 %v2236
        %3226 = vmatprep.subr.mxu0 0.0
        %3227 = vmatpush1.msra.mxu0 %v2237
        %3228 = vmatprep.subr.mxu0 0.0
        %3229 = vmatpush1.msra.mxu0 %v2238
        %3230 = vmatprep.subr.mxu0 0.0
        %3231 = vmatpush1.msra.mxu0 %v2239
        %3232 = vmatprep.mubr.f32.mxu0 %v2363
        %3233 = vmatmul.mubr.f32.gmra.mrb[0].mxu0 %v2361
        %v3234 = vpop.f32.mrb[0].mxu0
        %v3235 = vadd.f32 %v3165, %v3234
        %v3236 = vpop.f32.mrb[0].mxu0
        %3237 = vdwg.mxu0
        %3238 = vmatprep.subr.mxu0 0.0
        %3239 = vmatpush1.msra.mxu0 %v2240
        %3240 = vmatprep.subr.mxu0 0.0
        %3241 = vmatpush1.msra.mxu0 %v2241
        %3242 = vmatprep.subr.mxu0 0.0
        %3243 = vmatpush1.msra.mxu0 %v2242
        %3244 = vmatprep.subr.mxu0 0.0
        %3245 = vmatpush1.msra.mxu0 %v2243
        %3246 = vmatprep.subr.mxu0 0.0
        %3247 = vmatpush1.msra.mxu0 %v2244
        %3248 = vmatprep.subr.mxu0 0.0
        %3249 = vmatpush1.msra.mxu0 %v2245
        %3250 = vmatprep.subr.mxu0 0.0
        %3251 = vmatpush1.msra.mxu0 %v2246
        %3252 = vmatprep.subr.mxu0 0.0
        %3253 = vmatpush1.msra.mxu0 %v2247
        %3254 = vmatprep.subr.mxu0 0.0
        %3255 = vmatpush1.msra.mxu0 0.0
        %3256 = vmatprep.subr.mxu0 0.0
        %3257 = vmatpush1.msra.mxu0 0.0
        %3258 = vmatprep.subr.mxu0 0.0
        %3259 = vmatpush1.msra.mxu0 0.0
        %3260 = vmatprep.subr.mxu0 0.0
        %3261 = vmatpush1.msra.mxu0 0.0
        %3262 = vmatprep.subr.mxu0 0.0
        %3263 = vmatpush1.msra.mxu0 0.0
        %3264 = vmatprep.subr.mxu0 0.0
        %3265 = vmatpush1.msra.mxu0 0.0
        %3266 = vmatprep.subr.mxu0 0.0
        %3267 = vmatpush1.msra.mxu0 0.0
        %3268 = vmatprep.subr.mxu0 0.0
        %3269 = vmatpush1.msra.mxu0 0.0
        %3270 = vmatprep.subr.mxu0 0.0
        %3271 = vmatpush1.msra.mxu0 0.0
        %3272 = vmatprep.subr.mxu0 0.0
        %3273 = vmatpush1.msra.mxu0 0.0
        %3274 = vmatprep.subr.mxu0 0.0
        %3275 = vmatpush1.msra.mxu0 0.0
        %3276 = vmatprep.subr.mxu0 0.0
        %3277 = vmatpush1.msra.mxu0 0.0
        %3278 = vmatprep.subr.mxu0 0.0
        %3279 = vmatpush1.msra.mxu0 0.0
        %3280 = vmatprep.subr.mxu0 0.0
        %3281 = vmatpush1.msra.mxu0 0.0
        %3282 = vmatprep.subr.mxu0 0.0
        %3283 = vmatpush1.msra.mxu0 0.0
        %3284 = vmatprep.subr.mxu0 0.0
        %3285 = vmatpush1.msra.mxu0 0.0
        %3286 = vmatprep.subr.mxu0 0.0
        %3287 = vmatpush1.msra.mxu0 0.0
        %3288 = vmatprep.subr.mxu0 0.0
        %3289 = vmatpush1.msra.mxu0 0.0
        %3290 = vmatprep.subr.mxu0 0.0
        %3291 = vmatpush1.msra.mxu0 0.0
        %3292 = vmatprep.subr.mxu0 0.0
        %3293 = vmatpush1.msra.mxu0 0.0
        %3294 = vmatprep.subr.mxu0 0.0
        %3295 = vmatpush1.msra.mxu0 0.0
        %3296 = vmatprep.subr.mxu0 0.0
        %3297 = vmatpush1.msra.mxu0 0.0
        %3298 = vmatprep.subr.mxu0 0.0
        %3299 = vmatpush1.msra.mxu0 0.0
        %3300 = vmatprep.subr.mxu0 0.0
        %3301 = vmatpush1.msra.mxu0 0.0
        %3302 = vmatprep.mubr.f32.mxu0 0.0
        %3303 = vmatmul.mubr.f32.gmra.mrb[0].mxu0 %v2396
        %v3304 = vpop.f32.mrb[0].mxu0
        %v3305 = vadd.f32 %v3235, %v3304
        %v3306 = vpop.f32.mrb[0].mxu0
        %3307 = vdwg.mxu0
        %v3308 = vmax.f32 %v3305, 0.0
        %v3309 = vld [vmem:[#allocation2] sm:$0x3]
        %v3310 = vld [vmem:[%s1842] sm:$0xff]
        %v3311 = vld [vmem:[%s1842 + $0x8] sm:$0xff]
        %v3312 = vld [vmem:[%s1842 + $0x10] sm:$0xff]
        %v3313 = vld [vmem:[%s1842 + $0x18] sm:$0xff]
        %v3314 = vld [vmem:[%s1842 + $0x20] sm:$0xff]
        %v3315 = vld [vmem:[%s1842 + $0x28] sm:$0xff]
        %v3316 = vld [vmem:[%s1842 + $0x30] sm:$0xff]
        %v3317 = vld [vmem:[%s1842 + $0x38] sm:$0xff]
        %v3318 = vld [vmem:[%s1842 + $0x40] sm:$0xff]
        %v3319 = vld [vmem:[%s1842 + $0x48] sm:$0xff]
        %v3320 = vld [vmem:[%s1842 + $0x50] sm:$0xff]
        %v3321 = vld [vmem:[%s1842 + $0x58] sm:$0xff]
        %v3322 = vld [vmem:[%s1842 + $0x60] sm:$0xff]
        %v3323 = vld [vmem:[%s1842 + $0x68] sm:$0xff]
        %v3324 = vld [vmem:[%s1842 + $0x70] sm:$0xff]
        %v3325 = vld [vmem:[%s1842 + $0x78] sm:$0xff]
        %3326 = vmatprep.subr.mxu0 0.0
        %3327 = vmatpush1.msra.mxu0 %v3310
        %3328 = vmatprep.subr.mxu0 0.0
        %3329 = vmatpush1.msra.mxu0 %v3311
        %3330 = vmatprep.subr.mxu0 0.0
        %3331 = vmatpush1.msra.mxu0 %v3312
        %3332 = vmatprep.subr.mxu0 0.0
        %3333 = vmatpush1.msra.mxu0 %v3313
        %3334 = vmatprep.subr.mxu0 0.0
        %3335 = vmatpush1.msra.mxu0 %v3314
        %3336 = vmatprep.subr.mxu0 0.0
        %3337 = vmatpush1.msra.mxu0 %v3315
        %3338 = vmatprep.subr.mxu0 0.0
        %3339 = vmatpush1.msra.mxu0 %v3316
        %3340 = vmatprep.subr.mxu0 0.0
        %3341 = vmatpush1.msra.mxu0 %v3317
        %3342 = vmatprep.subr.mxu0 0.0
        %3343 = vmatpush1.msra.mxu0 %v3318
        %3344 = vmatprep.subr.mxu0 0.0
        %3345 = vmatpush1.msra.mxu0 %v3319
        %3346 = vmatprep.subr.mxu0 0.0
        %3347 = vmatpush1.msra.mxu0 %v3320
        %3348 = vmatprep.subr.mxu0 0.0
        %3349 = vmatpush1.msra.mxu0 %v3321
        %3350 = vmatprep.subr.mxu0 0.0
        %3351 = vmatpush1.msra.mxu0 %v3322
        %3352 = vmatprep.subr.mxu0 0.0
        %3353 = vmatpush1.msra.mxu0 %v3323
        %3354 = vmatprep.subr.mxu0 0.0
        %3355 = vmatpush1.msra.mxu0 %v3324
        %3356 = vmatprep.subr.mxu0 0.0
        %3357 = vmatpush1.msra.mxu0 %v3325
        %3358 = vmatprep.subr.mxu0 0.0
        %3359 = vmatpush1.msra.mxu0 0.0
        %3360 = vmatprep.subr.mxu0 0.0
        %3361 = vmatpush1.msra.mxu0 0.0
        %3362 = vmatprep.subr.mxu0 0.0
        %3363 = vmatpush1.msra.mxu0 0.0
        %3364 = vmatprep.subr.mxu0 0.0
        %3365 = vmatpush1.msra.mxu0 0.0
        %3366 = vmatprep.subr.mxu0 0.0
        %3367 = vmatpush1.msra.mxu0 0.0
        %3368 = vmatprep.subr.mxu0 0.0
        %3369 = vmatpush1.msra.mxu0 0.0
        %3370 = vmatprep.subr.mxu0 0.0
        %3371 = vmatpush1.msra.mxu0 0.0
        %3372 = vmatprep.subr.mxu0 0.0
        %3373 = vmatpush1.msra.mxu0 0.0
        %3374 = vmatprep.subr.mxu0 0.0
        %3375 = vmatpush1.msra.mxu0 0.0
        %3376 = vmatprep.subr.mxu0 0.0
        %3377 = vmatpush1.msra.mxu0 0.0
        %3378 = vmatprep.subr.mxu0 0.0
        %3379 = vmatpush1.msra.mxu0 0.0
        %3380 = vmatprep.subr.mxu0 0.0
        %3381 = vmatpush1.msra.mxu0 0.0
        %3382 = vmatprep.subr.mxu0 0.0
        %3383 = vmatpush1.msra.mxu0 0.0
        %3384 = vmatprep.subr.mxu0 0.0
        %3385 = vmatpush1.msra.mxu0 0.0
        %3386 = vmatprep.subr.mxu0 0.0
        %3387 = vmatpush1.msra.mxu0 0.0
        %3388 = vmatprep.subr.mxu0 0.0
        %3389 = vmatpush1.msra.mxu0 0.0
        %3390 = vmatprep.mubr.f32.mxu0 0.0
        %3391 = vmatmul.mubr.f32.gmra.mrb[0].mxu0 %v3308
        %v3392 = vpop.f32.mrb[0].mxu0
        %v3393 = vadd.f32 0.0, %v3392
        %v3394 = vpop.f32.mrb[0].mxu0
        %3395 = vdwg.mxu0
        %v3396 = vadd.f32 %v3309, %v3393
        %3397 = vst [vmem:[#allocation2] sm:$0x3] %v3396
        %p3398 = scmp.eq.s32.totalorder %s16, 3
        // Predicated region
        $region83: #{shared_network_a2c_forward.7} parent=73 // pred_check
          %p3399 = pneg %p3398
        $region84: #{shared_network_a2c_forward.7} parent=73 // pred_check_branch
          %3401 = sbr.rel (%p3399) target = $region86
        $region85: #{shared_network_a2c_forward.7} parent=73 // pred_region
          %v3402 = vld [vmem:[#allocation2] sm:$0x3]
          %v3403 = vld [vmem:[%s4] sm:$0x1]
          %v3405 = vlaneseq
          %v3406 = vshrl.u32 %v3405, 7
          %v3407 = vsub.s32 0, %v3406
          %v3408 = vrot.slane %v3403, %v3407
          %v3410 = vadd.f32 %v3402, %v3408
          %3411 = vst [vmem:[%s5] sm:$0x3] %v3410
        $region86: #{shared_network_a2c_forward.7} parent=73 // pred_fallthru
          _
        // Predicated region
        $region87: #{shared_network_a2c_forward.7} parent=73 // pred_check
          %p3412 = pneg %p149
        $region88: #{shared_network_a2c_forward.7} parent=73 // pred_check_branch
          %3414 = sbr.rel (%p3412) target = $region90
        $region89: #{shared_network_a2c_forward.7} parent=73 // pred_region
          _
        $region90: #{shared_network_a2c_forward.7} parent=73 // pred_fallthru
          _
        // Predicated region
        $region91: #{shared_network_a2c_forward.7} parent=73 // pred_check
          %p3415 = pneg %p149
        $region92: #{shared_network_a2c_forward.7} parent=73 // pred_check_branch
          %3417 = sbr.rel (%p3415) target = $region94
        $region93: #{shared_network_a2c_forward.7} parent=73 // pred_region
          _
        $region94: #{shared_network_a2c_forward.7} parent=73 // pred_fallthru
          _
      $region74: #{shared_network_a2c_forward.7} parent=5 // pred_fallthru
        _
      %p3418 = scmp.le.s32.totalorder 2, %s11
      // Predicated region
      $region95: #{shared_network_a2c_forward.7} parent=5 // pred_check
        %p3419 = pneg %p3418
      $region96: #{shared_network_a2c_forward.7} parent=5 // pred_check_branch
        %3421 = sbr.rel (%p3419) target = $region98
      $region97: #{shared_network_a2c_forward.7} parent=5 // pred_region
        %s3422 = ssub.s32 %s11, 2
      $region98: #{shared_network_a2c_forward.7} parent=5 // pred_fallthru
        _
    $region6: #{shared_network_a2c_forward.7} parent=1 // loop_footer
      %s15 = sadd.s32 1, %s11
    $region7: #{shared_network_a2c_forward.7} parent=1 // loop_footer_branch
      %10 = sbr.rel target = $region3
    $region8: #{shared_network_a2c_forward.7} parent=1 // loop_exit
      _

</llo_original>
